<compile_context>
chip_gen: v6e
topology: v6e:2x2x1
jax: 0.10.0
libtpu: 0.0.40
codegen_flags: <defaults>
</compile_context>

<pallas_src>
import numpy as np
import jax
import jax.numpy as jnp
from jax.experimental import pallas as pl
from jax.experimental.pallas import tpu as pltpu

EPS = 1e-5  # nn.BatchNorm2d default eps


def _round_up(x, m):
    return ((x + m - 1) // m) * m


# ------------------------- constant-matrix builders --------------------------

def adaptive_avg_pool_matrix(H, W, b):
    """(b*b, H*W) matrix implementing nn.AdaptiveAvgPool2d(b) on flat HW."""
    P = np.zeros((b * b, H * W), np.float32)
    for i in range(b):
        h0 = (i * H) // b
        h1 = -((-(i + 1) * H) // b)
        for j in range(b):
            w0 = (j * W) // b
            w1 = -((-(j + 1) * W) // b)
            inv = 1.0 / float((h1 - h0) * (w1 - w0))
            for h in range(h0, h1):
                for w in range(w0, w1):
                    P[i * b + j, h * W + w] = inv
    return P


def bilinear_matrix_1d(out_size, in_size):
    """(out,in) weights for F.interpolate(mode='bilinear', align_corners=False)."""
    U = np.zeros((out_size, in_size), np.float32)
    if in_size == 1:
        U[:, 0] = 1.0
        return U
    scale = in_size / out_size
    for o in range(out_size):
        src = max((o + 0.5) * scale - 0.5, 0.0)
        i0 = min(int(np.floor(src)), in_size - 1)
        i1 = min(i0 + 1, in_size - 1)
        lam = src - i0
        U[o, i0] += 1.0 - lam
        U[o, i1] += lam
    return U


def build_pyramid_constants(H, W, bin_sizes, Co):
    """Stacked pooling matrix P (BBp,HW), stacked upsample U (HW,BBp) and the
    (row-group, col-block) validity mask M (BBp, len(bins)*Co)."""
    HW = H * W
    BB = sum(b * b for b in bin_sizes)
    BBp = _round_up(BB, 16)           # pad pooled rows to bf16 sublane pack
    nS = len(bin_sizes)
    P = np.zeros((BBp, HW), np.float32)
    U = np.zeros((HW, BBp), np.float32)
    M = np.zeros((BBp, nS * Co), np.float32)
    off = 0
    for s, b in enumerate(bin_sizes):
        P[off:off + b * b, :] = adaptive_avg_pool_matrix(H, W, b)
        U[:, off:off + b * b] = np.kron(bilinear_matrix_1d(H, b),
                                        bilinear_matrix_1d(W, b))
        M[off:off + b * b, s * Co:(s + 1) * Co] = 1.0
        off += b * b
    return P, U, M


# ------------------------------ parameter init -------------------------------

def init_psp_params(key, in_channels, bin_sizes):
    out_channels = in_channels // len(bin_sizes)
    params = {"bin_sizes": list(bin_sizes),
              "in_channels": in_channels,
              "out_channels": out_channels,
              "stages": []}
    for _ in bin_sizes:
        key, k1, k2, k3, k4, k5 = jax.random.split(key, 6)
        params["stages"].append(dict(
            w=0.05 * jax.random.normal(k1, (in_channels, out_channels), jnp.float32),
            gamma=1.0 + 0.1 * jax.random.normal(k2, (out_channels,), jnp.float32),
            beta=0.1 * jax.random.normal(k3, (out_channels,), jnp.float32),
            mean=0.1 * jax.random.normal(k4, (out_channels,), jnp.float32),
            var=jnp.abs(jax.random.normal(k5, (out_channels,), jnp.float32)) + 0.5,
        ))
    c_tot = in_channels + out_channels * len(bin_sizes)
    key, k1, k2, k3, k4, k5 = jax.random.split(key, 6)
    # NOTE: weight stored as (kh, kw, Cin, Co); real PyTorch (Co, Cin, kh, kw)
    # weights must be transposed to this layout before use.
    params["bottleneck"] = dict(
        w=0.05 * jax.random.normal(k1, (3, 3, c_tot, out_channels), jnp.float32),
        gamma=1.0 + 0.1 * jax.random.normal(k2, (out_channels,), jnp.float32),
        beta=0.1 * jax.random.normal(k3, (out_channels,), jnp.float32),
        mean=0.1 * jax.random.normal(k4, (out_channels,), jnp.float32),
        var=jnp.abs(jax.random.normal(k5, (out_channels,), jnp.float32)) + 0.5,
    )
    return params


# ---------------------------------- kernel ------------------------------------

def _make_fused_psp_kernel(HW, W, Cin, Co, Ctot, PAD, HWP):
    """Fully fused PSP head for one image:
       pyramid [AdaptiveAvgPool(all bins) -> 1x1 conv -> BN -> ReLU -> bilinear
       upsample]  +  identity branch  ->  VMEM cat slab (row-padded)  ->
       3x3 conv (padding=1, bias=False) as ONE wide matmul + 9 shifted adds
       -> folded-BN shift -> ReLU -> bf16 store."""
    offsets = [(dy, dx) for dy in (-1, 0, 1) for dx in (-1, 0, 1)]

    def kernel(x_ref, p_ref, wc_ref, shift_s_ref, mask_ref, u_ref,
               wall_ref, shift_b_ref, edge_ref, o_ref, slab_ref, y_ref):
        x = x_ref[0]                                                 # (HW, Cin) bf16

        # ---- pyramid branch: stacked pooling matmul for all bins ----
        pooled = jnp.dot(p_ref[...], x, preferred_element_type=jnp.float32)  # (BBp, Cin)
        # fused per-stage 1x1 convs (BN scale folded into columns)
        y1 = jnp.dot(pooled.astype(jnp.bfloat16), wc_ref[...],
                     preferred_element_type=jnp.float32)              # (BBp, 4*Co)
        # BN shift + ReLU, then kill cross-stage (row-group x col-block) terms
        y1 = jnp.maximum(y1 + shift_s_ref[...], 0.0) * mask_ref[...]
        # stacked bilinear upsample: all 4 stages' channels at once
        up = jnp.dot(u_ref[...], y1.astype(jnp.bfloat16),
                     preferred_element_type=jnp.float32)              # (HW, 4*Co)

        # ---- concatenated, row-padded slab stays in VMEM (no HBM round-trip)
        slab_ref[:PAD, :] = jnp.zeros((PAD, Ctot), slab_ref.dtype)    # zero halos
        slab_ref[PAD + HW:, :] = jnp.zeros((PAD, Ctot), slab_ref.dtype)
        slab_ref[PAD:PAD + HW, :Cin] = x                              # identity branch
        slab_ref[PAD:PAD + HW, Cin:] = up.astype(slab_ref.dtype)      # pyramid branches

        # ---- 3x3 conv: ONE wide matmul (fills the 256-wide MXU on v6e/v7x),
        #      column group k holds tap (kh, kw) = offsets[k].
        y_ref[...] = jnp.dot(slab_ref[...], wall_ref[...],
                             preferred_element_type=jnp.float32)      # (HWP, 9*Co)

        edge = edge_ref[...]                   # (HW, 2) f32
        mask_left = edge[:, 0:1]               # 0 where w == 0     (dx = -1)
        mask_right = edge[:, 1:2]              # 0 where w == W-1   (dx = +1)

        # 9 flat-shifted adds of the output column groups (accumulate in vregs)
        acc = jnp.zeros((HW, Co), jnp.float32)
        for k, (dy, dx) in enumerate(offsets):
            s = dy * W + dx
            c = y_ref[pl.ds(PAD + s, HW), pl.ds(k * Co, Co)]
            if dx == -1:                       # flat shift wraps rows at the
                c = c * mask_left              # W-boundary: mask it out
            elif dx == 1:
                c = c * mask_right
            acc = acc + c

        o_ref[0] = jnp.maximum(acc + shift_b_ref[...], 0.0).astype(o_ref.dtype)

    return kernel


# ------------------------------ pallas wrapper --------------------------------

def _fused_psp_call(x_flat, P, Wc, shift_s, M, U, Wall, shift_b, edge,
                    W, Co, PAD, out_dtype=jnp.bfloat16):
    N, HW, Cin = x_flat.shape
    BBp = P.shape[0]
    C4 = Wc.shape[1]
    Ctot = Cin + C4
    HWP = HW + 2 * PAD
    NT = Wall.shape[1]                    # 9 * Co

    kernel = _make_fused_psp_kernel(HW, W, Cin, Co, Ctot, PAD, HWP)
    return pl.pallas_call(
        kernel,
        out_shape=jax.ShapeDtypeStruct((N, HW, Co), out_dtype),
        grid=(N,),
        in_specs=[
            pl.BlockSpec((1, HW, Cin), lambda n: (n, 0, 0)),   # x (per image)
            pl.BlockSpec((BBp, HW), lambda n: (0, 0)),         # pooling matrix
            pl.BlockSpec((Cin, C4), lambda n: (0, 0)),         # stacked 1x1 weights
            pl.BlockSpec((1, C4), lambda n: (0, 0)),           # stage BN shift
            pl.BlockSpec((BBp, C4), lambda n: (0, 0)),         # stage validity mask
            pl.BlockSpec((HW, BBp), lambda n: (0, 0)),         # upsample matrix
            pl.BlockSpec((Ctot, NT), lambda n: (0, 0)),        # 3x3 weights (wide)
            pl.BlockSpec((1, Co), lambda n: (0, 0)),           # bottleneck BN shift
            pl.BlockSpec((HW, 2), lambda n: (0, 0)),           # dx=+-1 edge masks
        ],
        out_specs=pl.BlockSpec((1, HW, Co), lambda n: (n, 0, 0)),
        scratch_shapes=[
            pltpu.VMEM((HWP, Ctot), jnp.bfloat16),   # padded cat slab (~360 KB)
            pltpu.VMEM((HWP, NT), jnp.float32),      # wide-conv columns (~810 KB)
        ],
        compiler_params=pltpu.CompilerParams(
            dimension_semantics=("parallel",),        # v7x: one image per TC
            vmem_limit_bytes=20 * 1024 * 1024),       # ~10 MiB footprint + headroom
    )(x_flat, P, Wc, shift_s, M, U, Wall, shift_b, edge)


# ------------------------------ forward (PSP head) -----------------------------

def psp_forward_nhwc(x_nhwc, params, out_dtype=jnp.bfloat16):
    """old_PSPModule.forward (eval-mode BN). Input NHWC, output NHWC (N,H,W,Co)."""
    N, H, W, Cin = x_nhwc.shape
    bin_sizes = params["bin_sizes"]
    Co = params["out_channels"]
    nS = len(bin_sizes)
    C4 = Co * nS
    Ctot = Cin + C4
    HW = H * W
    PAD = _round_up(W + 1, 16)        # flat halo rows for the 3x3 conv shifts
    assert PAD >= W + 1, "halo must cover the largest flat shift (W+1)"
    assert Cin % 128 == 0 and Co % 128 == 0, "lane-dense channel dims expected"
    assert HW % 8 == 0, "flattened spatial must be sublane aligned"

    # host-built constants (pool / upsample matrices, stage validity mask)
    P_np, U_np, M_np = build_pyramid_constants(H, W, bin_sizes, Co)

    # fold BN scale into the 1x1 stage weights; concatenate into one (Cin, 4Co)
    wc_cols, shift_cols = [], []
    for sp in params["stages"]:
        scale = sp["gamma"] / jnp.sqrt(sp["var"] + EPS)
        wc_cols.append(sp["w"] * scale[None, :])
        shift_cols.append(sp["beta"] - sp["mean"] * scale)
    Wc = jnp.concatenate(wc_cols, axis=1).astype(jnp.bfloat16)            # (Cin, 4Co)
    shift_s = jnp.concatenate(shift_cols)[None, :].astype(jnp.float32)    # (1, 4Co)

    # fold BN scale into the 3x3 bottleneck weight; lay out as one wide
    # (Ctot, 9*Co) matmul operand: column group k corresponds to tap (kh, kw).
    bp = params["bottleneck"]
    scale_b = bp["gamma"] / jnp.sqrt(bp["var"] + EPS)
    shift_b = (bp["beta"] - bp["mean"] * scale_b)[None, :].astype(jnp.float32)
    wb = (bp["w"] * scale_b[None, None, None, :]).reshape(9, Ctot, Co)
    Wall = jnp.transpose(wb, (1, 0, 2)).reshape(Ctot, 9 * Co).astype(jnp.bfloat16)

    # masks for the W-boundary of the flat row shifts (dx = -1 / +1)
    wcol = np.arange(HW) % W
    edge_np = np.stack([(wcol != 0), (wcol != W - 1)], axis=1).astype(np.float32)

    x_flat = x_nhwc.reshape(N, HW, Cin).astype(jnp.bfloat16)

    out_flat = _fused_psp_call(
        x_flat,
        jnp.asarray(P_np).astype(jnp.bfloat16),
        Wc, shift_s,
        jnp.asarray(M_np),
        jnp.asarray(U_np).astype(jnp.bfloat16),
        Wall, shift_b,
        jnp.asarray(edge_np),
        W, Co, PAD, out_dtype=out_dtype)                # (N, HW, Co)
    return out_flat.reshape(N, H, W, Co)


def old_encoder_forward(features_nchw, params):
    # TODO(synk): self.base (ResNet backbone) omitted — old_resnet_bbs undefined.
    # NCHW<->NHWC transposes kept only for PyTorch API parity in this demo;
    # production should call psp_forward_nhwc directly (channels-last in/out).
    x_nhwc = jnp.transpose(features_nchw, (0, 2, 3, 1))
    out_nhwc = psp_forward_nhwc(x_nhwc, params)
    return jnp.transpose(out_nhwc, (0, 3, 1, 2))


# ------------------------------------ main -------------------------------------

if __name__ == "__main__":
    key = jax.random.PRNGKey(0)
    k_in, k_par = jax.random.split(key)

    # Small shapes consistent with the PSP head: in_channels=512 (÷4 bins ->
    # Co=128, lane-dense output), spatial 12x12 (divisible by bins 1,2,3,6).
    N, Cin, H, W = 2, 512, 12, 12
    params = init_psp_params(k_par, Cin, bin_sizes=[1, 2, 3, 6])
    feats = jax.random.normal(k_in, (N, Cin, H, W), jnp.float32)

    out = old_encoder_forward(feats, params)
    out = jax.block_until_ready(out)
    assert out.shape == (N, Cin // 4, H, W), out.shape
    assert bool(jnp.all(jnp.isfinite(out.astype(jnp.float32))))
    print("KERNEL_OK")
</pallas_src>

<mosaic_0001>
module attributes {stable_mosaic.version = 11 : i64} {
  func.func @kernel(%arg0: i32, %arg1: memref<1x144x512xbf16, #tpu.memory_space<vmem>>, %arg2: memref<64x144xbf16, #tpu.memory_space<vmem>>, %arg3: memref<512x512xbf16, #tpu.memory_space<vmem>>, %arg4: memref<1x512xf32, #tpu.memory_space<vmem>>, %arg5: memref<64x512xf32, #tpu.memory_space<vmem>>, %arg6: memref<144x64xbf16, #tpu.memory_space<vmem>>, %arg7: memref<1024x1152xbf16, #tpu.memory_space<vmem>>, %arg8: memref<1x128xf32, #tpu.memory_space<vmem>>, %arg9: memref<144x2xf32, #tpu.memory_space<vmem>>, %arg10: memref<1x144x128xbf16, #tpu.memory_space<vmem>>, %arg11: memref<176x1024xbf16, #tpu.memory_space<vmem>>, %arg12: memref<176x1152xf32, #tpu.memory_space<vmem>>) attributes {dimension_semantics = [#tpu.dimension_semantics<parallel>], iteration_bounds = array<i64: 2>, scalar_prefetch = 0 : i64, scratch_operands = 2 : i64, tpu.core_type = #tpu.core_type<tc>, window_params = [{transform_indices = @transform_0, window_bounds = array<i64: 1, 144, 512>}, {pipeline_mode = #tpu.pipeline_mode<synchronous>, transform_indices = @transform_1, window_bounds = array<i64: 64, 144>}, {pipeline_mode = #tpu.pipeline_mode<synchronous>, transform_indices = @transform_2, window_bounds = array<i64: 512, 512>}, {pipeline_mode = #tpu.pipeline_mode<synchronous>, transform_indices = @transform_3, window_bounds = array<i64: 1, 512>}, {pipeline_mode = #tpu.pipeline_mode<synchronous>, transform_indices = @transform_4, window_bounds = array<i64: 64, 512>}, {pipeline_mode = #tpu.pipeline_mode<synchronous>, transform_indices = @transform_5, window_bounds = array<i64: 144, 64>}, {pipeline_mode = #tpu.pipeline_mode<synchronous>, transform_indices = @transform_6, window_bounds = array<i64: 1024, 1152>}, {pipeline_mode = #tpu.pipeline_mode<synchronous>, transform_indices = @transform_7, window_bounds = array<i64: 1, 128>}, {pipeline_mode = #tpu.pipeline_mode<synchronous>, transform_indices = @transform_8, window_bounds = array<i64: 144, 2>}, {transform_indices = @transform_9, window_bounds = array<i64: 1, 144, 128>}]} {
    %c0 = arith.constant 0 : index
    %c0_0 = arith.constant 0 : index
    %c0_1 = arith.constant 0 : index
    %0 = vector.load %arg1[%c0, %c0_0, %c0_1] : memref<1x144x512xbf16, #tpu.memory_space<vmem>>, vector<1x144x512xbf16>
    %1 = vector.shape_cast %0 : vector<1x144x512xbf16> to vector<144x512xbf16>
    %c0_2 = arith.constant 0 : index
    %c0_3 = arith.constant 0 : index
    %2 = vector.load %arg2[%c0_2, %c0_3] : memref<64x144xbf16, #tpu.memory_space<vmem>>, vector<64x144xbf16>
    %cst = arith.constant dense<0.000000e+00> : vector<64x512xf32>
    %3 = tpu.matmul %2, %1, %cst {dimension_numbers = #tpu.dot_dimension_numbers<[1], [0], [0], [1], [0, 0, 1, 1], [], []>} : vector<64x144xbf16>, vector<144x512xbf16>, vector<64x512xf32> -> vector<64x512xf32>
    %4 = arith.truncf %3 : vector<64x512xf32> to vector<64x512xbf16>
    %c0_4 = arith.constant 0 : index
    %c0_5 = arith.constant 0 : index
    %5 = vector.load %arg3[%c0_4, %c0_5] : memref<512x512xbf16, #tpu.memory_space<vmem>>, vector<512x512xbf16>
    %cst_6 = arith.constant dense<0.000000e+00> : vector<64x512xf32>
    %6 = tpu.matmul %4, %5, %cst_6 {dimension_numbers = #tpu.dot_dimension_numbers<[1], [0], [0], [1], [0, 0, 1, 1], [], []>} : vector<64x512xbf16>, vector<512x512xbf16>, vector<64x512xf32> -> vector<64x512xf32>
    %c0_7 = arith.constant 0 : index
    %c0_8 = arith.constant 0 : index
    %7 = vector.load %arg4[%c0_7, %c0_8] : memref<1x512xf32, #tpu.memory_space<vmem>>, vector<1x512xf32>
    %8 = vector.broadcast %7 : vector<1x512xf32> to vector<64x512xf32>
    %9 = arith.addf %6, %8 : vector<64x512xf32>
    %cst_9 = arith.constant 0.000000e+00 : f32
    %10 = vector.broadcast %cst_9 : f32 to vector<64x512xf32>
    %11 = arith.maximumf %9, %10 : vector<64x512xf32>
    %c0_10 = arith.constant 0 : index
    %c0_11 = arith.constant 0 : index
    %12 = vector.load %arg5[%c0_10, %c0_11] : memref<64x512xf32, #tpu.memory_space<vmem>>, vector<64x512xf32>
    %13 = arith.mulf %11, %12 : vector<64x512xf32>
    %c0_12 = arith.constant 0 : index
    %c0_13 = arith.constant 0 : index
    %14 = vector.load %arg6[%c0_12, %c0_13] : memref<144x64xbf16, #tpu.memory_space<vmem>>, vector<144x64xbf16>
    %15 = arith.truncf %13 : vector<64x512xf32> to vector<64x512xbf16>
    %cst_14 = arith.constant dense<0.000000e+00> : vector<144x512xf32>
    %16 = tpu.matmul %14, %15, %cst_14 {dimension_numbers = #tpu.dot_dimension_numbers<[1], [0], [0], [1], [0, 0, 1, 1], [], []>} : vector<144x64xbf16>, vector<64x512xbf16>, vector<144x512xf32> -> vector<144x512xf32>
    %cst_15 = arith.constant 0.000000e+00 : bf16
    %17 = vector.broadcast %cst_15 : bf16 to vector<16x1024xbf16>
    %c0_16 = arith.constant 0 : index
    %c0_17 = arith.constant 0 : index
    %18 = vector.load %arg11[%c0_16, %c0_17] : memref<176x1024xbf16, #tpu.memory_space<vmem>>, vector<16x1024xbf16>
    tpu.vector_store %arg11[%c0_16, %c0_17], %17 {strides = array<i32>} : memref<176x1024xbf16, #tpu.memory_space<vmem>>, vector<16x1024xbf16>,
    %cst_18 = arith.constant 0.000000e+00 : bf16
    %19 = vector.broadcast %cst_18 : bf16 to vector<16x1024xbf16>
    %c160 = arith.constant 160 : index
    %c0_19 = arith.constant 0 : index
    %20 = vector.load %arg11[%c160, %c0_19] : memref<176x1024xbf16, #tpu.memory_space<vmem>>, vector<16x1024xbf16>
    tpu.vector_store %arg11[%c160, %c0_19], %19 {strides = array<i32>} : memref<176x1024xbf16, #tpu.memory_space<vmem>>, vector<16x1024xbf16>,
    %c16 = arith.constant 16 : index
    %c0_20 = arith.constant 0 : index
    %21 = vector.load %arg11[%c16, %c0_20] : memref<176x1024xbf16, #tpu.memory_space<vmem>>, vector<144x512xbf16>
    tpu.vector_store %arg11[%c16, %c0_20], %1 {strides = array<i32>} : memref<176x1024xbf16, #tpu.memory_space<vmem>>, vector<144x512xbf16>,
    %22 = arith.truncf %16 : vector<144x512xf32> to vector<144x512xbf16>
    %c16_21 = arith.constant 16 : index
    %c512 = arith.constant 512 : index
    %23 = vector.load %arg11[%c16_21, %c512] : memref<176x1024xbf16, #tpu.memory_space<vmem>>, vector<144x512xbf16>
    tpu.vector_store %arg11[%c16_21, %c512], %22 {strides = array<i32>} : memref<176x1024xbf16, #tpu.memory_space<vmem>>, vector<144x512xbf16>,
    %c0_22 = arith.constant 0 : index
    %c0_23 = arith.constant 0 : index
    %24 = vector.load %arg11[%c0_22, %c0_23] : memref<176x1024xbf16, #tpu.memory_space<vmem>>, vector<176x1024xbf16>
    %c0_24 = arith.constant 0 : index
    %c0_25 = arith.constant 0 : index
    %25 = vector.load %arg7[%c0_24, %c0_25] : memref<1024x1152xbf16, #tpu.memory_space<vmem>>, vector<1024x1152xbf16>
    %cst_26 = arith.constant dense<0.000000e+00> : vector<176x1152xf32>
    %26 = tpu.matmul %24, %25, %cst_26 {dimension_numbers = #tpu.dot_dimension_numbers<[1], [0], [0], [1], [0, 0, 1, 1], [], []>} : vector<176x1024xbf16>, vector<1024x1152xbf16>, vector<176x1152xf32> -> vector<176x1152xf32>
    %c0_27 = arith.constant 0 : index
    %c0_28 = arith.constant 0 : index
    %27 = vector.load %arg12[%c0_27, %c0_28] : memref<176x1152xf32, #tpu.memory_space<vmem>>, vector<176x1152xf32>
    tpu.vector_store %arg12[%c0_27, %c0_28], %26 {strides = array<i32>} : memref<176x1152xf32, #tpu.memory_space<vmem>>, vector<176x1152xf32>,
    %c0_29 = arith.constant 0 : index
    %c0_30 = arith.constant 0 : index
    %28 = vector.load %arg9[%c0_29, %c0_30] : memref<144x2xf32, #tpu.memory_space<vmem>>, vector<144x2xf32>
    %29 = vector.extract_strided_slice %28 {offsets = [0, 0], sizes = [144, 1], strides = [1, 1]} : vector<144x2xf32> to vector<144x1xf32>
    %30 = vector.extract_strided_slice %28 {offsets = [0, 1], sizes = [144, 1], strides = [1, 1]} : vector<144x2xf32> to vector<144x1xf32>
    %cst_31 = arith.constant 0.000000e+00 : f32
    %31 = vector.broadcast %cst_31 : f32 to vector<144x128xf32>
    %c3 = arith.constant 3 : index
    %c0_32 = arith.constant 0 : index
    %32 = vector.load %arg12[%c3, %c0_32] : memref<176x1152xf32, #tpu.memory_space<vmem>>, vector<144x128xf32>
    %33 = vector.broadcast %29 : vector<144x1xf32> to vector<144x128xf32>
    %34 = arith.mulf %32, %33 : vector<144x128xf32>
    %35 = arith.addf %31, %34 : vector<144x128xf32>
    %c4 = arith.constant 4 : index
    %c128 = arith.constant 128 : index
    %36 = vector.load %arg12[%c4, %c128] : memref<176x1152xf32, #tpu.memory_space<vmem>>, vector<144x128xf32>
    %37 = arith.addf %35, %36 : vector<144x128xf32>
    %c5 = arith.constant 5 : index
    %c256 = arith.constant 256 : index
    %38 = vector.load %arg12[%c5, %c256] : memref<176x1152xf32, #tpu.memory_space<vmem>>, vector<144x128xf32>
    %39 = vector.broadcast %30 : vector<144x1xf32> to vector<144x128xf32>
    %40 = arith.mulf %38, %39 : vector<144x128xf32>
    %41 = arith.addf %37, %40 : vector<144x128xf32>
    %c15 = arith.constant 15 : index
    %c384 = arith.constant 384 : index
    %42 = vector.load %arg12[%c15, %c384] : memref<176x1152xf32, #tpu.memory_space<vmem>>, vector<144x128xf32>
    %43 = vector.broadcast %29 : vector<144x1xf32> to vector<144x128xf32>
    %44 = arith.mulf %42, %43 : vector<144x128xf32>
    %45 = arith.addf %41, %44 : vector<144x128xf32>
    %c16_33 = arith.constant 16 : index
    %c512_34 = arith.constant 512 : index
    %46 = vector.load %arg12[%c16_33, %c512_34] : memref<176x1152xf32, #tpu.memory_space<vmem>>, vector<144x128xf32>
    %47 = arith.addf %45, %46 : vector<144x128xf32>
    %c17 = arith.constant 17 : index
    %c640 = arith.constant 640 : index
    %48 = vector.load %arg12[%c17, %c640] : memref<176x1152xf32, #tpu.memory_space<vmem>>, vector<144x128xf32>
    %49 = vector.broadcast %30 : vector<144x1xf32> to vector<144x128xf32>
    %50 = arith.mulf %48, %49 : vector<144x128xf32>
    %51 = arith.addf %47, %50 : vector<144x128xf32>
    %c27 = arith.constant 27 : index
    %c768 = arith.constant 768 : index
    %52 = vector.load %arg12[%c27, %c768] : memref<176x1152xf32, #tpu.memory_space<vmem>>, vector<144x128xf32>
    %53 = vector.broadcast %29 : vector<144x1xf32> to vector<144x128xf32>
    %54 = arith.mulf %52, %53 : vector<144x128xf32>
    %55 = arith.addf %51, %54 : vector<144x128xf32>
    %c28 = arith.constant 28 : index
    %c896 = arith.constant 896 : index
    %56 = vector.load %arg12[%c28, %c896] : memref<176x1152xf32, #tpu.memory_space<vmem>>, vector<144x128xf32>
    %57 = arith.addf %55, %56 : vector<144x128xf32>
    %c29 = arith.constant 29 : index
    %c1024 = arith.constant 1024 : index
    %58 = vector.load %arg12[%c29, %c1024] : memref<176x1152xf32, #tpu.memory_space<vmem>>, vector<144x128xf32>
    %59 = vector.broadcast %30 : vector<144x1xf32> to vector<144x128xf32>
    %60 = arith.mulf %58, %59 : vector<144x128xf32>
    %61 = arith.addf %57, %60 : vector<144x128xf32>
    %c0_35 = arith.constant 0 : index
    %c0_36 = arith.constant 0 : index
    %62 = vector.load %arg8[%c0_35, %c0_36] : memref<1x128xf32, #tpu.memory_space<vmem>>, vector<1x128xf32>
    %63 = vector.broadcast %62 : vector<1x128xf32> to vector<144x128xf32>
    %64 = arith.addf %61, %63 : vector<144x128xf32>
    %cst_37 = arith.constant 0.000000e+00 : f32
    %65 = vector.broadcast %cst_37 : f32 to vector<144x128xf32>
    %66 = arith.maximumf %64, %65 : vector<144x128xf32>
    %67 = arith.truncf %66 : vector<144x128xf32> to vector<144x128xbf16>
    %c0_38 = arith.constant 0 : index
    %c0_39 = arith.constant 0 : index
    %c0_40 = arith.constant 0 : index
    %68 = vector.load %arg10[%c0_38, %c0_39, %c0_40] : memref<1x144x128xbf16, #tpu.memory_space<vmem>>, vector<1x144x128xbf16>
    %69 = vector.shape_cast %68 : vector<1x144x128xbf16> to vector<144x128xbf16>
    %70 = vector.shape_cast %67 : vector<144x128xbf16> to vector<1x144x128xbf16>
    tpu.vector_store %arg10[%c0_38, %c0_39, %c0_40], %70 {strides = array<i32>} : memref<1x144x128xbf16, #tpu.memory_space<vmem>>, vector<1x144x128xbf16>,
    return
  }
  func.func @transform_0(%arg0: i32) -> (i32, i32, i32) {
    %c0_i32 = arith.constant 0 : i32
    %c0_i32_0 = arith.constant 0 : i32
    %c0_i32_1 = arith.constant 0 : i32
    return %arg0, %c0_i32, %c0_i32_0 : i32, i32, i32
  }
  func.func @transform_1(%arg0: i32) -> (i32, i32) {
    %c0_i32 = arith.constant 0 : i32
    %c0_i32_0 = arith.constant 0 : i32
    %c0_i32_1 = arith.constant 0 : i32
    return %c0_i32, %c0_i32_0 : i32, i32
  }
  func.func @transform_2(%arg0: i32) -> (i32, i32) {
    %c0_i32 = arith.constant 0 : i32
    %c0_i32_0 = arith.constant 0 : i32
    %c0_i32_1 = arith.constant 0 : i32
    return %c0_i32, %c0_i32_0 : i32, i32
  }
  func.func @transform_3(%arg0: i32) -> (i32, i32) {
    %c0_i32 = arith.constant 0 : i32
    %c0_i32_0 = arith.constant 0 : i32
    %c0_i32_1 = arith.constant 0 : i32
    return %c0_i32, %c0_i32_0 : i32, i32
  }
  func.func @transform_4(%arg0: i32) -> (i32, i32) {
    %c0_i32 = arith.constant 0 : i32
    %c0_i32_0 = arith.constant 0 : i32
    %c0_i32_1 = arith.constant 0 : i32
    return %c0_i32, %c0_i32_0 : i32, i32
  }
  func.func @transform_5(%arg0: i32) -> (i32, i32) {
    %c0_i32 = arith.constant 0 : i32
    %c0_i32_0 = arith.constant 0 : i32
    %c0_i32_1 = arith.constant 0 : i32
    return %c0_i32, %c0_i32_0 : i32, i32
  }
  func.func @transform_6(%arg0: i32) -> (i32, i32) {
    %c0_i32 = arith.constant 0 : i32
    %c0_i32_0 = arith.constant 0 : i32
    %c0_i32_1 = arith.constant 0 : i32
    return %c0_i32, %c0_i32_0 : i32, i32
  }
  func.func @transform_7(%arg0: i32) -> (i32, i32) {
    %c0_i32 = arith.constant 0 : i32
    %c0_i32_0 = arith.constant 0 : i32
    %c0_i32_1 = arith.constant 0 : i32
    return %c0_i32, %c0_i32_0 : i32, i32
  }
  func.func @transform_8(%arg0: i32) -> (i32, i32) {
    %c0_i32 = arith.constant 0 : i32
    %c0_i32_0 = arith.constant 0 : i32
    %c0_i32_1 = arith.constant 0 : i32
    return %c0_i32, %c0_i32_0 : i32, i32
  }
  func.func @transform_9(%arg0: i32) -> (i32, i32, i32) {
    %c0_i32 = arith.constant 0 : i32
    %c0_i32_0 = arith.constant 0 : i32
    %c0_i32_1 = arith.constant 0 : i32
    return %arg0, %c0_i32, %c0_i32_0 : i32, i32, i32
  }
}

</mosaic_0001>

<llo_original>
// kernel: tpu_custom_call.1
$region0: #{tpu_custom_call.1}
  #allocation0 [shape = 'u32[]', space=smem, size = 0x4, offset = 0x4, fixed_abs, tag = 'smem constant byte address 0x4 - core index']
  #allocation1 [shape = 'u32[144,128]{1,0:T(1,128)}', space=vmem, size = 0x12000, scoped, tag = 'internal scratch']
  #allocation2 [shape = 'bf16[176,1024]{1,0:T(8,128)(2,1)}', space=vmem, size = 0x58000, scoped, tag = 'scratch operand']
  #allocation3 [shape = 'f32[176,1152]{1,0:T(8,128)}', space=vmem, size = 0xc6000, scoped, tag = 'scratch operand']
  %s0 = inlined_call_operand.hbm [shape: bf16[2,144,512], index: 0, kind: input, shape index: {}]
  %s1 = inlined_call_operand.hbm [shape: bf16[64,144], index: 1, kind: input, shape index: {}]
  %s2 = inlined_call_operand.hbm [shape: bf16[512,512], index: 2, kind: input, shape index: {}]
  %s3 = inlined_call_operand.hbm [shape: f32[1,512], index: 3, kind: input, shape index: {}]
  %s4 = inlined_call_operand.hbm [shape: f32[64,512], index: 4, kind: input, shape index: {}]
  %s5 = inlined_call_operand.vmem [shape: bf16[144,64], index: 5, kind: input, shape index: {}]
  %s6 = inlined_call_operand.hbm [shape: bf16[1024,1152], index: 6, kind: input, shape index: {}]
  %s7 = inlined_call_operand.hbm [shape: f32[1,128], index: 7, kind: input, shape index: {}]
  %s8 = inlined_call_operand.vmem [shape: f32[144,2], index: 8, kind: input, shape index: {}]
  %s9 = inlined_call_operand.hbm [shape: bf16[2,144,128], index: 9, kind: output, shape index: {}]
  %s10 = sld [smem:[#allocation0]]
  $region97: #{tpu_custom_call.1} parent=0
    _
  %s12 = ssub.s32 1, %s10
  %s13 = scalar_select 0, %s12, %s10
  $region1: #{tpu_custom_call.1} parent=0
    #allocation4 [shape = 'u8[294912]{0}', space=vmem, size = 0x48000, scoped, tag = 'input window, operand 0']
    #allocation5 [shape = 's32[2]{0}', space=sflag, size = 0x8, scoped, tag = 'scoped memory for tpu_custom_call.1']
    #allocation6 [shape = 's32[2]{0}', space=sflag, size = 0x8, scoped, tag = 'scoped memory for tpu_custom_call.1']
    #allocation7 [shape = 'u8[32768]{0}', space=vmem, size = 0x8000, scoped, tag = 'input window, operand 1, single buffered']
    #allocation8 [shape = 's32[1]{0}', space=sflag, size = 0x4, scoped, tag = 'scoped memory for tpu_custom_call.1']
    #allocation9 [shape = 'u8[524288]{0}', space=vmem, size = 0x80000, scoped, tag = 'input window, operand 2, single buffered']
    #allocation10 [shape = 'u8[2048]{0}', space=vmem, size = 0x800, scoped, tag = 'input window, operand 3, single buffered']
    #allocation11 [shape = 's32[1]{0}', space=sflag, size = 0x4, scoped, tag = 'scoped memory for tpu_custom_call.1']
    #allocation12 [shape = 'u8[131072]{0}', space=vmem, size = 0x20000, scoped, tag = 'input window, operand 4, single buffered']
    #allocation13 [shape = 'u8[2359296]{0}', space=vmem, size = 0x240000, scoped, tag = 'input window, operand 6, single buffered']
    #allocation14 [shape = 's32[1]{0}', space=sflag, size = 0x4, scoped, tag = 'scoped memory for tpu_custom_call.1']
    #allocation15 [shape = 'u8[512]{0}', space=vmem, size = 0x400, scoped, tag = 'input window, operand 7, single buffered']
    #allocation16 [shape = 'u8[73728]{0}', space=vmem, size = 0x12000, scoped, tag = 'output window, operand 0']
    %14 = vsyncpa [#allocation5], 0
    %s15 = scalar_lea.sflag [#allocation5], 1
    %16 = vsyncpa %s15, 0
    %17 = vsyncpa [#allocation8], 0
    %18 = vsyncpa [#allocation11], 0
    %19 = vsyncpa [#allocation14], 0
    %20 = vsyncpa [#allocation6], 0
    %s21 = scalar_lea.sflag [#allocation6], 1
    %22 = vsyncpa %s21, 0
    loop: start=0, step=1, limit=4
    $region2: #{tpu_custom_call.1} parent=1 // loop_pre_header
      _
    $region3: #{tpu_custom_call.1} parent=1 // loop_header
      %s24 = sphi 0, %s28
      %p25 = scmp.ge.s32.totalorder %s24, 4
      %s34 = sphi 0, %s36
      %s37 = sphi 0, %s34
      %s38 = sphi 0, %s37
      %s54 = sphi 0, %s38
      %s58 = sphi 0, %s58
      %s60 = sphi 0, %s58
      %s61 = sphi 0, %s60
      %s75 = sphi 0, %s61
      %s79 = sphi 0, %s79
      %s81 = sphi 0, %s79
      %s82 = sphi 0, %s81
      %s96 = sphi 0, %s82
      %s100 = sphi 0, %s100
      %s102 = sphi 0, %s100
      %s103 = sphi 0, %s102
      %s117 = sphi 0, %s103
      %s121 = sphi 0, %s121
      %s123 = sphi 0, %s121
      %s124 = sphi 0, %s123
      %s138 = sphi 0, %s124
      %s142 = sphi 0, %s142
      %s144 = sphi 0, %s142
      %s145 = sphi 0, %s144
      %s159 = sphi 0, %s145
      %s163 = sphi 0, %s163
      %s165 = sphi 0, %s163
      %s166 = sphi 0, %s165
      %s180 = sphi 0, %s166
      %s184 = sphi 0, %s184
      %s186 = sphi 0, %s184
      %s187 = sphi 0, %s186
      %s201 = sphi 0, %s187
      %s205 = sphi 0, %s205
      %s207 = sphi 0, %s205
      %s208 = sphi 0, %s207
      %s222 = sphi 0, %s208
      %s228 = sphi 0, %s230
      %s231 = sphi 0, %s228
      %s232 = sphi 0, %s231
      %s248 = sphi 0, %s232
    $region4: #{tpu_custom_call.1} parent=1 // loop_header_branch
      %27 = sbr.rel (%p25) target = $region8
    $region5: #{tpu_custom_call.1} parent=1 // loop_body
      %s29 = ssub.s32 %s24, 1
      %s30 = ssub.s32 %s24, 2
      %s31 = sadd.s32 %s24, 1
      %s32 = ssub.s32 %s24, %s31
      %p33 = scmp.eq.s32.totalorder %s32, 0
      %s35 = sadd.s32 %s34, 1
      %s36 = scalar_select %p33, %s34, %s35
      %p39 = pneg %p33
      %p40 = scmp.eq.s32.totalorder %s24, 1
      %p41 = por %p39, %p40
      %p42 = scmp.ne.s32.totalorder %s34, %s37
      %p43 = scmp.eq.s32.totalorder %s24, 0
      %p44 = por %p42, %p43
      %p45 = scmp.ne.s32.totalorder %s34, %s37
      %p46 = scmp.eq.s32.totalorder %s29, 1
      %p47 = por %p45, %p46
      %p48 = scmp.ne.s32.totalorder %s37, %s38
      %p49 = scmp.eq.s32.totalorder %s29, 0
      %p50 = por %p48, %p49
      %p51 = scmp.ne.s32.totalorder %s37, %s38
      %p52 = scmp.eq.s32.totalorder %s30, 1
      %p53 = por %p51, %p52
      %p55 = scmp.ne.s32.totalorder %s38, %s54
      %p56 = scmp.eq.s32.totalorder %s30, 0
      %p57 = por %p55, %p56
      %s59 = sadd.s32 %s58, 1
      %p62 = scmp.eq.s32.totalorder %s24, 1
      %p63 = scmp.ne.s32.totalorder %s58, %s60
      %p64 = scmp.eq.s32.totalorder %s24, 0
      %p65 = por %p63, %p64
      %p66 = scmp.ne.s32.totalorder %s58, %s60
      %p67 = scmp.eq.s32.totalorder %s29, 1
      %p68 = por %p66, %p67
      %p69 = scmp.ne.s32.totalorder %s60, %s61
      %p70 = scmp.eq.s32.totalorder %s29, 0
      %p71 = por %p69, %p70
      %p72 = scmp.ne.s32.totalorder %s60, %s61
      %p73 = scmp.eq.s32.totalorder %s30, 1
      %p74 = por %p72, %p73
      %p76 = scmp.ne.s32.totalorder %s61, %s75
      %p77 = scmp.eq.s32.totalorder %s30, 0
      %p78 = por %p76, %p77
      %s80 = sadd.s32 %s79, 1
      %p83 = scmp.eq.s32.totalorder %s24, 1
      %p84 = scmp.ne.s32.totalorder %s79, %s81
      %p85 = scmp.eq.s32.totalorder %s24, 0
      %p86 = por %p84, %p85
      %p87 = scmp.ne.s32.totalorder %s79, %s81
      %p88 = scmp.eq.s32.totalorder %s29, 1
      %p89 = por %p87, %p88
      %p90 = scmp.ne.s32.totalorder %s81, %s82
      %p91 = scmp.eq.s32.totalorder %s29, 0
      %p92 = por %p90, %p91
      %p93 = scmp.ne.s32.totalorder %s81, %s82
      %p94 = scmp.eq.s32.totalorder %s30, 1
      %p95 = por %p93, %p94
      %p97 = scmp.ne.s32.totalorder %s82, %s96
      %p98 = scmp.eq.s32.totalorder %s30, 0
      %p99 = por %p97, %p98
      %s101 = sadd.s32 %s100, 1
      %p104 = scmp.eq.s32.totalorder %s24, 1
      %p105 = scmp.ne.s32.totalorder %s100, %s102
      %p106 = scmp.eq.s32.totalorder %s24, 0
      %p107 = por %p105, %p106
      %p108 = scmp.ne.s32.totalorder %s100, %s102
      %p109 = scmp.eq.s32.totalorder %s29, 1
      %p110 = por %p108, %p109
      %p111 = scmp.ne.s32.totalorder %s102, %s103
      %p112 = scmp.eq.s32.totalorder %s29, 0
      %p113 = por %p111, %p112
      %p114 = scmp.ne.s32.totalorder %s102, %s103
      %p115 = scmp.eq.s32.totalorder %s30, 1
      %p116 = por %p114, %p115
      %p118 = scmp.ne.s32.totalorder %s103, %s117
      %p119 = scmp.eq.s32.totalorder %s30, 0
      %p120 = por %p118, %p119
      %s122 = sadd.s32 %s121, 1
      %p125 = scmp.eq.s32.totalorder %s24, 1
      %p126 = scmp.ne.s32.totalorder %s121, %s123
      %p127 = scmp.eq.s32.totalorder %s24, 0
      %p128 = por %p126, %p127
      %p129 = scmp.ne.s32.totalorder %s121, %s123
      %p130 = scmp.eq.s32.totalorder %s29, 1
      %p131 = por %p129, %p130
      %p132 = scmp.ne.s32.totalorder %s123, %s124
      %p133 = scmp.eq.s32.totalorder %s29, 0
      %p134 = por %p132, %p133
      %p135 = scmp.ne.s32.totalorder %s123, %s124
      %p136 = scmp.eq.s32.totalorder %s30, 1
      %p137 = por %p135, %p136
      %p139 = scmp.ne.s32.totalorder %s124, %s138
      %p140 = scmp.eq.s32.totalorder %s30, 0
      %p141 = por %p139, %p140
      %s143 = sadd.s32 %s142, 1
      %p146 = scmp.eq.s32.totalorder %s24, 1
      %p147 = scmp.ne.s32.totalorder %s142, %s144
      %p148 = scmp.eq.s32.totalorder %s24, 0
      %p149 = por %p147, %p148
      %p150 = scmp.ne.s32.totalorder %s142, %s144
      %p151 = scmp.eq.s32.totalorder %s29, 1
      %p152 = por %p150, %p151
      %p153 = scmp.ne.s32.totalorder %s144, %s145
      %p154 = scmp.eq.s32.totalorder %s29, 0
      %p155 = por %p153, %p154
      %p156 = scmp.ne.s32.totalorder %s144, %s145
      %p157 = scmp.eq.s32.totalorder %s30, 1
      %p158 = por %p156, %p157
      %p160 = scmp.ne.s32.totalorder %s145, %s159
      %p161 = scmp.eq.s32.totalorder %s30, 0
      %p162 = por %p160, %p161
      %s164 = sadd.s32 %s163, 1
      %p167 = scmp.eq.s32.totalorder %s24, 1
      %p168 = scmp.ne.s32.totalorder %s163, %s165
      %p169 = scmp.eq.s32.totalorder %s24, 0
      %p170 = por %p168, %p169
      %p171 = scmp.ne.s32.totalorder %s163, %s165
      %p172 = scmp.eq.s32.totalorder %s29, 1
      %p173 = por %p171, %p172
      %p174 = scmp.ne.s32.totalorder %s165, %s166
      %p175 = scmp.eq.s32.totalorder %s29, 0
      %p176 = por %p174, %p175
      %p177 = scmp.ne.s32.totalorder %s165, %s166
      %p178 = scmp.eq.s32.totalorder %s30, 1
      %p179 = por %p177, %p178
      %p181 = scmp.ne.s32.totalorder %s166, %s180
      %p182 = scmp.eq.s32.totalorder %s30, 0
      %p183 = por %p181, %p182
      %s185 = sadd.s32 %s184, 1
      %p188 = scmp.eq.s32.totalorder %s24, 1
      %p189 = scmp.ne.s32.totalorder %s184, %s186
      %p190 = scmp.eq.s32.totalorder %s24, 0
      %p191 = por %p189, %p190
      %p192 = scmp.ne.s32.totalorder %s184, %s186
      %p193 = scmp.eq.s32.totalorder %s29, 1
      %p194 = por %p192, %p193
      %p195 = scmp.ne.s32.totalorder %s186, %s187
      %p196 = scmp.eq.s32.totalorder %s29, 0
      %p197 = por %p195, %p196
      %p198 = scmp.ne.s32.totalorder %s186, %s187
      %p199 = scmp.eq.s32.totalorder %s30, 1
      %p200 = por %p198, %p199
      %p202 = scmp.ne.s32.totalorder %s187, %s201
      %p203 = scmp.eq.s32.totalorder %s30, 0
      %p204 = por %p202, %p203
      %s206 = sadd.s32 %s205, 1
      %p209 = scmp.eq.s32.totalorder %s24, 1
      %p210 = scmp.ne.s32.totalorder %s205, %s207
      %p211 = scmp.eq.s32.totalorder %s24, 0
      %p212 = por %p210, %p211
      %p213 = scmp.ne.s32.totalorder %s205, %s207
      %p214 = scmp.eq.s32.totalorder %s29, 1
      %p215 = por %p213, %p214
      %p216 = scmp.ne.s32.totalorder %s207, %s208
      %p217 = scmp.eq.s32.totalorder %s29, 0
      %p218 = por %p216, %p217
      %p219 = scmp.ne.s32.totalorder %s207, %s208
      %p220 = scmp.eq.s32.totalorder %s30, 1
      %p221 = por %p219, %p220
      %p223 = scmp.ne.s32.totalorder %s208, %s222
      %p224 = scmp.eq.s32.totalorder %s30, 0
      %p225 = por %p223, %p224
      %s226 = ssub.s32 %s24, %s31
      %p227 = scmp.eq.s32.totalorder %s226, 0
      %s229 = sadd.s32 %s228, 1
      %s230 = scalar_select %p227, %s228, %s229
      %p233 = pneg %p227
      %p234 = scmp.eq.s32.totalorder %s24, 1
      %p235 = por %p233, %p234
      %p236 = scmp.ne.s32.totalorder %s228, %s231
      %p237 = scmp.eq.s32.totalorder %s24, 0
      %p238 = por %p236, %p237
      %p239 = scmp.ne.s32.totalorder %s228, %s231
      %p240 = scmp.eq.s32.totalorder %s29, 1
      %p241 = por %p239, %p240
      %p242 = scmp.ne.s32.totalorder %s231, %s232
      %p243 = scmp.eq.s32.totalorder %s29, 0
      %p244 = por %p242, %p243
      %p245 = scmp.ne.s32.totalorder %s231, %s232
      %p246 = scmp.eq.s32.totalorder %s30, 1
      %p247 = por %p245, %p246
      %p249 = scmp.ne.s32.totalorder %s232, %s248
      %p250 = scmp.eq.s32.totalorder %s30, 0
      %p251 = por %p249, %p250
      %p252 = scmp.le.s32.totalorder 1, %s24
      %p253 = scmp.lt.s32.totalorder %s24, 3
      %p254 = pnand %p252, %p253
      %p255 = pneg %p254
      // Predicated region
      $region9: #{tpu_custom_call.1} parent=5 // pred_check
        _
      $region10: #{tpu_custom_call.1} parent=5 // pred_check_branch
        %257 = sbr.rel (%p254) target = $region12
      $region11: #{tpu_custom_call.1} parent=5 // pred_region
        %s258 = ssub.s32 %s24, 1
        // Predicated region
        $region13: #{tpu_custom_call.1} parent=11 // pred_check
          %p259 = pneg %p71
        $region14: #{tpu_custom_call.1} parent=11 // pred_check_branch
          %261 = sbr.rel (%p259) target = $region16
        $region15: #{tpu_custom_call.1} parent=11 // pred_region
          %s263 = ssub.s32 1024, 1024
          %264 = vsyncadd [#allocation8], %s263
          %s265 = sshll.u32 [#allocation7], 4
          %s266 = int_to_ptr.vmem [resolvable:$true] %s265
          %271 = dma.hbm_to_vmem [thread:$0]  %s1, 1024, %s266, [#allocation8], 128, 128, 8
        $region16: #{tpu_custom_call.1} parent=11 // pred_fallthru
          _
        // Predicated region
        $region17: #{tpu_custom_call.1} parent=11 // pred_check
          %p272 = pneg %p92
        $region18: #{tpu_custom_call.1} parent=11 // pred_check_branch
          %274 = sbr.rel (%p272) target = $region20
        $region19: #{tpu_custom_call.1} parent=11 // pred_region
          %s276 = ssub.s32 16384, 16384
          %277 = vsyncadd [#allocation8], %s276
          %s278 = sshll.u32 [#allocation9], 4
          %s279 = int_to_ptr.vmem [resolvable:$true] %s278
          %284 = dma.hbm_to_vmem [thread:$0]  %s2, 16384, %s279, [#allocation8], 256, 256, 16
        $region20: #{tpu_custom_call.1} parent=11 // pred_fallthru
          _
        // Predicated region
        $region21: #{tpu_custom_call.1} parent=11 // pred_check
          %p285 = pneg %p113
        $region22: #{tpu_custom_call.1} parent=11 // pred_check_branch
          %287 = sbr.rel (%p285) target = $region24
        $region23: #{tpu_custom_call.1} parent=11 // pred_region
          %s289 = ssub.s32 64, 64
          %290 = vsyncadd [#allocation11], %s289
          %s292 = sshll.u32 [#allocation10], 4
          %s293 = int_to_ptr.vmem [resolvable:$true] %s292
          %295 = dma.hbm_to_vmem [thread:$0]  %s3, 64, %s293, [#allocation11]
        $region24: #{tpu_custom_call.1} parent=11 // pred_fallthru
          _
        // Predicated region
        $region25: #{tpu_custom_call.1} parent=11 // pred_check
          %p296 = pneg %p134
        $region26: #{tpu_custom_call.1} parent=11 // pred_check_branch
          %298 = sbr.rel (%p296) target = $region28
        $region27: #{tpu_custom_call.1} parent=11 // pred_region
          %s300 = ssub.s32 4096, 4096
          %301 = vsyncadd [#allocation11], %s300
          %s302 = sshll.u32 [#allocation12], 4
          %s303 = int_to_ptr.vmem [resolvable:$true] %s302
          %308 = dma.hbm_to_vmem [thread:$0]  %s4, 4096, %s303, [#allocation11], 512, 512, 32
        $region28: #{tpu_custom_call.1} parent=11 // pred_fallthru
          _
        // Predicated region
        $region29: #{tpu_custom_call.1} parent=11 // pred_check
          %p309 = pneg %p155
        $region30: #{tpu_custom_call.1} parent=11 // pred_check_branch
          %311 = sbr.rel (%p309) target = $region32
        $region31: #{tpu_custom_call.1} parent=11 // pred_region
          _
        $region32: #{tpu_custom_call.1} parent=11 // pred_fallthru
          _
        // Predicated region
        $region33: #{tpu_custom_call.1} parent=11 // pred_check
          %p312 = pneg %p176
        $region34: #{tpu_custom_call.1} parent=11 // pred_check_branch
          %314 = sbr.rel (%p312) target = $region36
        $region35: #{tpu_custom_call.1} parent=11 // pred_region
          %s316 = ssub.s32 73728, 73728
          %317 = vsyncadd [#allocation14], %s316
          %s318 = sshll.u32 [#allocation13], 4
          %s319 = int_to_ptr.vmem [resolvable:$true] %s318
          %324 = dma.hbm_to_vmem [thread:$0]  %s6, 73728, %s319, [#allocation14], 576, 576, 36
        $region36: #{tpu_custom_call.1} parent=11 // pred_fallthru
          _
        // Predicated region
        $region37: #{tpu_custom_call.1} parent=11 // pred_check
          %p325 = pneg %p197
        $region38: #{tpu_custom_call.1} parent=11 // pred_check_branch
          %327 = sbr.rel (%p325) target = $region40
        $region39: #{tpu_custom_call.1} parent=11 // pred_region
          %s329 = ssub.s32 16, 16
          %330 = vsyncadd [#allocation14], %s329
          %s332 = sshll.u32 [#allocation15], 4
          %s333 = int_to_ptr.vmem [resolvable:$true] %s332
          %335 = dma.hbm_to_vmem [thread:$0]  %s7, 16, %s333, [#allocation14]
        $region40: #{tpu_custom_call.1} parent=11 // pred_fallthru
          _
        // Predicated region
        $region41: #{tpu_custom_call.1} parent=11 // pred_check
          %p336 = pneg %p218
        $region42: #{tpu_custom_call.1} parent=11 // pred_check_branch
          %338 = sbr.rel (%p336) target = $region44
        $region43: #{tpu_custom_call.1} parent=11 // pred_region
          _
        $region44: #{tpu_custom_call.1} parent=11 // pred_fallthru
          _
      $region12: #{tpu_custom_call.1} parent=5 // pred_fallthru
        _
      %p339 = scmp.lt.s32.totalorder %s24, 2
      // Predicated region
      $region45: #{tpu_custom_call.1} parent=5 // pred_check
        %p340 = pneg %p339
      $region46: #{tpu_custom_call.1} parent=5 // pred_check_branch
        %342 = sbr.rel (%p340) target = $region48
      $region47: #{tpu_custom_call.1} parent=5 // pred_region
        // Predicated region
        $region49: #{tpu_custom_call.1} parent=47 // pred_check
          %p343 = pneg %p44
        $region50: #{tpu_custom_call.1} parent=47 // pred_check_branch
          %345 = sbr.rel (%p343) target = $region52
        $region51: #{tpu_custom_call.1} parent=47 // pred_region
          %s346 = sand.u32 %s34, 1
          %s347 = scalar_lea.sflag [#allocation5], %s346
          %s348 = sand.u32 %s34, 1
          %s349 = smul.addr %s348, 288
          %s350 = scalar_lea.vmem [#allocation4], %s349
          %s352 = ssub.s32 4608, 4608
          %353 = vsyncadd %s347, %s352
          %s354 = smul.addr %s24, 72
          %s355 = smul.addr %s354, 64
          %s356 = scalar_lea.hbm %s0, %s355
          %s357 = sshll.u32 %s350, 4
          %s358 = int_to_ptr.vmem [resolvable:$true] %s357
          %363 = dma.hbm_to_vmem [thread:$0]  %s356, 4608, %s358, %s347, 256, 256, 16
        $region52: #{tpu_custom_call.1} parent=47 // pred_fallthru
          _
      $region48: #{tpu_custom_call.1} parent=5 // pred_fallthru
        _
      %p364 = scmp.le.s32.totalorder 1, %s24
      %p365 = scmp.lt.s32.totalorder %s24, 3
      %p366 = pnand %p364, %p365
      %p367 = pneg %p366
      // Predicated region
      $region53: #{tpu_custom_call.1} parent=5 // pred_check
        _
      $region54: #{tpu_custom_call.1} parent=5 // pred_check_branch
        %369 = sbr.rel (%p366) target = $region56
      $region55: #{tpu_custom_call.1} parent=5 // pred_region
        %s370 = ssub.s32 %s24, 1
        %s371 = sand.u32 %s37, 1
        %s372 = scalar_lea.sflag [#allocation5], %s371
        %s373 = sand.u32 %s37, 1
        %s374 = smul.addr %s373, 288
        %s375 = scalar_lea.vmem [#allocation4], %s374
        // Predicated region
        $region57: #{tpu_custom_call.1} parent=55 // pred_check
          %p376 = pneg %p50
        $region58: #{tpu_custom_call.1} parent=55 // pred_check_branch
          %378 = sbr.rel (%p376) target = $region60
        $region59: #{tpu_custom_call.1} parent=55 // pred_region
          %379 = dma.done %s372, 4608
        $region60: #{tpu_custom_call.1} parent=55 // pred_fallthru
          _
        // Predicated region
        $region61: #{tpu_custom_call.1} parent=55 // pred_check
          %p380 = pneg %p71
        $region62: #{tpu_custom_call.1} parent=55 // pred_check_branch
          %382 = sbr.rel (%p380) target = $region64
        $region63: #{tpu_custom_call.1} parent=55 // pred_region
          %383 = dma.done [#allocation8], 1024
        $region64: #{tpu_custom_call.1} parent=55 // pred_fallthru
          _
        // Predicated region
        $region65: #{tpu_custom_call.1} parent=55 // pred_check
          %p384 = pneg %p92
        $region66: #{tpu_custom_call.1} parent=55 // pred_check_branch
          %386 = sbr.rel (%p384) target = $region68
        $region67: #{tpu_custom_call.1} parent=55 // pred_region
          %387 = dma.done [#allocation8], 16384
        $region68: #{tpu_custom_call.1} parent=55 // pred_fallthru
          _
        // Predicated region
        $region69: #{tpu_custom_call.1} parent=55 // pred_check
          %p388 = pneg %p113
        $region70: #{tpu_custom_call.1} parent=55 // pred_check_branch
          %390 = sbr.rel (%p388) target = $region72
        $region71: #{tpu_custom_call.1} parent=55 // pred_region
          %391 = dma.done [#allocation11], 64
        $region72: #{tpu_custom_call.1} parent=55 // pred_fallthru
          _
        // Predicated region
        $region73: #{tpu_custom_call.1} parent=55 // pred_check
          %p392 = pneg %p134
        $region74: #{tpu_custom_call.1} parent=55 // pred_check_branch
          %394 = sbr.rel (%p392) target = $region76
        $region75: #{tpu_custom_call.1} parent=55 // pred_region
          %395 = dma.done [#allocation11], 4096
        $region76: #{tpu_custom_call.1} parent=55 // pred_fallthru
          _
        // Predicated region
        $region77: #{tpu_custom_call.1} parent=55 // pred_check
          %p396 = pneg %p176
        $region78: #{tpu_custom_call.1} parent=55 // pred_check_branch
          %398 = sbr.rel (%p396) target = $region80
        $region79: #{tpu_custom_call.1} parent=55 // pred_region
          %399 = dma.done [#allocation14], 73728
        $region80: #{tpu_custom_call.1} parent=55 // pred_fallthru
          _
        // Predicated region
        $region81: #{tpu_custom_call.1} parent=55 // pred_check
          %p400 = pneg %p197
        $region82: #{tpu_custom_call.1} parent=55 // pred_check_branch
          %402 = sbr.rel (%p400) target = $region84
        $region83: #{tpu_custom_call.1} parent=55 // pred_region
          %403 = dma.done [#allocation14], 16
        $region84: #{tpu_custom_call.1} parent=55 // pred_fallthru
          _
        %s404 = sand.u32 %s37, 1
        %s405 = scalar_lea.sflag [#allocation5], %s404
        %s406 = sand.u32 %s37, 1
        %s407 = smul.addr %s406, 288
        %s408 = scalar_lea.vmem [#allocation4], %s407
        %p409 = pneg %p50
        %p410 = pneg %p47
        %p411 = pneg %p71
        %p412 = pneg %p68
        %p413 = pneg %p92
        %p414 = pneg %p89
        %p415 = pneg %p113
        %p416 = pneg %p110
        %p417 = pneg %p134
        %p418 = pneg %p131
        %p419 = pneg %p155
        %p420 = pneg %p152
        %p421 = pneg %p176
        %p422 = pneg %p173
        %p423 = pneg %p197
        %p424 = pneg %p194
        %p425 = pneg %p218
        %p426 = pneg %p215
        %p427 = pneg %p244
        %p428 = pneg %p241
        %s429 = sand.u32 %s231, 1
        %s430 = scalar_lea.sflag [#allocation6], %s429
        %s431 = sand.u32 %s231, 1
        %s432 = smul.addr %s431, 72
        %s433 = scalar_lea.vmem [#allocation16], %s432
        %v435 = vld [vmem:[%s375] sm:$0xff]
        %v436 = vld [vmem:[%s375 + $0x8] sm:$0xff]
        %v437 = vld [vmem:[%s375 + $0x10] sm:$0xff]
        %v438 = vld [vmem:[%s375 + $0x18] sm:$0xff]
        %v439 = vld [vmem:[%s375 + $0x20] sm:$0xff]
        %v440 = vld [vmem:[%s375 + $0x28] sm:$0xff]
        %v441 = vld [vmem:[%s375 + $0x30] sm:$0xff]
        %v442 = vld [vmem:[%s375 + $0x38] sm:$0xff]
        %v443 = vld [vmem:[%s375 + $0x40] sm:$0xff]
        %v444 = vld [vmem:[%s375 + $0x48] sm:$0xff]
        %v445 = vld [vmem:[%s375 + $0x50] sm:$0xff]
        %v446 = vld [vmem:[%s375 + $0x58] sm:$0xff]
        %v447 = vld [vmem:[%s375 + $0x60] sm:$0xff]
        %v448 = vld [vmem:[%s375 + $0x68] sm:$0xff]
        %v449 = vld [vmem:[%s375 + $0x70] sm:$0xff]
        %v450 = vld [vmem:[%s375 + $0x78] sm:$0xff]
        %v451 = vld [vmem:[%s375 + $0x80] sm:$0xff]
        %v452 = vld [vmem:[%s375 + $0x88] sm:$0xff]
        %v453 = vld [vmem:[%s375 + $0x90] sm:$0xff]
        %v454 = vld [vmem:[%s375 + $0x98] sm:$0xff]
        %v455 = vld [vmem:[%s375 + $0xa0] sm:$0xff]
        %v456 = vld [vmem:[%s375 + $0xa8] sm:$0xff]
        %v457 = vld [vmem:[%s375 + $0xb0] sm:$0xff]
        %v458 = vld [vmem:[%s375 + $0xb8] sm:$0xff]
        %v459 = vld [vmem:[%s375 + $0xc0] sm:$0xff]
        %v460 = vld [vmem:[%s375 + $0xc8] sm:$0xff]
        %v461 = vld [vmem:[%s375 + $0xd0] sm:$0xff]
        %v462 = vld [vmem:[%s375 + $0xd8] sm:$0xff]
        %v463 = vld [vmem:[%s375 + $0xe0] sm:$0xff]
        %v464 = vld [vmem:[%s375 + $0xe8] sm:$0xff]
        %v465 = vld [vmem:[%s375 + $0xf0] sm:$0xff]
        %v466 = vld [vmem:[%s375 + $0xf8] sm:$0xff]
        %v467 = vld [vmem:[%s375 + $0x100] sm:$0xff]
        %v468 = vld [vmem:[%s375 + $0x108] sm:$0xff]
        %v469 = vld [vmem:[%s375 + $0x110] sm:$0xff]
        %v470 = vld [vmem:[%s375 + $0x118] sm:$0xff]
        %v471 = vld [vmem:[#allocation7] sm:$0xff]
        %v472 = vld [vmem:[#allocation7 + $0x8] sm:$0xff]
        %v473 = vld [vmem:[#allocation7 + $0x10] sm:$0xff]
        %v474 = vld [vmem:[#allocation7 + $0x18] sm:$0xff]
        %v475 = vld [vmem:[#allocation7 + $0x20] sm:$0xff]
        %v476 = vld [vmem:[#allocation7 + $0x28] sm:$0xff]
        %v477 = vld [vmem:[#allocation7 + $0x30] sm:$0xff]
        %v478 = vld [vmem:[#allocation7 + $0x38] sm:$0xff]
        %v487 = vunpack.c.l.b16 %v471
        %v488 = vunpack.c.h.b16 %v471
        %v489 = vunpack.c.l.b16 %v472
        %v490 = vunpack.c.h.b16 %v472
        %v491 = vunpack.c.l.b16 %v473
        %v492 = vunpack.c.h.b16 %v473
        %v493 = vunpack.c.l.b16 %v474
        %v494 = vunpack.c.h.b16 %v474
        %v495 = vunpack.c.l.b16 %v475
        %v496 = vunpack.c.h.b16 %v475
        %v497 = vunpack.c.l.b16 %v476
        %v498 = vunpack.c.h.b16 %v476
        %v499 = vunpack.c.l.b16 %v477
        %v500 = vunpack.c.h.b16 %v477
        %v501 = vunpack.c.l.b16 %v478
        %v502 = vunpack.c.h.b16 %v478
        %v503 = vpack.c.b16 %v489, %v487
        %v504 = vpack.c.b16 %v490, %v488
        %v505 = vpack.c.b16 %v493, %v491
        %v506 = vpack.c.b16 %v494, %v492
        %v507 = vpack.c.b16 %v497, %v495
        %v508 = vpack.c.b16 %v498, %v496
        %v509 = vpack.c.b16 %v501, %v499
        %v510 = vpack.c.b16 %v502, %v500
        %v551 = vunpack.c.l.b16 %v435
        %v552 = vunpack.c.h.b16 %v435
        %v553 = vunpack.c.l.b16 %v436
        %v554 = vunpack.c.h.b16 %v436
        %v555 = vunpack.c.l.b16 %v437
        %v556 = vunpack.c.h.b16 %v437
        %v557 = vunpack.c.l.b16 %v438
        %v558 = vunpack.c.h.b16 %v438
        %v559 = vunpack.c.l.b16 %v439
        %v560 = vunpack.c.h.b16 %v439
        %v561 = vunpack.c.l.b16 %v440
        %v562 = vunpack.c.h.b16 %v440
        %v563 = vunpack.c.l.b16 %v441
        %v564 = vunpack.c.h.b16 %v441
        %v565 = vunpack.c.l.b16 %v442
        %v566 = vunpack.c.h.b16 %v442
        %v567 = vunpack.c.l.b16 %v443
        %v568 = vunpack.c.h.b16 %v443
        %v569 = vunpack.c.l.b16 %v444
        %v570 = vunpack.c.h.b16 %v444
        %v571 = vunpack.c.l.b16 %v445
        %v572 = vunpack.c.h.b16 %v445
        %v573 = vunpack.c.l.b16 %v446
        %v574 = vunpack.c.h.b16 %v446
        %v575 = vunpack.c.l.b16 %v447
        %v576 = vunpack.c.h.b16 %v447
        %v577 = vunpack.c.l.b16 %v448
        %v578 = vunpack.c.h.b16 %v448
        %v579 = vunpack.c.l.b16 %v449
        %v580 = vunpack.c.h.b16 %v449
        %v581 = vunpack.c.l.b16 %v450
        %v582 = vunpack.c.h.b16 %v450
        %v583 = vunpack.c.l.b16 %v451
        %v584 = vunpack.c.h.b16 %v451
        %v585 = vunpack.c.l.b16 %v452
        %v586 = vunpack.c.h.b16 %v452
        %v587 = vunpack.c.l.b16 %v453
        %v588 = vunpack.c.h.b16 %v453
        %v589 = vunpack.c.l.b16 %v454
        %v590 = vunpack.c.h.b16 %v454
        %v591 = vunpack.c.l.b16 %v455
        %v592 = vunpack.c.h.b16 %v455
        %v593 = vunpack.c.l.b16 %v456
        %v594 = vunpack.c.h.b16 %v456
        %v595 = vunpack.c.l.b16 %v457
        %v596 = vunpack.c.h.b16 %v457
        %v597 = vunpack.c.l.b16 %v458
        %v598 = vunpack.c.h.b16 %v458
        %v599 = vunpack.c.l.b16 %v459
        %v600 = vunpack.c.h.b16 %v459
        %v601 = vunpack.c.l.b16 %v460
        %v602 = vunpack.c.h.b16 %v460
        %v603 = vunpack.c.l.b16 %v461
        %v604 = vunpack.c.h.b16 %v461
        %v605 = vunpack.c.l.b16 %v462
        %v606 = vunpack.c.h.b16 %v462
        %v607 = vunpack.c.l.b16 %v463
        %v608 = vunpack.c.h.b16 %v463
        %v609 = vunpack.c.l.b16 %v464
        %v610 = vunpack.c.h.b16 %v464
        %v611 = vunpack.c.l.b16 %v465
        %v612 = vunpack.c.h.b16 %v465
        %v613 = vunpack.c.l.b16 %v466
        %v614 = vunpack.c.h.b16 %v466
        %v615 = vunpack.c.l.b16 %v467
        %v616 = vunpack.c.h.b16 %v467
        %v617 = vunpack.c.l.b16 %v468
        %v618 = vunpack.c.h.b16 %v468
        %v619 = vunpack.c.l.b16 %v469
        %v620 = vunpack.c.h.b16 %v469
        %v621 = vunpack.c.l.b16 %v470
        %v622 = vunpack.c.h.b16 %v470
        %v623 = vpack.c.b16 %v555, %v551
        %v624 = vpack.c.b16 %v556, %v552
        %v625 = vpack.c.b16 %v557, %v553
        %v626 = vpack.c.b16 %v558, %v554
        %v627 = vpack.c.b16 %v563, %v559
        %v628 = vpack.c.b16 %v564, %v560
        %v629 = vpack.c.b16 %v565, %v561
        %v630 = vpack.c.b16 %v566, %v562
        %v631 = vpack.c.b16 %v571, %v567
        %v632 = vpack.c.b16 %v572, %v568
        %v633 = vpack.c.b16 %v573, %v569
        %v634 = vpack.c.b16 %v574, %v570
        %v635 = vpack.c.b16 %v579, %v575
        %v636 = vpack.c.b16 %v580, %v576
        %v637 = vpack.c.b16 %v581, %v577
        %v638 = vpack.c.b16 %v582, %v578
        %v639 = vpack.c.b16 %v587, %v583
        %v640 = vpack.c.b16 %v588, %v584
        %v641 = vpack.c.b16 %v589, %v585
        %v642 = vpack.c.b16 %v590, %v586
        %v643 = vpack.c.b16 %v595, %v591
        %v644 = vpack.c.b16 %v596, %v592
        %v645 = vpack.c.b16 %v597, %v593
        %v646 = vpack.c.b16 %v598, %v594
        %v647 = vpack.c.b16 %v603, %v599
        %v648 = vpack.c.b16 %v604, %v600
        %v649 = vpack.c.b16 %v605, %v601
        %v650 = vpack.c.b16 %v606, %v602
        %v651 = vpack.c.b16 %v611, %v607
        %v652 = vpack.c.b16 %v612, %v608
        %v653 = vpack.c.b16 %v613, %v609
        %v654 = vpack.c.b16 %v614, %v610
        %v655 = vpack.c.b16 %v619, %v615
        %v656 = vpack.c.b16 %v620, %v616
        %v657 = vpack.c.b16 %v621, %v617
        %v658 = vpack.c.b16 %v622, %v618
        %vm695 = vcmask 130048
        %v697 = vsel %vm695, %v504, 0
        %v700 = vsel %vm695, %v506, 0
        %v703 = vsel %vm695, %v508, 0
        %v706 = vsel %vm695, %v510, 0
        %708 = vmatprep.subr.bf16.mxu0 %v652
        %709 = vmatpush1.bf16.msra.mxu0 %v651
        %710 = vmatprep.subr.bf16.mxu0 %v648
        %711 = vmatpush1.bf16.msra.mxu0 %v647
        %712 = vmatprep.subr.bf16.mxu0 %v644
        %713 = vmatpush1.bf16.msra.mxu0 %v643
        %714 = vmatprep.subr.bf16.mxu0 %v640
        %715 = vmatpush1.bf16.msra.mxu0 %v639
        %716 = vmatprep.subr.bf16.mxu0 %v636
        %717 = vmatpush1.bf16.msra.mxu0 %v635
        %718 = vmatprep.subr.bf16.mxu0 %v632
        %719 = vmatpush1.bf16.msra.mxu0 %v631
        %720 = vmatprep.subr.bf16.mxu0 %v628
        %721 = vmatpush1.bf16.msra.mxu0 %v627
        %722 = vmatprep.subr.bf16.mxu0 %v624
        %723 = vmatpush1.bf16.msra.mxu0 %v623
        %724 = vmatprep.subr.bf16.mxu0 0
        %725 = vmatpush2.bf16.msra.mxu0 0
        %726 = vmatprep.subr.bf16.mxu0 0
        %727 = vmatpush2.bf16.msra.mxu0 0
        %728 = vmatprep.subr.bf16.mxu0 0
        %729 = vmatpush2.bf16.msra.mxu0 0
        %730 = vmatprep.subr.bf16.mxu0 0
        %731 = vmatpush2.bf16.msra.mxu0 0
        %732 = vmatprep.subr.bf16.mxu0 0
        %733 = vmatpush2.bf16.msra.mxu0 0
        %734 = vmatprep.subr.bf16.mxu0 0
        %735 = vmatpush2.bf16.msra.mxu0 0
        %736 = vmatprep.subr.bf16.mxu0 0
        %737 = vmatpush2.bf16.msra.mxu0 0
        %738 = vmatprep.subr.bf16.mxu0 %v656
        %739 = vmatpush2.bf16.msra.mxu0 %v655
        %740 = vmatprep.mubr.bf16.mxu0 %v697
        %741 = vmatmul.mubr.bf16.gmra.mxu0 %v503
        %v742 = vpop.f32.mrf.mxu0
        %v743 = vadd.f32 0.0, %v742
        %v744 = vpop.f32.mrf.mxu0
        %v745 = vadd.f32 0.0, %v744
        %v746 = vpop.f32.mrf.mxu0
        %v747 = vadd.f32 0.0, %v746
        %v748 = vpop.f32.mrf.mxu0
        %v749 = vadd.f32 0.0, %v748
        %750 = vmatprep.mubr.bf16.mxu0 %v700
        %751 = vmatmul.mubr.bf16.gmra.mxu0 %v505
        %v752 = vpop.f32.mrf.mxu0
        %v753 = vadd.f32 0.0, %v752
        %v754 = vpop.f32.mrf.mxu0
        %v755 = vadd.f32 0.0, %v754
        %v756 = vpop.f32.mrf.mxu0
        %v757 = vadd.f32 0.0, %v756
        %v758 = vpop.f32.mrf.mxu0
        %v759 = vadd.f32 0.0, %v758
        %760 = vmatprep.mubr.bf16.mxu0 %v703
        %761 = vmatmul.mubr.bf16.gmra.mxu0 %v507
        %v762 = vpop.f32.mrf.mxu0
        %v763 = vadd.f32 0.0, %v762
        %v764 = vpop.f32.mrf.mxu0
        %v765 = vadd.f32 0.0, %v764
        %v766 = vpop.f32.mrf.mxu0
        %v767 = vadd.f32 0.0, %v766
        %v768 = vpop.f32.mrf.mxu0
        %v769 = vadd.f32 0.0, %v768
        %770 = vmatprep.mubr.bf16.mxu0 %v706
        %771 = vmatmul.mubr.bf16.gmra.mxu0 %v509
        %v772 = vpop.f32.mrf.mxu0
        %v773 = vadd.f32 0.0, %v772
        %v774 = vpop.f32.mrf.mxu0
        %v775 = vadd.f32 0.0, %v774
        %v776 = vpop.f32.mrf.mxu0
        %v777 = vadd.f32 0.0, %v776
        %v778 = vpop.f32.mrf.mxu0
        %v779 = vadd.f32 0.0, %v778
        %780 = vdwg.mxu0
        %781 = vmatprep.subr.bf16.mxu0 %v654
        %782 = vmatpush1.bf16.msra.mxu0 %v653
        %783 = vmatprep.subr.bf16.mxu0 %v650
        %784 = vmatpush1.bf16.msra.mxu0 %v649
        %785 = vmatprep.subr.bf16.mxu0 %v646
        %786 = vmatpush1.bf16.msra.mxu0 %v645
        %787 = vmatprep.subr.bf16.mxu0 %v642
        %788 = vmatpush1.bf16.msra.mxu0 %v641
        %789 = vmatprep.subr.bf16.mxu0 %v638
        %790 = vmatpush1.bf16.msra.mxu0 %v637
        %791 = vmatprep.subr.bf16.mxu0 %v634
        %792 = vmatpush1.bf16.msra.mxu0 %v633
        %793 = vmatprep.subr.bf16.mxu0 %v630
        %794 = vmatpush1.bf16.msra.mxu0 %v629
        %795 = vmatprep.subr.bf16.mxu0 %v626
        %796 = vmatpush1.bf16.msra.mxu0 %v625
        %797 = vmatprep.subr.bf16.mxu0 0
        %798 = vmatpush2.bf16.msra.mxu0 0
        %799 = vmatprep.subr.bf16.mxu0 0
        %800 = vmatpush2.bf16.msra.mxu0 0
        %801 = vmatprep.subr.bf16.mxu0 0
        %802 = vmatpush2.bf16.msra.mxu0 0
        %803 = vmatprep.subr.bf16.mxu0 0
        %804 = vmatpush2.bf16.msra.mxu0 0
        %805 = vmatprep.subr.bf16.mxu0 0
        %806 = vmatpush2.bf16.msra.mxu0 0
        %807 = vmatprep.subr.bf16.mxu0 0
        %808 = vmatpush2.bf16.msra.mxu0 0
        %809 = vmatprep.subr.bf16.mxu0 0
        %810 = vmatpush2.bf16.msra.mxu0 0
        %811 = vmatprep.subr.bf16.mxu0 %v658
        %812 = vmatpush2.bf16.msra.mxu0 %v657
        %813 = vmatprep.mubr.bf16.mxu0 %v697
        %814 = vmatmul.mubr.bf16.gmra.mxu0 %v503
        %v815 = vpop.f32.mrf.mxu0
        %v816 = vadd.f32 0.0, %v815
        %v817 = vpop.f32.mrf.mxu0
        %v818 = vadd.f32 0.0, %v817
        %v819 = vpop.f32.mrf.mxu0
        %v820 = vadd.f32 0.0, %v819
        %v821 = vpop.f32.mrf.mxu0
        %v822 = vadd.f32 0.0, %v821
        %823 = vmatprep.mubr.bf16.mxu0 %v700
        %824 = vmatmul.mubr.bf16.gmra.mxu0 %v505
        %v825 = vpop.f32.mrf.mxu0
        %v826 = vadd.f32 0.0, %v825
        %v827 = vpop.f32.mrf.mxu0
        %v828 = vadd.f32 0.0, %v827
        %v829 = vpop.f32.mrf.mxu0
        %v830 = vadd.f32 0.0, %v829
        %v831 = vpop.f32.mrf.mxu0
        %v832 = vadd.f32 0.0, %v831
        %833 = vmatprep.mubr.bf16.mxu0 %v703
        %834 = vmatmul.mubr.bf16.gmra.mxu0 %v507
        %v835 = vpop.f32.mrf.mxu0
        %v836 = vadd.f32 0.0, %v835
        %v837 = vpop.f32.mrf.mxu0
        %v838 = vadd.f32 0.0, %v837
        %v839 = vpop.f32.mrf.mxu0
        %v840 = vadd.f32 0.0, %v839
        %v841 = vpop.f32.mrf.mxu0
        %v842 = vadd.f32 0.0, %v841
        %843 = vmatprep.mubr.bf16.mxu0 %v706
        %844 = vmatmul.mubr.bf16.gmra.mxu0 %v509
        %v845 = vpop.f32.mrf.mxu0
        %v846 = vadd.f32 0.0, %v845
        %v847 = vpop.f32.mrf.mxu0
        %v848 = vadd.f32 0.0, %v847
        %v849 = vpop.f32.mrf.mxu0
        %v850 = vadd.f32 0.0, %v849
        %v851 = vpop.f32.mrf.mxu0
        %v852 = vadd.f32 0.0, %v851
        %853 = vdwg.mxu0
        %v854 = vpack.c.bf16 %v747, %v743
        %v855 = vpack.c.bf16 %v749, %v745
        %v856 = vpack.c.bf16 %v820, %v816
        %v857 = vpack.c.bf16 %v822, %v818
        %v858 = vpack.c.bf16 %v757, %v753
        %v859 = vpack.c.bf16 %v759, %v755
        %v860 = vpack.c.bf16 %v830, %v826
        %v861 = vpack.c.bf16 %v832, %v828
        %v862 = vpack.c.bf16 %v767, %v763
        %v863 = vpack.c.bf16 %v769, %v765
        %v864 = vpack.c.bf16 %v840, %v836
        %v865 = vpack.c.bf16 %v842, %v838
        %v866 = vpack.c.bf16 %v777, %v773
        %v867 = vpack.c.bf16 %v779, %v775
        %v868 = vpack.c.bf16 %v850, %v846
        %v869 = vpack.c.bf16 %v852, %v848
        %v870 = vld [vmem:[#allocation9] sm:$0xff]
        %v871 = vld [vmem:[#allocation9 + $0x8] sm:$0xff]
        %v872 = vld [vmem:[#allocation9 + $0x10] sm:$0xff]
        %v873 = vld [vmem:[#allocation9 + $0x18] sm:$0xff]
        %v874 = vld [vmem:[#allocation9 + $0x20] sm:$0xff]
        %v875 = vld [vmem:[#allocation9 + $0x28] sm:$0xff]
        %v876 = vld [vmem:[#allocation9 + $0x30] sm:$0xff]
        %v877 = vld [vmem:[#allocation9 + $0x38] sm:$0xff]
        %v878 = vld [vmem:[#allocation9 + $0x40] sm:$0xff]
        %v879 = vld [vmem:[#allocation9 + $0x48] sm:$0xff]
        %v880 = vld [vmem:[#allocation9 + $0x50] sm:$0xff]
        %v881 = vld [vmem:[#allocation9 + $0x58] sm:$0xff]
        %v882 = vld [vmem:[#allocation9 + $0x60] sm:$0xff]
        %v883 = vld [vmem:[#allocation9 + $0x68] sm:$0xff]
        %v884 = vld [vmem:[#allocation9 + $0x70] sm:$0xff]
        %v885 = vld [vmem:[#allocation9 + $0x78] sm:$0xff]
        %v886 = vld [vmem:[#allocation9 + $0x80] sm:$0xff]
        %v887 = vld [vmem:[#allocation9 + $0x88] sm:$0xff]
        %v888 = vld [vmem:[#allocation9 + $0x90] sm:$0xff]
        %v889 = vld [vmem:[#allocation9 + $0x98] sm:$0xff]
        %v890 = vld [vmem:[#allocation9 + $0xa0] sm:$0xff]
        %v891 = vld [vmem:[#allocation9 + $0xa8] sm:$0xff]
        %v892 = vld [vmem:[#allocation9 + $0xb0] sm:$0xff]
        %v893 = vld [vmem:[#allocation9 + $0xb8] sm:$0xff]
        %v894 = vld [vmem:[#allocation9 + $0xc0] sm:$0xff]
        %v895 = vld [vmem:[#allocation9 + $0xc8] sm:$0xff]
        %v896 = vld [vmem:[#allocation9 + $0xd0] sm:$0xff]
        %v897 = vld [vmem:[#allocation9 + $0xd8] sm:$0xff]
        %v898 = vld [vmem:[#allocation9 + $0xe0] sm:$0xff]
        %v899 = vld [vmem:[#allocation9 + $0xe8] sm:$0xff]
        %v900 = vld [vmem:[#allocation9 + $0xf0] sm:$0xff]
        %v901 = vld [vmem:[#allocation9 + $0xf8] sm:$0xff]
        %v902 = vld [vmem:[#allocation9 + $0x100] sm:$0xff]
        %v903 = vld [vmem:[#allocation9 + $0x108] sm:$0xff]
        %v904 = vld [vmem:[#allocation9 + $0x110] sm:$0xff]
        %v905 = vld [vmem:[#allocation9 + $0x118] sm:$0xff]
        %v906 = vld [vmem:[#allocation9 + $0x120] sm:$0xff]
        %v907 = vld [vmem:[#allocation9 + $0x128] sm:$0xff]
        %v908 = vld [vmem:[#allocation9 + $0x130] sm:$0xff]
        %v909 = vld [vmem:[#allocation9 + $0x138] sm:$0xff]
        %v910 = vld [vmem:[#allocation9 + $0x140] sm:$0xff]
        %v911 = vld [vmem:[#allocation9 + $0x148] sm:$0xff]
        %v912 = vld [vmem:[#allocation9 + $0x150] sm:$0xff]
        %v913 = vld [vmem:[#allocation9 + $0x158] sm:$0xff]
        %v914 = vld [vmem:[#allocation9 + $0x160] sm:$0xff]
        %v915 = vld [vmem:[#allocation9 + $0x168] sm:$0xff]
        %v916 = vld [vmem:[#allocation9 + $0x170] sm:$0xff]
        %v917 = vld [vmem:[#allocation9 + $0x178] sm:$0xff]
        %v918 = vld [vmem:[#allocation9 + $0x180] sm:$0xff]
        %v919 = vld [vmem:[#allocation9 + $0x188] sm:$0xff]
        %v920 = vld [vmem:[#allocation9 + $0x190] sm:$0xff]
        %v921 = vld [vmem:[#allocation9 + $0x198] sm:$0xff]
        %v922 = vld [vmem:[#allocation9 + $0x1a0] sm:$0xff]
        %v923 = vld [vmem:[#allocation9 + $0x1a8] sm:$0xff]
        %v924 = vld [vmem:[#allocation9 + $0x1b0] sm:$0xff]
        %v925 = vld [vmem:[#allocation9 + $0x1b8] sm:$0xff]
        %v926 = vld [vmem:[#allocation9 + $0x1c0] sm:$0xff]
        %v927 = vld [vmem:[#allocation9 + $0x1c8] sm:$0xff]
        %v928 = vld [vmem:[#allocation9 + $0x1d0] sm:$0xff]
        %v929 = vld [vmem:[#allocation9 + $0x1d8] sm:$0xff]
        %v930 = vld [vmem:[#allocation9 + $0x1e0] sm:$0xff]
        %v931 = vld [vmem:[#allocation9 + $0x1e8] sm:$0xff]
        %v932 = vld [vmem:[#allocation9 + $0x1f0] sm:$0xff]
        %v933 = vld [vmem:[#allocation9 + $0x1f8] sm:$0xff]
        %v934 = vld [vmem:[#allocation9 + $0x200] sm:$0xff]
        %v935 = vld [vmem:[#allocation9 + $0x208] sm:$0xff]
        %v936 = vld [vmem:[#allocation9 + $0x210] sm:$0xff]
        %v937 = vld [vmem:[#allocation9 + $0x218] sm:$0xff]
        %v938 = vld [vmem:[#allocation9 + $0x220] sm:$0xff]
        %v939 = vld [vmem:[#allocation9 + $0x228] sm:$0xff]
        %v940 = vld [vmem:[#allocation9 + $0x230] sm:$0xff]
        %v941 = vld [vmem:[#allocation9 + $0x238] sm:$0xff]
        %v942 = vld [vmem:[#allocation9 + $0x240] sm:$0xff]
        %v943 = vld [vmem:[#allocation9 + $0x248] sm:$0xff]
        %v944 = vld [vmem:[#allocation9 + $0x250] sm:$0xff]
        %v945 = vld [vmem:[#allocation9 + $0x258] sm:$0xff]
        %v946 = vld [vmem:[#allocation9 + $0x260] sm:$0xff]
        %v947 = vld [vmem:[#allocation9 + $0x268] sm:$0xff]
        %v948 = vld [vmem:[#allocation9 + $0x270] sm:$0xff]
        %v949 = vld [vmem:[#allocation9 + $0x278] sm:$0xff]
        %v950 = vld [vmem:[#allocation9 + $0x280] sm:$0xff]
        %v951 = vld [vmem:[#allocation9 + $0x288] sm:$0xff]
        %v952 = vld [vmem:[#allocation9 + $0x290] sm:$0xff]
        %v953 = vld [vmem:[#allocation9 + $0x298] sm:$0xff]
        %v954 = vld [vmem:[#allocation9 + $0x2a0] sm:$0xff]
        %v955 = vld [vmem:[#allocation9 + $0x2a8] sm:$0xff]
        %v956 = vld [vmem:[#allocation9 + $0x2b0] sm:$0xff]
        %v957 = vld [vmem:[#allocation9 + $0x2b8] sm:$0xff]
        %v958 = vld [vmem:[#allocation9 + $0x2c0] sm:$0xff]
        %v959 = vld [vmem:[#allocation9 + $0x2c8] sm:$0xff]
        %v960 = vld [vmem:[#allocation9 + $0x2d0] sm:$0xff]
        %v961 = vld [vmem:[#allocation9 + $0x2d8] sm:$0xff]
        %v962 = vld [vmem:[#allocation9 + $0x2e0] sm:$0xff]
        %v963 = vld [vmem:[#allocation9 + $0x2e8] sm:$0xff]
        %v964 = vld [vmem:[#allocation9 + $0x2f0] sm:$0xff]
        %v965 = vld [vmem:[#allocation9 + $0x2f8] sm:$0xff]
        %v966 = vld [vmem:[#allocation9 + $0x300] sm:$0xff]
        %v967 = vld [vmem:[#allocation9 + $0x308] sm:$0xff]
        %v968 = vld [vmem:[#allocation9 + $0x310] sm:$0xff]
        %v969 = vld [vmem:[#allocation9 + $0x318] sm:$0xff]
        %v970 = vld [vmem:[#allocation9 + $0x320] sm:$0xff]
        %v971 = vld [vmem:[#allocation9 + $0x328] sm:$0xff]
        %v972 = vld [vmem:[#allocation9 + $0x330] sm:$0xff]
        %v973 = vld [vmem:[#allocation9 + $0x338] sm:$0xff]
        %v974 = vld [vmem:[#allocation9 + $0x340] sm:$0xff]
        %v975 = vld [vmem:[#allocation9 + $0x348] sm:$0xff]
        %v976 = vld [vmem:[#allocation9 + $0x350] sm:$0xff]
        %v977 = vld [vmem:[#allocation9 + $0x358] sm:$0xff]
        %v978 = vld [vmem:[#allocation9 + $0x360] sm:$0xff]
        %v979 = vld [vmem:[#allocation9 + $0x368] sm:$0xff]
        %v980 = vld [vmem:[#allocation9 + $0x370] sm:$0xff]
        %v981 = vld [vmem:[#allocation9 + $0x378] sm:$0xff]
        %v982 = vld [vmem:[#allocation9 + $0x380] sm:$0xff]
        %v983 = vld [vmem:[#allocation9 + $0x388] sm:$0xff]
        %v984 = vld [vmem:[#allocation9 + $0x390] sm:$0xff]
        %v985 = vld [vmem:[#allocation9 + $0x398] sm:$0xff]
        %v986 = vld [vmem:[#allocation9 + $0x3a0] sm:$0xff]
        %v987 = vld [vmem:[#allocation9 + $0x3a8] sm:$0xff]
        %v988 = vld [vmem:[#allocation9 + $0x3b0] sm:$0xff]
        %v989 = vld [vmem:[#allocation9 + $0x3b8] sm:$0xff]
        %v990 = vld [vmem:[#allocation9 + $0x3c0] sm:$0xff]
        %v991 = vld [vmem:[#allocation9 + $0x3c8] sm:$0xff]
        %v992 = vld [vmem:[#allocation9 + $0x3d0] sm:$0xff]
        %v993 = vld [vmem:[#allocation9 + $0x3d8] sm:$0xff]
        %v994 = vld [vmem:[#allocation9 + $0x3e0] sm:$0xff]
        %v995 = vld [vmem:[#allocation9 + $0x3e8] sm:$0xff]
        %v996 = vld [vmem:[#allocation9 + $0x3f0] sm:$0xff]
        %v997 = vld [vmem:[#allocation9 + $0x3f8] sm:$0xff]
        %v998 = vld [vmem:[#allocation10] sm:$0xf]
        %v1000 = vlaneseq
        %v1001 = vshrl.u32 %v1000, 7
        %v1002 = vsub.s32 0, %v1001
        %v1003 = vrot.slane %v998, %v1002
        %v1004 = vlaneseq
        %v1005 = vshrl.u32 %v1004, 7
        %v1006 = vsub.s32 1, %v1005
        %v1007 = vrot.slane %v998, %v1006
        %v1008 = vlaneseq
        %v1009 = vshrl.u32 %v1008, 7
        %v1010 = vsub.s32 2, %v1009
        %v1011 = vrot.slane %v998, %v1010
        %v1012 = vlaneseq
        %v1013 = vshrl.u32 %v1012, 7
        %v1014 = vsub.s32 3, %v1013
        %v1015 = vrot.slane %v998, %v1014
        %v1148 = vunpack.c.l.b16 %v870
        %v1149 = vunpack.c.h.b16 %v870
        %v1150 = vunpack.c.l.b16 %v871
        %v1151 = vunpack.c.h.b16 %v871
        %v1152 = vunpack.c.l.b16 %v872
        %v1153 = vunpack.c.h.b16 %v872
        %v1154 = vunpack.c.l.b16 %v873
        %v1155 = vunpack.c.h.b16 %v873
        %v1156 = vunpack.c.l.b16 %v874
        %v1157 = vunpack.c.h.b16 %v874
        %v1158 = vunpack.c.l.b16 %v875
        %v1159 = vunpack.c.h.b16 %v875
        %v1160 = vunpack.c.l.b16 %v876
        %v1161 = vunpack.c.h.b16 %v876
        %v1162 = vunpack.c.l.b16 %v877
        %v1163 = vunpack.c.h.b16 %v877
        %v1164 = vunpack.c.l.b16 %v878
        %v1165 = vunpack.c.h.b16 %v878
        %v1166 = vunpack.c.l.b16 %v879
        %v1167 = vunpack.c.h.b16 %v879
        %v1168 = vunpack.c.l.b16 %v880
        %v1169 = vunpack.c.h.b16 %v880
        %v1170 = vunpack.c.l.b16 %v881
        %v1171 = vunpack.c.h.b16 %v881
        %v1172 = vunpack.c.l.b16 %v882
        %v1173 = vunpack.c.h.b16 %v882
        %v1174 = vunpack.c.l.b16 %v883
        %v1175 = vunpack.c.h.b16 %v883
        %v1176 = vunpack.c.l.b16 %v884
        %v1177 = vunpack.c.h.b16 %v884
        %v1178 = vunpack.c.l.b16 %v885
        %v1179 = vunpack.c.h.b16 %v885
        %v1180 = vunpack.c.l.b16 %v886
        %v1181 = vunpack.c.h.b16 %v886
        %v1182 = vunpack.c.l.b16 %v887
        %v1183 = vunpack.c.h.b16 %v887
        %v1184 = vunpack.c.l.b16 %v888
        %v1185 = vunpack.c.h.b16 %v888
        %v1186 = vunpack.c.l.b16 %v889
        %v1187 = vunpack.c.h.b16 %v889
        %v1188 = vunpack.c.l.b16 %v890
        %v1189 = vunpack.c.h.b16 %v890
        %v1190 = vunpack.c.l.b16 %v891
        %v1191 = vunpack.c.h.b16 %v891
        %v1192 = vunpack.c.l.b16 %v892
        %v1193 = vunpack.c.h.b16 %v892
        %v1194 = vunpack.c.l.b16 %v893
        %v1195 = vunpack.c.h.b16 %v893
        %v1196 = vunpack.c.l.b16 %v894
        %v1197 = vunpack.c.h.b16 %v894
        %v1198 = vunpack.c.l.b16 %v895
        %v1199 = vunpack.c.h.b16 %v895
        %v1200 = vunpack.c.l.b16 %v896
        %v1201 = vunpack.c.h.b16 %v896
        %v1202 = vunpack.c.l.b16 %v897
        %v1203 = vunpack.c.h.b16 %v897
        %v1204 = vunpack.c.l.b16 %v898
        %v1205 = vunpack.c.h.b16 %v898
        %v1206 = vunpack.c.l.b16 %v899
        %v1207 = vunpack.c.h.b16 %v899
        %v1208 = vunpack.c.l.b16 %v900
        %v1209 = vunpack.c.h.b16 %v900
        %v1210 = vunpack.c.l.b16 %v901
        %v1211 = vunpack.c.h.b16 %v901
        %v1212 = vunpack.c.l.b16 %v902
        %v1213 = vunpack.c.h.b16 %v902
        %v1214 = vunpack.c.l.b16 %v903
        %v1215 = vunpack.c.h.b16 %v903
        %v1216 = vunpack.c.l.b16 %v904
        %v1217 = vunpack.c.h.b16 %v904
        %v1218 = vunpack.c.l.b16 %v905
        %v1219 = vunpack.c.h.b16 %v905
        %v1220 = vunpack.c.l.b16 %v906
        %v1221 = vunpack.c.h.b16 %v906
        %v1222 = vunpack.c.l.b16 %v907
        %v1223 = vunpack.c.h.b16 %v907
        %v1224 = vunpack.c.l.b16 %v908
        %v1225 = vunpack.c.h.b16 %v908
        %v1226 = vunpack.c.l.b16 %v909
        %v1227 = vunpack.c.h.b16 %v909
        %v1228 = vunpack.c.l.b16 %v910
        %v1229 = vunpack.c.h.b16 %v910
        %v1230 = vunpack.c.l.b16 %v911
        %v1231 = vunpack.c.h.b16 %v911
        %v1232 = vunpack.c.l.b16 %v912
        %v1233 = vunpack.c.h.b16 %v912
        %v1234 = vunpack.c.l.b16 %v913
        %v1235 = vunpack.c.h.b16 %v913
        %v1236 = vunpack.c.l.b16 %v914
        %v1237 = vunpack.c.h.b16 %v914
        %v1238 = vunpack.c.l.b16 %v915
        %v1239 = vunpack.c.h.b16 %v915
        %v1240 = vunpack.c.l.b16 %v916
        %v1241 = vunpack.c.h.b16 %v916
        %v1242 = vunpack.c.l.b16 %v917
        %v1243 = vunpack.c.h.b16 %v917
        %v1244 = vunpack.c.l.b16 %v918
        %v1245 = vunpack.c.h.b16 %v918
        %v1246 = vunpack.c.l.b16 %v919
        %v1247 = vunpack.c.h.b16 %v919
        %v1248 = vunpack.c.l.b16 %v920
        %v1249 = vunpack.c.h.b16 %v920
        %v1250 = vunpack.c.l.b16 %v921
        %v1251 = vunpack.c.h.b16 %v921
        %v1252 = vunpack.c.l.b16 %v922
        %v1253 = vunpack.c.h.b16 %v922
        %v1254 = vunpack.c.l.b16 %v923
        %v1255 = vunpack.c.h.b16 %v923
        %v1256 = vunpack.c.l.b16 %v924
        %v1257 = vunpack.c.h.b16 %v924
        %v1258 = vunpack.c.l.b16 %v925
        %v1259 = vunpack.c.h.b16 %v925
        %v1260 = vunpack.c.l.b16 %v926
        %v1261 = vunpack.c.h.b16 %v926
        %v1262 = vunpack.c.l.b16 %v927
        %v1263 = vunpack.c.h.b16 %v927
        %v1264 = vunpack.c.l.b16 %v928
        %v1265 = vunpack.c.h.b16 %v928
        %v1266 = vunpack.c.l.b16 %v929
        %v1267 = vunpack.c.h.b16 %v929
        %v1268 = vunpack.c.l.b16 %v930
        %v1269 = vunpack.c.h.b16 %v930
        %v1270 = vunpack.c.l.b16 %v931
        %v1271 = vunpack.c.h.b16 %v931
        %v1272 = vunpack.c.l.b16 %v932
        %v1273 = vunpack.c.h.b16 %v932
        %v1274 = vunpack.c.l.b16 %v933
        %v1275 = vunpack.c.h.b16 %v933
        %v1276 = vunpack.c.l.b16 %v934
        %v1277 = vunpack.c.h.b16 %v934
        %v1278 = vunpack.c.l.b16 %v935
        %v1279 = vunpack.c.h.b16 %v935
        %v1280 = vunpack.c.l.b16 %v936
        %v1281 = vunpack.c.h.b16 %v936
        %v1282 = vunpack.c.l.b16 %v937
        %v1283 = vunpack.c.h.b16 %v937
        %v1284 = vunpack.c.l.b16 %v938
        %v1285 = vunpack.c.h.b16 %v938
        %v1286 = vunpack.c.l.b16 %v939
        %v1287 = vunpack.c.h.b16 %v939
        %v1288 = vunpack.c.l.b16 %v940
        %v1289 = vunpack.c.h.b16 %v940
        %v1290 = vunpack.c.l.b16 %v941
        %v1291 = vunpack.c.h.b16 %v941
        %v1292 = vunpack.c.l.b16 %v942
        %v1293 = vunpack.c.h.b16 %v942
        %v1294 = vunpack.c.l.b16 %v943
        %v1295 = vunpack.c.h.b16 %v943
        %v1296 = vunpack.c.l.b16 %v944
        %v1297 = vunpack.c.h.b16 %v944
        %v1298 = vunpack.c.l.b16 %v945
        %v1299 = vunpack.c.h.b16 %v945
        %v1300 = vunpack.c.l.b16 %v946
        %v1301 = vunpack.c.h.b16 %v946
        %v1302 = vunpack.c.l.b16 %v947
        %v1303 = vunpack.c.h.b16 %v947
        %v1304 = vunpack.c.l.b16 %v948
        %v1305 = vunpack.c.h.b16 %v948
        %v1306 = vunpack.c.l.b16 %v949
        %v1307 = vunpack.c.h.b16 %v949
        %v1308 = vunpack.c.l.b16 %v950
        %v1309 = vunpack.c.h.b16 %v950
        %v1310 = vunpack.c.l.b16 %v951
        %v1311 = vunpack.c.h.b16 %v951
        %v1312 = vunpack.c.l.b16 %v952
        %v1313 = vunpack.c.h.b16 %v952
        %v1314 = vunpack.c.l.b16 %v953
        %v1315 = vunpack.c.h.b16 %v953
        %v1316 = vunpack.c.l.b16 %v954
        %v1317 = vunpack.c.h.b16 %v954
        %v1318 = vunpack.c.l.b16 %v955
        %v1319 = vunpack.c.h.b16 %v955
        %v1320 = vunpack.c.l.b16 %v956
        %v1321 = vunpack.c.h.b16 %v956
        %v1322 = vunpack.c.l.b16 %v957
        %v1323 = vunpack.c.h.b16 %v957
        %v1324 = vunpack.c.l.b16 %v958
        %v1325 = vunpack.c.h.b16 %v958
        %v1326 = vunpack.c.l.b16 %v959
        %v1327 = vunpack.c.h.b16 %v959
        %v1328 = vunpack.c.l.b16 %v960
        %v1329 = vunpack.c.h.b16 %v960
        %v1330 = vunpack.c.l.b16 %v961
        %v1331 = vunpack.c.h.b16 %v961
        %v1332 = vunpack.c.l.b16 %v962
        %v1333 = vunpack.c.h.b16 %v962
        %v1334 = vunpack.c.l.b16 %v963
        %v1335 = vunpack.c.h.b16 %v963
        %v1336 = vunpack.c.l.b16 %v964
        %v1337 = vunpack.c.h.b16 %v964
        %v1338 = vunpack.c.l.b16 %v965
        %v1339 = vunpack.c.h.b16 %v965
        %v1340 = vunpack.c.l.b16 %v966
        %v1341 = vunpack.c.h.b16 %v966
        %v1342 = vunpack.c.l.b16 %v967
        %v1343 = vunpack.c.h.b16 %v967
        %v1344 = vunpack.c.l.b16 %v968
        %v1345 = vunpack.c.h.b16 %v968
        %v1346 = vunpack.c.l.b16 %v969
        %v1347 = vunpack.c.h.b16 %v969
        %v1348 = vunpack.c.l.b16 %v970
        %v1349 = vunpack.c.h.b16 %v970
        %v1350 = vunpack.c.l.b16 %v971
        %v1351 = vunpack.c.h.b16 %v971
        %v1352 = vunpack.c.l.b16 %v972
        %v1353 = vunpack.c.h.b16 %v972
        %v1354 = vunpack.c.l.b16 %v973
        %v1355 = vunpack.c.h.b16 %v973
        %v1356 = vunpack.c.l.b16 %v974
        %v1357 = vunpack.c.h.b16 %v974
        %v1358 = vunpack.c.l.b16 %v975
        %v1359 = vunpack.c.h.b16 %v975
        %v1360 = vunpack.c.l.b16 %v976
        %v1361 = vunpack.c.h.b16 %v976
        %v1362 = vunpack.c.l.b16 %v977
        %v1363 = vunpack.c.h.b16 %v977
        %v1364 = vunpack.c.l.b16 %v978
        %v1365 = vunpack.c.h.b16 %v978
        %v1366 = vunpack.c.l.b16 %v979
        %v1367 = vunpack.c.h.b16 %v979
        %v1368 = vunpack.c.l.b16 %v980
        %v1369 = vunpack.c.h.b16 %v980
        %v1370 = vunpack.c.l.b16 %v981
        %v1371 = vunpack.c.h.b16 %v981
        %v1372 = vunpack.c.l.b16 %v982
        %v1373 = vunpack.c.h.b16 %v982
        %v1374 = vunpack.c.l.b16 %v983
        %v1375 = vunpack.c.h.b16 %v983
        %v1376 = vunpack.c.l.b16 %v984
        %v1377 = vunpack.c.h.b16 %v984
        %v1378 = vunpack.c.l.b16 %v985
        %v1379 = vunpack.c.h.b16 %v985
        %v1380 = vunpack.c.l.b16 %v986
        %v1381 = vunpack.c.h.b16 %v986
        %v1382 = vunpack.c.l.b16 %v987
        %v1383 = vunpack.c.h.b16 %v987
        %v1384 = vunpack.c.l.b16 %v988
        %v1385 = vunpack.c.h.b16 %v988
        %v1386 = vunpack.c.l.b16 %v989
        %v1387 = vunpack.c.h.b16 %v989
        %v1388 = vunpack.c.l.b16 %v990
        %v1389 = vunpack.c.h.b16 %v990
        %v1390 = vunpack.c.l.b16 %v991
        %v1391 = vunpack.c.h.b16 %v991
        %v1392 = vunpack.c.l.b16 %v992
        %v1393 = vunpack.c.h.b16 %v992
        %v1394 = vunpack.c.l.b16 %v993
        %v1395 = vunpack.c.h.b16 %v993
        %v1396 = vunpack.c.l.b16 %v994
        %v1397 = vunpack.c.h.b16 %v994
        %v1398 = vunpack.c.l.b16 %v995
        %v1399 = vunpack.c.h.b16 %v995
        %v1400 = vunpack.c.l.b16 %v996
        %v1401 = vunpack.c.h.b16 %v996
        %v1402 = vunpack.c.l.b16 %v997
        %v1403 = vunpack.c.h.b16 %v997
        %v1404 = vpack.c.b16 %v1152, %v1148
        %v1405 = vpack.c.b16 %v1153, %v1149
        %v1406 = vpack.c.b16 %v1154, %v1150
        %v1407 = vpack.c.b16 %v1155, %v1151
        %v1408 = vpack.c.b16 %v1160, %v1156
        %v1409 = vpack.c.b16 %v1161, %v1157
        %v1410 = vpack.c.b16 %v1162, %v1158
        %v1411 = vpack.c.b16 %v1163, %v1159
        %v1412 = vpack.c.b16 %v1168, %v1164
        %v1413 = vpack.c.b16 %v1169, %v1165
        %v1414 = vpack.c.b16 %v1170, %v1166
        %v1415 = vpack.c.b16 %v1171, %v1167
        %v1416 = vpack.c.b16 %v1176, %v1172
        %v1417 = vpack.c.b16 %v1177, %v1173
        %v1418 = vpack.c.b16 %v1178, %v1174
        %v1419 = vpack.c.b16 %v1179, %v1175
        %v1420 = vpack.c.b16 %v1184, %v1180
        %v1421 = vpack.c.b16 %v1185, %v1181
        %v1422 = vpack.c.b16 %v1186, %v1182
        %v1423 = vpack.c.b16 %v1187, %v1183
        %v1424 = vpack.c.b16 %v1192, %v1188
        %v1425 = vpack.c.b16 %v1193, %v1189
        %v1426 = vpack.c.b16 %v1194, %v1190
        %v1427 = vpack.c.b16 %v1195, %v1191
        %v1428 = vpack.c.b16 %v1200, %v1196
        %v1429 = vpack.c.b16 %v1201, %v1197
        %v1430 = vpack.c.b16 %v1202, %v1198
        %v1431 = vpack.c.b16 %v1203, %v1199
        %v1432 = vpack.c.b16 %v1208, %v1204
        %v1433 = vpack.c.b16 %v1209, %v1205
        %v1434 = vpack.c.b16 %v1210, %v1206
        %v1435 = vpack.c.b16 %v1211, %v1207
        %v1436 = vpack.c.b16 %v1216, %v1212
        %v1437 = vpack.c.b16 %v1217, %v1213
        %v1438 = vpack.c.b16 %v1218, %v1214
        %v1439 = vpack.c.b16 %v1219, %v1215
        %v1440 = vpack.c.b16 %v1224, %v1220
        %v1441 = vpack.c.b16 %v1225, %v1221
        %v1442 = vpack.c.b16 %v1226, %v1222
        %v1443 = vpack.c.b16 %v1227, %v1223
        %v1444 = vpack.c.b16 %v1232, %v1228
        %v1445 = vpack.c.b16 %v1233, %v1229
        %v1446 = vpack.c.b16 %v1234, %v1230
        %v1447 = vpack.c.b16 %v1235, %v1231
        %v1448 = vpack.c.b16 %v1240, %v1236
        %v1449 = vpack.c.b16 %v1241, %v1237
        %v1450 = vpack.c.b16 %v1242, %v1238
        %v1451 = vpack.c.b16 %v1243, %v1239
        %v1452 = vpack.c.b16 %v1248, %v1244
        %v1453 = vpack.c.b16 %v1249, %v1245
        %v1454 = vpack.c.b16 %v1250, %v1246
        %v1455 = vpack.c.b16 %v1251, %v1247
        %v1456 = vpack.c.b16 %v1256, %v1252
        %v1457 = vpack.c.b16 %v1257, %v1253
        %v1458 = vpack.c.b16 %v1258, %v1254
        %v1459 = vpack.c.b16 %v1259, %v1255
        %v1460 = vpack.c.b16 %v1264, %v1260
        %v1461 = vpack.c.b16 %v1265, %v1261
        %v1462 = vpack.c.b16 %v1266, %v1262
        %v1463 = vpack.c.b16 %v1267, %v1263
        %v1464 = vpack.c.b16 %v1272, %v1268
        %v1465 = vpack.c.b16 %v1273, %v1269
        %v1466 = vpack.c.b16 %v1274, %v1270
        %v1467 = vpack.c.b16 %v1275, %v1271
        %v1468 = vpack.c.b16 %v1280, %v1276
        %v1469 = vpack.c.b16 %v1281, %v1277
        %v1470 = vpack.c.b16 %v1282, %v1278
        %v1471 = vpack.c.b16 %v1283, %v1279
        %v1472 = vpack.c.b16 %v1288, %v1284
        %v1473 = vpack.c.b16 %v1289, %v1285
        %v1474 = vpack.c.b16 %v1290, %v1286
        %v1475 = vpack.c.b16 %v1291, %v1287
        %v1476 = vpack.c.b16 %v1296, %v1292
        %v1477 = vpack.c.b16 %v1297, %v1293
        %v1478 = vpack.c.b16 %v1298, %v1294
        %v1479 = vpack.c.b16 %v1299, %v1295
        %v1480 = vpack.c.b16 %v1304, %v1300
        %v1481 = vpack.c.b16 %v1305, %v1301
        %v1482 = vpack.c.b16 %v1306, %v1302
        %v1483 = vpack.c.b16 %v1307, %v1303
        %v1484 = vpack.c.b16 %v1312, %v1308
        %v1485 = vpack.c.b16 %v1313, %v1309
        %v1486 = vpack.c.b16 %v1314, %v1310
        %v1487 = vpack.c.b16 %v1315, %v1311
        %v1488 = vpack.c.b16 %v1320, %v1316
        %v1489 = vpack.c.b16 %v1321, %v1317
        %v1490 = vpack.c.b16 %v1322, %v1318
        %v1491 = vpack.c.b16 %v1323, %v1319
        %v1492 = vpack.c.b16 %v1328, %v1324
        %v1493 = vpack.c.b16 %v1329, %v1325
        %v1494 = vpack.c.b16 %v1330, %v1326
        %v1495 = vpack.c.b16 %v1331, %v1327
        %v1496 = vpack.c.b16 %v1336, %v1332
        %v1497 = vpack.c.b16 %v1337, %v1333
        %v1498 = vpack.c.b16 %v1338, %v1334
        %v1499 = vpack.c.b16 %v1339, %v1335
        %v1500 = vpack.c.b16 %v1344, %v1340
        %v1501 = vpack.c.b16 %v1345, %v1341
        %v1502 = vpack.c.b16 %v1346, %v1342
        %v1503 = vpack.c.b16 %v1347, %v1343
        %v1504 = vpack.c.b16 %v1352, %v1348
        %v1505 = vpack.c.b16 %v1353, %v1349
        %v1506 = vpack.c.b16 %v1354, %v1350
        %v1507 = vpack.c.b16 %v1355, %v1351
        %v1508 = vpack.c.b16 %v1360, %v1356
        %v1509 = vpack.c.b16 %v1361, %v1357
        %v1510 = vpack.c.b16 %v1362, %v1358
        %v1511 = vpack.c.b16 %v1363, %v1359
        %v1512 = vpack.c.b16 %v1368, %v1364
        %v1513 = vpack.c.b16 %v1369, %v1365
        %v1514 = vpack.c.b16 %v1370, %v1366
        %v1515 = vpack.c.b16 %v1371, %v1367
        %v1516 = vpack.c.b16 %v1376, %v1372
        %v1517 = vpack.c.b16 %v1377, %v1373
        %v1518 = vpack.c.b16 %v1378, %v1374
        %v1519 = vpack.c.b16 %v1379, %v1375
        %v1520 = vpack.c.b16 %v1384, %v1380
        %v1521 = vpack.c.b16 %v1385, %v1381
        %v1522 = vpack.c.b16 %v1386, %v1382
        %v1523 = vpack.c.b16 %v1387, %v1383
        %v1524 = vpack.c.b16 %v1392, %v1388
        %v1525 = vpack.c.b16 %v1393, %v1389
        %v1526 = vpack.c.b16 %v1394, %v1390
        %v1527 = vpack.c.b16 %v1395, %v1391
        %v1528 = vpack.c.b16 %v1400, %v1396
        %v1529 = vpack.c.b16 %v1401, %v1397
        %v1530 = vpack.c.b16 %v1402, %v1398
        %v1531 = vpack.c.b16 %v1403, %v1399
        %1660 = vmatprep.subr.bf16.mxu0 %v1433
        %1661 = vmatpush1.bf16.msra.mxu0 %v1432
        %1662 = vmatprep.subr.bf16.mxu0 %v1429
        %1663 = vmatpush1.bf16.msra.mxu0 %v1428
        %1664 = vmatprep.subr.bf16.mxu0 %v1425
        %1665 = vmatpush1.bf16.msra.mxu0 %v1424
        %1666 = vmatprep.subr.bf16.mxu0 %v1421
        %1667 = vmatpush1.bf16.msra.mxu0 %v1420
        %1668 = vmatprep.subr.bf16.mxu0 %v1417
        %1669 = vmatpush1.bf16.msra.mxu0 %v1416
        %1670 = vmatprep.subr.bf16.mxu0 %v1413
        %1671 = vmatpush1.bf16.msra.mxu0 %v1412
        %1672 = vmatprep.subr.bf16.mxu0 %v1409
        %1673 = vmatpush1.bf16.msra.mxu0 %v1408
        %1674 = vmatprep.subr.bf16.mxu0 %v1405
        %1675 = vmatpush1.bf16.msra.mxu0 %v1404
        %1676 = vmatprep.subr.bf16.mxu0 %v1465
        %1677 = vmatpush2.bf16.msra.mxu0 %v1464
        %1678 = vmatprep.subr.bf16.mxu0 %v1461
        %1679 = vmatpush2.bf16.msra.mxu0 %v1460
        %1680 = vmatprep.subr.bf16.mxu0 %v1457
        %1681 = vmatpush2.bf16.msra.mxu0 %v1456
        %1682 = vmatprep.subr.bf16.mxu0 %v1453
        %1683 = vmatpush2.bf16.msra.mxu0 %v1452
        %1684 = vmatprep.subr.bf16.mxu0 %v1449
        %1685 = vmatpush2.bf16.msra.mxu0 %v1448
        %1686 = vmatprep.subr.bf16.mxu0 %v1445
        %1687 = vmatpush2.bf16.msra.mxu0 %v1444
        %1688 = vmatprep.subr.bf16.mxu0 %v1441
        %1689 = vmatpush2.bf16.msra.mxu0 %v1440
        %1690 = vmatprep.subr.bf16.mxu0 %v1437
        %1691 = vmatpush2.bf16.msra.mxu0 %v1436
        %1692 = vmatprep.mubr.bf16.mxu0 %v855
        %1693 = vmatmul.mubr.bf16.gmra.mxu0 %v854
        %v1694 = vpop.f32.mrf.mxu0
        %v1695 = vadd.f32 %v1003, %v1694
        %v1696 = vpop.f32.mrf.mxu0
        %v1697 = vadd.f32 %v1007, %v1696
        %v1698 = vpop.f32.mrf.mxu0
        %v1699 = vadd.f32 %v1003, %v1698
        %v1700 = vpop.f32.mrf.mxu0
        %v1701 = vadd.f32 %v1007, %v1700
        %1702 = vmatprep.mubr.bf16.mxu0 %v859
        %1703 = vmatmul.mubr.bf16.gmra.mxu0 %v858
        %v1704 = vpop.f32.mrf.mxu0
        %v1705 = vadd.f32 %v1003, %v1704
        %v1706 = vpop.f32.mrf.mxu0
        %v1707 = vadd.f32 %v1007, %v1706
        %v1708 = vpop.f32.mrf.mxu0
        %v1709 = vadd.f32 %v1003, %v1708
        %v1710 = vpop.f32.mrf.mxu0
        %v1711 = vadd.f32 %v1007, %v1710
        %1712 = vmatprep.mubr.bf16.mxu0 %v863
        %1713 = vmatmul.mubr.bf16.gmra.mxu0 %v862
        %v1714 = vpop.f32.mrf.mxu0
        %v1715 = vadd.f32 %v1003, %v1714
        %v1716 = vpop.f32.mrf.mxu0
        %v1717 = vadd.f32 %v1007, %v1716
        %v1718 = vpop.f32.mrf.mxu0
        %v1719 = vadd.f32 %v1003, %v1718
        %v1720 = vpop.f32.mrf.mxu0
        %v1721 = vadd.f32 %v1007, %v1720
        %1722 = vmatprep.mubr.bf16.mxu0 %v867
        %1723 = vmatmul.mubr.bf16.gmra.mxu0 %v866
        %v1724 = vpop.f32.mrf.mxu0
        %v1725 = vadd.f32 %v1003, %v1724
        %v1726 = vpop.f32.mrf.mxu0
        %v1727 = vadd.f32 %v1007, %v1726
        %v1728 = vpop.f32.mrf.mxu0
        %v1729 = vadd.f32 %v1003, %v1728
        %v1730 = vpop.f32.mrf.mxu0
        %v1731 = vadd.f32 %v1007, %v1730
        %1732 = vdwg.mxu0
        %1733 = vmatprep.subr.bf16.mxu0 %v1497
        %1734 = vmatpush1.bf16.msra.mxu0 %v1496
        %1735 = vmatprep.subr.bf16.mxu0 %v1493
        %1736 = vmatpush1.bf16.msra.mxu0 %v1492
        %1737 = vmatprep.subr.bf16.mxu0 %v1489
        %1738 = vmatpush1.bf16.msra.mxu0 %v1488
        %1739 = vmatprep.subr.bf16.mxu0 %v1485
        %1740 = vmatpush1.bf16.msra.mxu0 %v1484
        %1741 = vmatprep.subr.bf16.mxu0 %v1481
        %1742 = vmatpush1.bf16.msra.mxu0 %v1480
        %1743 = vmatprep.subr.bf16.mxu0 %v1477
        %1744 = vmatpush1.bf16.msra.mxu0 %v1476
        %1745 = vmatprep.subr.bf16.mxu0 %v1473
        %1746 = vmatpush1.bf16.msra.mxu0 %v1472
        %1747 = vmatprep.subr.bf16.mxu0 %v1469
        %1748 = vmatpush1.bf16.msra.mxu0 %v1468
        %1749 = vmatprep.subr.bf16.mxu0 %v1529
        %1750 = vmatpush2.bf16.msra.mxu0 %v1528
        %1751 = vmatprep.subr.bf16.mxu0 %v1525
        %1752 = vmatpush2.bf16.msra.mxu0 %v1524
        %1753 = vmatprep.subr.bf16.mxu0 %v1521
        %1754 = vmatpush2.bf16.msra.mxu0 %v1520
        %1755 = vmatprep.subr.bf16.mxu0 %v1517
        %1756 = vmatpush2.bf16.msra.mxu0 %v1516
        %1757 = vmatprep.subr.bf16.mxu0 %v1513
        %1758 = vmatpush2.bf16.msra.mxu0 %v1512
        %1759 = vmatprep.subr.bf16.mxu0 %v1509
        %1760 = vmatpush2.bf16.msra.mxu0 %v1508
        %1761 = vmatprep.subr.bf16.mxu0 %v1505
        %1762 = vmatpush2.bf16.msra.mxu0 %v1504
        %1763 = vmatprep.subr.bf16.mxu0 %v1501
        %1764 = vmatpush2.bf16.msra.mxu0 %v1500
        %1765 = vmatprep.mubr.bf16.mxu0 %v857
        %1766 = vmatmul.mubr.bf16.gmra.mxu0 %v856
        %v1767 = vpop.f32.mrf.mxu0
        %v1768 = vadd.f32 %v1695, %v1767
        %v1769 = vpop.f32.mrf.mxu0
        %v1770 = vadd.f32 %v1697, %v1769
        %v1771 = vpop.f32.mrf.mxu0
        %v1772 = vadd.f32 %v1699, %v1771
        %v1773 = vpop.f32.mrf.mxu0
        %v1774 = vadd.f32 %v1701, %v1773
        %1775 = vmatprep.mubr.bf16.mxu0 %v861
        %1776 = vmatmul.mubr.bf16.gmra.mxu0 %v860
        %v1777 = vpop.f32.mrf.mxu0
        %v1778 = vadd.f32 %v1705, %v1777
        %v1779 = vpop.f32.mrf.mxu0
        %v1780 = vadd.f32 %v1707, %v1779
        %v1781 = vpop.f32.mrf.mxu0
        %v1782 = vadd.f32 %v1709, %v1781
        %v1783 = vpop.f32.mrf.mxu0
        %v1784 = vadd.f32 %v1711, %v1783
        %1785 = vmatprep.mubr.bf16.mxu0 %v865
        %1786 = vmatmul.mubr.bf16.gmra.mxu0 %v864
        %v1787 = vpop.f32.mrf.mxu0
        %v1788 = vadd.f32 %v1715, %v1787
        %v1789 = vpop.f32.mrf.mxu0
        %v1790 = vadd.f32 %v1717, %v1789
        %v1791 = vpop.f32.mrf.mxu0
        %v1792 = vadd.f32 %v1719, %v1791
        %v1793 = vpop.f32.mrf.mxu0
        %v1794 = vadd.f32 %v1721, %v1793
        %1795 = vmatprep.mubr.bf16.mxu0 %v869
        %1796 = vmatmul.mubr.bf16.gmra.mxu0 %v868
        %v1797 = vpop.f32.mrf.mxu0
        %v1798 = vadd.f32 %v1725, %v1797
        %v1799 = vpop.f32.mrf.mxu0
        %v1800 = vadd.f32 %v1727, %v1799
        %v1801 = vpop.f32.mrf.mxu0
        %v1802 = vadd.f32 %v1729, %v1801
        %v1803 = vpop.f32.mrf.mxu0
        %v1804 = vadd.f32 %v1731, %v1803
        %1805 = vdwg.mxu0
        %1806 = vmatprep.subr.bf16.mxu0 %v1435
        %1807 = vmatpush1.bf16.msra.mxu0 %v1434
        %1808 = vmatprep.subr.bf16.mxu0 %v1431
        %1809 = vmatpush1.bf16.msra.mxu0 %v1430
        %1810 = vmatprep.subr.bf16.mxu0 %v1427
        %1811 = vmatpush1.bf16.msra.mxu0 %v1426
        %1812 = vmatprep.subr.bf16.mxu0 %v1423
        %1813 = vmatpush1.bf16.msra.mxu0 %v1422
        %1814 = vmatprep.subr.bf16.mxu0 %v1419
        %1815 = vmatpush1.bf16.msra.mxu0 %v1418
        %1816 = vmatprep.subr.bf16.mxu0 %v1415
        %1817 = vmatpush1.bf16.msra.mxu0 %v1414
        %1818 = vmatprep.subr.bf16.mxu0 %v1411
        %1819 = vmatpush1.bf16.msra.mxu0 %v1410
        %1820 = vmatprep.subr.bf16.mxu0 %v1407
        %1821 = vmatpush1.bf16.msra.mxu0 %v1406
        %1822 = vmatprep.subr.bf16.mxu0 %v1467
        %1823 = vmatpush2.bf16.msra.mxu0 %v1466
        %1824 = vmatprep.subr.bf16.mxu0 %v1463
        %1825 = vmatpush2.bf16.msra.mxu0 %v1462
        %1826 = vmatprep.subr.bf16.mxu0 %v1459
        %1827 = vmatpush2.bf16.msra.mxu0 %v1458
        %1828 = vmatprep.subr.bf16.mxu0 %v1455
        %1829 = vmatpush2.bf16.msra.mxu0 %v1454
        %1830 = vmatprep.subr.bf16.mxu0 %v1451
        %1831 = vmatpush2.bf16.msra.mxu0 %v1450
        %1832 = vmatprep.subr.bf16.mxu0 %v1447
        %1833 = vmatpush2.bf16.msra.mxu0 %v1446
        %1834 = vmatprep.subr.bf16.mxu0 %v1443
        %1835 = vmatpush2.bf16.msra.mxu0 %v1442
        %1836 = vmatprep.subr.bf16.mxu0 %v1439
        %1837 = vmatpush2.bf16.msra.mxu0 %v1438
        %1838 = vmatprep.mubr.bf16.mxu0 %v855
        %1839 = vmatmul.mubr.bf16.gmra.mxu0 %v854
        %v1840 = vpop.f32.mrf.mxu0
        %v1841 = vadd.f32 %v1011, %v1840
        %v1842 = vpop.f32.mrf.mxu0
        %v1843 = vadd.f32 %v1015, %v1842
        %v1844 = vpop.f32.mrf.mxu0
        %v1845 = vadd.f32 %v1011, %v1844
        %v1846 = vpop.f32.mrf.mxu0
        %v1847 = vadd.f32 %v1015, %v1846
        %1848 = vmatprep.mubr.bf16.mxu0 %v859
        %1849 = vmatmul.mubr.bf16.gmra.mxu0 %v858
        %v1850 = vpop.f32.mrf.mxu0
        %v1851 = vadd.f32 %v1011, %v1850
        %v1852 = vpop.f32.mrf.mxu0
        %v1853 = vadd.f32 %v1015, %v1852
        %v1854 = vpop.f32.mrf.mxu0
        %v1855 = vadd.f32 %v1011, %v1854
        %v1856 = vpop.f32.mrf.mxu0
        %v1857 = vadd.f32 %v1015, %v1856
        %1858 = vmatprep.mubr.bf16.mxu0 %v863
        %1859 = vmatmul.mubr.bf16.gmra.mxu0 %v862
        %v1860 = vpop.f32.mrf.mxu0
        %v1861 = vadd.f32 %v1011, %v1860
        %v1862 = vpop.f32.mrf.mxu0
        %v1863 = vadd.f32 %v1015, %v1862
        %v1864 = vpop.f32.mrf.mxu0
        %v1865 = vadd.f32 %v1011, %v1864
        %v1866 = vpop.f32.mrf.mxu0
        %v1867 = vadd.f32 %v1015, %v1866
        %1868 = vmatprep.mubr.bf16.mxu0 %v867
        %1869 = vmatmul.mubr.bf16.gmra.mxu0 %v866
        %v1870 = vpop.f32.mrf.mxu0
        %v1871 = vadd.f32 %v1011, %v1870
        %v1872 = vpop.f32.mrf.mxu0
        %v1873 = vadd.f32 %v1015, %v1872
        %v1874 = vpop.f32.mrf.mxu0
        %v1875 = vadd.f32 %v1011, %v1874
        %v1876 = vpop.f32.mrf.mxu0
        %v1877 = vadd.f32 %v1015, %v1876
        %1878 = vdwg.mxu0
        %1879 = vmatprep.subr.bf16.mxu0 %v1499
        %1880 = vmatpush1.bf16.msra.mxu0 %v1498
        %1881 = vmatprep.subr.bf16.mxu0 %v1495
        %1882 = vmatpush1.bf16.msra.mxu0 %v1494
        %1883 = vmatprep.subr.bf16.mxu0 %v1491
        %1884 = vmatpush1.bf16.msra.mxu0 %v1490
        %1885 = vmatprep.subr.bf16.mxu0 %v1487
        %1886 = vmatpush1.bf16.msra.mxu0 %v1486
        %1887 = vmatprep.subr.bf16.mxu0 %v1483
        %1888 = vmatpush1.bf16.msra.mxu0 %v1482
        %1889 = vmatprep.subr.bf16.mxu0 %v1479
        %1890 = vmatpush1.bf16.msra.mxu0 %v1478
        %1891 = vmatprep.subr.bf16.mxu0 %v1475
        %1892 = vmatpush1.bf16.msra.mxu0 %v1474
        %1893 = vmatprep.subr.bf16.mxu0 %v1471
        %1894 = vmatpush1.bf16.msra.mxu0 %v1470
        %1895 = vmatprep.subr.bf16.mxu0 %v1531
        %1896 = vmatpush2.bf16.msra.mxu0 %v1530
        %1897 = vmatprep.subr.bf16.mxu0 %v1527
        %1898 = vmatpush2.bf16.msra.mxu0 %v1526
        %1899 = vmatprep.subr.bf16.mxu0 %v1523
        %1900 = vmatpush2.bf16.msra.mxu0 %v1522
        %1901 = vmatprep.subr.bf16.mxu0 %v1519
        %1902 = vmatpush2.bf16.msra.mxu0 %v1518
        %1903 = vmatprep.subr.bf16.mxu0 %v1515
        %1904 = vmatpush2.bf16.msra.mxu0 %v1514
        %1905 = vmatprep.subr.bf16.mxu0 %v1511
        %1906 = vmatpush2.bf16.msra.mxu0 %v1510
        %1907 = vmatprep.subr.bf16.mxu0 %v1507
        %1908 = vmatpush2.bf16.msra.mxu0 %v1506
        %1909 = vmatprep.subr.bf16.mxu0 %v1503
        %1910 = vmatpush2.bf16.msra.mxu0 %v1502
        %1911 = vmatprep.mubr.bf16.mxu0 %v857
        %1912 = vmatmul.mubr.bf16.gmra.mxu0 %v856
        %v1913 = vpop.f32.mrf.mxu0
        %v1914 = vadd.f32 %v1841, %v1913
        %v1915 = vpop.f32.mrf.mxu0
        %v1916 = vadd.f32 %v1843, %v1915
        %v1917 = vpop.f32.mrf.mxu0
        %v1918 = vadd.f32 %v1845, %v1917
        %v1919 = vpop.f32.mrf.mxu0
        %v1920 = vadd.f32 %v1847, %v1919
        %1921 = vmatprep.mubr.bf16.mxu0 %v861
        %1922 = vmatmul.mubr.bf16.gmra.mxu0 %v860
        %v1923 = vpop.f32.mrf.mxu0
        %v1924 = vadd.f32 %v1851, %v1923
        %v1925 = vpop.f32.mrf.mxu0
        %v1926 = vadd.f32 %v1853, %v1925
        %v1927 = vpop.f32.mrf.mxu0
        %v1928 = vadd.f32 %v1855, %v1927
        %v1929 = vpop.f32.mrf.mxu0
        %v1930 = vadd.f32 %v1857, %v1929
        %1931 = vmatprep.mubr.bf16.mxu0 %v865
        %1932 = vmatmul.mubr.bf16.gmra.mxu0 %v864
        %v1933 = vpop.f32.mrf.mxu0
        %v1934 = vadd.f32 %v1861, %v1933
        %v1935 = vpop.f32.mrf.mxu0
        %v1936 = vadd.f32 %v1863, %v1935
        %v1937 = vpop.f32.mrf.mxu0
        %v1938 = vadd.f32 %v1865, %v1937
        %v1939 = vpop.f32.mrf.mxu0
        %v1940 = vadd.f32 %v1867, %v1939
        %1941 = vmatprep.mubr.bf16.mxu0 %v869
        %1942 = vmatmul.mubr.bf16.gmra.mxu0 %v868
        %v1943 = vpop.f32.mrf.mxu0
        %v1944 = vadd.f32 %v1871, %v1943
        %v1945 = vpop.f32.mrf.mxu0
        %v1946 = vadd.f32 %v1873, %v1945
        %v1947 = vpop.f32.mrf.mxu0
        %v1948 = vadd.f32 %v1875, %v1947
        %v1949 = vpop.f32.mrf.mxu0
        %v1950 = vadd.f32 %v1877, %v1949
        %1951 = vdwg.mxu0
        %v1952 = vmax.f32 %v1768, 0.0
        %v1953 = vmax.f32 %v1770, 0.0
        %v1954 = vmax.f32 %v1914, 0.0
        %v1955 = vmax.f32 %v1916, 0.0
        %v1956 = vmax.f32 %v1772, 0.0
        %v1957 = vmax.f32 %v1774, 0.0
        %v1958 = vmax.f32 %v1918, 0.0
        %v1959 = vmax.f32 %v1920, 0.0
        %v1960 = vmax.f32 %v1778, 0.0
        %v1961 = vmax.f32 %v1780, 0.0
        %v1962 = vmax.f32 %v1924, 0.0
        %v1963 = vmax.f32 %v1926, 0.0
        %v1964 = vmax.f32 %v1782, 0.0
        %v1965 = vmax.f32 %v1784, 0.0
        %v1966 = vmax.f32 %v1928, 0.0
        %v1967 = vmax.f32 %v1930, 0.0
        %v1968 = vmax.f32 %v1788, 0.0
        %v1969 = vmax.f32 %v1790, 0.0
        %v1970 = vmax.f32 %v1934, 0.0
        %v1971 = vmax.f32 %v1936, 0.0
        %v1972 = vmax.f32 %v1792, 0.0
        %v1973 = vmax.f32 %v1794, 0.0
        %v1974 = vmax.f32 %v1938, 0.0
        %v1975 = vmax.f32 %v1940, 0.0
        %v1976 = vmax.f32 %v1798, 0.0
        %v1977 = vmax.f32 %v1800, 0.0
        %v1978 = vmax.f32 %v1944, 0.0
        %v1979 = vmax.f32 %v1946, 0.0
        %v1980 = vmax.f32 %v1802, 0.0
        %v1981 = vmax.f32 %v1804, 0.0
        %v1982 = vmax.f32 %v1948, 0.0
        %v1983 = vmax.f32 %v1950, 0.0
        %v1984 = vld [vmem:[#allocation12] sm:$0xff]
        %v1985 = vld [vmem:[#allocation12 + $0x8] sm:$0xff]
        %v1986 = vld [vmem:[#allocation12 + $0x10] sm:$0xff]
        %v1987 = vld [vmem:[#allocation12 + $0x18] sm:$0xff]
        %v1988 = vld [vmem:[#allocation12 + $0x20] sm:$0xff]
        %v1989 = vld [vmem:[#allocation12 + $0x28] sm:$0xff]
        %v1990 = vld [vmem:[#allocation12 + $0x30] sm:$0xff]
        %v1991 = vld [vmem:[#allocation12 + $0x38] sm:$0xff]
        %v1992 = vld [vmem:[#allocation12 + $0x40] sm:$0xff]
        %v1993 = vld [vmem:[#allocation12 + $0x48] sm:$0xff]
        %v1994 = vld [vmem:[#allocation12 + $0x50] sm:$0xff]
        %v1995 = vld [vmem:[#allocation12 + $0x58] sm:$0xff]
        %v1996 = vld [vmem:[#allocation12 + $0x60] sm:$0xff]
        %v1997 = vld [vmem:[#allocation12 + $0x68] sm:$0xff]
        %v1998 = vld [vmem:[#allocation12 + $0x70] sm:$0xff]
        %v1999 = vld [vmem:[#allocation12 + $0x78] sm:$0xff]
        %v2000 = vld [vmem:[#allocation12 + $0x80] sm:$0xff]
        %v2001 = vld [vmem:[#allocation12 + $0x88] sm:$0xff]
        %v2002 = vld [vmem:[#allocation12 + $0x90] sm:$0xff]
        %v2003 = vld [vmem:[#allocation12 + $0x98] sm:$0xff]
        %v2004 = vld [vmem:[#allocation12 + $0xa0] sm:$0xff]
        %v2005 = vld [vmem:[#allocation12 + $0xa8] sm:$0xff]
        %v2006 = vld [vmem:[#allocation12 + $0xb0] sm:$0xff]
        %v2007 = vld [vmem:[#allocation12 + $0xb8] sm:$0xff]
        %v2008 = vld [vmem:[#allocation12 + $0xc0] sm:$0xff]
        %v2009 = vld [vmem:[#allocation12 + $0xc8] sm:$0xff]
        %v2010 = vld [vmem:[#allocation12 + $0xd0] sm:$0xff]
        %v2011 = vld [vmem:[#allocation12 + $0xd8] sm:$0xff]
        %v2012 = vld [vmem:[#allocation12 + $0xe0] sm:$0xff]
        %v2013 = vld [vmem:[#allocation12 + $0xe8] sm:$0xff]
        %v2014 = vld [vmem:[#allocation12 + $0xf0] sm:$0xff]
        %v2015 = vld [vmem:[#allocation12 + $0xf8] sm:$0xff]
        %v2016 = vmul.f32 %v1952, %v1984
        %v2017 = vmul.f32 %v1953, %v1985
        %v2018 = vmul.f32 %v1954, %v1986
        %v2019 = vmul.f32 %v1955, %v1987
        %v2020 = vmul.f32 %v1956, %v1988
        %v2021 = vmul.f32 %v1957, %v1989
        %v2022 = vmul.f32 %v1958, %v1990
        %v2023 = vmul.f32 %v1959, %v1991
        %v2024 = vmul.f32 %v1960, %v1992
        %v2025 = vmul.f32 %v1961, %v1993
        %v2026 = vmul.f32 %v1962, %v1994
        %v2027 = vmul.f32 %v1963, %v1995
        %v2028 = vmul.f32 %v1964, %v1996
        %v2029 = vmul.f32 %v1965, %v1997
        %v2030 = vmul.f32 %v1966, %v1998
        %v2031 = vmul.f32 %v1967, %v1999
        %v2032 = vmul.f32 %v1968, %v2000
        %v2033 = vmul.f32 %v1969, %v2001
        %v2034 = vmul.f32 %v1970, %v2002
        %v2035 = vmul.f32 %v1971, %v2003
        %v2036 = vmul.f32 %v1972, %v2004
        %v2037 = vmul.f32 %v1973, %v2005
        %v2038 = vmul.f32 %v1974, %v2006
        %v2039 = vmul.f32 %v1975, %v2007
        %v2040 = vmul.f32 %v1976, %v2008
        %v2041 = vmul.f32 %v1977, %v2009
        %v2042 = vmul.f32 %v1978, %v2010
        %v2043 = vmul.f32 %v1979, %v2011
        %v2044 = vmul.f32 %v1980, %v2012
        %v2045 = vmul.f32 %v1981, %v2013
        %v2046 = vmul.f32 %v1982, %v2014
        %v2047 = vmul.f32 %v1983, %v2015
        %v2048 = vld [vmem:[%s5] sm:$0xf]
        %v2049 = vld [vmem:[%s5 + $0x4] sm:$0xf]
        %v2050 = vld [vmem:[%s5 + $0x8] sm:$0xf]
        %v2051 = vld [vmem:[%s5 + $0xc] sm:$0xf]
        %v2052 = vld [vmem:[%s5 + $0x10] sm:$0xf]
        %v2053 = vld [vmem:[%s5 + $0x14] sm:$0xf]
        %v2054 = vld [vmem:[%s5 + $0x18] sm:$0xf]
        %v2055 = vld [vmem:[%s5 + $0x1c] sm:$0xf]
        %v2056 = vld [vmem:[%s5 + $0x20] sm:$0xf]
        %v2057 = vld [vmem:[%s5 + $0x24] sm:$0xf]
        %v2058 = vld [vmem:[%s5 + $0x28] sm:$0xf]
        %v2059 = vld [vmem:[%s5 + $0x2c] sm:$0xf]
        %v2060 = vld [vmem:[%s5 + $0x30] sm:$0xf]
        %v2061 = vld [vmem:[%s5 + $0x34] sm:$0xf]
        %v2062 = vld [vmem:[%s5 + $0x38] sm:$0xf]
        %v2063 = vld [vmem:[%s5 + $0x3c] sm:$0xf]
        %v2064 = vld [vmem:[%s5 + $0x40] sm:$0xf]
        %v2065 = vld [vmem:[%s5 + $0x44] sm:$0xf]
        %v2066 = vpack.c.bf16 %v2020, %v2016
        %v2067 = vpack.c.bf16 %v2021, %v2017
        %v2068 = vpack.c.bf16 %v2022, %v2018
        %v2069 = vpack.c.bf16 %v2023, %v2019
        %v2070 = vpack.c.bf16 %v2028, %v2024
        %v2071 = vpack.c.bf16 %v2029, %v2025
        %v2072 = vpack.c.bf16 %v2030, %v2026
        %v2073 = vpack.c.bf16 %v2031, %v2027
        %v2074 = vpack.c.bf16 %v2036, %v2032
        %v2075 = vpack.c.bf16 %v2037, %v2033
        %v2076 = vpack.c.bf16 %v2038, %v2034
        %v2077 = vpack.c.bf16 %v2039, %v2035
        %v2078 = vpack.c.bf16 %v2044, %v2040
        %v2079 = vpack.c.bf16 %v2045, %v2041
        %v2080 = vpack.c.bf16 %v2046, %v2042
        %v2081 = vpack.c.bf16 %v2047, %v2043
        %v2100 = vunpack.c.l.b16 %v2048
        %v2101 = vunpack.c.l.b16 %v2049
        %v2102 = vunpack.c.l.b16 %v2050
        %v2103 = vunpack.c.l.b16 %v2051
        %v2104 = vunpack.c.l.b16 %v2052
        %v2105 = vunpack.c.l.b16 %v2053
        %v2106 = vunpack.c.l.b16 %v2054
        %v2107 = vunpack.c.l.b16 %v2055
        %v2108 = vunpack.c.l.b16 %v2056
        %v2109 = vunpack.c.l.b16 %v2057
        %v2110 = vunpack.c.l.b16 %v2058
        %v2111 = vunpack.c.l.b16 %v2059
        %v2112 = vunpack.c.l.b16 %v2060
        %v2113 = vunpack.c.l.b16 %v2061
        %v2114 = vunpack.c.l.b16 %v2062
        %v2115 = vunpack.c.l.b16 %v2063
        %v2116 = vunpack.c.l.b16 %v2064
        %v2117 = vunpack.c.l.b16 %v2065
        %v2118 = vpack.c.b16 %v2101, %v2100
        %v2119 = vpack.c.b16 %v2103, %v2102
        %v2120 = vpack.c.b16 %v2105, %v2104
        %v2121 = vpack.c.b16 %v2107, %v2106
        %v2122 = vpack.c.b16 %v2109, %v2108
        %v2123 = vpack.c.b16 %v2111, %v2110
        %v2124 = vpack.c.b16 %v2113, %v2112
        %v2125 = vpack.c.b16 %v2115, %v2114
        %v2126 = vpack.c.b16 %v2117, %v2116
        %vm2127 = vcmask 523264
        %v2129 = vsel %vm2127, %v2118, 0
        %v2132 = vsel %vm2127, %v2119, 0
        %v2135 = vsel %vm2127, %v2120, 0
        %v2138 = vsel %vm2127, %v2121, 0
        %v2141 = vsel %vm2127, %v2122, 0
        %v2144 = vsel %vm2127, %v2123, 0
        %v2147 = vsel %vm2127, %v2124, 0
        %v2150 = vsel %vm2127, %v2125, 0
        %v2153 = vsel %vm2127, %v2126, 0
        %2155 = vmatprep.subr.bf16.mxu0 0
        %2156 = vmatpush1.bf16.msra.mxu0 0
        %2157 = vmatprep.subr.bf16.mxu0 0
        %2158 = vmatpush1.bf16.msra.mxu0 0
        %2159 = vmatprep.subr.bf16.mxu0 0
        %2160 = vmatpush1.bf16.msra.mxu0 0
        %2161 = vmatprep.subr.bf16.mxu0 0
        %2162 = vmatpush1.bf16.msra.mxu0 0
        %2163 = vmatprep.subr.bf16.mxu0 %v2079
        %2164 = vmatpush1.bf16.msra.mxu0 %v2078
        %2165 = vmatprep.subr.bf16.mxu0 %v2075
        %2166 = vmatpush1.bf16.msra.mxu0 %v2074
        %2167 = vmatprep.subr.bf16.mxu0 %v2071
        %2168 = vmatpush1.bf16.msra.mxu0 %v2070
        %2169 = vmatprep.subr.bf16.mxu0 %v2067
        %2170 = vmatpush1.bf16.msra.mxu0 %v2066
        %2171 = vmatprep.subr.bf16.mxu0 0
        %2172 = vmatpush2.bf16.msra.mxu0 0
        %2173 = vmatprep.subr.bf16.mxu0 0
        %2174 = vmatpush2.bf16.msra.mxu0 0
        %2175 = vmatprep.subr.bf16.mxu0 0
        %2176 = vmatpush2.bf16.msra.mxu0 0
        %2177 = vmatprep.subr.bf16.mxu0 0
        %2178 = vmatpush2.bf16.msra.mxu0 0
        %2179 = vmatprep.subr.bf16.mxu0 0
        %2180 = vmatpush2.bf16.msra.mxu0 0
        %2181 = vmatprep.subr.bf16.mxu0 0
        %2182 = vmatpush2.bf16.msra.mxu0 0
        %2183 = vmatprep.subr.bf16.mxu0 0
        %2184 = vmatpush2.bf16.msra.mxu0 0
        %2185 = vmatprep.subr.bf16.mxu0 0
        %2186 = vmatpush2.bf16.msra.mxu0 0
        %2187 = vmatprep.mubr.bf16.mxu0 0
        %2188 = vmatmul.mubr.bf16.gmra.mxu0 %v2129
        %v2189 = vpop.f32.mrf.mxu0
        %v2190 = vadd.f32 0.0, %v2189
        %v2191 = vpop.f32.mrf.mxu0
        %v2192 = vadd.f32 0.0, %v2191
        %v2193 = vpop.f32.mrf.mxu0
        %v2194 = vadd.f32 0.0, %v2193
        %v2195 = vpop.f32.mrf.mxu0
        %v2196 = vadd.f32 0.0, %v2195
        %2197 = vmatprep.mubr.bf16.mxu0 0
        %2198 = vmatmul.mubr.bf16.gmra.mxu0 %v2132
        %v2199 = vpop.f32.mrf.mxu0
        %v2200 = vadd.f32 0.0, %v2199
        %v2201 = vpop.f32.mrf.mxu0
        %v2202 = vadd.f32 0.0, %v2201
        %v2203 = vpop.f32.mrf.mxu0
        %v2204 = vadd.f32 0.0, %v2203
        %v2205 = vpop.f32.mrf.mxu0
        %v2206 = vadd.f32 0.0, %v2205
        %2207 = vmatprep.mubr.bf16.mxu0 0
        %2208 = vmatmul.mubr.bf16.gmra.mxu0 %v2135
        %v2209 = vpop.f32.mrf.mxu0
        %v2210 = vadd.f32 0.0, %v2209
        %v2211 = vpop.f32.mrf.mxu0
        %v2212 = vadd.f32 0.0, %v2211
        %v2213 = vpop.f32.mrf.mxu0
        %v2214 = vadd.f32 0.0, %v2213
        %v2215 = vpop.f32.mrf.mxu0
        %v2216 = vadd.f32 0.0, %v2215
        %2217 = vmatprep.mubr.bf16.mxu0 0
        %2218 = vmatmul.mubr.bf16.gmra.mxu0 %v2138
        %v2219 = vpop.f32.mrf.mxu0
        %v2220 = vadd.f32 0.0, %v2219
        %v2221 = vpop.f32.mrf.mxu0
        %v2222 = vadd.f32 0.0, %v2221
        %v2223 = vpop.f32.mrf.mxu0
        %v2224 = vadd.f32 0.0, %v2223
        %v2225 = vpop.f32.mrf.mxu0
        %v2226 = vadd.f32 0.0, %v2225
        %2227 = vmatprep.mubr.bf16.mxu0 0
        %2228 = vmatmul.mubr.bf16.gmra.mxu0 %v2141
        %v2229 = vpop.f32.mrf.mxu0
        %v2230 = vadd.f32 0.0, %v2229
        %v2231 = vpop.f32.mrf.mxu0
        %v2232 = vadd.f32 0.0, %v2231
        %v2233 = vpop.f32.mrf.mxu0
        %v2234 = vadd.f32 0.0, %v2233
        %v2235 = vpop.f32.mrf.mxu0
        %v2236 = vadd.f32 0.0, %v2235
        %2237 = vmatprep.mubr.bf16.mxu0 0
        %2238 = vmatmul.mubr.bf16.gmra.mxu0 %v2144
        %v2239 = vpop.f32.mrf.mxu0
        %v2240 = vadd.f32 0.0, %v2239
        %v2241 = vpop.f32.mrf.mxu0
        %v2242 = vadd.f32 0.0, %v2241
        %v2243 = vpop.f32.mrf.mxu0
        %v2244 = vadd.f32 0.0, %v2243
        %v2245 = vpop.f32.mrf.mxu0
        %v2246 = vadd.f32 0.0, %v2245
        %2247 = vmatprep.mubr.bf16.mxu0 0
        %2248 = vmatmul.mubr.bf16.gmra.mxu0 %v2147
        %v2249 = vpop.f32.mrf.mxu0
        %v2250 = vadd.f32 0.0, %v2249
        %v2251 = vpop.f32.mrf.mxu0
        %v2252 = vadd.f32 0.0, %v2251
        %v2253 = vpop.f32.mrf.mxu0
        %v2254 = vadd.f32 0.0, %v2253
        %v2255 = vpop.f32.mrf.mxu0
        %v2256 = vadd.f32 0.0, %v2255
        %2257 = vmatprep.mubr.bf16.mxu0 0
        %2258 = vmatmul.mubr.bf16.gmra.mxu0 %v2150
        %v2259 = vpop.f32.mrf.mxu0
        %v2260 = vadd.f32 0.0, %v2259
        %v2261 = vpop.f32.mrf.mxu0
        %v2262 = vadd.f32 0.0, %v2261
        %v2263 = vpop.f32.mrf.mxu0
        %v2264 = vadd.f32 0.0, %v2263
        %v2265 = vpop.f32.mrf.mxu0
        %v2266 = vadd.f32 0.0, %v2265
        %2267 = vmatprep.mubr.bf16.mxu0 0
        %2268 = vmatmul.mubr.bf16.gmra.mxu0 %v2153
        %v2269 = vpop.f32.mrf.mxu0
        %v2270 = vadd.f32 0.0, %v2269
        %v2271 = vpop.f32.mrf.mxu0
        %v2272 = vadd.f32 0.0, %v2271
        %v2273 = vpop.f32.mrf.mxu0
        %v2274 = vadd.f32 0.0, %v2273
        %v2275 = vpop.f32.mrf.mxu0
        %v2276 = vadd.f32 0.0, %v2275
        %2277 = vdwg.mxu0
        %2278 = vmatprep.subr.bf16.mxu0 0
        %2279 = vmatpush1.bf16.msra.mxu0 0
        %2280 = vmatprep.subr.bf16.mxu0 0
        %2281 = vmatpush1.bf16.msra.mxu0 0
        %2282 = vmatprep.subr.bf16.mxu0 0
        %2283 = vmatpush1.bf16.msra.mxu0 0
        %2284 = vmatprep.subr.bf16.mxu0 0
        %2285 = vmatpush1.bf16.msra.mxu0 0
        %2286 = vmatprep.subr.bf16.mxu0 %v2081
        %2287 = vmatpush1.bf16.msra.mxu0 %v2080
        %2288 = vmatprep.subr.bf16.mxu0 %v2077
        %2289 = vmatpush1.bf16.msra.mxu0 %v2076
        %2290 = vmatprep.subr.bf16.mxu0 %v2073
        %2291 = vmatpush1.bf16.msra.mxu0 %v2072
        %2292 = vmatprep.subr.bf16.mxu0 %v2069
        %2293 = vmatpush1.bf16.msra.mxu0 %v2068
        %2294 = vmatprep.subr.bf16.mxu0 0
        %2295 = vmatpush2.bf16.msra.mxu0 0
        %2296 = vmatprep.subr.bf16.mxu0 0
        %2297 = vmatpush2.bf16.msra.mxu0 0
        %2298 = vmatprep.subr.bf16.mxu0 0
        %2299 = vmatpush2.bf16.msra.mxu0 0
        %2300 = vmatprep.subr.bf16.mxu0 0
        %2301 = vmatpush2.bf16.msra.mxu0 0
        %2302 = vmatprep.subr.bf16.mxu0 0
        %2303 = vmatpush2.bf16.msra.mxu0 0
        %2304 = vmatprep.subr.bf16.mxu0 0
        %2305 = vmatpush2.bf16.msra.mxu0 0
        %2306 = vmatprep.subr.bf16.mxu0 0
        %2307 = vmatpush2.bf16.msra.mxu0 0
        %2308 = vmatprep.subr.bf16.mxu0 0
        %2309 = vmatpush2.bf16.msra.mxu0 0
        %2310 = vmatprep.mubr.bf16.mxu0 0
        %2311 = vmatmul.mubr.bf16.gmra.mxu0 %v2129
        %v2312 = vpop.f32.mrf.mxu0
        %v2313 = vadd.f32 0.0, %v2312
        %v2314 = vpop.f32.mrf.mxu0
        %v2315 = vadd.f32 0.0, %v2314
        %v2316 = vpop.f32.mrf.mxu0
        %v2317 = vadd.f32 0.0, %v2316
        %v2318 = vpop.f32.mrf.mxu0
        %v2319 = vadd.f32 0.0, %v2318
        %2320 = vmatprep.mubr.bf16.mxu0 0
        %2321 = vmatmul.mubr.bf16.gmra.mxu0 %v2132
        %v2322 = vpop.f32.mrf.mxu0
        %v2323 = vadd.f32 0.0, %v2322
        %v2324 = vpop.f32.mrf.mxu0
        %v2325 = vadd.f32 0.0, %v2324
        %v2326 = vpop.f32.mrf.mxu0
        %v2327 = vadd.f32 0.0, %v2326
        %v2328 = vpop.f32.mrf.mxu0
        %v2329 = vadd.f32 0.0, %v2328
        %2330 = vmatprep.mubr.bf16.mxu0 0
        %2331 = vmatmul.mubr.bf16.gmra.mxu0 %v2135
        %v2332 = vpop.f32.mrf.mxu0
        %v2333 = vadd.f32 0.0, %v2332
        %v2334 = vpop.f32.mrf.mxu0
        %v2335 = vadd.f32 0.0, %v2334
        %v2336 = vpop.f32.mrf.mxu0
        %v2337 = vadd.f32 0.0, %v2336
        %v2338 = vpop.f32.mrf.mxu0
        %v2339 = vadd.f32 0.0, %v2338
        %2340 = vmatprep.mubr.bf16.mxu0 0
        %2341 = vmatmul.mubr.bf16.gmra.mxu0 %v2138
        %v2342 = vpop.f32.mrf.mxu0
        %v2343 = vadd.f32 0.0, %v2342
        %v2344 = vpop.f32.mrf.mxu0
        %v2345 = vadd.f32 0.0, %v2344
        %v2346 = vpop.f32.mrf.mxu0
        %v2347 = vadd.f32 0.0, %v2346
        %v2348 = vpop.f32.mrf.mxu0
        %v2349 = vadd.f32 0.0, %v2348
        %2350 = vmatprep.mubr.bf16.mxu0 0
        %2351 = vmatmul.mubr.bf16.gmra.mxu0 %v2141
        %v2352 = vpop.f32.mrf.mxu0
        %v2353 = vadd.f32 0.0, %v2352
        %v2354 = vpop.f32.mrf.mxu0
        %v2355 = vadd.f32 0.0, %v2354
        %v2356 = vpop.f32.mrf.mxu0
        %v2357 = vadd.f32 0.0, %v2356
        %v2358 = vpop.f32.mrf.mxu0
        %v2359 = vadd.f32 0.0, %v2358
        %2360 = vmatprep.mubr.bf16.mxu0 0
        %2361 = vmatmul.mubr.bf16.gmra.mxu0 %v2144
        %v2362 = vpop.f32.mrf.mxu0
        %v2363 = vadd.f32 0.0, %v2362
        %v2364 = vpop.f32.mrf.mxu0
        %v2365 = vadd.f32 0.0, %v2364
        %v2366 = vpop.f32.mrf.mxu0
        %v2367 = vadd.f32 0.0, %v2366
        %v2368 = vpop.f32.mrf.mxu0
        %v2369 = vadd.f32 0.0, %v2368
        %2370 = vmatprep.mubr.bf16.mxu0 0
        %2371 = vmatmul.mubr.bf16.gmra.mxu0 %v2147
        %v2372 = vpop.f32.mrf.mxu0
        %v2373 = vadd.f32 0.0, %v2372
        %v2374 = vpop.f32.mrf.mxu0
        %v2375 = vadd.f32 0.0, %v2374
        %v2376 = vpop.f32.mrf.mxu0
        %v2377 = vadd.f32 0.0, %v2376
        %v2378 = vpop.f32.mrf.mxu0
        %v2379 = vadd.f32 0.0, %v2378
        %2380 = vmatprep.mubr.bf16.mxu0 0
        %2381 = vmatmul.mubr.bf16.gmra.mxu0 %v2150
        %v2382 = vpop.f32.mrf.mxu0
        %v2383 = vadd.f32 0.0, %v2382
        %v2384 = vpop.f32.mrf.mxu0
        %v2385 = vadd.f32 0.0, %v2384
        %v2386 = vpop.f32.mrf.mxu0
        %v2387 = vadd.f32 0.0, %v2386
        %v2388 = vpop.f32.mrf.mxu0
        %v2389 = vadd.f32 0.0, %v2388
        %2390 = vmatprep.mubr.bf16.mxu0 0
        %2391 = vmatmul.mubr.bf16.gmra.mxu0 %v2153
        %v2392 = vpop.f32.mrf.mxu0
        %v2393 = vadd.f32 0.0, %v2392
        %v2394 = vpop.f32.mrf.mxu0
        %v2395 = vadd.f32 0.0, %v2394
        %v2396 = vpop.f32.mrf.mxu0
        %v2397 = vadd.f32 0.0, %v2396
        %v2398 = vpop.f32.mrf.mxu0
        %v2399 = vadd.f32 0.0, %v2398
        %2400 = vdwg.mxu0
        %2401 = vst [vmem:[#allocation2] sm:$0xff] 0
        %2402 = vst [vmem:[#allocation2 + $0x8] sm:$0xff] 0
        %2403 = vst [vmem:[#allocation2 + $0x10] sm:$0xff] 0
        %2404 = vst [vmem:[#allocation2 + $0x18] sm:$0xff] 0
        %2405 = vst [vmem:[#allocation2 + $0x20] sm:$0xff] 0
        %2406 = vst [vmem:[#allocation2 + $0x28] sm:$0xff] 0
        %2407 = vst [vmem:[#allocation2 + $0x30] sm:$0xff] 0
        %2408 = vst [vmem:[#allocation2 + $0x38] sm:$0xff] 0
        %2409 = vst [vmem:[#allocation2 + $0x280] sm:$0xff] 0
        %2410 = vst [vmem:[#allocation2 + $0x288] sm:$0xff] 0
        %2411 = vst [vmem:[#allocation2 + $0x290] sm:$0xff] 0
        %2412 = vst [vmem:[#allocation2 + $0x298] sm:$0xff] 0
        %2413 = vst [vmem:[#allocation2 + $0x2a0] sm:$0xff] 0
        %2414 = vst [vmem:[#allocation2 + $0x2a8] sm:$0xff] 0
        %2415 = vst [vmem:[#allocation2 + $0x2b0] sm:$0xff] 0
        %2416 = vst [vmem:[#allocation2 + $0x2b8] sm:$0xff] 0
        %2417 = vst [vmem:[#allocation2 + $0x40] sm:$0xff] %v435
        %2418 = vst [vmem:[#allocation2 + $0x48] sm:$0xff] %v436
        %2419 = vst [vmem:[#allocation2 + $0x60] sm:$0xff] %v437
        %2420 = vst [vmem:[#allocation2 + $0x68] sm:$0xff] %v438
        %2421 = vst [vmem:[#allocation2 + $0x80] sm:$0xff] %v439
        %2422 = vst [vmem:[#allocation2 + $0x88] sm:$0xff] %v440
        %2423 = vst [vmem:[#allocation2 + $0xa0] sm:$0xff] %v441
        %2424 = vst [vmem:[#allocation2 + $0xa8] sm:$0xff] %v442
        %2425 = vst [vmem:[#allocation2 + $0xc0] sm:$0xff] %v443
        %2426 = vst [vmem:[#allocation2 + $0xc8] sm:$0xff] %v444
        %2427 = vst [vmem:[#allocation2 + $0xe0] sm:$0xff] %v445
        %2428 = vst [vmem:[#allocation2 + $0xe8] sm:$0xff] %v446
        %2429 = vst [vmem:[#allocation2 + $0x100] sm:$0xff] %v447
        %2430 = vst [vmem:[#allocation2 + $0x108] sm:$0xff] %v448
        %2431 = vst [vmem:[#allocation2 + $0x120] sm:$0xff] %v449
        %2432 = vst [vmem:[#allocation2 + $0x128] sm:$0xff] %v450
        %2433 = vst [vmem:[#allocation2 + $0x140] sm:$0xff] %v451
        %2434 = vst [vmem:[#allocation2 + $0x148] sm:$0xff] %v452
        %2435 = vst [vmem:[#allocation2 + $0x160] sm:$0xff] %v453
        %2436 = vst [vmem:[#allocation2 + $0x168] sm:$0xff] %v454
        %2437 = vst [vmem:[#allocation2 + $0x180] sm:$0xff] %v455
        %2438 = vst [vmem:[#allocation2 + $0x188] sm:$0xff] %v456
        %2439 = vst [vmem:[#allocation2 + $0x1a0] sm:$0xff] %v457
        %2440 = vst [vmem:[#allocation2 + $0x1a8] sm:$0xff] %v458
        %2441 = vst [vmem:[#allocation2 + $0x1c0] sm:$0xff] %v459
        %2442 = vst [vmem:[#allocation2 + $0x1c8] sm:$0xff] %v460
        %2443 = vst [vmem:[#allocation2 + $0x1e0] sm:$0xff] %v461
        %2444 = vst [vmem:[#allocation2 + $0x1e8] sm:$0xff] %v462
        %2445 = vst [vmem:[#allocation2 + $0x200] sm:$0xff] %v463
        %2446 = vst [vmem:[#allocation2 + $0x208] sm:$0xff] %v464
        %2447 = vst [vmem:[#allocation2 + $0x220] sm:$0xff] %v465
        %2448 = vst [vmem:[#allocation2 + $0x228] sm:$0xff] %v466
        %2449 = vst [vmem:[#allocation2 + $0x240] sm:$0xff] %v467
        %2450 = vst [vmem:[#allocation2 + $0x248] sm:$0xff] %v468
        %2451 = vst [vmem:[#allocation2 + $0x260] sm:$0xff] %v469
        %2452 = vst [vmem:[#allocation2 + $0x268] sm:$0xff] %v470
        %v2453 = vpack.c.bf16 %v2194, %v2190
        %v2454 = vpack.c.bf16 %v2196, %v2192
        %v2455 = vpack.c.bf16 %v2317, %v2313
        %v2456 = vpack.c.bf16 %v2319, %v2315
        %v2457 = vpack.c.bf16 %v2204, %v2200
        %v2458 = vpack.c.bf16 %v2206, %v2202
        %v2459 = vpack.c.bf16 %v2327, %v2323
        %v2460 = vpack.c.bf16 %v2329, %v2325
        %v2461 = vpack.c.bf16 %v2214, %v2210
        %v2462 = vpack.c.bf16 %v2216, %v2212
        %v2463 = vpack.c.bf16 %v2337, %v2333
        %v2464 = vpack.c.bf16 %v2339, %v2335
        %v2465 = vpack.c.bf16 %v2224, %v2220
        %v2466 = vpack.c.bf16 %v2226, %v2222
        %v2467 = vpack.c.bf16 %v2347, %v2343
        %v2468 = vpack.c.bf16 %v2349, %v2345
        %v2469 = vpack.c.bf16 %v2234, %v2230
        %v2470 = vpack.c.bf16 %v2236, %v2232
        %v2471 = vpack.c.bf16 %v2357, %v2353
        %v2472 = vpack.c.bf16 %v2359, %v2355
        %v2473 = vpack.c.bf16 %v2244, %v2240
        %v2474 = vpack.c.bf16 %v2246, %v2242
        %v2475 = vpack.c.bf16 %v2367, %v2363
        %v2476 = vpack.c.bf16 %v2369, %v2365
        %v2477 = vpack.c.bf16 %v2254, %v2250
        %v2478 = vpack.c.bf16 %v2256, %v2252
        %v2479 = vpack.c.bf16 %v2377, %v2373
        %v2480 = vpack.c.bf16 %v2379, %v2375
        %v2481 = vpack.c.bf16 %v2264, %v2260
        %v2482 = vpack.c.bf16 %v2266, %v2262
        %v2483 = vpack.c.bf16 %v2387, %v2383
        %v2484 = vpack.c.bf16 %v2389, %v2385
        %v2485 = vpack.c.bf16 %v2274, %v2270
        %v2486 = vpack.c.bf16 %v2276, %v2272
        %v2487 = vpack.c.bf16 %v2397, %v2393
        %v2488 = vpack.c.bf16 %v2399, %v2395
        %v2525 = vunpack.c.l.b16 %v2453
        %v2526 = vunpack.c.l.b16 %v2454
        %v2527 = vunpack.c.l.b16 %v2455
        %v2528 = vunpack.c.l.b16 %v2456
        %v2529 = vunpack.c.h.b16 %v2453
        %v2530 = vunpack.c.h.b16 %v2454
        %v2531 = vunpack.c.h.b16 %v2455
        %v2532 = vunpack.c.h.b16 %v2456
        %v2533 = vunpack.c.l.b16 %v2457
        %v2534 = vunpack.c.l.b16 %v2458
        %v2535 = vunpack.c.l.b16 %v2459
        %v2536 = vunpack.c.l.b16 %v2460
        %v2537 = vunpack.c.h.b16 %v2457
        %v2538 = vunpack.c.h.b16 %v2458
        %v2539 = vunpack.c.h.b16 %v2459
        %v2540 = vunpack.c.h.b16 %v2460
        %v2541 = vunpack.c.l.b16 %v2461
        %v2542 = vunpack.c.l.b16 %v2462
        %v2543 = vunpack.c.l.b16 %v2463
        %v2544 = vunpack.c.l.b16 %v2464
        %v2545 = vunpack.c.h.b16 %v2461
        %v2546 = vunpack.c.h.b16 %v2462
        %v2547 = vunpack.c.h.b16 %v2463
        %v2548 = vunpack.c.h.b16 %v2464
        %v2549 = vunpack.c.l.b16 %v2465
        %v2550 = vunpack.c.l.b16 %v2466
        %v2551 = vunpack.c.l.b16 %v2467
        %v2552 = vunpack.c.l.b16 %v2468
        %v2553 = vunpack.c.h.b16 %v2465
        %v2554 = vunpack.c.h.b16 %v2466
        %v2555 = vunpack.c.h.b16 %v2467
        %v2556 = vunpack.c.h.b16 %v2468
        %v2557 = vunpack.c.l.b16 %v2469
        %v2558 = vunpack.c.l.b16 %v2470
        %v2559 = vunpack.c.l.b16 %v2471
        %v2560 = vunpack.c.l.b16 %v2472
        %v2561 = vunpack.c.h.b16 %v2469
        %v2562 = vunpack.c.h.b16 %v2470
        %v2563 = vunpack.c.h.b16 %v2471
        %v2564 = vunpack.c.h.b16 %v2472
        %v2565 = vunpack.c.l.b16 %v2473
        %v2566 = vunpack.c.l.b16 %v2474
        %v2567 = vunpack.c.l.b16 %v2475
        %v2568 = vunpack.c.l.b16 %v2476
        %v2569 = vunpack.c.h.b16 %v2473
        %v2570 = vunpack.c.h.b16 %v2474
        %v2571 = vunpack.c.h.b16 %v2475
        %v2572 = vunpack.c.h.b16 %v2476
        %v2573 = vunpack.c.l.b16 %v2477
        %v2574 = vunpack.c.l.b16 %v2478
        %v2575 = vunpack.c.l.b16 %v2479
        %v2576 = vunpack.c.l.b16 %v2480
        %v2577 = vunpack.c.h.b16 %v2477
        %v2578 = vunpack.c.h.b16 %v2478
        %v2579 = vunpack.c.h.b16 %v2479
        %v2580 = vunpack.c.h.b16 %v2480
        %v2581 = vunpack.c.l.b16 %v2481
        %v2582 = vunpack.c.l.b16 %v2482
        %v2583 = vunpack.c.l.b16 %v2483
        %v2584 = vunpack.c.l.b16 %v2484
        %v2585 = vunpack.c.h.b16 %v2481
        %v2586 = vunpack.c.h.b16 %v2482
        %v2587 = vunpack.c.h.b16 %v2483
        %v2588 = vunpack.c.h.b16 %v2484
        %v2589 = vunpack.c.l.b16 %v2485
        %v2590 = vunpack.c.l.b16 %v2486
        %v2591 = vunpack.c.l.b16 %v2487
        %v2592 = vunpack.c.l.b16 %v2488
        %v2593 = vunpack.c.h.b16 %v2485
        %v2594 = vunpack.c.h.b16 %v2486
        %v2595 = vunpack.c.h.b16 %v2487
        %v2596 = vunpack.c.h.b16 %v2488
        %v2597 = vpack.c.b16 %v2526, %v2525
        %v2598 = vpack.c.b16 %v2528, %v2527
        %v2599 = vpack.c.b16 %v2530, %v2529
        %v2600 = vpack.c.b16 %v2532, %v2531
        %v2601 = vpack.c.b16 %v2534, %v2533
        %v2602 = vpack.c.b16 %v2536, %v2535
        %v2603 = vpack.c.b16 %v2538, %v2537
        %v2604 = vpack.c.b16 %v2540, %v2539
        %v2605 = vpack.c.b16 %v2542, %v2541
        %v2606 = vpack.c.b16 %v2544, %v2543
        %v2607 = vpack.c.b16 %v2546, %v2545
        %v2608 = vpack.c.b16 %v2548, %v2547
        %v2609 = vpack.c.b16 %v2550, %v2549
        %v2610 = vpack.c.b16 %v2552, %v2551
        %v2611 = vpack.c.b16 %v2554, %v2553
        %v2612 = vpack.c.b16 %v2556, %v2555
        %v2613 = vpack.c.b16 %v2558, %v2557
        %v2614 = vpack.c.b16 %v2560, %v2559
        %v2615 = vpack.c.b16 %v2562, %v2561
        %v2616 = vpack.c.b16 %v2564, %v2563
        %v2617 = vpack.c.b16 %v2566, %v2565
        %v2618 = vpack.c.b16 %v2568, %v2567
        %v2619 = vpack.c.b16 %v2570, %v2569
        %v2620 = vpack.c.b16 %v2572, %v2571
        %v2621 = vpack.c.b16 %v2574, %v2573
        %v2622 = vpack.c.b16 %v2576, %v2575
        %v2623 = vpack.c.b16 %v2578, %v2577
        %v2624 = vpack.c.b16 %v2580, %v2579
        %v2625 = vpack.c.b16 %v2582, %v2581
        %v2626 = vpack.c.b16 %v2584, %v2583
        %v2627 = vpack.c.b16 %v2586, %v2585
        %v2628 = vpack.c.b16 %v2588, %v2587
        %v2629 = vpack.c.b16 %v2590, %v2589
        %v2630 = vpack.c.b16 %v2592, %v2591
        %v2631 = vpack.c.b16 %v2594, %v2593
        %v2632 = vpack.c.b16 %v2596, %v2595
        %2669 = vst [vmem:[#allocation2 + $0x50] sm:$0xff] %v2597
        %2670 = vst [vmem:[#allocation2 + $0x58] sm:$0xff] %v2598
        %2671 = vst [vmem:[#allocation2 + $0x70] sm:$0xff] %v2599
        %2672 = vst [vmem:[#allocation2 + $0x78] sm:$0xff] %v2600
        %2673 = vst [vmem:[#allocation2 + $0x90] sm:$0xff] %v2601
        %2674 = vst [vmem:[#allocation2 + $0x98] sm:$0xff] %v2602
        %2675 = vst [vmem:[#allocation2 + $0xb0] sm:$0xff] %v2603
        %2676 = vst [vmem:[#allocation2 + $0xb8] sm:$0xff] %v2604
        %2677 = vst [vmem:[#allocation2 + $0xd0] sm:$0xff] %v2605
        %2678 = vst [vmem:[#allocation2 + $0xd8] sm:$0xff] %v2606
        %2679 = vst [vmem:[#allocation2 + $0xf0] sm:$0xff] %v2607
        %2680 = vst [vmem:[#allocation2 + $0xf8] sm:$0xff] %v2608
        %2681 = vst [vmem:[#allocation2 + $0x110] sm:$0xff] %v2609
        %2682 = vst [vmem:[#allocation2 + $0x118] sm:$0xff] %v2610
        %2683 = vst [vmem:[#allocation2 + $0x130] sm:$0xff] %v2611
        %2684 = vst [vmem:[#allocation2 + $0x138] sm:$0xff] %v2612
        %2685 = vst [vmem:[#allocation2 + $0x150] sm:$0xff] %v2613
        %2686 = vst [vmem:[#allocation2 + $0x158] sm:$0xff] %v2614
        %2687 = vst [vmem:[#allocation2 + $0x170] sm:$0xff] %v2615
        %2688 = vst [vmem:[#allocation2 + $0x178] sm:$0xff] %v2616
        %2689 = vst [vmem:[#allocation2 + $0x190] sm:$0xff] %v2617
        %2690 = vst [vmem:[#allocation2 + $0x198] sm:$0xff] %v2618
        %2691 = vst [vmem:[#allocation2 + $0x1b0] sm:$0xff] %v2619
        %2692 = vst [vmem:[#allocation2 + $0x1b8] sm:$0xff] %v2620
        %2693 = vst [vmem:[#allocation2 + $0x1d0] sm:$0xff] %v2621
        %2694 = vst [vmem:[#allocation2 + $0x1d8] sm:$0xff] %v2622
        %2695 = vst [vmem:[#allocation2 + $0x1f0] sm:$0xff] %v2623
        %2696 = vst [vmem:[#allocation2 + $0x1f8] sm:$0xff] %v2624
        %2697 = vst [vmem:[#allocation2 + $0x210] sm:$0xff] %v2625
        %2698 = vst [vmem:[#allocation2 + $0x218] sm:$0xff] %v2626
        %2699 = vst [vmem:[#allocation2 + $0x230] sm:$0xff] %v2627
        %2700 = vst [vmem:[#allocation2 + $0x238] sm:$0xff] %v2628
        %2701 = vst [vmem:[#allocation2 + $0x250] sm:$0xff] %v2629
        %2702 = vst [vmem:[#allocation2 + $0x258] sm:$0xff] %v2630
        %2703 = vst [vmem:[#allocation2 + $0x270] sm:$0xff] %v2631
        %2704 = vst [vmem:[#allocation2 + $0x278] sm:$0xff] %v2632
        %v2705 = vld [vmem:[#allocation2] sm:$0xff]
        %v2706 = vld [vmem:[#allocation2 + $0x8] sm:$0xff]
        %v2707 = vld [vmem:[#allocation2 + $0x10] sm:$0xff]
        %v2708 = vld [vmem:[#allocation2 + $0x18] sm:$0xff]
        %v2709 = vld [vmem:[#allocation2 + $0x20] sm:$0xff]
        %v2710 = vld [vmem:[#allocation2 + $0x28] sm:$0xff]
        %v2711 = vld [vmem:[#allocation2 + $0x30] sm:$0xff]
        %v2712 = vld [vmem:[#allocation2 + $0x38] sm:$0xff]
        %v2713 = vld [vmem:[#allocation2 + $0x40] sm:$0xff]
        %v2714 = vld [vmem:[#allocation2 + $0x48] sm:$0xff]
        %v2715 = vld [vmem:[#allocation2 + $0x50] sm:$0xff]
        %v2716 = vld [vmem:[#allocation2 + $0x58] sm:$0xff]
        %v2717 = vld [vmem:[#allocation2 + $0x60] sm:$0xff]
        %v2718 = vld [vmem:[#allocation2 + $0x68] sm:$0xff]
        %v2719 = vld [vmem:[#allocation2 + $0x70] sm:$0xff]
        %v2720 = vld [vmem:[#allocation2 + $0x78] sm:$0xff]
        %v2721 = vld [vmem:[#allocation2 + $0x80] sm:$0xff]
        %v2722 = vld [vmem:[#allocation2 + $0x88] sm:$0xff]
        %v2723 = vld [vmem:[#allocation2 + $0x90] sm:$0xff]
        %v2724 = vld [vmem:[#allocation2 + $0x98] sm:$0xff]
        %v2725 = vld [vmem:[#allocation2 + $0xa0] sm:$0xff]
        %v2726 = vld [vmem:[#allocation2 + $0xa8] sm:$0xff]
        %v2727 = vld [vmem:[#allocation2 + $0xb0] sm:$0xff]
        %v2728 = vld [vmem:[#allocation2 + $0xb8] sm:$0xff]
        %v2729 = vld [vmem:[#allocation2 + $0xc0] sm:$0xff]
        %v2730 = vld [vmem:[#allocation2 + $0xc8] sm:$0xff]
        %v2731 = vld [vmem:[#allocation2 + $0xd0] sm:$0xff]
        %v2732 = vld [vmem:[#allocation2 + $0xd8] sm:$0xff]
        %v2733 = vld [vmem:[#allocation2 + $0xe0] sm:$0xff]
        %v2734 = vld [vmem:[#allocation2 + $0xe8] sm:$0xff]
        %v2735 = vld [vmem:[#allocation2 + $0xf0] sm:$0xff]
        %v2736 = vld [vmem:[#allocation2 + $0xf8] sm:$0xff]
        %v2737 = vld [vmem:[#allocation2 + $0x100] sm:$0xff]
        %v2738 = vld [vmem:[#allocation2 + $0x108] sm:$0xff]
        %v2739 = vld [vmem:[#allocation2 + $0x110] sm:$0xff]
        %v2740 = vld [vmem:[#allocation2 + $0x118] sm:$0xff]
        %v2741 = vld [vmem:[#allocation2 + $0x120] sm:$0xff]
        %v2742 = vld [vmem:[#allocation2 + $0x128] sm:$0xff]
        %v2743 = vld [vmem:[#allocation2 + $0x130] sm:$0xff]
        %v2744 = vld [vmem:[#allocation2 + $0x138] sm:$0xff]
        %v2745 = vld [vmem:[#allocation2 + $0x140] sm:$0xff]
        %v2746 = vld [vmem:[#allocation2 + $0x148] sm:$0xff]
        %v2747 = vld [vmem:[#allocation2 + $0x150] sm:$0xff]
        %v2748 = vld [vmem:[#allocation2 + $0x158] sm:$0xff]
        %v2749 = vld [vmem:[#allocation2 + $0x160] sm:$0xff]
        %v2750 = vld [vmem:[#allocation2 + $0x168] sm:$0xff]
        %v2751 = vld [vmem:[#allocation2 + $0x170] sm:$0xff]
        %v2752 = vld [vmem:[#allocation2 + $0x178] sm:$0xff]
        %v2753 = vld [vmem:[#allocation2 + $0x180] sm:$0xff]
        %v2754 = vld [vmem:[#allocation2 + $0x188] sm:$0xff]
        %v2755 = vld [vmem:[#allocation2 + $0x190] sm:$0xff]
        %v2756 = vld [vmem:[#allocation2 + $0x198] sm:$0xff]
        %v2757 = vld [vmem:[#allocation2 + $0x1a0] sm:$0xff]
        %v2758 = vld [vmem:[#allocation2 + $0x1a8] sm:$0xff]
        %v2759 = vld [vmem:[#allocation2 + $0x1b0] sm:$0xff]
        %v2760 = vld [vmem:[#allocation2 + $0x1b8] sm:$0xff]
        %v2761 = vld [vmem:[#allocation2 + $0x1c0] sm:$0xff]
        %v2762 = vld [vmem:[#allocation2 + $0x1c8] sm:$0xff]
        %v2763 = vld [vmem:[#allocation2 + $0x1d0] sm:$0xff]
        %v2764 = vld [vmem:[#allocation2 + $0x1d8] sm:$0xff]
        %v2765 = vld [vmem:[#allocation2 + $0x1e0] sm:$0xff]
        %v2766 = vld [vmem:[#allocation2 + $0x1e8] sm:$0xff]
        %v2767 = vld [vmem:[#allocation2 + $0x1f0] sm:$0xff]
        %v2768 = vld [vmem:[#allocation2 + $0x1f8] sm:$0xff]
        %v2769 = vld [vmem:[#allocation2 + $0x200] sm:$0xff]
        %v2770 = vld [vmem:[#allocation2 + $0x208] sm:$0xff]
        %v2771 = vld [vmem:[#allocation2 + $0x210] sm:$0xff]
        %v2772 = vld [vmem:[#allocation2 + $0x218] sm:$0xff]
        %v2773 = vld [vmem:[#allocation2 + $0x220] sm:$0xff]
        %v2774 = vld [vmem:[#allocation2 + $0x228] sm:$0xff]
        %v2775 = vld [vmem:[#allocation2 + $0x230] sm:$0xff]
        %v2776 = vld [vmem:[#allocation2 + $0x238] sm:$0xff]
        %v2777 = vld [vmem:[#allocation2 + $0x240] sm:$0xff]
        %v2778 = vld [vmem:[#allocation2 + $0x248] sm:$0xff]
        %v2779 = vld [vmem:[#allocation2 + $0x250] sm:$0xff]
        %v2780 = vld [vmem:[#allocation2 + $0x258] sm:$0xff]
        %v2781 = vld [vmem:[#allocation2 + $0x260] sm:$0xff]
        %v2782 = vld [vmem:[#allocation2 + $0x268] sm:$0xff]
        %v2783 = vld [vmem:[#allocation2 + $0x270] sm:$0xff]
        %v2784 = vld [vmem:[#allocation2 + $0x278] sm:$0xff]
        %v2785 = vld [vmem:[#allocation2 + $0x280] sm:$0xff]
        %v2786 = vld [vmem:[#allocation2 + $0x288] sm:$0xff]
        %v2787 = vld [vmem:[#allocation2 + $0x290] sm:$0xff]
        %v2788 = vld [vmem:[#allocation2 + $0x298] sm:$0xff]
        %v2789 = vld [vmem:[#allocation2 + $0x2a0] sm:$0xff]
        %v2790 = vld [vmem:[#allocation2 + $0x2a8] sm:$0xff]
        %v2791 = vld [vmem:[#allocation2 + $0x2b0] sm:$0xff]
        %v2792 = vld [vmem:[#allocation2 + $0x2b8] sm:$0xff]
        %v2793 = vld [vmem:[#allocation13] sm:$0xff]
        %v2794 = vld [vmem:[#allocation13 + $0x8] sm:$0xff]
        %v2795 = vld [vmem:[#allocation13 + $0x10] sm:$0xff]
        %v2796 = vld [vmem:[#allocation13 + $0x18] sm:$0xff]
        %v2797 = vld [vmem:[#allocation13 + $0x20] sm:$0xf]
        %v2798 = vld [vmem:[#allocation13 + $0x24] sm:$0xff]
        %v2799 = vld [vmem:[#allocation13 + $0x2c] sm:$0xff]
        %v2800 = vld [vmem:[#allocation13 + $0x34] sm:$0xff]
        %v2801 = vld [vmem:[#allocation13 + $0x3c] sm:$0xff]
        %v2802 = vld [vmem:[#allocation13 + $0x44] sm:$0xf]
        %v2803 = vld [vmem:[#allocation13 + $0x48] sm:$0xff]
        %v2804 = vld [vmem:[#allocation13 + $0x50] sm:$0xff]
        %v2805 = vld [vmem:[#allocation13 + $0x58] sm:$0xff]
        %v2806 = vld [vmem:[#allocation13 + $0x60] sm:$0xff]
        %v2807 = vld [vmem:[#allocation13 + $0x68] sm:$0xf]
        %v2808 = vld [vmem:[#allocation13 + $0x6c] sm:$0xff]
        %v2809 = vld [vmem:[#allocation13 + $0x74] sm:$0xff]
        %v2810 = vld [vmem:[#allocation13 + $0x7c] sm:$0xff]
        %v2811 = vld [vmem:[#allocation13 + $0x84] sm:$0xff]
        %v2812 = vld [vmem:[#allocation13 + $0x8c] sm:$0xf]
        %v2813 = vld [vmem:[#allocation13 + $0x90] sm:$0xff]
        %v2814 = vld [vmem:[#allocation13 + $0x98] sm:$0xff]
        %v2815 = vld [vmem:[#allocation13 + $0xa0] sm:$0xff]
        %v2816 = vld [vmem:[#allocation13 + $0xa8] sm:$0xff]
        %v2817 = vld [vmem:[#allocation13 + $0xb0] sm:$0xf]
        %v2818 = vld [vmem:[#allocation13 + $0xb4] sm:$0xff]
        %v2819 = vld [vmem:[#allocation13 + $0xbc] sm:$0xff]
        %v2820 = vld [vmem:[#allocation13 + $0xc4] sm:$0xff]
        %v2821 = vld [vmem:[#allocation13 + $0xcc] sm:$0xff]
        %v2822 = vld [vmem:[#allocation13 + $0xd4] sm:$0xf]
        %v2823 = vld [vmem:[#allocation13 + $0xd8] sm:$0xff]
        %v2824 = vld [vmem:[#allocation13 + $0xe0] sm:$0xff]
        %v2825 = vld [vmem:[#allocation13 + $0xe8] sm:$0xff]
        %v2826 = vld [vmem:[#allocation13 + $0xf0] sm:$0xff]
        %v2827 = vld [vmem:[#allocation13 + $0xf8] sm:$0xf]
        %v2828 = vld [vmem:[#allocation13 + $0xfc] sm:$0xff]
        %v2829 = vld [vmem:[#allocation13 + $0x104] sm:$0xff]
        %v2830 = vld [vmem:[#allocation13 + $0x10c] sm:$0xff]
        %v2831 = vld [vmem:[#allocation13 + $0x114] sm:$0xff]
        %v2832 = vld [vmem:[#allocation13 + $0x11c] sm:$0xf]
        %v2833 = vld [vmem:[#allocation13 + $0x120] sm:$0xff]
        %v2834 = vld [vmem:[#allocation13 + $0x128] sm:$0xff]
        %v2835 = vld [vmem:[#allocation13 + $0x130] sm:$0xff]
        %v2836 = vld [vmem:[#allocation13 + $0x138] sm:$0xff]
        %v2837 = vld [vmem:[#allocation13 + $0x140] sm:$0xf]
        %v2838 = vld [vmem:[#allocation13 + $0x144] sm:$0xff]
        %v2839 = vld [vmem:[#allocation13 + $0x14c] sm:$0xff]
        %v2840 = vld [vmem:[#allocation13 + $0x154] sm:$0xff]
        %v2841 = vld [vmem:[#allocation13 + $0x15c] sm:$0xff]
        %v2842 = vld [vmem:[#allocation13 + $0x164] sm:$0xf]
        %v2843 = vld [vmem:[#allocation13 + $0x168] sm:$0xff]
        %v2844 = vld [vmem:[#allocation13 + $0x170] sm:$0xff]
        %v2845 = vld [vmem:[#allocation13 + $0x178] sm:$0xff]
        %v2846 = vld [vmem:[#allocation13 + $0x180] sm:$0xff]
        %v2847 = vld [vmem:[#allocation13 + $0x188] sm:$0xf]
        %v2848 = vld [vmem:[#allocation13 + $0x18c] sm:$0xff]
        %v2849 = vld [vmem:[#allocation13 + $0x194] sm:$0xff]
        %v2850 = vld [vmem:[#allocation13 + $0x19c] sm:$0xff]
        %v2851 = vld [vmem:[#allocation13 + $0x1a4] sm:$0xff]
        %v2852 = vld [vmem:[#allocation13 + $0x1ac] sm:$0xf]
        %v2853 = vld [vmem:[#allocation13 + $0x1b0] sm:$0xff]
        %v2854 = vld [vmem:[#allocation13 + $0x1b8] sm:$0xff]
        %v2855 = vld [vmem:[#allocation13 + $0x1c0] sm:$0xff]
        %v2856 = vld [vmem:[#allocation13 + $0x1c8] sm:$0xff]
        %v2857 = vld [vmem:[#allocation13 + $0x1d0] sm:$0xf]
        %v2858 = vld [vmem:[#allocation13 + $0x1d4] sm:$0xff]
        %v2859 = vld [vmem:[#allocation13 + $0x1dc] sm:$0xff]
        %v2860 = vld [vmem:[#allocation13 + $0x1e4] sm:$0xff]
        %v2861 = vld [vmem:[#allocation13 + $0x1ec] sm:$0xff]
        %v2862 = vld [vmem:[#allocation13 + $0x1f4] sm:$0xf]
        %v2863 = vld [vmem:[#allocation13 + $0x1f8] sm:$0xff]
        %v2864 = vld [vmem:[#allocation13 + $0x200] sm:$0xff]
        %v2865 = vld [vmem:[#allocation13 + $0x208] sm:$0xff]
        %v2866 = vld [vmem:[#allocation13 + $0x210] sm:$0xff]
        %v2867 = vld [vmem:[#allocation13 + $0x218] sm:$0xf]
        %v2868 = vld [vmem:[#allocation13 + $0x21c] sm:$0xff]
        %v2869 = vld [vmem:[#allocation13 + $0x224] sm:$0xff]
        %v2870 = vld [vmem:[#allocation13 + $0x22c] sm:$0xff]
        %v2871 = vld [vmem:[#allocation13 + $0x234] sm:$0xff]
        %v2872 = vld [vmem:[#allocation13 + $0x23c] sm:$0xf]
        %v2873 = vld [vmem:[#allocation13 + $0x240] sm:$0xff]
        %v2874 = vld [vmem:[#allocation13 + $0x248] sm:$0xff]
        %v2875 = vld [vmem:[#allocation13 + $0x250] sm:$0xff]
        %v2876 = vld [vmem:[#allocation13 + $0x258] sm:$0xff]
        %v2877 = vld [vmem:[#allocation13 + $0x260] sm:$0xf]
        %v2878 = vld [vmem:[#allocation13 + $0x264] sm:$0xff]
        %v2879 = vld [vmem:[#allocation13 + $0x26c] sm:$0xff]
        %v2880 = vld [vmem:[#allocation13 + $0x274] sm:$0xff]
        %v2881 = vld [vmem:[#allocation13 + $0x27c] sm:$0xff]
        %v2882 = vld [vmem:[#allocation13 + $0x284] sm:$0xf]
        %v2883 = vld [vmem:[#allocation13 + $0x288] sm:$0xff]
        %v2884 = vld [vmem:[#allocation13 + $0x290] sm:$0xff]
        %v2885 = vld [vmem:[#allocation13 + $0x298] sm:$0xff]
        %v2886 = vld [vmem:[#allocation13 + $0x2a0] sm:$0xff]
        %v2887 = vld [vmem:[#allocation13 + $0x2a8] sm:$0xf]
        %v2888 = vld [vmem:[#allocation13 + $0x2ac] sm:$0xff]
        %v2889 = vld [vmem:[#allocation13 + $0x2b4] sm:$0xff]
        %v2890 = vld [vmem:[#allocation13 + $0x2bc] sm:$0xff]
        %v2891 = vld [vmem:[#allocation13 + $0x2c4] sm:$0xff]
        %v2892 = vld [vmem:[#allocation13 + $0x2cc] sm:$0xf]
        %v2893 = vld [vmem:[#allocation13 + $0x2d0] sm:$0xff]
        %v2894 = vld [vmem:[#allocation13 + $0x2d8] sm:$0xff]
        %v2895 = vld [vmem:[#allocation13 + $0x2e0] sm:$0xff]
        %v2896 = vld [vmem:[#allocation13 + $0x2e8] sm:$0xff]
        %v2897 = vld [vmem:[#allocation13 + $0x2f0] sm:$0xf]
        %v2898 = vld [vmem:[#allocation13 + $0x2f4] sm:$0xff]
        %v2899 = vld [vmem:[#allocation13 + $0x2fc] sm:$0xff]
        %v2900 = vld [vmem:[#allocation13 + $0x304] sm:$0xff]
        %v2901 = vld [vmem:[#allocation13 + $0x30c] sm:$0xff]
        %v2902 = vld [vmem:[#allocation13 + $0x314] sm:$0xf]
        %v2903 = vld [vmem:[#allocation13 + $0x318] sm:$0xff]
        %v2904 = vld [vmem:[#allocation13 + $0x320] sm:$0xff]
        %v2905 = vld [vmem:[#allocation13 + $0x328] sm:$0xff]
        %v2906 = vld [vmem:[#allocation13 + $0x330] sm:$0xff]
        %v2907 = vld [vmem:[#allocation13 + $0x338] sm:$0xf]
        %v2908 = vld [vmem:[#allocation13 + $0x33c] sm:$0xff]
        %v2909 = vld [vmem:[#allocation13 + $0x344] sm:$0xff]
        %v2910 = vld [vmem:[#allocation13 + $0x34c] sm:$0xff]
        %v2911 = vld [vmem:[#allocation13 + $0x354] sm:$0xff]
        %v2912 = vld [vmem:[#allocation13 + $0x35c] sm:$0xf]
        %v2913 = vld [vmem:[#allocation13 + $0x360] sm:$0xff]
        %v2914 = vld [vmem:[#allocation13 + $0x368] sm:$0xff]
        %v2915 = vld [vmem:[#allocation13 + $0x370] sm:$0xff]
        %v2916 = vld [vmem:[#allocation13 + $0x378] sm:$0xff]
        %v2917 = vld [vmem:[#allocation13 + $0x380] sm:$0xf]
        %v2918 = vld [vmem:[#allocation13 + $0x384] sm:$0xff]
        %v2919 = vld [vmem:[#allocation13 + $0x38c] sm:$0xff]
        %v2920 = vld [vmem:[#allocation13 + $0x394] sm:$0xff]
        %v2921 = vld [vmem:[#allocation13 + $0x39c] sm:$0xff]
        %v2922 = vld [vmem:[#allocation13 + $0x3a4] sm:$0xf]
        %v2923 = vld [vmem:[#allocation13 + $0x3a8] sm:$0xff]
        %v2924 = vld [vmem:[#allocation13 + $0x3b0] sm:$0xff]
        %v2925 = vld [vmem:[#allocation13 + $0x3b8] sm:$0xff]
        %v2926 = vld [vmem:[#allocation13 + $0x3c0] sm:$0xff]
        %v2927 = vld [vmem:[#allocation13 + $0x3c8] sm:$0xf]
        %v2928 = vld [vmem:[#allocation13 + $0x3cc] sm:$0xff]
        %v2929 = vld [vmem:[#allocation13 + $0x3d4] sm:$0xff]
        %v2930 = vld [vmem:[#allocation13 + $0x3dc] sm:$0xff]
        %v2931 = vld [vmem:[#allocation13 + $0x3e4] sm:$0xff]
        %v2932 = vld [vmem:[#allocation13 + $0x3ec] sm:$0xf]
        %v2933 = vld [vmem:[#allocation13 + $0x3f0] sm:$0xff]
        %v2934 = vld [vmem:[#allocation13 + $0x3f8] sm:$0xff]
        %v2935 = vld [vmem:[#allocation13 + $0x400] sm:$0xff]
        %v2936 = vld [vmem:[#allocation13 + $0x408] sm:$0xff]
        %v2937 = vld [vmem:[#allocation13 + $0x410] sm:$0xf]
        %v2938 = vld [vmem:[#allocation13 + $0x414] sm:$0xff]
        %v2939 = vld [vmem:[#allocation13 + $0x41c] sm:$0xff]
        %v2940 = vld [vmem:[#allocation13 + $0x424] sm:$0xff]
        %v2941 = vld [vmem:[#allocation13 + $0x42c] sm:$0xff]
        %v2942 = vld [vmem:[#allocation13 + $0x434] sm:$0xf]
        %v2943 = vld [vmem:[#allocation13 + $0x438] sm:$0xff]
        %v2944 = vld [vmem:[#allocation13 + $0x440] sm:$0xff]
        %v2945 = vld [vmem:[#allocation13 + $0x448] sm:$0xff]
        %v2946 = vld [vmem:[#allocation13 + $0x450] sm:$0xff]
        %v2947 = vld [vmem:[#allocation13 + $0x458] sm:$0xf]
        %v2948 = vld [vmem:[#allocation13 + $0x45c] sm:$0xff]
        %v2949 = vld [vmem:[#allocation13 + $0x464] sm:$0xff]
        %v2950 = vld [vmem:[#allocation13 + $0x46c] sm:$0xff]
        %v2951 = vld [vmem:[#allocation13 + $0x474] sm:$0xff]
        %v2952 = vld [vmem:[#allocation13 + $0x47c] sm:$0xf]
        %v2953 = vld [vmem:[#allocation13 + $0x480] sm:$0xff]
        %v2954 = vld [vmem:[#allocation13 + $0x488] sm:$0xff]
        %v2955 = vld [vmem:[#allocation13 + $0x490] sm:$0xff]
        %v2956 = vld [vmem:[#allocation13 + $0x498] sm:$0xff]
        %v2957 = vld [vmem:[#allocation13 + $0x4a0] sm:$0xf]
        %v2958 = vld [vmem:[#allocation13 + $0x4a4] sm:$0xff]
        %v2959 = vld [vmem:[#allocation13 + $0x4ac] sm:$0xff]
        %v2960 = vld [vmem:[#allocation13 + $0x4b4] sm:$0xff]
        %v2961 = vld [vmem:[#allocation13 + $0x4bc] sm:$0xff]
        %v2962 = vld [vmem:[#allocation13 + $0x4c4] sm:$0xf]
        %v2963 = vld [vmem:[#allocation13 + $0x4c8] sm:$0xff]
        %v2964 = vld [vmem:[#allocation13 + $0x4d0] sm:$0xff]
        %v2965 = vld [vmem:[#allocation13 + $0x4d8] sm:$0xff]
        %v2966 = vld [vmem:[#allocation13 + $0x4e0] sm:$0xff]
        %v2967 = vld [vmem:[#allocation13 + $0x4e8] sm:$0xf]
        %v2968 = vld [vmem:[#allocation13 + $0x4ec] sm:$0xff]
        %v2969 = vld [vmem:[#allocation13 + $0x4f4] sm:$0xff]
        %v2970 = vld [vmem:[#allocation13 + $0x4fc] sm:$0xff]
        %v2971 = vld [vmem:[#allocation13 + $0x504] sm:$0xff]
        %v2972 = vld [vmem:[#allocation13 + $0x50c] sm:$0xf]
        %v2973 = vld [vmem:[#allocation13 + $0x510] sm:$0xff]
        %v2974 = vld [vmem:[#allocation13 + $0x518] sm:$0xff]
        %v2975 = vld [vmem:[#allocation13 + $0x520] sm:$0xff]
        %v2976 = vld [vmem:[#allocation13 + $0x528] sm:$0xff]
        %v2977 = vld [vmem:[#allocation13 + $0x530] sm:$0xf]
        %v2978 = vld [vmem:[#allocation13 + $0x534] sm:$0xff]
        %v2979 = vld [vmem:[#allocation13 + $0x53c] sm:$0xff]
        %v2980 = vld [vmem:[#allocation13 + $0x544] sm:$0xff]
        %v2981 = vld [vmem:[#allocation13 + $0x54c] sm:$0xff]
        %v2982 = vld [vmem:[#allocation13 + $0x554] sm:$0xf]
        %v2983 = vld [vmem:[#allocation13 + $0x558] sm:$0xff]
        %v2984 = vld [vmem:[#allocation13 + $0x560] sm:$0xff]
        %v2985 = vld [vmem:[#allocation13 + $0x568] sm:$0xff]
        %v2986 = vld [vmem:[#allocation13 + $0x570] sm:$0xff]
        %v2987 = vld [vmem:[#allocation13 + $0x578] sm:$0xf]
        %v2988 = vld [vmem:[#allocation13 + $0x57c] sm:$0xff]
        %v2989 = vld [vmem:[#allocation13 + $0x584] sm:$0xff]
        %v2990 = vld [vmem:[#allocation13 + $0x58c] sm:$0xff]
        %v2991 = vld [vmem:[#allocation13 + $0x594] sm:$0xff]
        %v2992 = vld [vmem:[#allocation13 + $0x59c] sm:$0xf]
        %v2993 = vld [vmem:[#allocation13 + $0x5a0] sm:$0xff]
        %v2994 = vld [vmem:[#allocation13 + $0x5a8] sm:$0xff]
        %v2995 = vld [vmem:[#allocation13 + $0x5b0] sm:$0xff]
        %v2996 = vld [vmem:[#allocation13 + $0x5b8] sm:$0xff]
        %v2997 = vld [vmem:[#allocation13 + $0x5c0] sm:$0xf]
        %v2998 = vld [vmem:[#allocation13 + $0x5c4] sm:$0xff]
        %v2999 = vld [vmem:[#allocation13 + $0x5cc] sm:$0xff]
        %v3000 = vld [vmem:[#allocation13 + $0x5d4] sm:$0xff]
        %v3001 = vld [vmem:[#allocation13 + $0x5dc] sm:$0xff]
        %v3002 = vld [vmem:[#allocation13 + $0x5e4] sm:$0xf]
        %v3003 = vld [vmem:[#allocation13 + $0x5e8] sm:$0xff]
        %v3004 = vld [vmem:[#allocation13 + $0x5f0] sm:$0xff]
        %v3005 = vld [vmem:[#allocation13 + $0x5f8] sm:$0xff]
        %v3006 = vld [vmem:[#allocation13 + $0x600] sm:$0xff]
        %v3007 = vld [vmem:[#allocation13 + $0x608] sm:$0xf]
        %v3008 = vld [vmem:[#allocation13 + $0x60c] sm:$0xff]
        %v3009 = vld [vmem:[#allocation13 + $0x614] sm:$0xff]
        %v3010 = vld [vmem:[#allocation13 + $0x61c] sm:$0xff]
        %v3011 = vld [vmem:[#allocation13 + $0x624] sm:$0xff]
        %v3012 = vld [vmem:[#allocation13 + $0x62c] sm:$0xf]
        %v3013 = vld [vmem:[#allocation13 + $0x630] sm:$0xff]
        %v3014 = vld [vmem:[#allocation13 + $0x638] sm:$0xff]
        %v3015 = vld [vmem:[#allocation13 + $0x640] sm:$0xff]
        %v3016 = vld [vmem:[#allocation13 + $0x648] sm:$0xff]
        %v3017 = vld [vmem:[#allocation13 + $0x650] sm:$0xf]
        %v3018 = vld [vmem:[#allocation13 + $0x654] sm:$0xff]
        %v3019 = vld [vmem:[#allocation13 + $0x65c] sm:$0xff]
        %v3020 = vld [vmem:[#allocation13 + $0x664] sm:$0xff]
        %v3021 = vld [vmem:[#allocation13 + $0x66c] sm:$0xff]
        %v3022 = vld [vmem:[#allocation13 + $0x674] sm:$0xf]
        %v3023 = vld [vmem:[#allocation13 + $0x678] sm:$0xff]
        %v3024 = vld [vmem:[#allocation13 + $0x680] sm:$0xff]
        %v3025 = vld [vmem:[#allocation13 + $0x688] sm:$0xff]
        %v3026 = vld [vmem:[#allocation13 + $0x690] sm:$0xff]
        %v3027 = vld [vmem:[#allocation13 + $0x698] sm:$0xf]
        %v3028 = vld [vmem:[#allocation13 + $0x69c] sm:$0xff]
        %v3029 = vld [vmem:[#allocation13 + $0x6a4] sm:$0xff]
        %v3030 = vld [vmem:[#allocation13 + $0x6ac] sm:$0xff]
        %v3031 = vld [vmem:[#allocation13 + $0x6b4] sm:$0xff]
        %v3032 = vld [vmem:[#allocation13 + $0x6bc] sm:$0xf]
        %v3033 = vld [vmem:[#allocation13 + $0x6c0] sm:$0xff]
        %v3034 = vld [vmem:[#allocation13 + $0x6c8] sm:$0xff]
        %v3035 = vld [vmem:[#allocation13 + $0x6d0] sm:$0xff]
        %v3036 = vld [vmem:[#allocation13 + $0x6d8] sm:$0xff]
        %v3037 = vld [vmem:[#allocation13 + $0x6e0] sm:$0xf]
        %v3038 = vld [vmem:[#allocation13 + $0x6e4] sm:$0xff]
        %v3039 = vld [vmem:[#allocation13 + $0x6ec] sm:$0xff]
        %v3040 = vld [vmem:[#allocation13 + $0x6f4] sm:$0xff]
        %v3041 = vld [vmem:[#allocation13 + $0x6fc] sm:$0xff]
        %v3042 = vld [vmem:[#allocation13 + $0x704] sm:$0xf]
        %v3043 = vld [vmem:[#allocation13 + $0x708] sm:$0xff]
        %v3044 = vld [vmem:[#allocation13 + $0x710] sm:$0xff]
        %v3045 = vld [vmem:[#allocation13 + $0x718] sm:$0xff]
        %v3046 = vld [vmem:[#allocation13 + $0x720] sm:$0xff]
        %v3047 = vld [vmem:[#allocation13 + $0x728] sm:$0xf]
        %v3048 = vld [vmem:[#allocation13 + $0x72c] sm:$0xff]
        %v3049 = vld [vmem:[#allocation13 + $0x734] sm:$0xff]
        %v3050 = vld [vmem:[#allocation13 + $0x73c] sm:$0xff]
        %v3051 = vld [vmem:[#allocation13 + $0x744] sm:$0xff]
        %v3052 = vld [vmem:[#allocation13 + $0x74c] sm:$0xf]
        %v3053 = vld [vmem:[#allocation13 + $0x750] sm:$0xff]
        %v3054 = vld [vmem:[#allocation13 + $0x758] sm:$0xff]
        %v3055 = vld [vmem:[#allocation13 + $0x760] sm:$0xff]
        %v3056 = vld [vmem:[#allocation13 + $0x768] sm:$0xff]
        %v3057 = vld [vmem:[#allocation13 + $0x770] sm:$0xf]
        %v3058 = vld [vmem:[#allocation13 + $0x774] sm:$0xff]
        %v3059 = vld [vmem:[#allocation13 + $0x77c] sm:$0xff]
        %v3060 = vld [vmem:[#allocation13 + $0x784] sm:$0xff]
        %v3061 = vld [vmem:[#allocation13 + $0x78c] sm:$0xff]
        %v3062 = vld [vmem:[#allocation13 + $0x794] sm:$0xf]
        %v3063 = vld [vmem:[#allocation13 + $0x798] sm:$0xff]
        %v3064 = vld [vmem:[#allocation13 + $0x7a0] sm:$0xff]
        %v3065 = vld [vmem:[#allocation13 + $0x7a8] sm:$0xff]
        %v3066 = vld [vmem:[#allocation13 + $0x7b0] sm:$0xff]
        %v3067 = vld [vmem:[#allocation13 + $0x7b8] sm:$0xf]
        %v3068 = vld [vmem:[#allocation13 + $0x7bc] sm:$0xff]
        %v3069 = vld [vmem:[#allocation13 + $0x7c4] sm:$0xff]
        %v3070 = vld [vmem:[#allocation13 + $0x7cc] sm:$0xff]
        %v3071 = vld [vmem:[#allocation13 + $0x7d4] sm:$0xff]
        %v3072 = vld [vmem:[#allocation13 + $0x7dc] sm:$0xf]
        %v3073 = vld [vmem:[#allocation13 + $0x7e0] sm:$0xff]
        %v3074 = vld [vmem:[#allocation13 + $0x7e8] sm:$0xff]
        %v3075 = vld [vmem:[#allocation13 + $0x7f0] sm:$0xff]
        %v3076 = vld [vmem:[#allocation13 + $0x7f8] sm:$0xff]
        %v3077 = vld [vmem:[#allocation13 + $0x800] sm:$0xf]
        %v3078 = vld [vmem:[#allocation13 + $0x804] sm:$0xff]
        %v3079 = vld [vmem:[#allocation13 + $0x80c] sm:$0xff]
        %v3080 = vld [vmem:[#allocation13 + $0x814] sm:$0xff]
        %v3081 = vld [vmem:[#allocation13 + $0x81c] sm:$0xff]
        %v3082 = vld [vmem:[#allocation13 + $0x824] sm:$0xf]
        %v3083 = vld [vmem:[#allocation13 + $0x828] sm:$0xff]
        %v3084 = vld [vmem:[#allocation13 + $0x830] sm:$0xff]
        %v3085 = vld [vmem:[#allocation13 + $0x838] sm:$0xff]
        %v3086 = vld [vmem:[#allocation13 + $0x840] sm:$0xff]
        %v3087 = vld [vmem:[#allocation13 + $0x848] sm:$0xf]
        %v3088 = vld [vmem:[#allocation13 + $0x84c] sm:$0xff]
        %v3089 = vld [vmem:[#allocation13 + $0x854] sm:$0xff]
        %v3090 = vld [vmem:[#allocation13 + $0x85c] sm:$0xff]
        %v3091 = vld [vmem:[#allocation13 + $0x864] sm:$0xff]
        %v3092 = vld [vmem:[#allocation13 + $0x86c] sm:$0xf]
        %v3093 = vld [vmem:[#allocation13 + $0x870] sm:$0xff]
        %v3094 = vld [vmem:[#allocation13 + $0x878] sm:$0xff]
        %v3095 = vld [vmem:[#allocation13 + $0x880] sm:$0xff]
        %v3096 = vld [vmem:[#allocation13 + $0x888] sm:$0xff]
        %v3097 = vld [vmem:[#allocation13 + $0x890] sm:$0xf]
        %v3098 = vld [vmem:[#allocation13 + $0x894] sm:$0xff]
        %v3099 = vld [vmem:[#allocation13 + $0x89c] sm:$0xff]
        %v3100 = vld [vmem:[#allocation13 + $0x8a4] sm:$0xff]
        %v3101 = vld [vmem:[#allocation13 + $0x8ac] sm:$0xff]
        %v3102 = vld [vmem:[#allocation13 + $0x8b4] sm:$0xf]
        %v3103 = vld [vmem:[#allocation13 + $0x8b8] sm:$0xff]
        %v3104 = vld [vmem:[#allocation13 + $0x8c0] sm:$0xff]
        %v3105 = vld [vmem:[#allocation13 + $0x8c8] sm:$0xff]
        %v3106 = vld [vmem:[#allocation13 + $0x8d0] sm:$0xff]
        %v3107 = vld [vmem:[#allocation13 + $0x8d8] sm:$0xf]
        %v3108 = vld [vmem:[#allocation13 + $0x8dc] sm:$0xff]
        %v3109 = vld [vmem:[#allocation13 + $0x8e4] sm:$0xff]
        %v3110 = vld [vmem:[#allocation13 + $0x8ec] sm:$0xff]
        %v3111 = vld [vmem:[#allocation13 + $0x8f4] sm:$0xff]
        %v3112 = vld [vmem:[#allocation13 + $0x8fc] sm:$0xf]
        %v3113 = vld [vmem:[#allocation13 + $0x900] sm:$0xff]
        %v3114 = vld [vmem:[#allocation13 + $0x908] sm:$0xff]
        %v3115 = vld [vmem:[#allocation13 + $0x910] sm:$0xff]
        %v3116 = vld [vmem:[#allocation13 + $0x918] sm:$0xff]
        %v3117 = vld [vmem:[#allocation13 + $0x920] sm:$0xf]
        %v3118 = vld [vmem:[#allocation13 + $0x924] sm:$0xff]
        %v3119 = vld [vmem:[#allocation13 + $0x92c] sm:$0xff]
        %v3120 = vld [vmem:[#allocation13 + $0x934] sm:$0xff]
        %v3121 = vld [vmem:[#allocation13 + $0x93c] sm:$0xff]
        %v3122 = vld [vmem:[#allocation13 + $0x944] sm:$0xf]
        %v3123 = vld [vmem:[#allocation13 + $0x948] sm:$0xff]
        %v3124 = vld [vmem:[#allocation13 + $0x950] sm:$0xff]
        %v3125 = vld [vmem:[#allocation13 + $0x958] sm:$0xff]
        %v3126 = vld [vmem:[#allocation13 + $0x960] sm:$0xff]
        %v3127 = vld [vmem:[#allocation13 + $0x968] sm:$0xf]
        %v3128 = vld [vmem:[#allocation13 + $0x96c] sm:$0xff]
        %v3129 = vld [vmem:[#allocation13 + $0x974] sm:$0xff]
        %v3130 = vld [vmem:[#allocation13 + $0x97c] sm:$0xff]
        %v3131 = vld [vmem:[#allocation13 + $0x984] sm:$0xff]
        %v3132 = vld [vmem:[#allocation13 + $0x98c] sm:$0xf]
        %v3133 = vld [vmem:[#allocation13 + $0x990] sm:$0xff]
        %v3134 = vld [vmem:[#allocation13 + $0x998] sm:$0xff]
        %v3135 = vld [vmem:[#allocation13 + $0x9a0] sm:$0xff]
        %v3136 = vld [vmem:[#allocation13 + $0x9a8] sm:$0xff]
        %v3137 = vld [vmem:[#allocation13 + $0x9b0] sm:$0xf]
        %v3138 = vld [vmem:[#allocation13 + $0x9b4] sm:$0xff]
        %v3139 = vld [vmem:[#allocation13 + $0x9bc] sm:$0xff]
        %v3140 = vld [vmem:[#allocation13 + $0x9c4] sm:$0xff]
        %v3141 = vld [vmem:[#allocation13 + $0x9cc] sm:$0xff]
        %v3142 = vld [vmem:[#allocation13 + $0x9d4] sm:$0xf]
        %v3143 = vld [vmem:[#allocation13 + $0x9d8] sm:$0xff]
        %v3144 = vld [vmem:[#allocation13 + $0x9e0] sm:$0xff]
        %v3145 = vld [vmem:[#allocation13 + $0x9e8] sm:$0xff]
        %v3146 = vld [vmem:[#allocation13 + $0x9f0] sm:$0xff]
        %v3147 = vld [vmem:[#allocation13 + $0x9f8] sm:$0xf]
        %v3148 = vld [vmem:[#allocation13 + $0x9fc] sm:$0xff]
        %v3149 = vld [vmem:[#allocation13 + $0xa04] sm:$0xff]
        %v3150 = vld [vmem:[#allocation13 + $0xa0c] sm:$0xff]
        %v3151 = vld [vmem:[#allocation13 + $0xa14] sm:$0xff]
        %v3152 = vld [vmem:[#allocation13 + $0xa1c] sm:$0xf]
        %v3153 = vld [vmem:[#allocation13 + $0xa20] sm:$0xff]
        %v3154 = vld [vmem:[#allocation13 + $0xa28] sm:$0xff]
        %v3155 = vld [vmem:[#allocation13 + $0xa30] sm:$0xff]
        %v3156 = vld [vmem:[#allocation13 + $0xa38] sm:$0xff]
        %v3157 = vld [vmem:[#allocation13 + $0xa40] sm:$0xf]
        %v3158 = vld [vmem:[#allocation13 + $0xa44] sm:$0xff]
        %v3159 = vld [vmem:[#allocation13 + $0xa4c] sm:$0xff]
        %v3160 = vld [vmem:[#allocation13 + $0xa54] sm:$0xff]
        %v3161 = vld [vmem:[#allocation13 + $0xa5c] sm:$0xff]
        %v3162 = vld [vmem:[#allocation13 + $0xa64] sm:$0xf]
        %v3163 = vld [vmem:[#allocation13 + $0xa68] sm:$0xff]
        %v3164 = vld [vmem:[#allocation13 + $0xa70] sm:$0xff]
        %v3165 = vld [vmem:[#allocation13 + $0xa78] sm:$0xff]
        %v3166 = vld [vmem:[#allocation13 + $0xa80] sm:$0xff]
        %v3167 = vld [vmem:[#allocation13 + $0xa88] sm:$0xf]
        %v3168 = vld [vmem:[#allocation13 + $0xa8c] sm:$0xff]
        %v3169 = vld [vmem:[#allocation13 + $0xa94] sm:$0xff]
        %v3170 = vld [vmem:[#allocation13 + $0xa9c] sm:$0xff]
        %v3171 = vld [vmem:[#allocation13 + $0xaa4] sm:$0xff]
        %v3172 = vld [vmem:[#allocation13 + $0xaac] sm:$0xf]
        %v3173 = vld [vmem:[#allocation13 + $0xab0] sm:$0xff]
        %v3174 = vld [vmem:[#allocation13 + $0xab8] sm:$0xff]
        %v3175 = vld [vmem:[#allocation13 + $0xac0] sm:$0xff]
        %v3176 = vld [vmem:[#allocation13 + $0xac8] sm:$0xff]
        %v3177 = vld [vmem:[#allocation13 + $0xad0] sm:$0xf]
        %v3178 = vld [vmem:[#allocation13 + $0xad4] sm:$0xff]
        %v3179 = vld [vmem:[#allocation13 + $0xadc] sm:$0xff]
        %v3180 = vld [vmem:[#allocation13 + $0xae4] sm:$0xff]
        %v3181 = vld [vmem:[#allocation13 + $0xaec] sm:$0xff]
        %v3182 = vld [vmem:[#allocation13 + $0xaf4] sm:$0xf]
        %v3183 = vld [vmem:[#allocation13 + $0xaf8] sm:$0xff]
        %v3184 = vld [vmem:[#allocation13 + $0xb00] sm:$0xff]
        %v3185 = vld [vmem:[#allocation13 + $0xb08] sm:$0xff]
        %v3186 = vld [vmem:[#allocation13 + $0xb10] sm:$0xff]
        %v3187 = vld [vmem:[#allocation13 + $0xb18] sm:$0xf]
        %v3188 = vld [vmem:[#allocation13 + $0xb1c] sm:$0xff]
        %v3189 = vld [vmem:[#allocation13 + $0xb24] sm:$0xff]
        %v3190 = vld [vmem:[#allocation13 + $0xb2c] sm:$0xff]
        %v3191 = vld [vmem:[#allocation13 + $0xb34] sm:$0xff]
        %v3192 = vld [vmem:[#allocation13 + $0xb3c] sm:$0xf]
        %v3193 = vld [vmem:[#allocation13 + $0xb40] sm:$0xff]
        %v3194 = vld [vmem:[#allocation13 + $0xb48] sm:$0xff]
        %v3195 = vld [vmem:[#allocation13 + $0xb50] sm:$0xff]
        %v3196 = vld [vmem:[#allocation13 + $0xb58] sm:$0xff]
        %v3197 = vld [vmem:[#allocation13 + $0xb60] sm:$0xf]
        %v3198 = vld [vmem:[#allocation13 + $0xb64] sm:$0xff]
        %v3199 = vld [vmem:[#allocation13 + $0xb6c] sm:$0xff]
        %v3200 = vld [vmem:[#allocation13 + $0xb74] sm:$0xff]
        %v3201 = vld [vmem:[#allocation13 + $0xb7c] sm:$0xff]
        %v3202 = vld [vmem:[#allocation13 + $0xb84] sm:$0xf]
        %v3203 = vld [vmem:[#allocation13 + $0xb88] sm:$0xff]
        %v3204 = vld [vmem:[#allocation13 + $0xb90] sm:$0xff]
        %v3205 = vld [vmem:[#allocation13 + $0xb98] sm:$0xff]
        %v3206 = vld [vmem:[#allocation13 + $0xba0] sm:$0xff]
        %v3207 = vld [vmem:[#allocation13 + $0xba8] sm:$0xf]
        %v3208 = vld [vmem:[#allocation13 + $0xbac] sm:$0xff]
        %v3209 = vld [vmem:[#allocation13 + $0xbb4] sm:$0xff]
        %v3210 = vld [vmem:[#allocation13 + $0xbbc] sm:$0xff]
        %v3211 = vld [vmem:[#allocation13 + $0xbc4] sm:$0xff]
        %v3212 = vld [vmem:[#allocation13 + $0xbcc] sm:$0xf]
        %v3213 = vld [vmem:[#allocation13 + $0xbd0] sm:$0xff]
        %v3214 = vld [vmem:[#allocation13 + $0xbd8] sm:$0xff]
        %v3215 = vld [vmem:[#allocation13 + $0xbe0] sm:$0xff]
        %v3216 = vld [vmem:[#allocation13 + $0xbe8] sm:$0xff]
        %v3217 = vld [vmem:[#allocation13 + $0xbf0] sm:$0xf]
        %v3218 = vld [vmem:[#allocation13 + $0xbf4] sm:$0xff]
        %v3219 = vld [vmem:[#allocation13 + $0xbfc] sm:$0xff]
        %v3220 = vld [vmem:[#allocation13 + $0xc04] sm:$0xff]
        %v3221 = vld [vmem:[#allocation13 + $0xc0c] sm:$0xff]
        %v3222 = vld [vmem:[#allocation13 + $0xc14] sm:$0xf]
        %v3223 = vld [vmem:[#allocation13 + $0xc18] sm:$0xff]
        %v3224 = vld [vmem:[#allocation13 + $0xc20] sm:$0xff]
        %v3225 = vld [vmem:[#allocation13 + $0xc28] sm:$0xff]
        %v3226 = vld [vmem:[#allocation13 + $0xc30] sm:$0xff]
        %v3227 = vld [vmem:[#allocation13 + $0xc38] sm:$0xf]
        %v3228 = vld [vmem:[#allocation13 + $0xc3c] sm:$0xff]
        %v3229 = vld [vmem:[#allocation13 + $0xc44] sm:$0xff]
        %v3230 = vld [vmem:[#allocation13 + $0xc4c] sm:$0xff]
        %v3231 = vld [vmem:[#allocation13 + $0xc54] sm:$0xff]
        %v3232 = vld [vmem:[#allocation13 + $0xc5c] sm:$0xf]
        %v3233 = vld [vmem:[#allocation13 + $0xc60] sm:$0xff]
        %v3234 = vld [vmem:[#allocation13 + $0xc68] sm:$0xff]
        %v3235 = vld [vmem:[#allocation13 + $0xc70] sm:$0xff]
        %v3236 = vld [vmem:[#allocation13 + $0xc78] sm:$0xff]
        %v3237 = vld [vmem:[#allocation13 + $0xc80] sm:$0xf]
        %v3238 = vld [vmem:[#allocation13 + $0xc84] sm:$0xff]
        %v3239 = vld [vmem:[#allocation13 + $0xc8c] sm:$0xff]
        %v3240 = vld [vmem:[#allocation13 + $0xc94] sm:$0xff]
        %v3241 = vld [vmem:[#allocation13 + $0xc9c] sm:$0xff]
        %v3242 = vld [vmem:[#allocation13 + $0xca4] sm:$0xf]
        %v3243 = vld [vmem:[#allocation13 + $0xca8] sm:$0xff]
        %v3244 = vld [vmem:[#allocation13 + $0xcb0] sm:$0xff]
        %v3245 = vld [vmem:[#allocation13 + $0xcb8] sm:$0xff]
        %v3246 = vld [vmem:[#allocation13 + $0xcc0] sm:$0xff]
        %v3247 = vld [vmem:[#allocation13 + $0xcc8] sm:$0xf]
        %v3248 = vld [vmem:[#allocation13 + $0xccc] sm:$0xff]
        %v3249 = vld [vmem:[#allocation13 + $0xcd4] sm:$0xff]
        %v3250 = vld [vmem:[#allocation13 + $0xcdc] sm:$0xff]
        %v3251 = vld [vmem:[#allocation13 + $0xce4] sm:$0xff]
        %v3252 = vld [vmem:[#allocation13 + $0xcec] sm:$0xf]
        %v3253 = vld [vmem:[#allocation13 + $0xcf0] sm:$0xff]
        %v3254 = vld [vmem:[#allocation13 + $0xcf8] sm:$0xff]
        %v3255 = vld [vmem:[#allocation13 + $0xd00] sm:$0xff]
        %v3256 = vld [vmem:[#allocation13 + $0xd08] sm:$0xff]
        %v3257 = vld [vmem:[#allocation13 + $0xd10] sm:$0xf]
        %v3258 = vld [vmem:[#allocation13 + $0xd14] sm:$0xff]
        %v3259 = vld [vmem:[#allocation13 + $0xd1c] sm:$0xff]
        %v3260 = vld [vmem:[#allocation13 + $0xd24] sm:$0xff]
        %v3261 = vld [vmem:[#allocation13 + $0xd2c] sm:$0xff]
        %v3262 = vld [vmem:[#allocation13 + $0xd34] sm:$0xf]
        %v3263 = vld [vmem:[#allocation13 + $0xd38] sm:$0xff]
        %v3264 = vld [vmem:[#allocation13 + $0xd40] sm:$0xff]
        %v3265 = vld [vmem:[#allocation13 + $0xd48] sm:$0xff]
        %v3266 = vld [vmem:[#allocation13 + $0xd50] sm:$0xff]
        %v3267 = vld [vmem:[#allocation13 + $0xd58] sm:$0xf]
        %v3268 = vld [vmem:[#allocation13 + $0xd5c] sm:$0xff]
        %v3269 = vld [vmem:[#allocation13 + $0xd64] sm:$0xff]
        %v3270 = vld [vmem:[#allocation13 + $0xd6c] sm:$0xff]
        %v3271 = vld [vmem:[#allocation13 + $0xd74] sm:$0xff]
        %v3272 = vld [vmem:[#allocation13 + $0xd7c] sm:$0xf]
        %v3273 = vld [vmem:[#allocation13 + $0xd80] sm:$0xff]
        %v3274 = vld [vmem:[#allocation13 + $0xd88] sm:$0xff]
        %v3275 = vld [vmem:[#allocation13 + $0xd90] sm:$0xff]
        %v3276 = vld [vmem:[#allocation13 + $0xd98] sm:$0xff]
        %v3277 = vld [vmem:[#allocation13 + $0xda0] sm:$0xf]
        %v3278 = vld [vmem:[#allocation13 + $0xda4] sm:$0xff]
        %v3279 = vld [vmem:[#allocation13 + $0xdac] sm:$0xff]
        %v3280 = vld [vmem:[#allocation13 + $0xdb4] sm:$0xff]
        %v3281 = vld [vmem:[#allocation13 + $0xdbc] sm:$0xff]
        %v3282 = vld [vmem:[#allocation13 + $0xdc4] sm:$0xf]
        %v3283 = vld [vmem:[#allocation13 + $0xdc8] sm:$0xff]
        %v3284 = vld [vmem:[#allocation13 + $0xdd0] sm:$0xff]
        %v3285 = vld [vmem:[#allocation13 + $0xdd8] sm:$0xff]
        %v3286 = vld [vmem:[#allocation13 + $0xde0] sm:$0xff]
        %v3287 = vld [vmem:[#allocation13 + $0xde8] sm:$0xf]
        %v3288 = vld [vmem:[#allocation13 + $0xdec] sm:$0xff]
        %v3289 = vld [vmem:[#allocation13 + $0xdf4] sm:$0xff]
        %v3290 = vld [vmem:[#allocation13 + $0xdfc] sm:$0xff]
        %v3291 = vld [vmem:[#allocation13 + $0xe04] sm:$0xff]
        %v3292 = vld [vmem:[#allocation13 + $0xe0c] sm:$0xf]
        %v3293 = vld [vmem:[#allocation13 + $0xe10] sm:$0xff]
        %v3294 = vld [vmem:[#allocation13 + $0xe18] sm:$0xff]
        %v3295 = vld [vmem:[#allocation13 + $0xe20] sm:$0xff]
        %v3296 = vld [vmem:[#allocation13 + $0xe28] sm:$0xff]
        %v3297 = vld [vmem:[#allocation13 + $0xe30] sm:$0xf]
        %v3298 = vld [vmem:[#allocation13 + $0xe34] sm:$0xff]
        %v3299 = vld [vmem:[#allocation13 + $0xe3c] sm:$0xff]
        %v3300 = vld [vmem:[#allocation13 + $0xe44] sm:$0xff]
        %v3301 = vld [vmem:[#allocation13 + $0xe4c] sm:$0xff]
        %v3302 = vld [vmem:[#allocation13 + $0xe54] sm:$0xf]
        %v3303 = vld [vmem:[#allocation13 + $0xe58] sm:$0xff]
        %v3304 = vld [vmem:[#allocation13 + $0xe60] sm:$0xff]
        %v3305 = vld [vmem:[#allocation13 + $0xe68] sm:$0xff]
        %v3306 = vld [vmem:[#allocation13 + $0xe70] sm:$0xff]
        %v3307 = vld [vmem:[#allocation13 + $0xe78] sm:$0xf]
        %v3308 = vld [vmem:[#allocation13 + $0xe7c] sm:$0xff]
        %v3309 = vld [vmem:[#allocation13 + $0xe84] sm:$0xff]
        %v3310 = vld [vmem:[#allocation13 + $0xe8c] sm:$0xff]
        %v3311 = vld [vmem:[#allocation13 + $0xe94] sm:$0xff]
        %v3312 = vld [vmem:[#allocation13 + $0xe9c] sm:$0xf]
        %v3313 = vld [vmem:[#allocation13 + $0xea0] sm:$0xff]
        %v3314 = vld [vmem:[#allocation13 + $0xea8] sm:$0xff]
        %v3315 = vld [vmem:[#allocation13 + $0xeb0] sm:$0xff]
        %v3316 = vld [vmem:[#allocation13 + $0xeb8] sm:$0xff]
        %v3317 = vld [vmem:[#allocation13 + $0xec0] sm:$0xf]
        %v3318 = vld [vmem:[#allocation13 + $0xec4] sm:$0xff]
        %v3319 = vld [vmem:[#allocation13 + $0xecc] sm:$0xff]
        %v3320 = vld [vmem:[#allocation13 + $0xed4] sm:$0xff]
        %v3321 = vld [vmem:[#allocation13 + $0xedc] sm:$0xff]
        %v3322 = vld [vmem:[#allocation13 + $0xee4] sm:$0xf]
        %v3323 = vld [vmem:[#allocation13 + $0xee8] sm:$0xff]
        %v3324 = vld [vmem:[#allocation13 + $0xef0] sm:$0xff]
        %v3325 = vld [vmem:[#allocation13 + $0xef8] sm:$0xff]
        %v3326 = vld [vmem:[#allocation13 + $0xf00] sm:$0xff]
        %v3327 = vld [vmem:[#allocation13 + $0xf08] sm:$0xf]
        %v3328 = vld [vmem:[#allocation13 + $0xf0c] sm:$0xff]
        %v3329 = vld [vmem:[#allocation13 + $0xf14] sm:$0xff]
        %v3330 = vld [vmem:[#allocation13 + $0xf1c] sm:$0xff]
        %v3331 = vld [vmem:[#allocation13 + $0xf24] sm:$0xff]
        %v3332 = vld [vmem:[#allocation13 + $0xf2c] sm:$0xf]
        %v3333 = vld [vmem:[#allocation13 + $0xf30] sm:$0xff]
        %v3334 = vld [vmem:[#allocation13 + $0xf38] sm:$0xff]
        %v3335 = vld [vmem:[#allocation13 + $0xf40] sm:$0xff]
        %v3336 = vld [vmem:[#allocation13 + $0xf48] sm:$0xff]
        %v3337 = vld [vmem:[#allocation13 + $0xf50] sm:$0xf]
        %v3338 = vld [vmem:[#allocation13 + $0xf54] sm:$0xff]
        %v3339 = vld [vmem:[#allocation13 + $0xf5c] sm:$0xff]
        %v3340 = vld [vmem:[#allocation13 + $0xf64] sm:$0xff]
        %v3341 = vld [vmem:[#allocation13 + $0xf6c] sm:$0xff]
        %v3342 = vld [vmem:[#allocation13 + $0xf74] sm:$0xf]
        %v3343 = vld [vmem:[#allocation13 + $0xf78] sm:$0xff]
        %v3344 = vld [vmem:[#allocation13 + $0xf80] sm:$0xff]
        %v3345 = vld [vmem:[#allocation13 + $0xf88] sm:$0xff]
        %v3346 = vld [vmem:[#allocation13 + $0xf90] sm:$0xff]
        %v3347 = vld [vmem:[#allocation13 + $0xf98] sm:$0xf]
        %v3348 = vld [vmem:[#allocation13 + $0xf9c] sm:$0xff]
        %v3349 = vld [vmem:[#allocation13 + $0xfa4] sm:$0xff]
        %v3350 = vld [vmem:[#allocation13 + $0xfac] sm:$0xff]
        %v3351 = vld [vmem:[#allocation13 + $0xfb4] sm:$0xff]
        %v3352 = vld [vmem:[#allocation13 + $0xfbc] sm:$0xf]
        %v3353 = vld [vmem:[#allocation13 + $0xfc0] sm:$0xff]
        %v3354 = vld [vmem:[#allocation13 + $0xfc8] sm:$0xff]
        %v3355 = vld [vmem:[#allocation13 + $0xfd0] sm:$0xff]
        %v3356 = vld [vmem:[#allocation13 + $0xfd8] sm:$0xff]
        %v3357 = vld [vmem:[#allocation13 + $0xfe0] sm:$0xf]
        %v3358 = vld [vmem:[#allocation13 + $0xfe4] sm:$0xff]
        %v3359 = vld [vmem:[#allocation13 + $0xfec] sm:$0xff]
        %v3360 = vld [vmem:[#allocation13 + $0xff4] sm:$0xff]
        %v3361 = vld [vmem:[#allocation13 + $0xffc] sm:$0xff]
        %v3362 = vld [vmem:[#allocation13 + $0x1004] sm:$0xf]
        %v3363 = vld [vmem:[#allocation13 + $0x1008] sm:$0xff]
        %v3364 = vld [vmem:[#allocation13 + $0x1010] sm:$0xff]
        %v3365 = vld [vmem:[#allocation13 + $0x1018] sm:$0xff]
        %v3366 = vld [vmem:[#allocation13 + $0x1020] sm:$0xff]
        %v3367 = vld [vmem:[#allocation13 + $0x1028] sm:$0xf]
        %v3368 = vld [vmem:[#allocation13 + $0x102c] sm:$0xff]
        %v3369 = vld [vmem:[#allocation13 + $0x1034] sm:$0xff]
        %v3370 = vld [vmem:[#allocation13 + $0x103c] sm:$0xff]
        %v3371 = vld [vmem:[#allocation13 + $0x1044] sm:$0xff]
        %v3372 = vld [vmem:[#allocation13 + $0x104c] sm:$0xf]
        %v3373 = vld [vmem:[#allocation13 + $0x1050] sm:$0xff]
        %v3374 = vld [vmem:[#allocation13 + $0x1058] sm:$0xff]
        %v3375 = vld [vmem:[#allocation13 + $0x1060] sm:$0xff]
        %v3376 = vld [vmem:[#allocation13 + $0x1068] sm:$0xff]
        %v3377 = vld [vmem:[#allocation13 + $0x1070] sm:$0xf]
        %v3378 = vld [vmem:[#allocation13 + $0x1074] sm:$0xff]
        %v3379 = vld [vmem:[#allocation13 + $0x107c] sm:$0xff]
        %v3380 = vld [vmem:[#allocation13 + $0x1084] sm:$0xff]
        %v3381 = vld [vmem:[#allocation13 + $0x108c] sm:$0xff]
        %v3382 = vld [vmem:[#allocation13 + $0x1094] sm:$0xf]
        %v3383 = vld [vmem:[#allocation13 + $0x1098] sm:$0xff]
        %v3384 = vld [vmem:[#allocation13 + $0x10a0] sm:$0xff]
        %v3385 = vld [vmem:[#allocation13 + $0x10a8] sm:$0xff]
        %v3386 = vld [vmem:[#allocation13 + $0x10b0] sm:$0xff]
        %v3387 = vld [vmem:[#allocation13 + $0x10b8] sm:$0xf]
        %v3388 = vld [vmem:[#allocation13 + $0x10bc] sm:$0xff]
        %v3389 = vld [vmem:[#allocation13 + $0x10c4] sm:$0xff]
        %v3390 = vld [vmem:[#allocation13 + $0x10cc] sm:$0xff]
        %v3391 = vld [vmem:[#allocation13 + $0x10d4] sm:$0xff]
        %v3392 = vld [vmem:[#allocation13 + $0x10dc] sm:$0xf]
        %v3393 = vld [vmem:[#allocation13 + $0x10e0] sm:$0xff]
        %v3394 = vld [vmem:[#allocation13 + $0x10e8] sm:$0xff]
        %v3395 = vld [vmem:[#allocation13 + $0x10f0] sm:$0xff]
        %v3396 = vld [vmem:[#allocation13 + $0x10f8] sm:$0xff]
        %v3397 = vld [vmem:[#allocation13 + $0x1100] sm:$0xf]
        %v3398 = vld [vmem:[#allocation13 + $0x1104] sm:$0xff]
        %v3399 = vld [vmem:[#allocation13 + $0x110c] sm:$0xff]
        %v3400 = vld [vmem:[#allocation13 + $0x1114] sm:$0xff]
        %v3401 = vld [vmem:[#allocation13 + $0x111c] sm:$0xff]
        %v3402 = vld [vmem:[#allocation13 + $0x1124] sm:$0xf]
        %v3403 = vld [vmem:[#allocation13 + $0x1128] sm:$0xff]
        %v3404 = vld [vmem:[#allocation13 + $0x1130] sm:$0xff]
        %v3405 = vld [vmem:[#allocation13 + $0x1138] sm:$0xff]
        %v3406 = vld [vmem:[#allocation13 + $0x1140] sm:$0xff]
        %v3407 = vld [vmem:[#allocation13 + $0x1148] sm:$0xf]
        %v3408 = vld [vmem:[#allocation13 + $0x114c] sm:$0xff]
        %v3409 = vld [vmem:[#allocation13 + $0x1154] sm:$0xff]
        %v3410 = vld [vmem:[#allocation13 + $0x115c] sm:$0xff]
        %v3411 = vld [vmem:[#allocation13 + $0x1164] sm:$0xff]
        %v3412 = vld [vmem:[#allocation13 + $0x116c] sm:$0xf]
        %v3413 = vld [vmem:[#allocation13 + $0x1170] sm:$0xff]
        %v3414 = vld [vmem:[#allocation13 + $0x1178] sm:$0xff]
        %v3415 = vld [vmem:[#allocation13 + $0x1180] sm:$0xff]
        %v3416 = vld [vmem:[#allocation13 + $0x1188] sm:$0xff]
        %v3417 = vld [vmem:[#allocation13 + $0x1190] sm:$0xf]
        %v3418 = vld [vmem:[#allocation13 + $0x1194] sm:$0xff]
        %v3419 = vld [vmem:[#allocation13 + $0x119c] sm:$0xff]
        %v3420 = vld [vmem:[#allocation13 + $0x11a4] sm:$0xff]
        %v3421 = vld [vmem:[#allocation13 + $0x11ac] sm:$0xff]
        %v3422 = vld [vmem:[#allocation13 + $0x11b4] sm:$0xf]
        %v3423 = vld [vmem:[#allocation13 + $0x11b8] sm:$0xff]
        %v3424 = vld [vmem:[#allocation13 + $0x11c0] sm:$0xff]
        %v3425 = vld [vmem:[#allocation13 + $0x11c8] sm:$0xff]
        %v3426 = vld [vmem:[#allocation13 + $0x11d0] sm:$0xff]
        %v3427 = vld [vmem:[#allocation13 + $0x11d8] sm:$0xf]
        %v3428 = vld [vmem:[#allocation13 + $0x11dc] sm:$0xff]
        %v3429 = vld [vmem:[#allocation13 + $0x11e4] sm:$0xff]
        %v3430 = vld [vmem:[#allocation13 + $0x11ec] sm:$0xff]
        %v3431 = vld [vmem:[#allocation13 + $0x11f4] sm:$0xff]
        %v3432 = vld [vmem:[#allocation13 + $0x11fc] sm:$0xf]
        %v3521 = vunpack.c.l.b16 %v2705
        %v3522 = vunpack.c.h.b16 %v2705
        %v3523 = vunpack.c.l.b16 %v2706
        %v3524 = vunpack.c.h.b16 %v2706
        %v3525 = vunpack.c.l.b16 %v2707
        %v3526 = vunpack.c.h.b16 %v2707
        %v3527 = vunpack.c.l.b16 %v2708
        %v3528 = vunpack.c.h.b16 %v2708
        %v3529 = vunpack.c.l.b16 %v2709
        %v3530 = vunpack.c.h.b16 %v2709
        %v3531 = vunpack.c.l.b16 %v2710
        %v3532 = vunpack.c.h.b16 %v2710
        %v3533 = vunpack.c.l.b16 %v2711
        %v3534 = vunpack.c.h.b16 %v2711
        %v3535 = vunpack.c.l.b16 %v2712
        %v3536 = vunpack.c.h.b16 %v2712
        %v3537 = vunpack.c.l.b16 %v2713
        %v3538 = vunpack.c.h.b16 %v2713
        %v3539 = vunpack.c.l.b16 %v2714
        %v3540 = vunpack.c.h.b16 %v2714
        %v3541 = vunpack.c.l.b16 %v2715
        %v3542 = vunpack.c.h.b16 %v2715
        %v3543 = vunpack.c.l.b16 %v2716
        %v3544 = vunpack.c.h.b16 %v2716
        %v3545 = vunpack.c.l.b16 %v2717
        %v3546 = vunpack.c.h.b16 %v2717
        %v3547 = vunpack.c.l.b16 %v2718
        %v3548 = vunpack.c.h.b16 %v2718
        %v3549 = vunpack.c.l.b16 %v2719
        %v3550 = vunpack.c.h.b16 %v2719
        %v3551 = vunpack.c.l.b16 %v2720
        %v3552 = vunpack.c.h.b16 %v2720
        %v3553 = vunpack.c.l.b16 %v2721
        %v3554 = vunpack.c.h.b16 %v2721
        %v3555 = vunpack.c.l.b16 %v2722
        %v3556 = vunpack.c.h.b16 %v2722
        %v3557 = vunpack.c.l.b16 %v2723
        %v3558 = vunpack.c.h.b16 %v2723
        %v3559 = vunpack.c.l.b16 %v2724
        %v3560 = vunpack.c.h.b16 %v2724
        %v3561 = vunpack.c.l.b16 %v2725
        %v3562 = vunpack.c.h.b16 %v2725
        %v3563 = vunpack.c.l.b16 %v2726
        %v3564 = vunpack.c.h.b16 %v2726
        %v3565 = vunpack.c.l.b16 %v2727
        %v3566 = vunpack.c.h.b16 %v2727
        %v3567 = vunpack.c.l.b16 %v2728
        %v3568 = vunpack.c.h.b16 %v2728
        %v3569 = vunpack.c.l.b16 %v2729
        %v3570 = vunpack.c.h.b16 %v2729
        %v3571 = vunpack.c.l.b16 %v2730
        %v3572 = vunpack.c.h.b16 %v2730
        %v3573 = vunpack.c.l.b16 %v2731
        %v3574 = vunpack.c.h.b16 %v2731
        %v3575 = vunpack.c.l.b16 %v2732
        %v3576 = vunpack.c.h.b16 %v2732
        %v3577 = vunpack.c.l.b16 %v2733
        %v3578 = vunpack.c.h.b16 %v2733
        %v3579 = vunpack.c.l.b16 %v2734
        %v3580 = vunpack.c.h.b16 %v2734
        %v3581 = vunpack.c.l.b16 %v2735
        %v3582 = vunpack.c.h.b16 %v2735
        %v3583 = vunpack.c.l.b16 %v2736
        %v3584 = vunpack.c.h.b16 %v2736
        %v3585 = vunpack.c.l.b16 %v2737
        %v3586 = vunpack.c.h.b16 %v2737
        %v3587 = vunpack.c.l.b16 %v2738
        %v3588 = vunpack.c.h.b16 %v2738
        %v3589 = vunpack.c.l.b16 %v2739
        %v3590 = vunpack.c.h.b16 %v2739
        %v3591 = vunpack.c.l.b16 %v2740
        %v3592 = vunpack.c.h.b16 %v2740
        %v3593 = vunpack.c.l.b16 %v2741
        %v3594 = vunpack.c.h.b16 %v2741
        %v3595 = vunpack.c.l.b16 %v2742
        %v3596 = vunpack.c.h.b16 %v2742
        %v3597 = vunpack.c.l.b16 %v2743
        %v3598 = vunpack.c.h.b16 %v2743
        %v3599 = vunpack.c.l.b16 %v2744
        %v3600 = vunpack.c.h.b16 %v2744
        %v3601 = vunpack.c.l.b16 %v2745
        %v3602 = vunpack.c.h.b16 %v2745
        %v3603 = vunpack.c.l.b16 %v2746
        %v3604 = vunpack.c.h.b16 %v2746
        %v3605 = vunpack.c.l.b16 %v2747
        %v3606 = vunpack.c.h.b16 %v2747
        %v3607 = vunpack.c.l.b16 %v2748
        %v3608 = vunpack.c.h.b16 %v2748
        %v3609 = vunpack.c.l.b16 %v2749
        %v3610 = vunpack.c.h.b16 %v2749
        %v3611 = vunpack.c.l.b16 %v2750
        %v3612 = vunpack.c.h.b16 %v2750
        %v3613 = vunpack.c.l.b16 %v2751
        %v3614 = vunpack.c.h.b16 %v2751
        %v3615 = vunpack.c.l.b16 %v2752
        %v3616 = vunpack.c.h.b16 %v2752
        %v3617 = vunpack.c.l.b16 %v2753
        %v3618 = vunpack.c.h.b16 %v2753
        %v3619 = vunpack.c.l.b16 %v2754
        %v3620 = vunpack.c.h.b16 %v2754
        %v3621 = vunpack.c.l.b16 %v2755
        %v3622 = vunpack.c.h.b16 %v2755
        %v3623 = vunpack.c.l.b16 %v2756
        %v3624 = vunpack.c.h.b16 %v2756
        %v3625 = vunpack.c.l.b16 %v2757
        %v3626 = vunpack.c.h.b16 %v2757
        %v3627 = vunpack.c.l.b16 %v2758
        %v3628 = vunpack.c.h.b16 %v2758
        %v3629 = vunpack.c.l.b16 %v2759
        %v3630 = vunpack.c.h.b16 %v2759
        %v3631 = vunpack.c.l.b16 %v2760
        %v3632 = vunpack.c.h.b16 %v2760
        %v3633 = vunpack.c.l.b16 %v2761
        %v3634 = vunpack.c.h.b16 %v2761
        %v3635 = vunpack.c.l.b16 %v2762
        %v3636 = vunpack.c.h.b16 %v2762
        %v3637 = vunpack.c.l.b16 %v2763
        %v3638 = vunpack.c.h.b16 %v2763
        %v3639 = vunpack.c.l.b16 %v2764
        %v3640 = vunpack.c.h.b16 %v2764
        %v3641 = vunpack.c.l.b16 %v2765
        %v3642 = vunpack.c.h.b16 %v2765
        %v3643 = vunpack.c.l.b16 %v2766
        %v3644 = vunpack.c.h.b16 %v2766
        %v3645 = vunpack.c.l.b16 %v2767
        %v3646 = vunpack.c.h.b16 %v2767
        %v3647 = vunpack.c.l.b16 %v2768
        %v3648 = vunpack.c.h.b16 %v2768
        %v3649 = vunpack.c.l.b16 %v2769
        %v3650 = vunpack.c.h.b16 %v2769
        %v3651 = vunpack.c.l.b16 %v2770
        %v3652 = vunpack.c.h.b16 %v2770
        %v3653 = vunpack.c.l.b16 %v2771
        %v3654 = vunpack.c.h.b16 %v2771
        %v3655 = vunpack.c.l.b16 %v2772
        %v3656 = vunpack.c.h.b16 %v2772
        %v3657 = vunpack.c.l.b16 %v2773
        %v3658 = vunpack.c.h.b16 %v2773
        %v3659 = vunpack.c.l.b16 %v2774
        %v3660 = vunpack.c.h.b16 %v2774
        %v3661 = vunpack.c.l.b16 %v2775
        %v3662 = vunpack.c.h.b16 %v2775
        %v3663 = vunpack.c.l.b16 %v2776
        %v3664 = vunpack.c.h.b16 %v2776
        %v3665 = vunpack.c.l.b16 %v2777
        %v3666 = vunpack.c.h.b16 %v2777
        %v3667 = vunpack.c.l.b16 %v2778
        %v3668 = vunpack.c.h.b16 %v2778
        %v3669 = vunpack.c.l.b16 %v2779
        %v3670 = vunpack.c.h.b16 %v2779
        %v3671 = vunpack.c.l.b16 %v2780
        %v3672 = vunpack.c.h.b16 %v2780
        %v3673 = vunpack.c.l.b16 %v2781
        %v3674 = vunpack.c.h.b16 %v2781
        %v3675 = vunpack.c.l.b16 %v2782
        %v3676 = vunpack.c.h.b16 %v2782
        %v3677 = vunpack.c.l.b16 %v2783
        %v3678 = vunpack.c.h.b16 %v2783
        %v3679 = vunpack.c.l.b16 %v2784
        %v3680 = vunpack.c.h.b16 %v2784
        %v3681 = vunpack.c.l.b16 %v2785
        %v3682 = vunpack.c.h.b16 %v2785
        %v3683 = vunpack.c.l.b16 %v2786
        %v3684 = vunpack.c.h.b16 %v2786
        %v3685 = vunpack.c.l.b16 %v2787
        %v3686 = vunpack.c.h.b16 %v2787
        %v3687 = vunpack.c.l.b16 %v2788
        %v3688 = vunpack.c.h.b16 %v2788
        %v3689 = vunpack.c.l.b16 %v2789
        %v3690 = vunpack.c.h.b16 %v2789
        %v3691 = vunpack.c.l.b16 %v2790
        %v3692 = vunpack.c.h.b16 %v2790
        %v3693 = vunpack.c.l.b16 %v2791
        %v3694 = vunpack.c.h.b16 %v2791
        %v3695 = vunpack.c.l.b16 %v2792
        %v3696 = vunpack.c.h.b16 %v2792
        %v3697 = vpack.c.b16 %v3529, %v3521
        %v3698 = vpack.c.b16 %v3530, %v3522
        %v3699 = vpack.c.b16 %v3531, %v3523
        %v3700 = vpack.c.b16 %v3532, %v3524
        %v3701 = vpack.c.b16 %v3533, %v3525
        %v3702 = vpack.c.b16 %v3534, %v3526
        %v3703 = vpack.c.b16 %v3535, %v3527
        %v3704 = vpack.c.b16 %v3536, %v3528
        %v3705 = vpack.c.b16 %v3545, %v3537
        %v3706 = vpack.c.b16 %v3546, %v3538
        %v3707 = vpack.c.b16 %v3547, %v3539
        %v3708 = vpack.c.b16 %v3548, %v3540
        %v3709 = vpack.c.b16 %v3549, %v3541
        %v3710 = vpack.c.b16 %v3550, %v3542
        %v3711 = vpack.c.b16 %v3551, %v3543
        %v3712 = vpack.c.b16 %v3552, %v3544
        %v3713 = vpack.c.b16 %v3561, %v3553
        %v3714 = vpack.c.b16 %v3562, %v3554
        %v3715 = vpack.c.b16 %v3563, %v3555
        %v3716 = vpack.c.b16 %v3564, %v3556
        %v3717 = vpack.c.b16 %v3565, %v3557
        %v3718 = vpack.c.b16 %v3566, %v3558
        %v3719 = vpack.c.b16 %v3567, %v3559
        %v3720 = vpack.c.b16 %v3568, %v3560
        %v3721 = vpack.c.b16 %v3577, %v3569
        %v3722 = vpack.c.b16 %v3578, %v3570
        %v3723 = vpack.c.b16 %v3579, %v3571
        %v3724 = vpack.c.b16 %v3580, %v3572
        %v3725 = vpack.c.b16 %v3581, %v3573
        %v3726 = vpack.c.b16 %v3582, %v3574
        %v3727 = vpack.c.b16 %v3583, %v3575
        %v3728 = vpack.c.b16 %v3584, %v3576
        %v3729 = vpack.c.b16 %v3593, %v3585
        %v3730 = vpack.c.b16 %v3594, %v3586
        %v3731 = vpack.c.b16 %v3595, %v3587
        %v3732 = vpack.c.b16 %v3596, %v3588
        %v3733 = vpack.c.b16 %v3597, %v3589
        %v3734 = vpack.c.b16 %v3598, %v3590
        %v3735 = vpack.c.b16 %v3599, %v3591
        %v3736 = vpack.c.b16 %v3600, %v3592
        %v3737 = vpack.c.b16 %v3609, %v3601
        %v3738 = vpack.c.b16 %v3610, %v3602
        %v3739 = vpack.c.b16 %v3611, %v3603
        %v3740 = vpack.c.b16 %v3612, %v3604
        %v3741 = vpack.c.b16 %v3613, %v3605
        %v3742 = vpack.c.b16 %v3614, %v3606
        %v3743 = vpack.c.b16 %v3615, %v3607
        %v3744 = vpack.c.b16 %v3616, %v3608
        %v3745 = vpack.c.b16 %v3625, %v3617
        %v3746 = vpack.c.b16 %v3626, %v3618
        %v3747 = vpack.c.b16 %v3627, %v3619
        %v3748 = vpack.c.b16 %v3628, %v3620
        %v3749 = vpack.c.b16 %v3629, %v3621
        %v3750 = vpack.c.b16 %v3630, %v3622
        %v3751 = vpack.c.b16 %v3631, %v3623
        %v3752 = vpack.c.b16 %v3632, %v3624
        %v3753 = vpack.c.b16 %v3641, %v3633
        %v3754 = vpack.c.b16 %v3642, %v3634
        %v3755 = vpack.c.b16 %v3643, %v3635
        %v3756 = vpack.c.b16 %v3644, %v3636
        %v3757 = vpack.c.b16 %v3645, %v3637
        %v3758 = vpack.c.b16 %v3646, %v3638
        %v3759 = vpack.c.b16 %v3647, %v3639
        %v3760 = vpack.c.b16 %v3648, %v3640
        %v3761 = vpack.c.b16 %v3657, %v3649
        %v3762 = vpack.c.b16 %v3658, %v3650
        %v3763 = vpack.c.b16 %v3659, %v3651
        %v3764 = vpack.c.b16 %v3660, %v3652
        %v3765 = vpack.c.b16 %v3661, %v3653
        %v3766 = vpack.c.b16 %v3662, %v3654
        %v3767 = vpack.c.b16 %v3663, %v3655
        %v3768 = vpack.c.b16 %v3664, %v3656
        %v3769 = vpack.c.b16 %v3673, %v3665
        %v3770 = vpack.c.b16 %v3674, %v3666
        %v3771 = vpack.c.b16 %v3675, %v3667
        %v3772 = vpack.c.b16 %v3676, %v3668
        %v3773 = vpack.c.b16 %v3677, %v3669
        %v3774 = vpack.c.b16 %v3678, %v3670
        %v3775 = vpack.c.b16 %v3679, %v3671
        %v3776 = vpack.c.b16 %v3680, %v3672
        %v3777 = vpack.c.b16 %v3689, %v3681
        %v3778 = vpack.c.b16 %v3690, %v3682
        %v3779 = vpack.c.b16 %v3691, %v3683
        %v3780 = vpack.c.b16 %v3692, %v3684
        %v3781 = vpack.c.b16 %v3693, %v3685
        %v3782 = vpack.c.b16 %v3694, %v3686
        %v3783 = vpack.c.b16 %v3695, %v3687
        %v3784 = vpack.c.b16 %v3696, %v3688
        %v4513 = vunpack.c.l.b16 %v2793
        %v4514 = vunpack.c.h.b16 %v2793
        %v4515 = vunpack.c.l.b16 %v2794
        %v4516 = vunpack.c.h.b16 %v2794
        %v4517 = vunpack.c.l.b16 %v2795
        %v4518 = vunpack.c.h.b16 %v2795
        %v4519 = vunpack.c.l.b16 %v2796
        %v4520 = vunpack.c.h.b16 %v2796
        %v4521 = vunpack.c.l.b16 %v2797
        %v4522 = vunpack.c.l.b16 %v2798
        %v4523 = vunpack.c.h.b16 %v2798
        %v4524 = vunpack.c.l.b16 %v2799
        %v4525 = vunpack.c.h.b16 %v2799
        %v4526 = vunpack.c.l.b16 %v2800
        %v4527 = vunpack.c.h.b16 %v2800
        %v4528 = vunpack.c.l.b16 %v2801
        %v4529 = vunpack.c.h.b16 %v2801
        %v4530 = vunpack.c.l.b16 %v2802
        %v4531 = vunpack.c.l.b16 %v2803
        %v4532 = vunpack.c.h.b16 %v2803
        %v4533 = vunpack.c.l.b16 %v2804
        %v4534 = vunpack.c.h.b16 %v2804
        %v4535 = vunpack.c.l.b16 %v2805
        %v4536 = vunpack.c.h.b16 %v2805
        %v4537 = vunpack.c.l.b16 %v2806
        %v4538 = vunpack.c.h.b16 %v2806
        %v4539 = vunpack.c.l.b16 %v2807
        %v4540 = vunpack.c.l.b16 %v2808
        %v4541 = vunpack.c.h.b16 %v2808
        %v4542 = vunpack.c.l.b16 %v2809
        %v4543 = vunpack.c.h.b16 %v2809
        %v4544 = vunpack.c.l.b16 %v2810
        %v4545 = vunpack.c.h.b16 %v2810
        %v4546 = vunpack.c.l.b16 %v2811
        %v4547 = vunpack.c.h.b16 %v2811
        %v4548 = vunpack.c.l.b16 %v2812
        %v4549 = vunpack.c.l.b16 %v2813
        %v4550 = vunpack.c.h.b16 %v2813
        %v4551 = vunpack.c.l.b16 %v2814
        %v4552 = vunpack.c.h.b16 %v2814
        %v4553 = vunpack.c.l.b16 %v2815
        %v4554 = vunpack.c.h.b16 %v2815
        %v4555 = vunpack.c.l.b16 %v2816
        %v4556 = vunpack.c.h.b16 %v2816
        %v4557 = vunpack.c.l.b16 %v2817
        %v4558 = vunpack.c.l.b16 %v2818
        %v4559 = vunpack.c.h.b16 %v2818
        %v4560 = vunpack.c.l.b16 %v2819
        %v4561 = vunpack.c.h.b16 %v2819
        %v4562 = vunpack.c.l.b16 %v2820
        %v4563 = vunpack.c.h.b16 %v2820
        %v4564 = vunpack.c.l.b16 %v2821
        %v4565 = vunpack.c.h.b16 %v2821
        %v4566 = vunpack.c.l.b16 %v2822
        %v4567 = vunpack.c.l.b16 %v2823
        %v4568 = vunpack.c.h.b16 %v2823
        %v4569 = vunpack.c.l.b16 %v2824
        %v4570 = vunpack.c.h.b16 %v2824
        %v4571 = vunpack.c.l.b16 %v2825
        %v4572 = vunpack.c.h.b16 %v2825
        %v4573 = vunpack.c.l.b16 %v2826
        %v4574 = vunpack.c.h.b16 %v2826
        %v4575 = vunpack.c.l.b16 %v2827
        %v4576 = vunpack.c.l.b16 %v2828
        %v4577 = vunpack.c.h.b16 %v2828
        %v4578 = vunpack.c.l.b16 %v2829
        %v4579 = vunpack.c.h.b16 %v2829
        %v4580 = vunpack.c.l.b16 %v2830
        %v4581 = vunpack.c.h.b16 %v2830
        %v4582 = vunpack.c.l.b16 %v2831
        %v4583 = vunpack.c.h.b16 %v2831
        %v4584 = vunpack.c.l.b16 %v2832
        %v4585 = vunpack.c.l.b16 %v2833
        %v4586 = vunpack.c.h.b16 %v2833
        %v4587 = vunpack.c.l.b16 %v2834
        %v4588 = vunpack.c.h.b16 %v2834
        %v4589 = vunpack.c.l.b16 %v2835
        %v4590 = vunpack.c.h.b16 %v2835
        %v4591 = vunpack.c.l.b16 %v2836
        %v4592 = vunpack.c.h.b16 %v2836
        %v4593 = vunpack.c.l.b16 %v2837
        %v4594 = vunpack.c.l.b16 %v2838
        %v4595 = vunpack.c.h.b16 %v2838
        %v4596 = vunpack.c.l.b16 %v2839
        %v4597 = vunpack.c.h.b16 %v2839
        %v4598 = vunpack.c.l.b16 %v2840
        %v4599 = vunpack.c.h.b16 %v2840
        %v4600 = vunpack.c.l.b16 %v2841
        %v4601 = vunpack.c.h.b16 %v2841
        %v4602 = vunpack.c.l.b16 %v2842
        %v4603 = vunpack.c.l.b16 %v2843
        %v4604 = vunpack.c.h.b16 %v2843
        %v4605 = vunpack.c.l.b16 %v2844
        %v4606 = vunpack.c.h.b16 %v2844
        %v4607 = vunpack.c.l.b16 %v2845
        %v4608 = vunpack.c.h.b16 %v2845
        %v4609 = vunpack.c.l.b16 %v2846
        %v4610 = vunpack.c.h.b16 %v2846
        %v4611 = vunpack.c.l.b16 %v2847
        %v4612 = vunpack.c.l.b16 %v2848
        %v4613 = vunpack.c.h.b16 %v2848
        %v4614 = vunpack.c.l.b16 %v2849
        %v4615 = vunpack.c.h.b16 %v2849
        %v4616 = vunpack.c.l.b16 %v2850
        %v4617 = vunpack.c.h.b16 %v2850
        %v4618 = vunpack.c.l.b16 %v2851
        %v4619 = vunpack.c.h.b16 %v2851
        %v4620 = vunpack.c.l.b16 %v2852
        %v4621 = vunpack.c.l.b16 %v2853
        %v4622 = vunpack.c.h.b16 %v2853
        %v4623 = vunpack.c.l.b16 %v2854
        %v4624 = vunpack.c.h.b16 %v2854
        %v4625 = vunpack.c.l.b16 %v2855
        %v4626 = vunpack.c.h.b16 %v2855
        %v4627 = vunpack.c.l.b16 %v2856
        %v4628 = vunpack.c.h.b16 %v2856
        %v4629 = vunpack.c.l.b16 %v2857
        %v4630 = vunpack.c.l.b16 %v2858
        %v4631 = vunpack.c.h.b16 %v2858
        %v4632 = vunpack.c.l.b16 %v2859
        %v4633 = vunpack.c.h.b16 %v2859
        %v4634 = vunpack.c.l.b16 %v2860
        %v4635 = vunpack.c.h.b16 %v2860
        %v4636 = vunpack.c.l.b16 %v2861
        %v4637 = vunpack.c.h.b16 %v2861
        %v4638 = vunpack.c.l.b16 %v2862
        %v4639 = vunpack.c.l.b16 %v2863
        %v4640 = vunpack.c.h.b16 %v2863
        %v4641 = vunpack.c.l.b16 %v2864
        %v4642 = vunpack.c.h.b16 %v2864
        %v4643 = vunpack.c.l.b16 %v2865
        %v4644 = vunpack.c.h.b16 %v2865
        %v4645 = vunpack.c.l.b16 %v2866
        %v4646 = vunpack.c.h.b16 %v2866
        %v4647 = vunpack.c.l.b16 %v2867
        %v4648 = vunpack.c.l.b16 %v2868
        %v4649 = vunpack.c.h.b16 %v2868
        %v4650 = vunpack.c.l.b16 %v2869
        %v4651 = vunpack.c.h.b16 %v2869
        %v4652 = vunpack.c.l.b16 %v2870
        %v4653 = vunpack.c.h.b16 %v2870
        %v4654 = vunpack.c.l.b16 %v2871
        %v4655 = vunpack.c.h.b16 %v2871
        %v4656 = vunpack.c.l.b16 %v2872
        %v4657 = vunpack.c.l.b16 %v2873
        %v4658 = vunpack.c.h.b16 %v2873
        %v4659 = vunpack.c.l.b16 %v2874
        %v4660 = vunpack.c.h.b16 %v2874
        %v4661 = vunpack.c.l.b16 %v2875
        %v4662 = vunpack.c.h.b16 %v2875
        %v4663 = vunpack.c.l.b16 %v2876
        %v4664 = vunpack.c.h.b16 %v2876
        %v4665 = vunpack.c.l.b16 %v2877
        %v4666 = vunpack.c.l.b16 %v2878
        %v4667 = vunpack.c.h.b16 %v2878
        %v4668 = vunpack.c.l.b16 %v2879
        %v4669 = vunpack.c.h.b16 %v2879
        %v4670 = vunpack.c.l.b16 %v2880
        %v4671 = vunpack.c.h.b16 %v2880
        %v4672 = vunpack.c.l.b16 %v2881
        %v4673 = vunpack.c.h.b16 %v2881
        %v4674 = vunpack.c.l.b16 %v2882
        %v4675 = vunpack.c.l.b16 %v2883
        %v4676 = vunpack.c.h.b16 %v2883
        %v4677 = vunpack.c.l.b16 %v2884
        %v4678 = vunpack.c.h.b16 %v2884
        %v4679 = vunpack.c.l.b16 %v2885
        %v4680 = vunpack.c.h.b16 %v2885
        %v4681 = vunpack.c.l.b16 %v2886
        %v4682 = vunpack.c.h.b16 %v2886
        %v4683 = vunpack.c.l.b16 %v2887
        %v4684 = vunpack.c.l.b16 %v2888
        %v4685 = vunpack.c.h.b16 %v2888
        %v4686 = vunpack.c.l.b16 %v2889
        %v4687 = vunpack.c.h.b16 %v2889
        %v4688 = vunpack.c.l.b16 %v2890
        %v4689 = vunpack.c.h.b16 %v2890
        %v4690 = vunpack.c.l.b16 %v2891
        %v4691 = vunpack.c.h.b16 %v2891
        %v4692 = vunpack.c.l.b16 %v2892
        %v4693 = vunpack.c.l.b16 %v2893
        %v4694 = vunpack.c.h.b16 %v2893
        %v4695 = vunpack.c.l.b16 %v2894
        %v4696 = vunpack.c.h.b16 %v2894
        %v4697 = vunpack.c.l.b16 %v2895
        %v4698 = vunpack.c.h.b16 %v2895
        %v4699 = vunpack.c.l.b16 %v2896
        %v4700 = vunpack.c.h.b16 %v2896
        %v4701 = vunpack.c.l.b16 %v2897
        %v4702 = vunpack.c.l.b16 %v2898
        %v4703 = vunpack.c.h.b16 %v2898
        %v4704 = vunpack.c.l.b16 %v2899
        %v4705 = vunpack.c.h.b16 %v2899
        %v4706 = vunpack.c.l.b16 %v2900
        %v4707 = vunpack.c.h.b16 %v2900
        %v4708 = vunpack.c.l.b16 %v2901
        %v4709 = vunpack.c.h.b16 %v2901
        %v4710 = vunpack.c.l.b16 %v2902
        %v4711 = vunpack.c.l.b16 %v2903
        %v4712 = vunpack.c.h.b16 %v2903
        %v4713 = vunpack.c.l.b16 %v2904
        %v4714 = vunpack.c.h.b16 %v2904
        %v4715 = vunpack.c.l.b16 %v2905
        %v4716 = vunpack.c.h.b16 %v2905
        %v4717 = vunpack.c.l.b16 %v2906
        %v4718 = vunpack.c.h.b16 %v2906
        %v4719 = vunpack.c.l.b16 %v2907
        %v4720 = vunpack.c.l.b16 %v2908
        %v4721 = vunpack.c.h.b16 %v2908
        %v4722 = vunpack.c.l.b16 %v2909
        %v4723 = vunpack.c.h.b16 %v2909
        %v4724 = vunpack.c.l.b16 %v2910
        %v4725 = vunpack.c.h.b16 %v2910
        %v4726 = vunpack.c.l.b16 %v2911
        %v4727 = vunpack.c.h.b16 %v2911
        %v4728 = vunpack.c.l.b16 %v2912
        %v4729 = vunpack.c.l.b16 %v2913
        %v4730 = vunpack.c.h.b16 %v2913
        %v4731 = vunpack.c.l.b16 %v2914
        %v4732 = vunpack.c.h.b16 %v2914
        %v4733 = vunpack.c.l.b16 %v2915
        %v4734 = vunpack.c.h.b16 %v2915
        %v4735 = vunpack.c.l.b16 %v2916
        %v4736 = vunpack.c.h.b16 %v2916
        %v4737 = vunpack.c.l.b16 %v2917
        %v4738 = vunpack.c.l.b16 %v2918
        %v4739 = vunpack.c.h.b16 %v2918
        %v4740 = vunpack.c.l.b16 %v2919
        %v4741 = vunpack.c.h.b16 %v2919
        %v4742 = vunpack.c.l.b16 %v2920
        %v4743 = vunpack.c.h.b16 %v2920
        %v4744 = vunpack.c.l.b16 %v2921
        %v4745 = vunpack.c.h.b16 %v2921
        %v4746 = vunpack.c.l.b16 %v2922
        %v4747 = vunpack.c.l.b16 %v2923
        %v4748 = vunpack.c.h.b16 %v2923
        %v4749 = vunpack.c.l.b16 %v2924
        %v4750 = vunpack.c.h.b16 %v2924
        %v4751 = vunpack.c.l.b16 %v2925
        %v4752 = vunpack.c.h.b16 %v2925
        %v4753 = vunpack.c.l.b16 %v2926
        %v4754 = vunpack.c.h.b16 %v2926
        %v4755 = vunpack.c.l.b16 %v2927
        %v4756 = vunpack.c.l.b16 %v2928
        %v4757 = vunpack.c.h.b16 %v2928
        %v4758 = vunpack.c.l.b16 %v2929
        %v4759 = vunpack.c.h.b16 %v2929
        %v4760 = vunpack.c.l.b16 %v2930
        %v4761 = vunpack.c.h.b16 %v2930
        %v4762 = vunpack.c.l.b16 %v2931
        %v4763 = vunpack.c.h.b16 %v2931
        %v4764 = vunpack.c.l.b16 %v2932
        %v4765 = vunpack.c.l.b16 %v2933
        %v4766 = vunpack.c.h.b16 %v2933
        %v4767 = vunpack.c.l.b16 %v2934
        %v4768 = vunpack.c.h.b16 %v2934
        %v4769 = vunpack.c.l.b16 %v2935
        %v4770 = vunpack.c.h.b16 %v2935
        %v4771 = vunpack.c.l.b16 %v2936
        %v4772 = vunpack.c.h.b16 %v2936
        %v4773 = vunpack.c.l.b16 %v2937
        %v4774 = vunpack.c.l.b16 %v2938
        %v4775 = vunpack.c.h.b16 %v2938
        %v4776 = vunpack.c.l.b16 %v2939
        %v4777 = vunpack.c.h.b16 %v2939
        %v4778 = vunpack.c.l.b16 %v2940
        %v4779 = vunpack.c.h.b16 %v2940
        %v4780 = vunpack.c.l.b16 %v2941
        %v4781 = vunpack.c.h.b16 %v2941
        %v4782 = vunpack.c.l.b16 %v2942
        %v4783 = vunpack.c.l.b16 %v2943
        %v4784 = vunpack.c.h.b16 %v2943
        %v4785 = vunpack.c.l.b16 %v2944
        %v4786 = vunpack.c.h.b16 %v2944
        %v4787 = vunpack.c.l.b16 %v2945
        %v4788 = vunpack.c.h.b16 %v2945
        %v4789 = vunpack.c.l.b16 %v2946
        %v4790 = vunpack.c.h.b16 %v2946
        %v4791 = vunpack.c.l.b16 %v2947
        %v4792 = vunpack.c.l.b16 %v2948
        %v4793 = vunpack.c.h.b16 %v2948
        %v4794 = vunpack.c.l.b16 %v2949
        %v4795 = vunpack.c.h.b16 %v2949
        %v4796 = vunpack.c.l.b16 %v2950
        %v4797 = vunpack.c.h.b16 %v2950
        %v4798 = vunpack.c.l.b16 %v2951
        %v4799 = vunpack.c.h.b16 %v2951
        %v4800 = vunpack.c.l.b16 %v2952
        %v4801 = vunpack.c.l.b16 %v2953
        %v4802 = vunpack.c.h.b16 %v2953
        %v4803 = vunpack.c.l.b16 %v2954
        %v4804 = vunpack.c.h.b16 %v2954
        %v4805 = vunpack.c.l.b16 %v2955
        %v4806 = vunpack.c.h.b16 %v2955
        %v4807 = vunpack.c.l.b16 %v2956
        %v4808 = vunpack.c.h.b16 %v2956
        %v4809 = vunpack.c.l.b16 %v2957
        %v4810 = vunpack.c.l.b16 %v2958
        %v4811 = vunpack.c.h.b16 %v2958
        %v4812 = vunpack.c.l.b16 %v2959
        %v4813 = vunpack.c.h.b16 %v2959
        %v4814 = vunpack.c.l.b16 %v2960
        %v4815 = vunpack.c.h.b16 %v2960
        %v4816 = vunpack.c.l.b16 %v2961
        %v4817 = vunpack.c.h.b16 %v2961
        %v4818 = vunpack.c.l.b16 %v2962
        %v4819 = vunpack.c.l.b16 %v2963
        %v4820 = vunpack.c.h.b16 %v2963
        %v4821 = vunpack.c.l.b16 %v2964
        %v4822 = vunpack.c.h.b16 %v2964
        %v4823 = vunpack.c.l.b16 %v2965
        %v4824 = vunpack.c.h.b16 %v2965
        %v4825 = vunpack.c.l.b16 %v2966
        %v4826 = vunpack.c.h.b16 %v2966
        %v4827 = vunpack.c.l.b16 %v2967
        %v4828 = vunpack.c.l.b16 %v2968
        %v4829 = vunpack.c.h.b16 %v2968
        %v4830 = vunpack.c.l.b16 %v2969
        %v4831 = vunpack.c.h.b16 %v2969
        %v4832 = vunpack.c.l.b16 %v2970
        %v4833 = vunpack.c.h.b16 %v2970
        %v4834 = vunpack.c.l.b16 %v2971
        %v4835 = vunpack.c.h.b16 %v2971
        %v4836 = vunpack.c.l.b16 %v2972
        %v4837 = vunpack.c.l.b16 %v2973
        %v4838 = vunpack.c.h.b16 %v2973
        %v4839 = vunpack.c.l.b16 %v2974
        %v4840 = vunpack.c.h.b16 %v2974
        %v4841 = vunpack.c.l.b16 %v2975
        %v4842 = vunpack.c.h.b16 %v2975
        %v4843 = vunpack.c.l.b16 %v2976
        %v4844 = vunpack.c.h.b16 %v2976
        %v4845 = vunpack.c.l.b16 %v2977
        %v4846 = vunpack.c.l.b16 %v2978
        %v4847 = vunpack.c.h.b16 %v2978
        %v4848 = vunpack.c.l.b16 %v2979
        %v4849 = vunpack.c.h.b16 %v2979
        %v4850 = vunpack.c.l.b16 %v2980
        %v4851 = vunpack.c.h.b16 %v2980
        %v4852 = vunpack.c.l.b16 %v2981
        %v4853 = vunpack.c.h.b16 %v2981
        %v4854 = vunpack.c.l.b16 %v2982
        %v4855 = vunpack.c.l.b16 %v2983
        %v4856 = vunpack.c.h.b16 %v2983
        %v4857 = vunpack.c.l.b16 %v2984
        %v4858 = vunpack.c.h.b16 %v2984
        %v4859 = vunpack.c.l.b16 %v2985
        %v4860 = vunpack.c.h.b16 %v2985
        %v4861 = vunpack.c.l.b16 %v2986
        %v4862 = vunpack.c.h.b16 %v2986
        %v4863 = vunpack.c.l.b16 %v2987
        %v4864 = vunpack.c.l.b16 %v2988
        %v4865 = vunpack.c.h.b16 %v2988
        %v4866 = vunpack.c.l.b16 %v2989
        %v4867 = vunpack.c.h.b16 %v2989
        %v4868 = vunpack.c.l.b16 %v2990
        %v4869 = vunpack.c.h.b16 %v2990
        %v4870 = vunpack.c.l.b16 %v2991
        %v4871 = vunpack.c.h.b16 %v2991
        %v4872 = vunpack.c.l.b16 %v2992
        %v4873 = vunpack.c.l.b16 %v2993
        %v4874 = vunpack.c.h.b16 %v2993
        %v4875 = vunpack.c.l.b16 %v2994
        %v4876 = vunpack.c.h.b16 %v2994
        %v4877 = vunpack.c.l.b16 %v2995
        %v4878 = vunpack.c.h.b16 %v2995
        %v4879 = vunpack.c.l.b16 %v2996
        %v4880 = vunpack.c.h.b16 %v2996
        %v4881 = vunpack.c.l.b16 %v2997
        %v4882 = vunpack.c.l.b16 %v2998
        %v4883 = vunpack.c.h.b16 %v2998
        %v4884 = vunpack.c.l.b16 %v2999
        %v4885 = vunpack.c.h.b16 %v2999
        %v4886 = vunpack.c.l.b16 %v3000
        %v4887 = vunpack.c.h.b16 %v3000
        %v4888 = vunpack.c.l.b16 %v3001
        %v4889 = vunpack.c.h.b16 %v3001
        %v4890 = vunpack.c.l.b16 %v3002
        %v4891 = vunpack.c.l.b16 %v3003
        %v4892 = vunpack.c.h.b16 %v3003
        %v4893 = vunpack.c.l.b16 %v3004
        %v4894 = vunpack.c.h.b16 %v3004
        %v4895 = vunpack.c.l.b16 %v3005
        %v4896 = vunpack.c.h.b16 %v3005
        %v4897 = vunpack.c.l.b16 %v3006
        %v4898 = vunpack.c.h.b16 %v3006
        %v4899 = vunpack.c.l.b16 %v3007
        %v4900 = vunpack.c.l.b16 %v3008
        %v4901 = vunpack.c.h.b16 %v3008
        %v4902 = vunpack.c.l.b16 %v3009
        %v4903 = vunpack.c.h.b16 %v3009
        %v4904 = vunpack.c.l.b16 %v3010
        %v4905 = vunpack.c.h.b16 %v3010
        %v4906 = vunpack.c.l.b16 %v3011
        %v4907 = vunpack.c.h.b16 %v3011
        %v4908 = vunpack.c.l.b16 %v3012
        %v4909 = vunpack.c.l.b16 %v3013
        %v4910 = vunpack.c.h.b16 %v3013
        %v4911 = vunpack.c.l.b16 %v3014
        %v4912 = vunpack.c.h.b16 %v3014
        %v4913 = vunpack.c.l.b16 %v3015
        %v4914 = vunpack.c.h.b16 %v3015
        %v4915 = vunpack.c.l.b16 %v3016
        %v4916 = vunpack.c.h.b16 %v3016
        %v4917 = vunpack.c.l.b16 %v3017
        %v4918 = vunpack.c.l.b16 %v3018
        %v4919 = vunpack.c.h.b16 %v3018
        %v4920 = vunpack.c.l.b16 %v3019
        %v4921 = vunpack.c.h.b16 %v3019
        %v4922 = vunpack.c.l.b16 %v3020
        %v4923 = vunpack.c.h.b16 %v3020
        %v4924 = vunpack.c.l.b16 %v3021
        %v4925 = vunpack.c.h.b16 %v3021
        %v4926 = vunpack.c.l.b16 %v3022
        %v4927 = vunpack.c.l.b16 %v3023
        %v4928 = vunpack.c.h.b16 %v3023
        %v4929 = vunpack.c.l.b16 %v3024
        %v4930 = vunpack.c.h.b16 %v3024
        %v4931 = vunpack.c.l.b16 %v3025
        %v4932 = vunpack.c.h.b16 %v3025
        %v4933 = vunpack.c.l.b16 %v3026
        %v4934 = vunpack.c.h.b16 %v3026
        %v4935 = vunpack.c.l.b16 %v3027
        %v4936 = vunpack.c.l.b16 %v3028
        %v4937 = vunpack.c.h.b16 %v3028
        %v4938 = vunpack.c.l.b16 %v3029
        %v4939 = vunpack.c.h.b16 %v3029
        %v4940 = vunpack.c.l.b16 %v3030
        %v4941 = vunpack.c.h.b16 %v3030
        %v4942 = vunpack.c.l.b16 %v3031
        %v4943 = vunpack.c.h.b16 %v3031
        %v4944 = vunpack.c.l.b16 %v3032
        %v4945 = vunpack.c.l.b16 %v3033
        %v4946 = vunpack.c.h.b16 %v3033
        %v4947 = vunpack.c.l.b16 %v3034
        %v4948 = vunpack.c.h.b16 %v3034
        %v4949 = vunpack.c.l.b16 %v3035
        %v4950 = vunpack.c.h.b16 %v3035
        %v4951 = vunpack.c.l.b16 %v3036
        %v4952 = vunpack.c.h.b16 %v3036
        %v4953 = vunpack.c.l.b16 %v3037
        %v4954 = vunpack.c.l.b16 %v3038
        %v4955 = vunpack.c.h.b16 %v3038
        %v4956 = vunpack.c.l.b16 %v3039
        %v4957 = vunpack.c.h.b16 %v3039
        %v4958 = vunpack.c.l.b16 %v3040
        %v4959 = vunpack.c.h.b16 %v3040
        %v4960 = vunpack.c.l.b16 %v3041
        %v4961 = vunpack.c.h.b16 %v3041
        %v4962 = vunpack.c.l.b16 %v3042
        %v4963 = vunpack.c.l.b16 %v3043
        %v4964 = vunpack.c.h.b16 %v3043
        %v4965 = vunpack.c.l.b16 %v3044
        %v4966 = vunpack.c.h.b16 %v3044
        %v4967 = vunpack.c.l.b16 %v3045
        %v4968 = vunpack.c.h.b16 %v3045
        %v4969 = vunpack.c.l.b16 %v3046
        %v4970 = vunpack.c.h.b16 %v3046
        %v4971 = vunpack.c.l.b16 %v3047
        %v4972 = vunpack.c.l.b16 %v3048
        %v4973 = vunpack.c.h.b16 %v3048
        %v4974 = vunpack.c.l.b16 %v3049
        %v4975 = vunpack.c.h.b16 %v3049
        %v4976 = vunpack.c.l.b16 %v3050
        %v4977 = vunpack.c.h.b16 %v3050
        %v4978 = vunpack.c.l.b16 %v3051
        %v4979 = vunpack.c.h.b16 %v3051
        %v4980 = vunpack.c.l.b16 %v3052
        %v4981 = vunpack.c.l.b16 %v3053
        %v4982 = vunpack.c.h.b16 %v3053
        %v4983 = vunpack.c.l.b16 %v3054
        %v4984 = vunpack.c.h.b16 %v3054
        %v4985 = vunpack.c.l.b16 %v3055
        %v4986 = vunpack.c.h.b16 %v3055
        %v4987 = vunpack.c.l.b16 %v3056
        %v4988 = vunpack.c.h.b16 %v3056
        %v4989 = vunpack.c.l.b16 %v3057
        %v4990 = vunpack.c.l.b16 %v3058
        %v4991 = vunpack.c.h.b16 %v3058
        %v4992 = vunpack.c.l.b16 %v3059
        %v4993 = vunpack.c.h.b16 %v3059
        %v4994 = vunpack.c.l.b16 %v3060
        %v4995 = vunpack.c.h.b16 %v3060
        %v4996 = vunpack.c.l.b16 %v3061
        %v4997 = vunpack.c.h.b16 %v3061
        %v4998 = vunpack.c.l.b16 %v3062
        %v4999 = vunpack.c.l.b16 %v3063
        %v5000 = vunpack.c.h.b16 %v3063
        %v5001 = vunpack.c.l.b16 %v3064
        %v5002 = vunpack.c.h.b16 %v3064
        %v5003 = vunpack.c.l.b16 %v3065
        %v5004 = vunpack.c.h.b16 %v3065
        %v5005 = vunpack.c.l.b16 %v3066
        %v5006 = vunpack.c.h.b16 %v3066
        %v5007 = vunpack.c.l.b16 %v3067
        %v5008 = vunpack.c.l.b16 %v3068
        %v5009 = vunpack.c.h.b16 %v3068
        %v5010 = vunpack.c.l.b16 %v3069
        %v5011 = vunpack.c.h.b16 %v3069
        %v5012 = vunpack.c.l.b16 %v3070
        %v5013 = vunpack.c.h.b16 %v3070
        %v5014 = vunpack.c.l.b16 %v3071
        %v5015 = vunpack.c.h.b16 %v3071
        %v5016 = vunpack.c.l.b16 %v3072
        %v5017 = vunpack.c.l.b16 %v3073
        %v5018 = vunpack.c.h.b16 %v3073
        %v5019 = vunpack.c.l.b16 %v3074
        %v5020 = vunpack.c.h.b16 %v3074
        %v5021 = vunpack.c.l.b16 %v3075
        %v5022 = vunpack.c.h.b16 %v3075
        %v5023 = vunpack.c.l.b16 %v3076
        %v5024 = vunpack.c.h.b16 %v3076
        %v5025 = vunpack.c.l.b16 %v3077
        %v5026 = vunpack.c.l.b16 %v3078
        %v5027 = vunpack.c.h.b16 %v3078
        %v5028 = vunpack.c.l.b16 %v3079
        %v5029 = vunpack.c.h.b16 %v3079
        %v5030 = vunpack.c.l.b16 %v3080
        %v5031 = vunpack.c.h.b16 %v3080
        %v5032 = vunpack.c.l.b16 %v3081
        %v5033 = vunpack.c.h.b16 %v3081
        %v5034 = vunpack.c.l.b16 %v3082
        %v5035 = vunpack.c.l.b16 %v3083
        %v5036 = vunpack.c.h.b16 %v3083
        %v5037 = vunpack.c.l.b16 %v3084
        %v5038 = vunpack.c.h.b16 %v3084
        %v5039 = vunpack.c.l.b16 %v3085
        %v5040 = vunpack.c.h.b16 %v3085
        %v5041 = vunpack.c.l.b16 %v3086
        %v5042 = vunpack.c.h.b16 %v3086
        %v5043 = vunpack.c.l.b16 %v3087
        %v5044 = vunpack.c.l.b16 %v3088
        %v5045 = vunpack.c.h.b16 %v3088
        %v5046 = vunpack.c.l.b16 %v3089
        %v5047 = vunpack.c.h.b16 %v3089
        %v5048 = vunpack.c.l.b16 %v3090
        %v5049 = vunpack.c.h.b16 %v3090
        %v5050 = vunpack.c.l.b16 %v3091
        %v5051 = vunpack.c.h.b16 %v3091
        %v5052 = vunpack.c.l.b16 %v3092
        %v5053 = vunpack.c.l.b16 %v3093
        %v5054 = vunpack.c.h.b16 %v3093
        %v5055 = vunpack.c.l.b16 %v3094
        %v5056 = vunpack.c.h.b16 %v3094
        %v5057 = vunpack.c.l.b16 %v3095
        %v5058 = vunpack.c.h.b16 %v3095
        %v5059 = vunpack.c.l.b16 %v3096
        %v5060 = vunpack.c.h.b16 %v3096
        %v5061 = vunpack.c.l.b16 %v3097
        %v5062 = vunpack.c.l.b16 %v3098
        %v5063 = vunpack.c.h.b16 %v3098
        %v5064 = vunpack.c.l.b16 %v3099
        %v5065 = vunpack.c.h.b16 %v3099
        %v5066 = vunpack.c.l.b16 %v3100
        %v5067 = vunpack.c.h.b16 %v3100
        %v5068 = vunpack.c.l.b16 %v3101
        %v5069 = vunpack.c.h.b16 %v3101
        %v5070 = vunpack.c.l.b16 %v3102
        %v5071 = vunpack.c.l.b16 %v3103
        %v5072 = vunpack.c.h.b16 %v3103
        %v5073 = vunpack.c.l.b16 %v3104
        %v5074 = vunpack.c.h.b16 %v3104
        %v5075 = vunpack.c.l.b16 %v3105
        %v5076 = vunpack.c.h.b16 %v3105
        %v5077 = vunpack.c.l.b16 %v3106
        %v5078 = vunpack.c.h.b16 %v3106
        %v5079 = vunpack.c.l.b16 %v3107
        %v5080 = vunpack.c.l.b16 %v3108
        %v5081 = vunpack.c.h.b16 %v3108
        %v5082 = vunpack.c.l.b16 %v3109
        %v5083 = vunpack.c.h.b16 %v3109
        %v5084 = vunpack.c.l.b16 %v3110
        %v5085 = vunpack.c.h.b16 %v3110
        %v5086 = vunpack.c.l.b16 %v3111
        %v5087 = vunpack.c.h.b16 %v3111
        %v5088 = vunpack.c.l.b16 %v3112
        %v5089 = vunpack.c.l.b16 %v3113
        %v5090 = vunpack.c.h.b16 %v3113
        %v5091 = vunpack.c.l.b16 %v3114
        %v5092 = vunpack.c.h.b16 %v3114
        %v5093 = vunpack.c.l.b16 %v3115
        %v5094 = vunpack.c.h.b16 %v3115
        %v5095 = vunpack.c.l.b16 %v3116
        %v5096 = vunpack.c.h.b16 %v3116
        %v5097 = vunpack.c.l.b16 %v3117
        %v5098 = vunpack.c.l.b16 %v3118
        %v5099 = vunpack.c.h.b16 %v3118
        %v5100 = vunpack.c.l.b16 %v3119
        %v5101 = vunpack.c.h.b16 %v3119
        %v5102 = vunpack.c.l.b16 %v3120
        %v5103 = vunpack.c.h.b16 %v3120
        %v5104 = vunpack.c.l.b16 %v3121
        %v5105 = vunpack.c.h.b16 %v3121
        %v5106 = vunpack.c.l.b16 %v3122
        %v5107 = vunpack.c.l.b16 %v3123
        %v5108 = vunpack.c.h.b16 %v3123
        %v5109 = vunpack.c.l.b16 %v3124
        %v5110 = vunpack.c.h.b16 %v3124
        %v5111 = vunpack.c.l.b16 %v3125
        %v5112 = vunpack.c.h.b16 %v3125
        %v5113 = vunpack.c.l.b16 %v3126
        %v5114 = vunpack.c.h.b16 %v3126
        %v5115 = vunpack.c.l.b16 %v3127
        %v5116 = vunpack.c.l.b16 %v3128
        %v5117 = vunpack.c.h.b16 %v3128
        %v5118 = vunpack.c.l.b16 %v3129
        %v5119 = vunpack.c.h.b16 %v3129
        %v5120 = vunpack.c.l.b16 %v3130
        %v5121 = vunpack.c.h.b16 %v3130
        %v5122 = vunpack.c.l.b16 %v3131
        %v5123 = vunpack.c.h.b16 %v3131
        %v5124 = vunpack.c.l.b16 %v3132
        %v5125 = vunpack.c.l.b16 %v3133
        %v5126 = vunpack.c.h.b16 %v3133
        %v5127 = vunpack.c.l.b16 %v3134
        %v5128 = vunpack.c.h.b16 %v3134
        %v5129 = vunpack.c.l.b16 %v3135
        %v5130 = vunpack.c.h.b16 %v3135
        %v5131 = vunpack.c.l.b16 %v3136
        %v5132 = vunpack.c.h.b16 %v3136
        %v5133 = vunpack.c.l.b16 %v3137
        %v5134 = vunpack.c.l.b16 %v3138
        %v5135 = vunpack.c.h.b16 %v3138
        %v5136 = vunpack.c.l.b16 %v3139
        %v5137 = vunpack.c.h.b16 %v3139
        %v5138 = vunpack.c.l.b16 %v3140
        %v5139 = vunpack.c.h.b16 %v3140
        %v5140 = vunpack.c.l.b16 %v3141
        %v5141 = vunpack.c.h.b16 %v3141
        %v5142 = vunpack.c.l.b16 %v3142
        %v5143 = vunpack.c.l.b16 %v3143
        %v5144 = vunpack.c.h.b16 %v3143
        %v5145 = vunpack.c.l.b16 %v3144
        %v5146 = vunpack.c.h.b16 %v3144
        %v5147 = vunpack.c.l.b16 %v3145
        %v5148 = vunpack.c.h.b16 %v3145
        %v5149 = vunpack.c.l.b16 %v3146
        %v5150 = vunpack.c.h.b16 %v3146
        %v5151 = vunpack.c.l.b16 %v3147
        %v5152 = vunpack.c.l.b16 %v3148
        %v5153 = vunpack.c.h.b16 %v3148
        %v5154 = vunpack.c.l.b16 %v3149
        %v5155 = vunpack.c.h.b16 %v3149
        %v5156 = vunpack.c.l.b16 %v3150
        %v5157 = vunpack.c.h.b16 %v3150
        %v5158 = vunpack.c.l.b16 %v3151
        %v5159 = vunpack.c.h.b16 %v3151
        %v5160 = vunpack.c.l.b16 %v3152
        %v5161 = vunpack.c.l.b16 %v3153
        %v5162 = vunpack.c.h.b16 %v3153
        %v5163 = vunpack.c.l.b16 %v3154
        %v5164 = vunpack.c.h.b16 %v3154
        %v5165 = vunpack.c.l.b16 %v3155
        %v5166 = vunpack.c.h.b16 %v3155
        %v5167 = vunpack.c.l.b16 %v3156
        %v5168 = vunpack.c.h.b16 %v3156
        %v5169 = vunpack.c.l.b16 %v3157
        %v5170 = vunpack.c.l.b16 %v3158
        %v5171 = vunpack.c.h.b16 %v3158
        %v5172 = vunpack.c.l.b16 %v3159
        %v5173 = vunpack.c.h.b16 %v3159
        %v5174 = vunpack.c.l.b16 %v3160
        %v5175 = vunpack.c.h.b16 %v3160
        %v5176 = vunpack.c.l.b16 %v3161
        %v5177 = vunpack.c.h.b16 %v3161
        %v5178 = vunpack.c.l.b16 %v3162
        %v5179 = vunpack.c.l.b16 %v3163
        %v5180 = vunpack.c.h.b16 %v3163
        %v5181 = vunpack.c.l.b16 %v3164
        %v5182 = vunpack.c.h.b16 %v3164
        %v5183 = vunpack.c.l.b16 %v3165
        %v5184 = vunpack.c.h.b16 %v3165
        %v5185 = vunpack.c.l.b16 %v3166
        %v5186 = vunpack.c.h.b16 %v3166
        %v5187 = vunpack.c.l.b16 %v3167
        %v5188 = vunpack.c.l.b16 %v3168
        %v5189 = vunpack.c.h.b16 %v3168
        %v5190 = vunpack.c.l.b16 %v3169
        %v5191 = vunpack.c.h.b16 %v3169
        %v5192 = vunpack.c.l.b16 %v3170
        %v5193 = vunpack.c.h.b16 %v3170
        %v5194 = vunpack.c.l.b16 %v3171
        %v5195 = vunpack.c.h.b16 %v3171
        %v5196 = vunpack.c.l.b16 %v3172
        %v5197 = vunpack.c.l.b16 %v3173
        %v5198 = vunpack.c.h.b16 %v3173
        %v5199 = vunpack.c.l.b16 %v3174
        %v5200 = vunpack.c.h.b16 %v3174
        %v5201 = vunpack.c.l.b16 %v3175
        %v5202 = vunpack.c.h.b16 %v3175
        %v5203 = vunpack.c.l.b16 %v3176
        %v5204 = vunpack.c.h.b16 %v3176
        %v5205 = vunpack.c.l.b16 %v3177
        %v5206 = vunpack.c.l.b16 %v3178
        %v5207 = vunpack.c.h.b16 %v3178
        %v5208 = vunpack.c.l.b16 %v3179
        %v5209 = vunpack.c.h.b16 %v3179
        %v5210 = vunpack.c.l.b16 %v3180
        %v5211 = vunpack.c.h.b16 %v3180
        %v5212 = vunpack.c.l.b16 %v3181
        %v5213 = vunpack.c.h.b16 %v3181
        %v5214 = vunpack.c.l.b16 %v3182
        %v5215 = vunpack.c.l.b16 %v3183
        %v5216 = vunpack.c.h.b16 %v3183
        %v5217 = vunpack.c.l.b16 %v3184
        %v5218 = vunpack.c.h.b16 %v3184
        %v5219 = vunpack.c.l.b16 %v3185
        %v5220 = vunpack.c.h.b16 %v3185
        %v5221 = vunpack.c.l.b16 %v3186
        %v5222 = vunpack.c.h.b16 %v3186
        %v5223 = vunpack.c.l.b16 %v3187
        %v5224 = vunpack.c.l.b16 %v3188
        %v5225 = vunpack.c.h.b16 %v3188
        %v5226 = vunpack.c.l.b16 %v3189
        %v5227 = vunpack.c.h.b16 %v3189
        %v5228 = vunpack.c.l.b16 %v3190
        %v5229 = vunpack.c.h.b16 %v3190
        %v5230 = vunpack.c.l.b16 %v3191
        %v5231 = vunpack.c.h.b16 %v3191
        %v5232 = vunpack.c.l.b16 %v3192
        %v5233 = vunpack.c.l.b16 %v3193
        %v5234 = vunpack.c.h.b16 %v3193
        %v5235 = vunpack.c.l.b16 %v3194
        %v5236 = vunpack.c.h.b16 %v3194
        %v5237 = vunpack.c.l.b16 %v3195
        %v5238 = vunpack.c.h.b16 %v3195
        %v5239 = vunpack.c.l.b16 %v3196
        %v5240 = vunpack.c.h.b16 %v3196
        %v5241 = vunpack.c.l.b16 %v3197
        %v5242 = vunpack.c.l.b16 %v3198
        %v5243 = vunpack.c.h.b16 %v3198
        %v5244 = vunpack.c.l.b16 %v3199
        %v5245 = vunpack.c.h.b16 %v3199
        %v5246 = vunpack.c.l.b16 %v3200
        %v5247 = vunpack.c.h.b16 %v3200
        %v5248 = vunpack.c.l.b16 %v3201
        %v5249 = vunpack.c.h.b16 %v3201
        %v5250 = vunpack.c.l.b16 %v3202
        %v5251 = vunpack.c.l.b16 %v3203
        %v5252 = vunpack.c.h.b16 %v3203
        %v5253 = vunpack.c.l.b16 %v3204
        %v5254 = vunpack.c.h.b16 %v3204
        %v5255 = vunpack.c.l.b16 %v3205
        %v5256 = vunpack.c.h.b16 %v3205
        %v5257 = vunpack.c.l.b16 %v3206
        %v5258 = vunpack.c.h.b16 %v3206
        %v5259 = vunpack.c.l.b16 %v3207
        %v5260 = vunpack.c.l.b16 %v3208
        %v5261 = vunpack.c.h.b16 %v3208
        %v5262 = vunpack.c.l.b16 %v3209
        %v5263 = vunpack.c.h.b16 %v3209
        %v5264 = vunpack.c.l.b16 %v3210
        %v5265 = vunpack.c.h.b16 %v3210
        %v5266 = vunpack.c.l.b16 %v3211
        %v5267 = vunpack.c.h.b16 %v3211
        %v5268 = vunpack.c.l.b16 %v3212
        %v5269 = vunpack.c.l.b16 %v3213
        %v5270 = vunpack.c.h.b16 %v3213
        %v5271 = vunpack.c.l.b16 %v3214
        %v5272 = vunpack.c.h.b16 %v3214
        %v5273 = vunpack.c.l.b16 %v3215
        %v5274 = vunpack.c.h.b16 %v3215
        %v5275 = vunpack.c.l.b16 %v3216
        %v5276 = vunpack.c.h.b16 %v3216
        %v5277 = vunpack.c.l.b16 %v3217
        %v5278 = vunpack.c.l.b16 %v3218
        %v5279 = vunpack.c.h.b16 %v3218
        %v5280 = vunpack.c.l.b16 %v3219
        %v5281 = vunpack.c.h.b16 %v3219
        %v5282 = vunpack.c.l.b16 %v3220
        %v5283 = vunpack.c.h.b16 %v3220
        %v5284 = vunpack.c.l.b16 %v3221
        %v5285 = vunpack.c.h.b16 %v3221
        %v5286 = vunpack.c.l.b16 %v3222
        %v5287 = vunpack.c.l.b16 %v3223
        %v5288 = vunpack.c.h.b16 %v3223
        %v5289 = vunpack.c.l.b16 %v3224
        %v5290 = vunpack.c.h.b16 %v3224
        %v5291 = vunpack.c.l.b16 %v3225
        %v5292 = vunpack.c.h.b16 %v3225
        %v5293 = vunpack.c.l.b16 %v3226
        %v5294 = vunpack.c.h.b16 %v3226
        %v5295 = vunpack.c.l.b16 %v3227
        %v5296 = vunpack.c.l.b16 %v3228
        %v5297 = vunpack.c.h.b16 %v3228
        %v5298 = vunpack.c.l.b16 %v3229
        %v5299 = vunpack.c.h.b16 %v3229
        %v5300 = vunpack.c.l.b16 %v3230
        %v5301 = vunpack.c.h.b16 %v3230
        %v5302 = vunpack.c.l.b16 %v3231
        %v5303 = vunpack.c.h.b16 %v3231
        %v5304 = vunpack.c.l.b16 %v3232
        %v5305 = vunpack.c.l.b16 %v3233
        %v5306 = vunpack.c.h.b16 %v3233
        %v5307 = vunpack.c.l.b16 %v3234
        %v5308 = vunpack.c.h.b16 %v3234
        %v5309 = vunpack.c.l.b16 %v3235
        %v5310 = vunpack.c.h.b16 %v3235
        %v5311 = vunpack.c.l.b16 %v3236
        %v5312 = vunpack.c.h.b16 %v3236
        %v5313 = vunpack.c.l.b16 %v3237
        %v5314 = vunpack.c.l.b16 %v3238
        %v5315 = vunpack.c.h.b16 %v3238
        %v5316 = vunpack.c.l.b16 %v3239
        %v5317 = vunpack.c.h.b16 %v3239
        %v5318 = vunpack.c.l.b16 %v3240
        %v5319 = vunpack.c.h.b16 %v3240
        %v5320 = vunpack.c.l.b16 %v3241
        %v5321 = vunpack.c.h.b16 %v3241
        %v5322 = vunpack.c.l.b16 %v3242
        %v5323 = vunpack.c.l.b16 %v3243
        %v5324 = vunpack.c.h.b16 %v3243
        %v5325 = vunpack.c.l.b16 %v3244
        %v5326 = vunpack.c.h.b16 %v3244
        %v5327 = vunpack.c.l.b16 %v3245
        %v5328 = vunpack.c.h.b16 %v3245
        %v5329 = vunpack.c.l.b16 %v3246
        %v5330 = vunpack.c.h.b16 %v3246
        %v5331 = vunpack.c.l.b16 %v3247
        %v5332 = vunpack.c.l.b16 %v3248
        %v5333 = vunpack.c.h.b16 %v3248
        %v5334 = vunpack.c.l.b16 %v3249
        %v5335 = vunpack.c.h.b16 %v3249
        %v5336 = vunpack.c.l.b16 %v3250
        %v5337 = vunpack.c.h.b16 %v3250
        %v5338 = vunpack.c.l.b16 %v3251
        %v5339 = vunpack.c.h.b16 %v3251
        %v5340 = vunpack.c.l.b16 %v3252
        %v5341 = vunpack.c.l.b16 %v3253
        %v5342 = vunpack.c.h.b16 %v3253
        %v5343 = vunpack.c.l.b16 %v3254
        %v5344 = vunpack.c.h.b16 %v3254
        %v5345 = vunpack.c.l.b16 %v3255
        %v5346 = vunpack.c.h.b16 %v3255
        %v5347 = vunpack.c.l.b16 %v3256
        %v5348 = vunpack.c.h.b16 %v3256
        %v5349 = vunpack.c.l.b16 %v3257
        %v5350 = vunpack.c.l.b16 %v3258
        %v5351 = vunpack.c.h.b16 %v3258
        %v5352 = vunpack.c.l.b16 %v3259
        %v5353 = vunpack.c.h.b16 %v3259
        %v5354 = vunpack.c.l.b16 %v3260
        %v5355 = vunpack.c.h.b16 %v3260
        %v5356 = vunpack.c.l.b16 %v3261
        %v5357 = vunpack.c.h.b16 %v3261
        %v5358 = vunpack.c.l.b16 %v3262
        %v5359 = vunpack.c.l.b16 %v3263
        %v5360 = vunpack.c.h.b16 %v3263
        %v5361 = vunpack.c.l.b16 %v3264
        %v5362 = vunpack.c.h.b16 %v3264
        %v5363 = vunpack.c.l.b16 %v3265
        %v5364 = vunpack.c.h.b16 %v3265
        %v5365 = vunpack.c.l.b16 %v3266
        %v5366 = vunpack.c.h.b16 %v3266
        %v5367 = vunpack.c.l.b16 %v3267
        %v5368 = vunpack.c.l.b16 %v3268
        %v5369 = vunpack.c.h.b16 %v3268
        %v5370 = vunpack.c.l.b16 %v3269
        %v5371 = vunpack.c.h.b16 %v3269
        %v5372 = vunpack.c.l.b16 %v3270
        %v5373 = vunpack.c.h.b16 %v3270
        %v5374 = vunpack.c.l.b16 %v3271
        %v5375 = vunpack.c.h.b16 %v3271
        %v5376 = vunpack.c.l.b16 %v3272
        %v5377 = vunpack.c.l.b16 %v3273
        %v5378 = vunpack.c.h.b16 %v3273
        %v5379 = vunpack.c.l.b16 %v3274
        %v5380 = vunpack.c.h.b16 %v3274
        %v5381 = vunpack.c.l.b16 %v3275
        %v5382 = vunpack.c.h.b16 %v3275
        %v5383 = vunpack.c.l.b16 %v3276
        %v5384 = vunpack.c.h.b16 %v3276
        %v5385 = vunpack.c.l.b16 %v3277
        %v5386 = vunpack.c.l.b16 %v3278
        %v5387 = vunpack.c.h.b16 %v3278
        %v5388 = vunpack.c.l.b16 %v3279
        %v5389 = vunpack.c.h.b16 %v3279
        %v5390 = vunpack.c.l.b16 %v3280
        %v5391 = vunpack.c.h.b16 %v3280
        %v5392 = vunpack.c.l.b16 %v3281
        %v5393 = vunpack.c.h.b16 %v3281
        %v5394 = vunpack.c.l.b16 %v3282
        %v5395 = vunpack.c.l.b16 %v3283
        %v5396 = vunpack.c.h.b16 %v3283
        %v5397 = vunpack.c.l.b16 %v3284
        %v5398 = vunpack.c.h.b16 %v3284
        %v5399 = vunpack.c.l.b16 %v3285
        %v5400 = vunpack.c.h.b16 %v3285
        %v5401 = vunpack.c.l.b16 %v3286
        %v5402 = vunpack.c.h.b16 %v3286
        %v5403 = vunpack.c.l.b16 %v3287
        %v5404 = vunpack.c.l.b16 %v3288
        %v5405 = vunpack.c.h.b16 %v3288
        %v5406 = vunpack.c.l.b16 %v3289
        %v5407 = vunpack.c.h.b16 %v3289
        %v5408 = vunpack.c.l.b16 %v3290
        %v5409 = vunpack.c.h.b16 %v3290
        %v5410 = vunpack.c.l.b16 %v3291
        %v5411 = vunpack.c.h.b16 %v3291
        %v5412 = vunpack.c.l.b16 %v3292
        %v5413 = vunpack.c.l.b16 %v3293
        %v5414 = vunpack.c.h.b16 %v3293
        %v5415 = vunpack.c.l.b16 %v3294
        %v5416 = vunpack.c.h.b16 %v3294
        %v5417 = vunpack.c.l.b16 %v3295
        %v5418 = vunpack.c.h.b16 %v3295
        %v5419 = vunpack.c.l.b16 %v3296
        %v5420 = vunpack.c.h.b16 %v3296
        %v5421 = vunpack.c.l.b16 %v3297
        %v5422 = vunpack.c.l.b16 %v3298
        %v5423 = vunpack.c.h.b16 %v3298
        %v5424 = vunpack.c.l.b16 %v3299
        %v5425 = vunpack.c.h.b16 %v3299
        %v5426 = vunpack.c.l.b16 %v3300
        %v5427 = vunpack.c.h.b16 %v3300
        %v5428 = vunpack.c.l.b16 %v3301
        %v5429 = vunpack.c.h.b16 %v3301
        %v5430 = vunpack.c.l.b16 %v3302
        %v5431 = vunpack.c.l.b16 %v3303
        %v5432 = vunpack.c.h.b16 %v3303
        %v5433 = vunpack.c.l.b16 %v3304
        %v5434 = vunpack.c.h.b16 %v3304
        %v5435 = vunpack.c.l.b16 %v3305
        %v5436 = vunpack.c.h.b16 %v3305
        %v5437 = vunpack.c.l.b16 %v3306
        %v5438 = vunpack.c.h.b16 %v3306
        %v5439 = vunpack.c.l.b16 %v3307
        %v5440 = vunpack.c.l.b16 %v3308
        %v5441 = vunpack.c.h.b16 %v3308
        %v5442 = vunpack.c.l.b16 %v3309
        %v5443 = vunpack.c.h.b16 %v3309
        %v5444 = vunpack.c.l.b16 %v3310
        %v5445 = vunpack.c.h.b16 %v3310
        %v5446 = vunpack.c.l.b16 %v3311
        %v5447 = vunpack.c.h.b16 %v3311
        %v5448 = vunpack.c.l.b16 %v3312
        %v5449 = vunpack.c.l.b16 %v3313
        %v5450 = vunpack.c.h.b16 %v3313
        %v5451 = vunpack.c.l.b16 %v3314
        %v5452 = vunpack.c.h.b16 %v3314
        %v5453 = vunpack.c.l.b16 %v3315
        %v5454 = vunpack.c.h.b16 %v3315
        %v5455 = vunpack.c.l.b16 %v3316
        %v5456 = vunpack.c.h.b16 %v3316
        %v5457 = vunpack.c.l.b16 %v3317
        %v5458 = vunpack.c.l.b16 %v3318
        %v5459 = vunpack.c.h.b16 %v3318
        %v5460 = vunpack.c.l.b16 %v3319
        %v5461 = vunpack.c.h.b16 %v3319
        %v5462 = vunpack.c.l.b16 %v3320
        %v5463 = vunpack.c.h.b16 %v3320
        %v5464 = vunpack.c.l.b16 %v3321
        %v5465 = vunpack.c.h.b16 %v3321
        %v5466 = vunpack.c.l.b16 %v3322
        %v5467 = vunpack.c.l.b16 %v3323
        %v5468 = vunpack.c.h.b16 %v3323
        %v5469 = vunpack.c.l.b16 %v3324
        %v5470 = vunpack.c.h.b16 %v3324
        %v5471 = vunpack.c.l.b16 %v3325
        %v5472 = vunpack.c.h.b16 %v3325
        %v5473 = vunpack.c.l.b16 %v3326
        %v5474 = vunpack.c.h.b16 %v3326
        %v5475 = vunpack.c.l.b16 %v3327
        %v5476 = vunpack.c.l.b16 %v3328
        %v5477 = vunpack.c.h.b16 %v3328
        %v5478 = vunpack.c.l.b16 %v3329
        %v5479 = vunpack.c.h.b16 %v3329
        %v5480 = vunpack.c.l.b16 %v3330
        %v5481 = vunpack.c.h.b16 %v3330
        %v5482 = vunpack.c.l.b16 %v3331
        %v5483 = vunpack.c.h.b16 %v3331
        %v5484 = vunpack.c.l.b16 %v3332
        %v5485 = vunpack.c.l.b16 %v3333
        %v5486 = vunpack.c.h.b16 %v3333
        %v5487 = vunpack.c.l.b16 %v3334
        %v5488 = vunpack.c.h.b16 %v3334
        %v5489 = vunpack.c.l.b16 %v3335
        %v5490 = vunpack.c.h.b16 %v3335
        %v5491 = vunpack.c.l.b16 %v3336
        %v5492 = vunpack.c.h.b16 %v3336
        %v5493 = vunpack.c.l.b16 %v3337
        %v5494 = vunpack.c.l.b16 %v3338
        %v5495 = vunpack.c.h.b16 %v3338
        %v5496 = vunpack.c.l.b16 %v3339
        %v5497 = vunpack.c.h.b16 %v3339
        %v5498 = vunpack.c.l.b16 %v3340
        %v5499 = vunpack.c.h.b16 %v3340
        %v5500 = vunpack.c.l.b16 %v3341
        %v5501 = vunpack.c.h.b16 %v3341
        %v5502 = vunpack.c.l.b16 %v3342
        %v5503 = vunpack.c.l.b16 %v3343
        %v5504 = vunpack.c.h.b16 %v3343
        %v5505 = vunpack.c.l.b16 %v3344
        %v5506 = vunpack.c.h.b16 %v3344
        %v5507 = vunpack.c.l.b16 %v3345
        %v5508 = vunpack.c.h.b16 %v3345
        %v5509 = vunpack.c.l.b16 %v3346
        %v5510 = vunpack.c.h.b16 %v3346
        %v5511 = vunpack.c.l.b16 %v3347
        %v5512 = vunpack.c.l.b16 %v3348
        %v5513 = vunpack.c.h.b16 %v3348
        %v5514 = vunpack.c.l.b16 %v3349
        %v5515 = vunpack.c.h.b16 %v3349
        %v5516 = vunpack.c.l.b16 %v3350
        %v5517 = vunpack.c.h.b16 %v3350
        %v5518 = vunpack.c.l.b16 %v3351
        %v5519 = vunpack.c.h.b16 %v3351
        %v5520 = vunpack.c.l.b16 %v3352
        %v5521 = vunpack.c.l.b16 %v3353
        %v5522 = vunpack.c.h.b16 %v3353
        %v5523 = vunpack.c.l.b16 %v3354
        %v5524 = vunpack.c.h.b16 %v3354
        %v5525 = vunpack.c.l.b16 %v3355
        %v5526 = vunpack.c.h.b16 %v3355
        %v5527 = vunpack.c.l.b16 %v3356
        %v5528 = vunpack.c.h.b16 %v3356
        %v5529 = vunpack.c.l.b16 %v3357
        %v5530 = vunpack.c.l.b16 %v3358
        %v5531 = vunpack.c.h.b16 %v3358
        %v5532 = vunpack.c.l.b16 %v3359
        %v5533 = vunpack.c.h.b16 %v3359
        %v5534 = vunpack.c.l.b16 %v3360
        %v5535 = vunpack.c.h.b16 %v3360
        %v5536 = vunpack.c.l.b16 %v3361
        %v5537 = vunpack.c.h.b16 %v3361
        %v5538 = vunpack.c.l.b16 %v3362
        %v5539 = vunpack.c.l.b16 %v3363
        %v5540 = vunpack.c.h.b16 %v3363
        %v5541 = vunpack.c.l.b16 %v3364
        %v5542 = vunpack.c.h.b16 %v3364
        %v5543 = vunpack.c.l.b16 %v3365
        %v5544 = vunpack.c.h.b16 %v3365
        %v5545 = vunpack.c.l.b16 %v3366
        %v5546 = vunpack.c.h.b16 %v3366
        %v5547 = vunpack.c.l.b16 %v3367
        %v5548 = vunpack.c.l.b16 %v3368
        %v5549 = vunpack.c.h.b16 %v3368
        %v5550 = vunpack.c.l.b16 %v3369
        %v5551 = vunpack.c.h.b16 %v3369
        %v5552 = vunpack.c.l.b16 %v3370
        %v5553 = vunpack.c.h.b16 %v3370
        %v5554 = vunpack.c.l.b16 %v3371
        %v5555 = vunpack.c.h.b16 %v3371
        %v5556 = vunpack.c.l.b16 %v3372
        %v5557 = vunpack.c.l.b16 %v3373
        %v5558 = vunpack.c.h.b16 %v3373
        %v5559 = vunpack.c.l.b16 %v3374
        %v5560 = vunpack.c.h.b16 %v3374
        %v5561 = vunpack.c.l.b16 %v3375
        %v5562 = vunpack.c.h.b16 %v3375
        %v5563 = vunpack.c.l.b16 %v3376
        %v5564 = vunpack.c.h.b16 %v3376
        %v5565 = vunpack.c.l.b16 %v3377
        %v5566 = vunpack.c.l.b16 %v3378
        %v5567 = vunpack.c.h.b16 %v3378
        %v5568 = vunpack.c.l.b16 %v3379
        %v5569 = vunpack.c.h.b16 %v3379
        %v5570 = vunpack.c.l.b16 %v3380
        %v5571 = vunpack.c.h.b16 %v3380
        %v5572 = vunpack.c.l.b16 %v3381
        %v5573 = vunpack.c.h.b16 %v3381
        %v5574 = vunpack.c.l.b16 %v3382
        %v5575 = vunpack.c.l.b16 %v3383
        %v5576 = vunpack.c.h.b16 %v3383
        %v5577 = vunpack.c.l.b16 %v3384
        %v5578 = vunpack.c.h.b16 %v3384
        %v5579 = vunpack.c.l.b16 %v3385
        %v5580 = vunpack.c.h.b16 %v3385
        %v5581 = vunpack.c.l.b16 %v3386
        %v5582 = vunpack.c.h.b16 %v3386
        %v5583 = vunpack.c.l.b16 %v3387
        %v5584 = vunpack.c.l.b16 %v3388
        %v5585 = vunpack.c.h.b16 %v3388
        %v5586 = vunpack.c.l.b16 %v3389
        %v5587 = vunpack.c.h.b16 %v3389
        %v5588 = vunpack.c.l.b16 %v3390
        %v5589 = vunpack.c.h.b16 %v3390
        %v5590 = vunpack.c.l.b16 %v3391
        %v5591 = vunpack.c.h.b16 %v3391
        %v5592 = vunpack.c.l.b16 %v3392
        %v5593 = vunpack.c.l.b16 %v3393
        %v5594 = vunpack.c.h.b16 %v3393
        %v5595 = vunpack.c.l.b16 %v3394
        %v5596 = vunpack.c.h.b16 %v3394
        %v5597 = vunpack.c.l.b16 %v3395
        %v5598 = vunpack.c.h.b16 %v3395
        %v5599 = vunpack.c.l.b16 %v3396
        %v5600 = vunpack.c.h.b16 %v3396
        %v5601 = vunpack.c.l.b16 %v3397
        %v5602 = vunpack.c.l.b16 %v3398
        %v5603 = vunpack.c.h.b16 %v3398
        %v5604 = vunpack.c.l.b16 %v3399
        %v5605 = vunpack.c.h.b16 %v3399
        %v5606 = vunpack.c.l.b16 %v3400
        %v5607 = vunpack.c.h.b16 %v3400
        %v5608 = vunpack.c.l.b16 %v3401
        %v5609 = vunpack.c.h.b16 %v3401
        %v5610 = vunpack.c.l.b16 %v3402
        %v5611 = vunpack.c.l.b16 %v3403
        %v5612 = vunpack.c.h.b16 %v3403
        %v5613 = vunpack.c.l.b16 %v3404
        %v5614 = vunpack.c.h.b16 %v3404
        %v5615 = vunpack.c.l.b16 %v3405
        %v5616 = vunpack.c.h.b16 %v3405
        %v5617 = vunpack.c.l.b16 %v3406
        %v5618 = vunpack.c.h.b16 %v3406
        %v5619 = vunpack.c.l.b16 %v3407
        %v5620 = vunpack.c.l.b16 %v3408
        %v5621 = vunpack.c.h.b16 %v3408
        %v5622 = vunpack.c.l.b16 %v3409
        %v5623 = vunpack.c.h.b16 %v3409
        %v5624 = vunpack.c.l.b16 %v3410
        %v5625 = vunpack.c.h.b16 %v3410
        %v5626 = vunpack.c.l.b16 %v3411
        %v5627 = vunpack.c.h.b16 %v3411
        %v5628 = vunpack.c.l.b16 %v3412
        %v5629 = vunpack.c.l.b16 %v3413
        %v5630 = vunpack.c.h.b16 %v3413
        %v5631 = vunpack.c.l.b16 %v3414
        %v5632 = vunpack.c.h.b16 %v3414
        %v5633 = vunpack.c.l.b16 %v3415
        %v5634 = vunpack.c.h.b16 %v3415
        %v5635 = vunpack.c.l.b16 %v3416
        %v5636 = vunpack.c.h.b16 %v3416
        %v5637 = vunpack.c.l.b16 %v3417
        %v5638 = vunpack.c.l.b16 %v3418
        %v5639 = vunpack.c.h.b16 %v3418
        %v5640 = vunpack.c.l.b16 %v3419
        %v5641 = vunpack.c.h.b16 %v3419
        %v5642 = vunpack.c.l.b16 %v3420
        %v5643 = vunpack.c.h.b16 %v3420
        %v5644 = vunpack.c.l.b16 %v3421
        %v5645 = vunpack.c.h.b16 %v3421
        %v5646 = vunpack.c.l.b16 %v3422
        %v5647 = vunpack.c.l.b16 %v3423
        %v5648 = vunpack.c.h.b16 %v3423
        %v5649 = vunpack.c.l.b16 %v3424
        %v5650 = vunpack.c.h.b16 %v3424
        %v5651 = vunpack.c.l.b16 %v3425
        %v5652 = vunpack.c.h.b16 %v3425
        %v5653 = vunpack.c.l.b16 %v3426
        %v5654 = vunpack.c.h.b16 %v3426
        %v5655 = vunpack.c.l.b16 %v3427
        %v5656 = vunpack.c.l.b16 %v3428
        %v5657 = vunpack.c.h.b16 %v3428
        %v5658 = vunpack.c.l.b16 %v3429
        %v5659 = vunpack.c.h.b16 %v3429
        %v5660 = vunpack.c.l.b16 %v3430
        %v5661 = vunpack.c.h.b16 %v3430
        %v5662 = vunpack.c.l.b16 %v3431
        %v5663 = vunpack.c.h.b16 %v3431
        %v5664 = vunpack.c.l.b16 %v3432
        %v5665 = vpack.c.b16 %v4522, %v4513
        %v5666 = vpack.c.b16 %v4523, %v4514
        %v5667 = vpack.c.b16 %v4524, %v4515
        %v5668 = vpack.c.b16 %v4525, %v4516
        %v5669 = vpack.c.b16 %v4526, %v4517
        %v5670 = vpack.c.b16 %v4527, %v4518
        %v5671 = vpack.c.b16 %v4528, %v4519
        %v5672 = vpack.c.b16 %v4529, %v4520
        %v5673 = vpack.c.b16 %v4530, %v4521
        %v5674 = vpack.c.b16 %v4540, %v4531
        %v5675 = vpack.c.b16 %v4541, %v4532
        %v5676 = vpack.c.b16 %v4542, %v4533
        %v5677 = vpack.c.b16 %v4543, %v4534
        %v5678 = vpack.c.b16 %v4544, %v4535
        %v5679 = vpack.c.b16 %v4545, %v4536
        %v5680 = vpack.c.b16 %v4546, %v4537
        %v5681 = vpack.c.b16 %v4547, %v4538
        %v5682 = vpack.c.b16 %v4548, %v4539
        %v5683 = vpack.c.b16 %v4558, %v4549
        %v5684 = vpack.c.b16 %v4559, %v4550
        %v5685 = vpack.c.b16 %v4560, %v4551
        %v5686 = vpack.c.b16 %v4561, %v4552
        %v5687 = vpack.c.b16 %v4562, %v4553
        %v5688 = vpack.c.b16 %v4563, %v4554
        %v5689 = vpack.c.b16 %v4564, %v4555
        %v5690 = vpack.c.b16 %v4565, %v4556
        %v5691 = vpack.c.b16 %v4566, %v4557
        %v5692 = vpack.c.b16 %v4576, %v4567
        %v5693 = vpack.c.b16 %v4577, %v4568
        %v5694 = vpack.c.b16 %v4578, %v4569
        %v5695 = vpack.c.b16 %v4579, %v4570
        %v5696 = vpack.c.b16 %v4580, %v4571
        %v5697 = vpack.c.b16 %v4581, %v4572
        %v5698 = vpack.c.b16 %v4582, %v4573
        %v5699 = vpack.c.b16 %v4583, %v4574
        %v5700 = vpack.c.b16 %v4584, %v4575
        %v5701 = vpack.c.b16 %v4594, %v4585
        %v5702 = vpack.c.b16 %v4595, %v4586
        %v5703 = vpack.c.b16 %v4596, %v4587
        %v5704 = vpack.c.b16 %v4597, %v4588
        %v5705 = vpack.c.b16 %v4598, %v4589
        %v5706 = vpack.c.b16 %v4599, %v4590
        %v5707 = vpack.c.b16 %v4600, %v4591
        %v5708 = vpack.c.b16 %v4601, %v4592
        %v5709 = vpack.c.b16 %v4602, %v4593
        %v5710 = vpack.c.b16 %v4612, %v4603
        %v5711 = vpack.c.b16 %v4613, %v4604
        %v5712 = vpack.c.b16 %v4614, %v4605
        %v5713 = vpack.c.b16 %v4615, %v4606
        %v5714 = vpack.c.b16 %v4616, %v4607
        %v5715 = vpack.c.b16 %v4617, %v4608
        %v5716 = vpack.c.b16 %v4618, %v4609
        %v5717 = vpack.c.b16 %v4619, %v4610
        %v5718 = vpack.c.b16 %v4620, %v4611
        %v5719 = vpack.c.b16 %v4630, %v4621
        %v5720 = vpack.c.b16 %v4631, %v4622
        %v5721 = vpack.c.b16 %v4632, %v4623
        %v5722 = vpack.c.b16 %v4633, %v4624
        %v5723 = vpack.c.b16 %v4634, %v4625
        %v5724 = vpack.c.b16 %v4635, %v4626
        %v5725 = vpack.c.b16 %v4636, %v4627
        %v5726 = vpack.c.b16 %v4637, %v4628
        %v5727 = vpack.c.b16 %v4638, %v4629
        %v5728 = vpack.c.b16 %v4648, %v4639
        %v5729 = vpack.c.b16 %v4649, %v4640
        %v5730 = vpack.c.b16 %v4650, %v4641
        %v5731 = vpack.c.b16 %v4651, %v4642
        %v5732 = vpack.c.b16 %v4652, %v4643
        %v5733 = vpack.c.b16 %v4653, %v4644
        %v5734 = vpack.c.b16 %v4654, %v4645
        %v5735 = vpack.c.b16 %v4655, %v4646
        %v5736 = vpack.c.b16 %v4656, %v4647
        %v5737 = vpack.c.b16 %v4666, %v4657
        %v5738 = vpack.c.b16 %v4667, %v4658
        %v5739 = vpack.c.b16 %v4668, %v4659
        %v5740 = vpack.c.b16 %v4669, %v4660
        %v5741 = vpack.c.b16 %v4670, %v4661
        %v5742 = vpack.c.b16 %v4671, %v4662
        %v5743 = vpack.c.b16 %v4672, %v4663
        %v5744 = vpack.c.b16 %v4673, %v4664
        %v5745 = vpack.c.b16 %v4674, %v4665
        %v5746 = vpack.c.b16 %v4684, %v4675
        %v5747 = vpack.c.b16 %v4685, %v4676
        %v5748 = vpack.c.b16 %v4686, %v4677
        %v5749 = vpack.c.b16 %v4687, %v4678
        %v5750 = vpack.c.b16 %v4688, %v4679
        %v5751 = vpack.c.b16 %v4689, %v4680
        %v5752 = vpack.c.b16 %v4690, %v4681
        %v5753 = vpack.c.b16 %v4691, %v4682
        %v5754 = vpack.c.b16 %v4692, %v4683
        %v5755 = vpack.c.b16 %v4702, %v4693
        %v5756 = vpack.c.b16 %v4703, %v4694
        %v5757 = vpack.c.b16 %v4704, %v4695
        %v5758 = vpack.c.b16 %v4705, %v4696
        %v5759 = vpack.c.b16 %v4706, %v4697
        %v5760 = vpack.c.b16 %v4707, %v4698
        %v5761 = vpack.c.b16 %v4708, %v4699
        %v5762 = vpack.c.b16 %v4709, %v4700
        %v5763 = vpack.c.b16 %v4710, %v4701
        %v5764 = vpack.c.b16 %v4720, %v4711
        %v5765 = vpack.c.b16 %v4721, %v4712
        %v5766 = vpack.c.b16 %v4722, %v4713
        %v5767 = vpack.c.b16 %v4723, %v4714
        %v5768 = vpack.c.b16 %v4724, %v4715
        %v5769 = vpack.c.b16 %v4725, %v4716
        %v5770 = vpack.c.b16 %v4726, %v4717
        %v5771 = vpack.c.b16 %v4727, %v4718
        %v5772 = vpack.c.b16 %v4728, %v4719
        %v5773 = vpack.c.b16 %v4738, %v4729
        %v5774 = vpack.c.b16 %v4739, %v4730
        %v5775 = vpack.c.b16 %v4740, %v4731
        %v5776 = vpack.c.b16 %v4741, %v4732
        %v5777 = vpack.c.b16 %v4742, %v4733
        %v5778 = vpack.c.b16 %v4743, %v4734
        %v5779 = vpack.c.b16 %v4744, %v4735
        %v5780 = vpack.c.b16 %v4745, %v4736
        %v5781 = vpack.c.b16 %v4746, %v4737
        %v5782 = vpack.c.b16 %v4756, %v4747
        %v5783 = vpack.c.b16 %v4757, %v4748
        %v5784 = vpack.c.b16 %v4758, %v4749
        %v5785 = vpack.c.b16 %v4759, %v4750
        %v5786 = vpack.c.b16 %v4760, %v4751
        %v5787 = vpack.c.b16 %v4761, %v4752
        %v5788 = vpack.c.b16 %v4762, %v4753
        %v5789 = vpack.c.b16 %v4763, %v4754
        %v5790 = vpack.c.b16 %v4764, %v4755
        %v5791 = vpack.c.b16 %v4774, %v4765
        %v5792 = vpack.c.b16 %v4775, %v4766
        %v5793 = vpack.c.b16 %v4776, %v4767
        %v5794 = vpack.c.b16 %v4777, %v4768
        %v5795 = vpack.c.b16 %v4778, %v4769
        %v5796 = vpack.c.b16 %v4779, %v4770
        %v5797 = vpack.c.b16 %v4780, %v4771
        %v5798 = vpack.c.b16 %v4781, %v4772
        %v5799 = vpack.c.b16 %v4782, %v4773
        %v5800 = vpack.c.b16 %v4792, %v4783
        %v5801 = vpack.c.b16 %v4793, %v4784
        %v5802 = vpack.c.b16 %v4794, %v4785
        %v5803 = vpack.c.b16 %v4795, %v4786
        %v5804 = vpack.c.b16 %v4796, %v4787
        %v5805 = vpack.c.b16 %v4797, %v4788
        %v5806 = vpack.c.b16 %v4798, %v4789
        %v5807 = vpack.c.b16 %v4799, %v4790
        %v5808 = vpack.c.b16 %v4800, %v4791
        %v5809 = vpack.c.b16 %v4810, %v4801
        %v5810 = vpack.c.b16 %v4811, %v4802
        %v5811 = vpack.c.b16 %v4812, %v4803
        %v5812 = vpack.c.b16 %v4813, %v4804
        %v5813 = vpack.c.b16 %v4814, %v4805
        %v5814 = vpack.c.b16 %v4815, %v4806
        %v5815 = vpack.c.b16 %v4816, %v4807
        %v5816 = vpack.c.b16 %v4817, %v4808
        %v5817 = vpack.c.b16 %v4818, %v4809
        %v5818 = vpack.c.b16 %v4828, %v4819
        %v5819 = vpack.c.b16 %v4829, %v4820
        %v5820 = vpack.c.b16 %v4830, %v4821
        %v5821 = vpack.c.b16 %v4831, %v4822
        %v5822 = vpack.c.b16 %v4832, %v4823
        %v5823 = vpack.c.b16 %v4833, %v4824
        %v5824 = vpack.c.b16 %v4834, %v4825
        %v5825 = vpack.c.b16 %v4835, %v4826
        %v5826 = vpack.c.b16 %v4836, %v4827
        %v5827 = vpack.c.b16 %v4846, %v4837
        %v5828 = vpack.c.b16 %v4847, %v4838
        %v5829 = vpack.c.b16 %v4848, %v4839
        %v5830 = vpack.c.b16 %v4849, %v4840
        %v5831 = vpack.c.b16 %v4850, %v4841
        %v5832 = vpack.c.b16 %v4851, %v4842
        %v5833 = vpack.c.b16 %v4852, %v4843
        %v5834 = vpack.c.b16 %v4853, %v4844
        %v5835 = vpack.c.b16 %v4854, %v4845
        %v5836 = vpack.c.b16 %v4864, %v4855
        %v5837 = vpack.c.b16 %v4865, %v4856
        %v5838 = vpack.c.b16 %v4866, %v4857
        %v5839 = vpack.c.b16 %v4867, %v4858
        %v5840 = vpack.c.b16 %v4868, %v4859
        %v5841 = vpack.c.b16 %v4869, %v4860
        %v5842 = vpack.c.b16 %v4870, %v4861
        %v5843 = vpack.c.b16 %v4871, %v4862
        %v5844 = vpack.c.b16 %v4872, %v4863
        %v5845 = vpack.c.b16 %v4882, %v4873
        %v5846 = vpack.c.b16 %v4883, %v4874
        %v5847 = vpack.c.b16 %v4884, %v4875
        %v5848 = vpack.c.b16 %v4885, %v4876
        %v5849 = vpack.c.b16 %v4886, %v4877
        %v5850 = vpack.c.b16 %v4887, %v4878
        %v5851 = vpack.c.b16 %v4888, %v4879
        %v5852 = vpack.c.b16 %v4889, %v4880
        %v5853 = vpack.c.b16 %v4890, %v4881
        %v5854 = vpack.c.b16 %v4900, %v4891
        %v5855 = vpack.c.b16 %v4901, %v4892
        %v5856 = vpack.c.b16 %v4902, %v4893
        %v5857 = vpack.c.b16 %v4903, %v4894
        %v5858 = vpack.c.b16 %v4904, %v4895
        %v5859 = vpack.c.b16 %v4905, %v4896
        %v5860 = vpack.c.b16 %v4906, %v4897
        %v5861 = vpack.c.b16 %v4907, %v4898
        %v5862 = vpack.c.b16 %v4908, %v4899
        %v5863 = vpack.c.b16 %v4918, %v4909
        %v5864 = vpack.c.b16 %v4919, %v4910
        %v5865 = vpack.c.b16 %v4920, %v4911
        %v5866 = vpack.c.b16 %v4921, %v4912
        %v5867 = vpack.c.b16 %v4922, %v4913
        %v5868 = vpack.c.b16 %v4923, %v4914
        %v5869 = vpack.c.b16 %v4924, %v4915
        %v5870 = vpack.c.b16 %v4925, %v4916
        %v5871 = vpack.c.b16 %v4926, %v4917
        %v5872 = vpack.c.b16 %v4936, %v4927
        %v5873 = vpack.c.b16 %v4937, %v4928
        %v5874 = vpack.c.b16 %v4938, %v4929
        %v5875 = vpack.c.b16 %v4939, %v4930
        %v5876 = vpack.c.b16 %v4940, %v4931
        %v5877 = vpack.c.b16 %v4941, %v4932
        %v5878 = vpack.c.b16 %v4942, %v4933
        %v5879 = vpack.c.b16 %v4943, %v4934
        %v5880 = vpack.c.b16 %v4944, %v4935
        %v5881 = vpack.c.b16 %v4954, %v4945
        %v5882 = vpack.c.b16 %v4955, %v4946
        %v5883 = vpack.c.b16 %v4956, %v4947
        %v5884 = vpack.c.b16 %v4957, %v4948
        %v5885 = vpack.c.b16 %v4958, %v4949
        %v5886 = vpack.c.b16 %v4959, %v4950
        %v5887 = vpack.c.b16 %v4960, %v4951
        %v5888 = vpack.c.b16 %v4961, %v4952
        %v5889 = vpack.c.b16 %v4962, %v4953
        %v5890 = vpack.c.b16 %v4972, %v4963
        %v5891 = vpack.c.b16 %v4973, %v4964
        %v5892 = vpack.c.b16 %v4974, %v4965
        %v5893 = vpack.c.b16 %v4975, %v4966
        %v5894 = vpack.c.b16 %v4976, %v4967
        %v5895 = vpack.c.b16 %v4977, %v4968
        %v5896 = vpack.c.b16 %v4978, %v4969
        %v5897 = vpack.c.b16 %v4979, %v4970
        %v5898 = vpack.c.b16 %v4980, %v4971
        %v5899 = vpack.c.b16 %v4990, %v4981
        %v5900 = vpack.c.b16 %v4991, %v4982
        %v5901 = vpack.c.b16 %v4992, %v4983
        %v5902 = vpack.c.b16 %v4993, %v4984
        %v5903 = vpack.c.b16 %v4994, %v4985
        %v5904 = vpack.c.b16 %v4995, %v4986
        %v5905 = vpack.c.b16 %v4996, %v4987
        %v5906 = vpack.c.b16 %v4997, %v4988
        %v5907 = vpack.c.b16 %v4998, %v4989
        %v5908 = vpack.c.b16 %v5008, %v4999
        %v5909 = vpack.c.b16 %v5009, %v5000
        %v5910 = vpack.c.b16 %v5010, %v5001
        %v5911 = vpack.c.b16 %v5011, %v5002
        %v5912 = vpack.c.b16 %v5012, %v5003
        %v5913 = vpack.c.b16 %v5013, %v5004
        %v5914 = vpack.c.b16 %v5014, %v5005
        %v5915 = vpack.c.b16 %v5015, %v5006
        %v5916 = vpack.c.b16 %v5016, %v5007
        %v5917 = vpack.c.b16 %v5026, %v5017
        %v5918 = vpack.c.b16 %v5027, %v5018
        %v5919 = vpack.c.b16 %v5028, %v5019
        %v5920 = vpack.c.b16 %v5029, %v5020
        %v5921 = vpack.c.b16 %v5030, %v5021
        %v5922 = vpack.c.b16 %v5031, %v5022
        %v5923 = vpack.c.b16 %v5032, %v5023
        %v5924 = vpack.c.b16 %v5033, %v5024
        %v5925 = vpack.c.b16 %v5034, %v5025
        %v5926 = vpack.c.b16 %v5044, %v5035
        %v5927 = vpack.c.b16 %v5045, %v5036
        %v5928 = vpack.c.b16 %v5046, %v5037
        %v5929 = vpack.c.b16 %v5047, %v5038
        %v5930 = vpack.c.b16 %v5048, %v5039
        %v5931 = vpack.c.b16 %v5049, %v5040
        %v5932 = vpack.c.b16 %v5050, %v5041
        %v5933 = vpack.c.b16 %v5051, %v5042
        %v5934 = vpack.c.b16 %v5052, %v5043
        %v5935 = vpack.c.b16 %v5062, %v5053
        %v5936 = vpack.c.b16 %v5063, %v5054
        %v5937 = vpack.c.b16 %v5064, %v5055
        %v5938 = vpack.c.b16 %v5065, %v5056
        %v5939 = vpack.c.b16 %v5066, %v5057
        %v5940 = vpack.c.b16 %v5067, %v5058
        %v5941 = vpack.c.b16 %v5068, %v5059
        %v5942 = vpack.c.b16 %v5069, %v5060
        %v5943 = vpack.c.b16 %v5070, %v5061
        %v5944 = vpack.c.b16 %v5080, %v5071
        %v5945 = vpack.c.b16 %v5081, %v5072
        %v5946 = vpack.c.b16 %v5082, %v5073
        %v5947 = vpack.c.b16 %v5083, %v5074
        %v5948 = vpack.c.b16 %v5084, %v5075
        %v5949 = vpack.c.b16 %v5085, %v5076
        %v5950 = vpack.c.b16 %v5086, %v5077
        %v5951 = vpack.c.b16 %v5087, %v5078
        %v5952 = vpack.c.b16 %v5088, %v5079
        %v5953 = vpack.c.b16 %v5098, %v5089
        %v5954 = vpack.c.b16 %v5099, %v5090
        %v5955 = vpack.c.b16 %v5100, %v5091
        %v5956 = vpack.c.b16 %v5101, %v5092
        %v5957 = vpack.c.b16 %v5102, %v5093
        %v5958 = vpack.c.b16 %v5103, %v5094
        %v5959 = vpack.c.b16 %v5104, %v5095
        %v5960 = vpack.c.b16 %v5105, %v5096
        %v5961 = vpack.c.b16 %v5106, %v5097
        %v5962 = vpack.c.b16 %v5116, %v5107
        %v5963 = vpack.c.b16 %v5117, %v5108
        %v5964 = vpack.c.b16 %v5118, %v5109
        %v5965 = vpack.c.b16 %v5119, %v5110
        %v5966 = vpack.c.b16 %v5120, %v5111
        %v5967 = vpack.c.b16 %v5121, %v5112
        %v5968 = vpack.c.b16 %v5122, %v5113
        %v5969 = vpack.c.b16 %v5123, %v5114
        %v5970 = vpack.c.b16 %v5124, %v5115
        %v5971 = vpack.c.b16 %v5134, %v5125
        %v5972 = vpack.c.b16 %v5135, %v5126
        %v5973 = vpack.c.b16 %v5136, %v5127
        %v5974 = vpack.c.b16 %v5137, %v5128
        %v5975 = vpack.c.b16 %v5138, %v5129
        %v5976 = vpack.c.b16 %v5139, %v5130
        %v5977 = vpack.c.b16 %v5140, %v5131
        %v5978 = vpack.c.b16 %v5141, %v5132
        %v5979 = vpack.c.b16 %v5142, %v5133
        %v5980 = vpack.c.b16 %v5152, %v5143
        %v5981 = vpack.c.b16 %v5153, %v5144
        %v5982 = vpack.c.b16 %v5154, %v5145
        %v5983 = vpack.c.b16 %v5155, %v5146
        %v5984 = vpack.c.b16 %v5156, %v5147
        %v5985 = vpack.c.b16 %v5157, %v5148
        %v5986 = vpack.c.b16 %v5158, %v5149
        %v5987 = vpack.c.b16 %v5159, %v5150
        %v5988 = vpack.c.b16 %v5160, %v5151
        %v5989 = vpack.c.b16 %v5170, %v5161
        %v5990 = vpack.c.b16 %v5171, %v5162
        %v5991 = vpack.c.b16 %v5172, %v5163
        %v5992 = vpack.c.b16 %v5173, %v5164
        %v5993 = vpack.c.b16 %v5174, %v5165
        %v5994 = vpack.c.b16 %v5175, %v5166
        %v5995 = vpack.c.b16 %v5176, %v5167
        %v5996 = vpack.c.b16 %v5177, %v5168
        %v5997 = vpack.c.b16 %v5178, %v5169
        %v5998 = vpack.c.b16 %v5188, %v5179
        %v5999 = vpack.c.b16 %v5189, %v5180
        %v6000 = vpack.c.b16 %v5190, %v5181
        %v6001 = vpack.c.b16 %v5191, %v5182
        %v6002 = vpack.c.b16 %v5192, %v5183
        %v6003 = vpack.c.b16 %v5193, %v5184
        %v6004 = vpack.c.b16 %v5194, %v5185
        %v6005 = vpack.c.b16 %v5195, %v5186
        %v6006 = vpack.c.b16 %v5196, %v5187
        %v6007 = vpack.c.b16 %v5206, %v5197
        %v6008 = vpack.c.b16 %v5207, %v5198
        %v6009 = vpack.c.b16 %v5208, %v5199
        %v6010 = vpack.c.b16 %v5209, %v5200
        %v6011 = vpack.c.b16 %v5210, %v5201
        %v6012 = vpack.c.b16 %v5211, %v5202
        %v6013 = vpack.c.b16 %v5212, %v5203
        %v6014 = vpack.c.b16 %v5213, %v5204
        %v6015 = vpack.c.b16 %v5214, %v5205
        %v6016 = vpack.c.b16 %v5224, %v5215
        %v6017 = vpack.c.b16 %v5225, %v5216
        %v6018 = vpack.c.b16 %v5226, %v5217
        %v6019 = vpack.c.b16 %v5227, %v5218
        %v6020 = vpack.c.b16 %v5228, %v5219
        %v6021 = vpack.c.b16 %v5229, %v5220
        %v6022 = vpack.c.b16 %v5230, %v5221
        %v6023 = vpack.c.b16 %v5231, %v5222
        %v6024 = vpack.c.b16 %v5232, %v5223
        %v6025 = vpack.c.b16 %v5242, %v5233
        %v6026 = vpack.c.b16 %v5243, %v5234
        %v6027 = vpack.c.b16 %v5244, %v5235
        %v6028 = vpack.c.b16 %v5245, %v5236
        %v6029 = vpack.c.b16 %v5246, %v5237
        %v6030 = vpack.c.b16 %v5247, %v5238
        %v6031 = vpack.c.b16 %v5248, %v5239
        %v6032 = vpack.c.b16 %v5249, %v5240
        %v6033 = vpack.c.b16 %v5250, %v5241
        %v6034 = vpack.c.b16 %v5260, %v5251
        %v6035 = vpack.c.b16 %v5261, %v5252
        %v6036 = vpack.c.b16 %v5262, %v5253
        %v6037 = vpack.c.b16 %v5263, %v5254
        %v6038 = vpack.c.b16 %v5264, %v5255
        %v6039 = vpack.c.b16 %v5265, %v5256
        %v6040 = vpack.c.b16 %v5266, %v5257
        %v6041 = vpack.c.b16 %v5267, %v5258
        %v6042 = vpack.c.b16 %v5268, %v5259
        %v6043 = vpack.c.b16 %v5278, %v5269
        %v6044 = vpack.c.b16 %v5279, %v5270
        %v6045 = vpack.c.b16 %v5280, %v5271
        %v6046 = vpack.c.b16 %v5281, %v5272
        %v6047 = vpack.c.b16 %v5282, %v5273
        %v6048 = vpack.c.b16 %v5283, %v5274
        %v6049 = vpack.c.b16 %v5284, %v5275
        %v6050 = vpack.c.b16 %v5285, %v5276
        %v6051 = vpack.c.b16 %v5286, %v5277
        %v6052 = vpack.c.b16 %v5296, %v5287
        %v6053 = vpack.c.b16 %v5297, %v5288
        %v6054 = vpack.c.b16 %v5298, %v5289
        %v6055 = vpack.c.b16 %v5299, %v5290
        %v6056 = vpack.c.b16 %v5300, %v5291
        %v6057 = vpack.c.b16 %v5301, %v5292
        %v6058 = vpack.c.b16 %v5302, %v5293
        %v6059 = vpack.c.b16 %v5303, %v5294
        %v6060 = vpack.c.b16 %v5304, %v5295
        %v6061 = vpack.c.b16 %v5314, %v5305
        %v6062 = vpack.c.b16 %v5315, %v5306
        %v6063 = vpack.c.b16 %v5316, %v5307
        %v6064 = vpack.c.b16 %v5317, %v5308
        %v6065 = vpack.c.b16 %v5318, %v5309
        %v6066 = vpack.c.b16 %v5319, %v5310
        %v6067 = vpack.c.b16 %v5320, %v5311
        %v6068 = vpack.c.b16 %v5321, %v5312
        %v6069 = vpack.c.b16 %v5322, %v5313
        %v6070 = vpack.c.b16 %v5332, %v5323
        %v6071 = vpack.c.b16 %v5333, %v5324
        %v6072 = vpack.c.b16 %v5334, %v5325
        %v6073 = vpack.c.b16 %v5335, %v5326
        %v6074 = vpack.c.b16 %v5336, %v5327
        %v6075 = vpack.c.b16 %v5337, %v5328
        %v6076 = vpack.c.b16 %v5338, %v5329
        %v6077 = vpack.c.b16 %v5339, %v5330
        %v6078 = vpack.c.b16 %v5340, %v5331
        %v6079 = vpack.c.b16 %v5350, %v5341
        %v6080 = vpack.c.b16 %v5351, %v5342
        %v6081 = vpack.c.b16 %v5352, %v5343
        %v6082 = vpack.c.b16 %v5353, %v5344
        %v6083 = vpack.c.b16 %v5354, %v5345
        %v6084 = vpack.c.b16 %v5355, %v5346
        %v6085 = vpack.c.b16 %v5356, %v5347
        %v6086 = vpack.c.b16 %v5357, %v5348
        %v6087 = vpack.c.b16 %v5358, %v5349
        %v6088 = vpack.c.b16 %v5368, %v5359
        %v6089 = vpack.c.b16 %v5369, %v5360
        %v6090 = vpack.c.b16 %v5370, %v5361
        %v6091 = vpack.c.b16 %v5371, %v5362
        %v6092 = vpack.c.b16 %v5372, %v5363
        %v6093 = vpack.c.b16 %v5373, %v5364
        %v6094 = vpack.c.b16 %v5374, %v5365
        %v6095 = vpack.c.b16 %v5375, %v5366
        %v6096 = vpack.c.b16 %v5376, %v5367
        %v6097 = vpack.c.b16 %v5386, %v5377
        %v6098 = vpack.c.b16 %v5387, %v5378
        %v6099 = vpack.c.b16 %v5388, %v5379
        %v6100 = vpack.c.b16 %v5389, %v5380
        %v6101 = vpack.c.b16 %v5390, %v5381
        %v6102 = vpack.c.b16 %v5391, %v5382
        %v6103 = vpack.c.b16 %v5392, %v5383
        %v6104 = vpack.c.b16 %v5393, %v5384
        %v6105 = vpack.c.b16 %v5394, %v5385
        %v6106 = vpack.c.b16 %v5404, %v5395
        %v6107 = vpack.c.b16 %v5405, %v5396
        %v6108 = vpack.c.b16 %v5406, %v5397
        %v6109 = vpack.c.b16 %v5407, %v5398
        %v6110 = vpack.c.b16 %v5408, %v5399
        %v6111 = vpack.c.b16 %v5409, %v5400
        %v6112 = vpack.c.b16 %v5410, %v5401
        %v6113 = vpack.c.b16 %v5411, %v5402
        %v6114 = vpack.c.b16 %v5412, %v5403
        %v6115 = vpack.c.b16 %v5422, %v5413
        %v6116 = vpack.c.b16 %v5423, %v5414
        %v6117 = vpack.c.b16 %v5424, %v5415
        %v6118 = vpack.c.b16 %v5425, %v5416
        %v6119 = vpack.c.b16 %v5426, %v5417
        %v6120 = vpack.c.b16 %v5427, %v5418
        %v6121 = vpack.c.b16 %v5428, %v5419
        %v6122 = vpack.c.b16 %v5429, %v5420
        %v6123 = vpack.c.b16 %v5430, %v5421
        %v6124 = vpack.c.b16 %v5440, %v5431
        %v6125 = vpack.c.b16 %v5441, %v5432
        %v6126 = vpack.c.b16 %v5442, %v5433
        %v6127 = vpack.c.b16 %v5443, %v5434
        %v6128 = vpack.c.b16 %v5444, %v5435
        %v6129 = vpack.c.b16 %v5445, %v5436
        %v6130 = vpack.c.b16 %v5446, %v5437
        %v6131 = vpack.c.b16 %v5447, %v5438
        %v6132 = vpack.c.b16 %v5448, %v5439
        %v6133 = vpack.c.b16 %v5458, %v5449
        %v6134 = vpack.c.b16 %v5459, %v5450
        %v6135 = vpack.c.b16 %v5460, %v5451
        %v6136 = vpack.c.b16 %v5461, %v5452
        %v6137 = vpack.c.b16 %v5462, %v5453
        %v6138 = vpack.c.b16 %v5463, %v5454
        %v6139 = vpack.c.b16 %v5464, %v5455
        %v6140 = vpack.c.b16 %v5465, %v5456
        %v6141 = vpack.c.b16 %v5466, %v5457
        %v6142 = vpack.c.b16 %v5476, %v5467
        %v6143 = vpack.c.b16 %v5477, %v5468
        %v6144 = vpack.c.b16 %v5478, %v5469
        %v6145 = vpack.c.b16 %v5479, %v5470
        %v6146 = vpack.c.b16 %v5480, %v5471
        %v6147 = vpack.c.b16 %v5481, %v5472
        %v6148 = vpack.c.b16 %v5482, %v5473
        %v6149 = vpack.c.b16 %v5483, %v5474
        %v6150 = vpack.c.b16 %v5484, %v5475
        %v6151 = vpack.c.b16 %v5494, %v5485
        %v6152 = vpack.c.b16 %v5495, %v5486
        %v6153 = vpack.c.b16 %v5496, %v5487
        %v6154 = vpack.c.b16 %v5497, %v5488
        %v6155 = vpack.c.b16 %v5498, %v5489
        %v6156 = vpack.c.b16 %v5499, %v5490
        %v6157 = vpack.c.b16 %v5500, %v5491
        %v6158 = vpack.c.b16 %v5501, %v5492
        %v6159 = vpack.c.b16 %v5502, %v5493
        %v6160 = vpack.c.b16 %v5512, %v5503
        %v6161 = vpack.c.b16 %v5513, %v5504
        %v6162 = vpack.c.b16 %v5514, %v5505
        %v6163 = vpack.c.b16 %v5515, %v5506
        %v6164 = vpack.c.b16 %v5516, %v5507
        %v6165 = vpack.c.b16 %v5517, %v5508
        %v6166 = vpack.c.b16 %v5518, %v5509
        %v6167 = vpack.c.b16 %v5519, %v5510
        %v6168 = vpack.c.b16 %v5520, %v5511
        %v6169 = vpack.c.b16 %v5530, %v5521
        %v6170 = vpack.c.b16 %v5531, %v5522
        %v6171 = vpack.c.b16 %v5532, %v5523
        %v6172 = vpack.c.b16 %v5533, %v5524
        %v6173 = vpack.c.b16 %v5534, %v5525
        %v6174 = vpack.c.b16 %v5535, %v5526
        %v6175 = vpack.c.b16 %v5536, %v5527
        %v6176 = vpack.c.b16 %v5537, %v5528
        %v6177 = vpack.c.b16 %v5538, %v5529
        %v6178 = vpack.c.b16 %v5548, %v5539
        %v6179 = vpack.c.b16 %v5549, %v5540
        %v6180 = vpack.c.b16 %v5550, %v5541
        %v6181 = vpack.c.b16 %v5551, %v5542
        %v6182 = vpack.c.b16 %v5552, %v5543
        %v6183 = vpack.c.b16 %v5553, %v5544
        %v6184 = vpack.c.b16 %v5554, %v5545
        %v6185 = vpack.c.b16 %v5555, %v5546
        %v6186 = vpack.c.b16 %v5556, %v5547
        %v6187 = vpack.c.b16 %v5566, %v5557
        %v6188 = vpack.c.b16 %v5567, %v5558
        %v6189 = vpack.c.b16 %v5568, %v5559
        %v6190 = vpack.c.b16 %v5569, %v5560
        %v6191 = vpack.c.b16 %v5570, %v5561
        %v6192 = vpack.c.b16 %v5571, %v5562
        %v6193 = vpack.c.b16 %v5572, %v5563
        %v6194 = vpack.c.b16 %v5573, %v5564
        %v6195 = vpack.c.b16 %v5574, %v5565
        %v6196 = vpack.c.b16 %v5584, %v5575
        %v6197 = vpack.c.b16 %v5585, %v5576
        %v6198 = vpack.c.b16 %v5586, %v5577
        %v6199 = vpack.c.b16 %v5587, %v5578
        %v6200 = vpack.c.b16 %v5588, %v5579
        %v6201 = vpack.c.b16 %v5589, %v5580
        %v6202 = vpack.c.b16 %v5590, %v5581
        %v6203 = vpack.c.b16 %v5591, %v5582
        %v6204 = vpack.c.b16 %v5592, %v5583
        %v6205 = vpack.c.b16 %v5602, %v5593
        %v6206 = vpack.c.b16 %v5603, %v5594
        %v6207 = vpack.c.b16 %v5604, %v5595
        %v6208 = vpack.c.b16 %v5605, %v5596
        %v6209 = vpack.c.b16 %v5606, %v5597
        %v6210 = vpack.c.b16 %v5607, %v5598
        %v6211 = vpack.c.b16 %v5608, %v5599
        %v6212 = vpack.c.b16 %v5609, %v5600
        %v6213 = vpack.c.b16 %v5610, %v5601
        %v6214 = vpack.c.b16 %v5620, %v5611
        %v6215 = vpack.c.b16 %v5621, %v5612
        %v6216 = vpack.c.b16 %v5622, %v5613
        %v6217 = vpack.c.b16 %v5623, %v5614
        %v6218 = vpack.c.b16 %v5624, %v5615
        %v6219 = vpack.c.b16 %v5625, %v5616
        %v6220 = vpack.c.b16 %v5626, %v5617
        %v6221 = vpack.c.b16 %v5627, %v5618
        %v6222 = vpack.c.b16 %v5628, %v5619
        %v6223 = vpack.c.b16 %v5638, %v5629
        %v6224 = vpack.c.b16 %v5639, %v5630
        %v6225 = vpack.c.b16 %v5640, %v5631
        %v6226 = vpack.c.b16 %v5641, %v5632
        %v6227 = vpack.c.b16 %v5642, %v5633
        %v6228 = vpack.c.b16 %v5643, %v5634
        %v6229 = vpack.c.b16 %v5644, %v5635
        %v6230 = vpack.c.b16 %v5645, %v5636
        %v6231 = vpack.c.b16 %v5646, %v5637
        %v6232 = vpack.c.b16 %v5656, %v5647
        %v6233 = vpack.c.b16 %v5657, %v5648
        %v6234 = vpack.c.b16 %v5658, %v5649
        %v6235 = vpack.c.b16 %v5659, %v5650
        %v6236 = vpack.c.b16 %v5660, %v5651
        %v6237 = vpack.c.b16 %v5661, %v5652
        %v6238 = vpack.c.b16 %v5662, %v5653
        %v6239 = vpack.c.b16 %v5663, %v5654
        %v6240 = vpack.c.b16 %v5664, %v5655
        %6817 = vmatprep.subr.bf16.mxu0 %v5729
        %6818 = vmatpush1.bf16.msra.mxu0 %v5728
        %6819 = vmatprep.subr.bf16.mxu0 %v5720
        %6820 = vmatpush1.bf16.msra.mxu0 %v5719
        %6821 = vmatprep.subr.bf16.mxu0 %v5711
        %6822 = vmatpush1.bf16.msra.mxu0 %v5710
        %6823 = vmatprep.subr.bf16.mxu0 %v5702
        %6824 = vmatpush1.bf16.msra.mxu0 %v5701
        %6825 = vmatprep.subr.bf16.mxu0 %v5693
        %6826 = vmatpush1.bf16.msra.mxu0 %v5692
        %6827 = vmatprep.subr.bf16.mxu0 %v5684
        %6828 = vmatpush1.bf16.msra.mxu0 %v5683
        %6829 = vmatprep.subr.bf16.mxu0 %v5675
        %6830 = vmatpush1.bf16.msra.mxu0 %v5674
        %6831 = vmatprep.subr.bf16.mxu0 %v5666
        %6832 = vmatpush1.bf16.msra.mxu0 %v5665
        %6833 = vmatprep.subr.bf16.mxu0 %v5801
        %6834 = vmatpush2.bf16.msra.mxu0 %v5800
        %6835 = vmatprep.subr.bf16.mxu0 %v5792
        %6836 = vmatpush2.bf16.msra.mxu0 %v5791
        %6837 = vmatprep.subr.bf16.mxu0 %v5783
        %6838 = vmatpush2.bf16.msra.mxu0 %v5782
        %6839 = vmatprep.subr.bf16.mxu0 %v5774
        %6840 = vmatpush2.bf16.msra.mxu0 %v5773
        %6841 = vmatprep.subr.bf16.mxu0 %v5765
        %6842 = vmatpush2.bf16.msra.mxu0 %v5764
        %6843 = vmatprep.subr.bf16.mxu0 %v5756
        %6844 = vmatpush2.bf16.msra.mxu0 %v5755
        %6845 = vmatprep.subr.bf16.mxu0 %v5747
        %6846 = vmatpush2.bf16.msra.mxu0 %v5746
        %6847 = vmatprep.subr.bf16.mxu0 %v5738
        %6848 = vmatpush2.bf16.msra.mxu0 %v5737
        %6849 = vmatprep.mubr.bf16.mxu0 %v3698
        %6850 = vmatmul.mubr.bf16.gmra.mxu0 %v3697
        %v6851 = vpop.f32.mrf.mxu0
        %v6852 = vadd.f32 0.0, %v6851
        %v6853 = vpop.f32.mrf.mxu0
        %v6854 = vadd.f32 0.0, %v6853
        %v6855 = vpop.f32.mrf.mxu0
        %v6856 = vadd.f32 0.0, %v6855
        %v6857 = vpop.f32.mrf.mxu0
        %v6858 = vadd.f32 0.0, %v6857
        %6859 = vmatprep.mubr.bf16.mxu0 %v3706
        %6860 = vmatmul.mubr.bf16.gmra.mxu0 %v3705
        %v6861 = vpop.f32.mrf.mxu0
        %v6862 = vadd.f32 0.0, %v6861
        %v6863 = vpop.f32.mrf.mxu0
        %v6864 = vadd.f32 0.0, %v6863
        %v6865 = vpop.f32.mrf.mxu0
        %v6866 = vadd.f32 0.0, %v6865
        %v6867 = vpop.f32.mrf.mxu0
        %v6868 = vadd.f32 0.0, %v6867
        %6869 = vmatprep.mubr.bf16.mxu0 %v3714
        %6870 = vmatmul.mubr.bf16.gmra.mxu0 %v3713
        %v6871 = vpop.f32.mrf.mxu0
        %v6872 = vadd.f32 0.0, %v6871
        %v6873 = vpop.f32.mrf.mxu0
        %v6874 = vadd.f32 0.0, %v6873
        %v6875 = vpop.f32.mrf.mxu0
        %v6876 = vadd.f32 0.0, %v6875
        %v6877 = vpop.f32.mrf.mxu0
        %v6878 = vadd.f32 0.0, %v6877
        %6879 = vmatprep.mubr.bf16.mxu0 %v3722
        %6880 = vmatmul.mubr.bf16.gmra.mxu0 %v3721
        %v6881 = vpop.f32.mrf.mxu0
        %v6882 = vadd.f32 0.0, %v6881
        %v6883 = vpop.f32.mrf.mxu0
        %v6884 = vadd.f32 0.0, %v6883
        %v6885 = vpop.f32.mrf.mxu0
        %v6886 = vadd.f32 0.0, %v6885
        %v6887 = vpop.f32.mrf.mxu0
        %v6888 = vadd.f32 0.0, %v6887
        %6889 = vmatprep.mubr.bf16.mxu0 %v3730
        %6890 = vmatmul.mubr.bf16.gmra.mxu0 %v3729
        %v6891 = vpop.f32.mrf.mxu0
        %v6892 = vadd.f32 0.0, %v6891
        %v6893 = vpop.f32.mrf.mxu0
        %v6894 = vadd.f32 0.0, %v6893
        %v6895 = vpop.f32.mrf.mxu0
        %v6896 = vadd.f32 0.0, %v6895
        %v6897 = vpop.f32.mrf.mxu0
        %v6898 = vadd.f32 0.0, %v6897
        %6899 = vmatprep.mubr.bf16.mxu0 %v3738
        %6900 = vmatmul.mubr.bf16.gmra.mxu0 %v3737
        %v6901 = vpop.f32.mrf.mxu0
        %v6902 = vadd.f32 0.0, %v6901
        %v6903 = vpop.f32.mrf.mxu0
        %v6904 = vadd.f32 0.0, %v6903
        %v6905 = vpop.f32.mrf.mxu0
        %v6906 = vadd.f32 0.0, %v6905
        %v6907 = vpop.f32.mrf.mxu0
        %v6908 = vadd.f32 0.0, %v6907
        %6909 = vmatprep.mubr.bf16.mxu0 %v3746
        %6910 = vmatmul.mubr.bf16.gmra.mxu0 %v3745
        %v6911 = vpop.f32.mrf.mxu0
        %v6912 = vadd.f32 0.0, %v6911
        %v6913 = vpop.f32.mrf.mxu0
        %v6914 = vadd.f32 0.0, %v6913
        %v6915 = vpop.f32.mrf.mxu0
        %v6916 = vadd.f32 0.0, %v6915
        %v6917 = vpop.f32.mrf.mxu0
        %v6918 = vadd.f32 0.0, %v6917
        %6919 = vmatprep.mubr.bf16.mxu0 %v3754
        %6920 = vmatmul.mubr.bf16.gmra.mxu0 %v3753
        %v6921 = vpop.f32.mrf.mxu0
        %v6922 = vadd.f32 0.0, %v6921
        %v6923 = vpop.f32.mrf.mxu0
        %v6924 = vadd.f32 0.0, %v6923
        %v6925 = vpop.f32.mrf.mxu0
        %v6926 = vadd.f32 0.0, %v6925
        %v6927 = vpop.f32.mrf.mxu0
        %v6928 = vadd.f32 0.0, %v6927
        %6929 = vmatprep.mubr.bf16.mxu0 %v3762
        %6930 = vmatmul.mubr.bf16.gmra.mxu0 %v3761
        %v6931 = vpop.f32.mrf.mxu0
        %v6932 = vadd.f32 0.0, %v6931
        %v6933 = vpop.f32.mrf.mxu0
        %v6934 = vadd.f32 0.0, %v6933
        %v6935 = vpop.f32.mrf.mxu0
        %v6936 = vadd.f32 0.0, %v6935
        %v6937 = vpop.f32.mrf.mxu0
        %v6938 = vadd.f32 0.0, %v6937
        %6939 = vmatprep.mubr.bf16.mxu0 %v3770
        %6940 = vmatmul.mubr.bf16.gmra.mxu0 %v3769
        %v6941 = vpop.f32.mrf.mxu0
        %v6942 = vadd.f32 0.0, %v6941
        %v6943 = vpop.f32.mrf.mxu0
        %v6944 = vadd.f32 0.0, %v6943
        %v6945 = vpop.f32.mrf.mxu0
        %v6946 = vadd.f32 0.0, %v6945
        %v6947 = vpop.f32.mrf.mxu0
        %v6948 = vadd.f32 0.0, %v6947
        %6949 = vmatprep.mubr.bf16.mxu0 %v3778
        %6950 = vmatmul.mubr.bf16.gmra.mxu0 %v3777
        %v6951 = vpop.f32.mrf.mxu0
        %v6952 = vadd.f32 0.0, %v6951
        %v6953 = vpop.f32.mrf.mxu0
        %v6954 = vadd.f32 0.0, %v6953
        %v6955 = vpop.f32.mrf.mxu0
        %v6956 = vadd.f32 0.0, %v6955
        %v6957 = vpop.f32.mrf.mxu0
        %v6958 = vadd.f32 0.0, %v6957
        %6959 = vdwg.mxu0
        %6960 = vmatprep.subr.bf16.mxu0 %v5873
        %6961 = vmatpush1.bf16.msra.mxu0 %v5872
        %6962 = vmatprep.subr.bf16.mxu0 %v5864
        %6963 = vmatpush1.bf16.msra.mxu0 %v5863
        %6964 = vmatprep.subr.bf16.mxu0 %v5855
        %6965 = vmatpush1.bf16.msra.mxu0 %v5854
        %6966 = vmatprep.subr.bf16.mxu0 %v5846
        %6967 = vmatpush1.bf16.msra.mxu0 %v5845
        %6968 = vmatprep.subr.bf16.mxu0 %v5837
        %6969 = vmatpush1.bf16.msra.mxu0 %v5836
        %6970 = vmatprep.subr.bf16.mxu0 %v5828
        %6971 = vmatpush1.bf16.msra.mxu0 %v5827
        %6972 = vmatprep.subr.bf16.mxu0 %v5819
        %6973 = vmatpush1.bf16.msra.mxu0 %v5818
        %6974 = vmatprep.subr.bf16.mxu0 %v5810
        %6975 = vmatpush1.bf16.msra.mxu0 %v5809
        %6976 = vmatprep.subr.bf16.mxu0 %v5945
        %6977 = vmatpush2.bf16.msra.mxu0 %v5944
        %6978 = vmatprep.subr.bf16.mxu0 %v5936
        %6979 = vmatpush2.bf16.msra.mxu0 %v5935
        %6980 = vmatprep.subr.bf16.mxu0 %v5927
        %6981 = vmatpush2.bf16.msra.mxu0 %v5926
        %6982 = vmatprep.subr.bf16.mxu0 %v5918
        %6983 = vmatpush2.bf16.msra.mxu0 %v5917
        %6984 = vmatprep.subr.bf16.mxu0 %v5909
        %6985 = vmatpush2.bf16.msra.mxu0 %v5908
        %6986 = vmatprep.subr.bf16.mxu0 %v5900
        %6987 = vmatpush2.bf16.msra.mxu0 %v5899
        %6988 = vmatprep.subr.bf16.mxu0 %v5891
        %6989 = vmatpush2.bf16.msra.mxu0 %v5890
        %6990 = vmatprep.subr.bf16.mxu0 %v5882
        %6991 = vmatpush2.bf16.msra.mxu0 %v5881
        %6992 = vmatprep.mubr.bf16.mxu0 %v3700
        %6993 = vmatmul.mubr.bf16.gmra.mxu0 %v3699
        %v6994 = vpop.f32.mrf.mxu0
        %v6995 = vadd.f32 %v6852, %v6994
        %v6996 = vpop.f32.mrf.mxu0
        %v6997 = vadd.f32 %v6854, %v6996
        %v6998 = vpop.f32.mrf.mxu0
        %v6999 = vadd.f32 %v6856, %v6998
        %v7000 = vpop.f32.mrf.mxu0
        %v7001 = vadd.f32 %v6858, %v7000
        %7002 = vmatprep.mubr.bf16.mxu0 %v3708
        %7003 = vmatmul.mubr.bf16.gmra.mxu0 %v3707
        %v7004 = vpop.f32.mrf.mxu0
        %v7005 = vadd.f32 %v6862, %v7004
        %v7006 = vpop.f32.mrf.mxu0
        %v7007 = vadd.f32 %v6864, %v7006
        %v7008 = vpop.f32.mrf.mxu0
        %v7009 = vadd.f32 %v6866, %v7008
        %v7010 = vpop.f32.mrf.mxu0
        %v7011 = vadd.f32 %v6868, %v7010
        %7012 = vmatprep.mubr.bf16.mxu0 %v3716
        %7013 = vmatmul.mubr.bf16.gmra.mxu0 %v3715
        %v7014 = vpop.f32.mrf.mxu0
        %v7015 = vadd.f32 %v6872, %v7014
        %v7016 = vpop.f32.mrf.mxu0
        %v7017 = vadd.f32 %v6874, %v7016
        %v7018 = vpop.f32.mrf.mxu0
        %v7019 = vadd.f32 %v6876, %v7018
        %v7020 = vpop.f32.mrf.mxu0
        %v7021 = vadd.f32 %v6878, %v7020
        %7022 = vmatprep.mubr.bf16.mxu0 %v3724
        %7023 = vmatmul.mubr.bf16.gmra.mxu0 %v3723
        %v7024 = vpop.f32.mrf.mxu0
        %v7025 = vadd.f32 %v6882, %v7024
        %v7026 = vpop.f32.mrf.mxu0
        %v7027 = vadd.f32 %v6884, %v7026
        %v7028 = vpop.f32.mrf.mxu0
        %v7029 = vadd.f32 %v6886, %v7028
        %v7030 = vpop.f32.mrf.mxu0
        %v7031 = vadd.f32 %v6888, %v7030
        %7032 = vmatprep.mubr.bf16.mxu0 %v3732
        %7033 = vmatmul.mubr.bf16.gmra.mxu0 %v3731
        %v7034 = vpop.f32.mrf.mxu0
        %v7035 = vadd.f32 %v6892, %v7034
        %v7036 = vpop.f32.mrf.mxu0
        %v7037 = vadd.f32 %v6894, %v7036
        %v7038 = vpop.f32.mrf.mxu0
        %v7039 = vadd.f32 %v6896, %v7038
        %v7040 = vpop.f32.mrf.mxu0
        %v7041 = vadd.f32 %v6898, %v7040
        %7042 = vmatprep.mubr.bf16.mxu0 %v3740
        %7043 = vmatmul.mubr.bf16.gmra.mxu0 %v3739
        %v7044 = vpop.f32.mrf.mxu0
        %v7045 = vadd.f32 %v6902, %v7044
        %v7046 = vpop.f32.mrf.mxu0
        %v7047 = vadd.f32 %v6904, %v7046
        %v7048 = vpop.f32.mrf.mxu0
        %v7049 = vadd.f32 %v6906, %v7048
        %v7050 = vpop.f32.mrf.mxu0
        %v7051 = vadd.f32 %v6908, %v7050
        %7052 = vmatprep.mubr.bf16.mxu0 %v3748
        %7053 = vmatmul.mubr.bf16.gmra.mxu0 %v3747
        %v7054 = vpop.f32.mrf.mxu0
        %v7055 = vadd.f32 %v6912, %v7054
        %v7056 = vpop.f32.mrf.mxu0
        %v7057 = vadd.f32 %v6914, %v7056
        %v7058 = vpop.f32.mrf.mxu0
        %v7059 = vadd.f32 %v6916, %v7058
        %v7060 = vpop.f32.mrf.mxu0
        %v7061 = vadd.f32 %v6918, %v7060
        %7062 = vmatprep.mubr.bf16.mxu0 %v3756
        %7063 = vmatmul.mubr.bf16.gmra.mxu0 %v3755
        %v7064 = vpop.f32.mrf.mxu0
        %v7065 = vadd.f32 %v6922, %v7064
        %v7066 = vpop.f32.mrf.mxu0
        %v7067 = vadd.f32 %v6924, %v7066
        %v7068 = vpop.f32.mrf.mxu0
        %v7069 = vadd.f32 %v6926, %v7068
        %v7070 = vpop.f32.mrf.mxu0
        %v7071 = vadd.f32 %v6928, %v7070
        %7072 = vmatprep.mubr.bf16.mxu0 %v3764
        %7073 = vmatmul.mubr.bf16.gmra.mxu0 %v3763
        %v7074 = vpop.f32.mrf.mxu0
        %v7075 = vadd.f32 %v6932, %v7074
        %v7076 = vpop.f32.mrf.mxu0
        %v7077 = vadd.f32 %v6934, %v7076
        %v7078 = vpop.f32.mrf.mxu0
        %v7079 = vadd.f32 %v6936, %v7078
        %v7080 = vpop.f32.mrf.mxu0
        %v7081 = vadd.f32 %v6938, %v7080
        %7082 = vmatprep.mubr.bf16.mxu0 %v3772
        %7083 = vmatmul.mubr.bf16.gmra.mxu0 %v3771
        %v7084 = vpop.f32.mrf.mxu0
        %v7085 = vadd.f32 %v6942, %v7084
        %v7086 = vpop.f32.mrf.mxu0
        %v7087 = vadd.f32 %v6944, %v7086
        %v7088 = vpop.f32.mrf.mxu0
        %v7089 = vadd.f32 %v6946, %v7088
        %v7090 = vpop.f32.mrf.mxu0
        %v7091 = vadd.f32 %v6948, %v7090
        %7092 = vmatprep.mubr.bf16.mxu0 %v3780
        %7093 = vmatmul.mubr.bf16.gmra.mxu0 %v3779
        %v7094 = vpop.f32.mrf.mxu0
        %v7095 = vadd.f32 %v6952, %v7094
        %v7096 = vpop.f32.mrf.mxu0
        %v7097 = vadd.f32 %v6954, %v7096
        %v7098 = vpop.f32.mrf.mxu0
        %v7099 = vadd.f32 %v6956, %v7098
        %v7100 = vpop.f32.mrf.mxu0
        %v7101 = vadd.f32 %v6958, %v7100
        %7102 = vdwg.mxu0
        %7103 = vmatprep.subr.bf16.mxu0 %v6017
        %7104 = vmatpush1.bf16.msra.mxu0 %v6016
        %7105 = vmatprep.subr.bf16.mxu0 %v6008
        %7106 = vmatpush1.bf16.msra.mxu0 %v6007
        %7107 = vmatprep.subr.bf16.mxu0 %v5999
        %7108 = vmatpush1.bf16.msra.mxu0 %v5998
        %7109 = vmatprep.subr.bf16.mxu0 %v5990
        %7110 = vmatpush1.bf16.msra.mxu0 %v5989
        %7111 = vmatprep.subr.bf16.mxu0 %v5981
        %7112 = vmatpush1.bf16.msra.mxu0 %v5980
        %7113 = vmatprep.subr.bf16.mxu0 %v5972
        %7114 = vmatpush1.bf16.msra.mxu0 %v5971
        %7115 = vmatprep.subr.bf16.mxu0 %v5963
        %7116 = vmatpush1.bf16.msra.mxu0 %v5962
        %7117 = vmatprep.subr.bf16.mxu0 %v5954
        %7118 = vmatpush1.bf16.msra.mxu0 %v5953
        %7119 = vmatprep.subr.bf16.mxu0 %v6089
        %7120 = vmatpush2.bf16.msra.mxu0 %v6088
        %7121 = vmatprep.subr.bf16.mxu0 %v6080
        %7122 = vmatpush2.bf16.msra.mxu0 %v6079
        %7123 = vmatprep.subr.bf16.mxu0 %v6071
        %7124 = vmatpush2.bf16.msra.mxu0 %v6070
        %7125 = vmatprep.subr.bf16.mxu0 %v6062
        %7126 = vmatpush2.bf16.msra.mxu0 %v6061
        %7127 = vmatprep.subr.bf16.mxu0 %v6053
        %7128 = vmatpush2.bf16.msra.mxu0 %v6052
        %7129 = vmatprep.subr.bf16.mxu0 %v6044
        %7130 = vmatpush2.bf16.msra.mxu0 %v6043
        %7131 = vmatprep.subr.bf16.mxu0 %v6035
        %7132 = vmatpush2.bf16.msra.mxu0 %v6034
        %7133 = vmatprep.subr.bf16.mxu0 %v6026
        %7134 = vmatpush2.bf16.msra.mxu0 %v6025
        %7135 = vmatprep.mubr.bf16.mxu0 %v3702
        %7136 = vmatmul.mubr.bf16.gmra.mxu0 %v3701
        %v7137 = vpop.f32.mrf.mxu0
        %v7138 = vadd.f32 %v6995, %v7137
        %v7139 = vpop.f32.mrf.mxu0
        %v7140 = vadd.f32 %v6997, %v7139
        %v7141 = vpop.f32.mrf.mxu0
        %v7142 = vadd.f32 %v6999, %v7141
        %v7143 = vpop.f32.mrf.mxu0
        %v7144 = vadd.f32 %v7001, %v7143
        %7145 = vmatprep.mubr.bf16.mxu0 %v3710
        %7146 = vmatmul.mubr.bf16.gmra.mxu0 %v3709
        %v7147 = vpop.f32.mrf.mxu0
        %v7148 = vadd.f32 %v7005, %v7147
        %v7149 = vpop.f32.mrf.mxu0
        %v7150 = vadd.f32 %v7007, %v7149
        %v7151 = vpop.f32.mrf.mxu0
        %v7152 = vadd.f32 %v7009, %v7151
        %v7153 = vpop.f32.mrf.mxu0
        %v7154 = vadd.f32 %v7011, %v7153
        %7155 = vmatprep.mubr.bf16.mxu0 %v3718
        %7156 = vmatmul.mubr.bf16.gmra.mxu0 %v3717
        %v7157 = vpop.f32.mrf.mxu0
        %v7158 = vadd.f32 %v7015, %v7157
        %v7159 = vpop.f32.mrf.mxu0
        %v7160 = vadd.f32 %v7017, %v7159
        %v7161 = vpop.f32.mrf.mxu0
        %v7162 = vadd.f32 %v7019, %v7161
        %v7163 = vpop.f32.mrf.mxu0
        %v7164 = vadd.f32 %v7021, %v7163
        %7165 = vmatprep.mubr.bf16.mxu0 %v3726
        %7166 = vmatmul.mubr.bf16.gmra.mxu0 %v3725
        %v7167 = vpop.f32.mrf.mxu0
        %v7168 = vadd.f32 %v7025, %v7167
        %v7169 = vpop.f32.mrf.mxu0
        %v7170 = vadd.f32 %v7027, %v7169
        %v7171 = vpop.f32.mrf.mxu0
        %v7172 = vadd.f32 %v7029, %v7171
        %v7173 = vpop.f32.mrf.mxu0
        %v7174 = vadd.f32 %v7031, %v7173
        %7175 = vmatprep.mubr.bf16.mxu0 %v3734
        %7176 = vmatmul.mubr.bf16.gmra.mxu0 %v3733
        %v7177 = vpop.f32.mrf.mxu0
        %v7178 = vadd.f32 %v7035, %v7177
        %v7179 = vpop.f32.mrf.mxu0
        %v7180 = vadd.f32 %v7037, %v7179
        %v7181 = vpop.f32.mrf.mxu0
        %v7182 = vadd.f32 %v7039, %v7181
        %v7183 = vpop.f32.mrf.mxu0
        %v7184 = vadd.f32 %v7041, %v7183
        %7185 = vmatprep.mubr.bf16.mxu0 %v3742
        %7186 = vmatmul.mubr.bf16.gmra.mxu0 %v3741
        %v7187 = vpop.f32.mrf.mxu0
        %v7188 = vadd.f32 %v7045, %v7187
        %v7189 = vpop.f32.mrf.mxu0
        %v7190 = vadd.f32 %v7047, %v7189
        %v7191 = vpop.f32.mrf.mxu0
        %v7192 = vadd.f32 %v7049, %v7191
        %v7193 = vpop.f32.mrf.mxu0
        %v7194 = vadd.f32 %v7051, %v7193
        %7195 = vmatprep.mubr.bf16.mxu0 %v3750
        %7196 = vmatmul.mubr.bf16.gmra.mxu0 %v3749
        %v7197 = vpop.f32.mrf.mxu0
        %v7198 = vadd.f32 %v7055, %v7197
        %v7199 = vpop.f32.mrf.mxu0
        %v7200 = vadd.f32 %v7057, %v7199
        %v7201 = vpop.f32.mrf.mxu0
        %v7202 = vadd.f32 %v7059, %v7201
        %v7203 = vpop.f32.mrf.mxu0
        %v7204 = vadd.f32 %v7061, %v7203
        %7205 = vmatprep.mubr.bf16.mxu0 %v3758
        %7206 = vmatmul.mubr.bf16.gmra.mxu0 %v3757
        %v7207 = vpop.f32.mrf.mxu0
        %v7208 = vadd.f32 %v7065, %v7207
        %v7209 = vpop.f32.mrf.mxu0
        %v7210 = vadd.f32 %v7067, %v7209
        %v7211 = vpop.f32.mrf.mxu0
        %v7212 = vadd.f32 %v7069, %v7211
        %v7213 = vpop.f32.mrf.mxu0
        %v7214 = vadd.f32 %v7071, %v7213
        %7215 = vmatprep.mubr.bf16.mxu0 %v3766
        %7216 = vmatmul.mubr.bf16.gmra.mxu0 %v3765
        %v7217 = vpop.f32.mrf.mxu0
        %v7218 = vadd.f32 %v7075, %v7217
        %v7219 = vpop.f32.mrf.mxu0
        %v7220 = vadd.f32 %v7077, %v7219
        %v7221 = vpop.f32.mrf.mxu0
        %v7222 = vadd.f32 %v7079, %v7221
        %v7223 = vpop.f32.mrf.mxu0
        %v7224 = vadd.f32 %v7081, %v7223
        %7225 = vmatprep.mubr.bf16.mxu0 %v3774
        %7226 = vmatmul.mubr.bf16.gmra.mxu0 %v3773
        %v7227 = vpop.f32.mrf.mxu0
        %v7228 = vadd.f32 %v7085, %v7227
        %v7229 = vpop.f32.mrf.mxu0
        %v7230 = vadd.f32 %v7087, %v7229
        %v7231 = vpop.f32.mrf.mxu0
        %v7232 = vadd.f32 %v7089, %v7231
        %v7233 = vpop.f32.mrf.mxu0
        %v7234 = vadd.f32 %v7091, %v7233
        %7235 = vmatprep.mubr.bf16.mxu0 %v3782
        %7236 = vmatmul.mubr.bf16.gmra.mxu0 %v3781
        %v7237 = vpop.f32.mrf.mxu0
        %v7238 = vadd.f32 %v7095, %v7237
        %v7239 = vpop.f32.mrf.mxu0
        %v7240 = vadd.f32 %v7097, %v7239
        %v7241 = vpop.f32.mrf.mxu0
        %v7242 = vadd.f32 %v7099, %v7241
        %v7243 = vpop.f32.mrf.mxu0
        %v7244 = vadd.f32 %v7101, %v7243
        %7245 = vdwg.mxu0
        %7246 = vmatprep.subr.bf16.mxu0 %v6161
        %7247 = vmatpush1.bf16.msra.mxu0 %v6160
        %7248 = vmatprep.subr.bf16.mxu0 %v6152
        %7249 = vmatpush1.bf16.msra.mxu0 %v6151
        %7250 = vmatprep.subr.bf16.mxu0 %v6143
        %7251 = vmatpush1.bf16.msra.mxu0 %v6142
        %7252 = vmatprep.subr.bf16.mxu0 %v6134
        %7253 = vmatpush1.bf16.msra.mxu0 %v6133
        %7254 = vmatprep.subr.bf16.mxu0 %v6125
        %7255 = vmatpush1.bf16.msra.mxu0 %v6124
        %7256 = vmatprep.subr.bf16.mxu0 %v6116
        %7257 = vmatpush1.bf16.msra.mxu0 %v6115
        %7258 = vmatprep.subr.bf16.mxu0 %v6107
        %7259 = vmatpush1.bf16.msra.mxu0 %v6106
        %7260 = vmatprep.subr.bf16.mxu0 %v6098
        %7261 = vmatpush1.bf16.msra.mxu0 %v6097
        %7262 = vmatprep.subr.bf16.mxu0 %v6233
        %7263 = vmatpush2.bf16.msra.mxu0 %v6232
        %7264 = vmatprep.subr.bf16.mxu0 %v6224
        %7265 = vmatpush2.bf16.msra.mxu0 %v6223
        %7266 = vmatprep.subr.bf16.mxu0 %v6215
        %7267 = vmatpush2.bf16.msra.mxu0 %v6214
        %7268 = vmatprep.subr.bf16.mxu0 %v6206
        %7269 = vmatpush2.bf16.msra.mxu0 %v6205
        %7270 = vmatprep.subr.bf16.mxu0 %v6197
        %7271 = vmatpush2.bf16.msra.mxu0 %v6196
        %7272 = vmatprep.subr.bf16.mxu0 %v6188
        %7273 = vmatpush2.bf16.msra.mxu0 %v6187
        %7274 = vmatprep.subr.bf16.mxu0 %v6179
        %7275 = vmatpush2.bf16.msra.mxu0 %v6178
        %7276 = vmatprep.subr.bf16.mxu0 %v6170
        %7277 = vmatpush2.bf16.msra.mxu0 %v6169
        %7278 = vmatprep.mubr.bf16.mxu0 %v3704
        %7279 = vmatmul.mubr.bf16.gmra.mxu0 %v3703
        %v7280 = vpop.f32.mrf.mxu0
        %v7281 = vadd.f32 %v7138, %v7280
        %v7282 = vpop.f32.mrf.mxu0
        %v7283 = vadd.f32 %v7140, %v7282
        %v7284 = vpop.f32.mrf.mxu0
        %v7285 = vadd.f32 %v7142, %v7284
        %v7286 = vpop.f32.mrf.mxu0
        %v7287 = vadd.f32 %v7144, %v7286
        %7288 = vmatprep.mubr.bf16.mxu0 %v3712
        %7289 = vmatmul.mubr.bf16.gmra.mxu0 %v3711
        %v7290 = vpop.f32.mrf.mxu0
        %v7291 = vadd.f32 %v7148, %v7290
        %v7292 = vpop.f32.mrf.mxu0
        %v7293 = vadd.f32 %v7150, %v7292
        %v7294 = vpop.f32.mrf.mxu0
        %v7295 = vadd.f32 %v7152, %v7294
        %v7296 = vpop.f32.mrf.mxu0
        %v7297 = vadd.f32 %v7154, %v7296
        %7298 = vmatprep.mubr.bf16.mxu0 %v3720
        %7299 = vmatmul.mubr.bf16.gmra.mxu0 %v3719
        %v7300 = vpop.f32.mrf.mxu0
        %v7301 = vadd.f32 %v7158, %v7300
        %v7302 = vpop.f32.mrf.mxu0
        %v7303 = vadd.f32 %v7160, %v7302
        %v7304 = vpop.f32.mrf.mxu0
        %v7305 = vadd.f32 %v7162, %v7304
        %v7306 = vpop.f32.mrf.mxu0
        %v7307 = vadd.f32 %v7164, %v7306
        %7308 = vmatprep.mubr.bf16.mxu0 %v3728
        %7309 = vmatmul.mubr.bf16.gmra.mxu0 %v3727
        %v7310 = vpop.f32.mrf.mxu0
        %v7311 = vadd.f32 %v7168, %v7310
        %v7312 = vpop.f32.mrf.mxu0
        %v7313 = vadd.f32 %v7170, %v7312
        %v7314 = vpop.f32.mrf.mxu0
        %v7315 = vadd.f32 %v7172, %v7314
        %v7316 = vpop.f32.mrf.mxu0
        %v7317 = vadd.f32 %v7174, %v7316
        %7318 = vmatprep.mubr.bf16.mxu0 %v3736
        %7319 = vmatmul.mubr.bf16.gmra.mxu0 %v3735
        %v7320 = vpop.f32.mrf.mxu0
        %v7321 = vadd.f32 %v7178, %v7320
        %v7322 = vpop.f32.mrf.mxu0
        %v7323 = vadd.f32 %v7180, %v7322
        %v7324 = vpop.f32.mrf.mxu0
        %v7325 = vadd.f32 %v7182, %v7324
        %v7326 = vpop.f32.mrf.mxu0
        %v7327 = vadd.f32 %v7184, %v7326
        %7328 = vmatprep.mubr.bf16.mxu0 %v3744
        %7329 = vmatmul.mubr.bf16.gmra.mxu0 %v3743
        %v7330 = vpop.f32.mrf.mxu0
        %v7331 = vadd.f32 %v7188, %v7330
        %v7332 = vpop.f32.mrf.mxu0
        %v7333 = vadd.f32 %v7190, %v7332
        %v7334 = vpop.f32.mrf.mxu0
        %v7335 = vadd.f32 %v7192, %v7334
        %v7336 = vpop.f32.mrf.mxu0
        %v7337 = vadd.f32 %v7194, %v7336
        %7338 = vmatprep.mubr.bf16.mxu0 %v3752
        %7339 = vmatmul.mubr.bf16.gmra.mxu0 %v3751
        %v7340 = vpop.f32.mrf.mxu0
        %v7341 = vadd.f32 %v7198, %v7340
        %v7342 = vpop.f32.mrf.mxu0
        %v7343 = vadd.f32 %v7200, %v7342
        %v7344 = vpop.f32.mrf.mxu0
        %v7345 = vadd.f32 %v7202, %v7344
        %v7346 = vpop.f32.mrf.mxu0
        %v7347 = vadd.f32 %v7204, %v7346
        %7348 = vmatprep.mubr.bf16.mxu0 %v3760
        %7349 = vmatmul.mubr.bf16.gmra.mxu0 %v3759
        %v7350 = vpop.f32.mrf.mxu0
        %v7351 = vadd.f32 %v7208, %v7350
        %v7352 = vpop.f32.mrf.mxu0
        %v7353 = vadd.f32 %v7210, %v7352
        %v7354 = vpop.f32.mrf.mxu0
        %v7355 = vadd.f32 %v7212, %v7354
        %v7356 = vpop.f32.mrf.mxu0
        %v7357 = vadd.f32 %v7214, %v7356
        %7358 = vmatprep.mubr.bf16.mxu0 %v3768
        %7359 = vmatmul.mubr.bf16.gmra.mxu0 %v3767
        %v7360 = vpop.f32.mrf.mxu0
        %v7361 = vadd.f32 %v7218, %v7360
        %v7362 = vpop.f32.mrf.mxu0
        %v7363 = vadd.f32 %v7220, %v7362
        %v7364 = vpop.f32.mrf.mxu0
        %v7365 = vadd.f32 %v7222, %v7364
        %v7366 = vpop.f32.mrf.mxu0
        %v7367 = vadd.f32 %v7224, %v7366
        %7368 = vmatprep.mubr.bf16.mxu0 %v3776
        %7369 = vmatmul.mubr.bf16.gmra.mxu0 %v3775
        %v7370 = vpop.f32.mrf.mxu0
        %v7371 = vadd.f32 %v7228, %v7370
        %v7372 = vpop.f32.mrf.mxu0
        %v7373 = vadd.f32 %v7230, %v7372
        %v7374 = vpop.f32.mrf.mxu0
        %v7375 = vadd.f32 %v7232, %v7374
        %v7376 = vpop.f32.mrf.mxu0
        %v7377 = vadd.f32 %v7234, %v7376
        %7378 = vmatprep.mubr.bf16.mxu0 %v3784
        %7379 = vmatmul.mubr.bf16.gmra.mxu0 %v3783
        %v7380 = vpop.f32.mrf.mxu0
        %v7381 = vadd.f32 %v7238, %v7380
        %v7382 = vpop.f32.mrf.mxu0
        %v7383 = vadd.f32 %v7240, %v7382
        %v7384 = vpop.f32.mrf.mxu0
        %v7385 = vadd.f32 %v7242, %v7384
        %v7386 = vpop.f32.mrf.mxu0
        %v7387 = vadd.f32 %v7244, %v7386
        %7388 = vdwg.mxu0
        %7389 = vmatprep.subr.bf16.mxu0 %v5731
        %7390 = vmatpush1.bf16.msra.mxu0 %v5730
        %7391 = vmatprep.subr.bf16.mxu0 %v5722
        %7392 = vmatpush1.bf16.msra.mxu0 %v5721
        %7393 = vmatprep.subr.bf16.mxu0 %v5713
        %7394 = vmatpush1.bf16.msra.mxu0 %v5712
        %7395 = vmatprep.subr.bf16.mxu0 %v5704
        %7396 = vmatpush1.bf16.msra.mxu0 %v5703
        %7397 = vmatprep.subr.bf16.mxu0 %v5695
        %7398 = vmatpush1.bf16.msra.mxu0 %v5694
        %7399 = vmatprep.subr.bf16.mxu0 %v5686
        %7400 = vmatpush1.bf16.msra.mxu0 %v5685
        %7401 = vmatprep.subr.bf16.mxu0 %v5677
        %7402 = vmatpush1.bf16.msra.mxu0 %v5676
        %7403 = vmatprep.subr.bf16.mxu0 %v5668
        %7404 = vmatpush1.bf16.msra.mxu0 %v5667
        %7405 = vmatprep.subr.bf16.mxu0 %v5803
        %7406 = vmatpush2.bf16.msra.mxu0 %v5802
        %7407 = vmatprep.subr.bf16.mxu0 %v5794
        %7408 = vmatpush2.bf16.msra.mxu0 %v5793
        %7409 = vmatprep.subr.bf16.mxu0 %v5785
        %7410 = vmatpush2.bf16.msra.mxu0 %v5784
        %7411 = vmatprep.subr.bf16.mxu0 %v5776
        %7412 = vmatpush2.bf16.msra.mxu0 %v5775
        %7413 = vmatprep.subr.bf16.mxu0 %v5767
        %7414 = vmatpush2.bf16.msra.mxu0 %v5766
        %7415 = vmatprep.subr.bf16.mxu0 %v5758
        %7416 = vmatpush2.bf16.msra.mxu0 %v5757
        %7417 = vmatprep.subr.bf16.mxu0 %v5749
        %7418 = vmatpush2.bf16.msra.mxu0 %v5748
        %7419 = vmatprep.subr.bf16.mxu0 %v5740
        %7420 = vmatpush2.bf16.msra.mxu0 %v5739
        %7421 = vmatprep.mubr.bf16.mxu0 %v3698
        %7422 = vmatmul.mubr.bf16.gmra.mxu0 %v3697
        %v7423 = vpop.f32.mrf.mxu0
        %v7424 = vadd.f32 0.0, %v7423
        %v7425 = vpop.f32.mrf.mxu0
        %v7426 = vadd.f32 0.0, %v7425
        %v7427 = vpop.f32.mrf.mxu0
        %v7428 = vadd.f32 0.0, %v7427
        %v7429 = vpop.f32.mrf.mxu0
        %v7430 = vadd.f32 0.0, %v7429
        %7431 = vmatprep.mubr.bf16.mxu0 %v3706
        %7432 = vmatmul.mubr.bf16.gmra.mxu0 %v3705
        %v7433 = vpop.f32.mrf.mxu0
        %v7434 = vadd.f32 0.0, %v7433
        %v7435 = vpop.f32.mrf.mxu0
        %v7436 = vadd.f32 0.0, %v7435
        %v7437 = vpop.f32.mrf.mxu0
        %v7438 = vadd.f32 0.0, %v7437
        %v7439 = vpop.f32.mrf.mxu0
        %v7440 = vadd.f32 0.0, %v7439
        %7441 = vmatprep.mubr.bf16.mxu0 %v3714
        %7442 = vmatmul.mubr.bf16.gmra.mxu0 %v3713
        %v7443 = vpop.f32.mrf.mxu0
        %v7444 = vadd.f32 0.0, %v7443
        %v7445 = vpop.f32.mrf.mxu0
        %v7446 = vadd.f32 0.0, %v7445
        %v7447 = vpop.f32.mrf.mxu0
        %v7448 = vadd.f32 0.0, %v7447
        %v7449 = vpop.f32.mrf.mxu0
        %v7450 = vadd.f32 0.0, %v7449
        %7451 = vmatprep.mubr.bf16.mxu0 %v3722
        %7452 = vmatmul.mubr.bf16.gmra.mxu0 %v3721
        %v7453 = vpop.f32.mrf.mxu0
        %v7454 = vadd.f32 0.0, %v7453
        %v7455 = vpop.f32.mrf.mxu0
        %v7456 = vadd.f32 0.0, %v7455
        %v7457 = vpop.f32.mrf.mxu0
        %v7458 = vadd.f32 0.0, %v7457
        %v7459 = vpop.f32.mrf.mxu0
        %v7460 = vadd.f32 0.0, %v7459
        %7461 = vmatprep.mubr.bf16.mxu0 %v3730
        %7462 = vmatmul.mubr.bf16.gmra.mxu0 %v3729
        %v7463 = vpop.f32.mrf.mxu0
        %v7464 = vadd.f32 0.0, %v7463
        %v7465 = vpop.f32.mrf.mxu0
        %v7466 = vadd.f32 0.0, %v7465
        %v7467 = vpop.f32.mrf.mxu0
        %v7468 = vadd.f32 0.0, %v7467
        %v7469 = vpop.f32.mrf.mxu0
        %v7470 = vadd.f32 0.0, %v7469
        %7471 = vmatprep.mubr.bf16.mxu0 %v3738
        %7472 = vmatmul.mubr.bf16.gmra.mxu0 %v3737
        %v7473 = vpop.f32.mrf.mxu0
        %v7474 = vadd.f32 0.0, %v7473
        %v7475 = vpop.f32.mrf.mxu0
        %v7476 = vadd.f32 0.0, %v7475
        %v7477 = vpop.f32.mrf.mxu0
        %v7478 = vadd.f32 0.0, %v7477
        %v7479 = vpop.f32.mrf.mxu0
        %v7480 = vadd.f32 0.0, %v7479
        %7481 = vmatprep.mubr.bf16.mxu0 %v3746
        %7482 = vmatmul.mubr.bf16.gmra.mxu0 %v3745
        %v7483 = vpop.f32.mrf.mxu0
        %v7484 = vadd.f32 0.0, %v7483
        %v7485 = vpop.f32.mrf.mxu0
        %v7486 = vadd.f32 0.0, %v7485
        %v7487 = vpop.f32.mrf.mxu0
        %v7488 = vadd.f32 0.0, %v7487
        %v7489 = vpop.f32.mrf.mxu0
        %v7490 = vadd.f32 0.0, %v7489
        %7491 = vmatprep.mubr.bf16.mxu0 %v3754
        %7492 = vmatmul.mubr.bf16.gmra.mxu0 %v3753
        %v7493 = vpop.f32.mrf.mxu0
        %v7494 = vadd.f32 0.0, %v7493
        %v7495 = vpop.f32.mrf.mxu0
        %v7496 = vadd.f32 0.0, %v7495
        %v7497 = vpop.f32.mrf.mxu0
        %v7498 = vadd.f32 0.0, %v7497
        %v7499 = vpop.f32.mrf.mxu0
        %v7500 = vadd.f32 0.0, %v7499
        %7501 = vmatprep.mubr.bf16.mxu0 %v3762
        %7502 = vmatmul.mubr.bf16.gmra.mxu0 %v3761
        %v7503 = vpop.f32.mrf.mxu0
        %v7504 = vadd.f32 0.0, %v7503
        %v7505 = vpop.f32.mrf.mxu0
        %v7506 = vadd.f32 0.0, %v7505
        %v7507 = vpop.f32.mrf.mxu0
        %v7508 = vadd.f32 0.0, %v7507
        %v7509 = vpop.f32.mrf.mxu0
        %v7510 = vadd.f32 0.0, %v7509
        %7511 = vmatprep.mubr.bf16.mxu0 %v3770
        %7512 = vmatmul.mubr.bf16.gmra.mxu0 %v3769
        %v7513 = vpop.f32.mrf.mxu0
        %v7514 = vadd.f32 0.0, %v7513
        %v7515 = vpop.f32.mrf.mxu0
        %v7516 = vadd.f32 0.0, %v7515
        %v7517 = vpop.f32.mrf.mxu0
        %v7518 = vadd.f32 0.0, %v7517
        %v7519 = vpop.f32.mrf.mxu0
        %v7520 = vadd.f32 0.0, %v7519
        %7521 = vmatprep.mubr.bf16.mxu0 %v3778
        %7522 = vmatmul.mubr.bf16.gmra.mxu0 %v3777
        %v7523 = vpop.f32.mrf.mxu0
        %v7524 = vadd.f32 0.0, %v7523
        %v7525 = vpop.f32.mrf.mxu0
        %v7526 = vadd.f32 0.0, %v7525
        %v7527 = vpop.f32.mrf.mxu0
        %v7528 = vadd.f32 0.0, %v7527
        %v7529 = vpop.f32.mrf.mxu0
        %v7530 = vadd.f32 0.0, %v7529
        %7531 = vdwg.mxu0
        %7532 = vmatprep.subr.bf16.mxu0 %v5875
        %7533 = vmatpush1.bf16.msra.mxu0 %v5874
        %7534 = vmatprep.subr.bf16.mxu0 %v5866
        %7535 = vmatpush1.bf16.msra.mxu0 %v5865
        %7536 = vmatprep.subr.bf16.mxu0 %v5857
        %7537 = vmatpush1.bf16.msra.mxu0 %v5856
        %7538 = vmatprep.subr.bf16.mxu0 %v5848
        %7539 = vmatpush1.bf16.msra.mxu0 %v5847
        %7540 = vmatprep.subr.bf16.mxu0 %v5839
        %7541 = vmatpush1.bf16.msra.mxu0 %v5838
        %7542 = vmatprep.subr.bf16.mxu0 %v5830
        %7543 = vmatpush1.bf16.msra.mxu0 %v5829
        %7544 = vmatprep.subr.bf16.mxu0 %v5821
        %7545 = vmatpush1.bf16.msra.mxu0 %v5820
        %7546 = vmatprep.subr.bf16.mxu0 %v5812
        %7547 = vmatpush1.bf16.msra.mxu0 %v5811
        %7548 = vmatprep.subr.bf16.mxu0 %v5947
        %7549 = vmatpush2.bf16.msra.mxu0 %v5946
        %7550 = vmatprep.subr.bf16.mxu0 %v5938
        %7551 = vmatpush2.bf16.msra.mxu0 %v5937
        %7552 = vmatprep.subr.bf16.mxu0 %v5929
        %7553 = vmatpush2.bf16.msra.mxu0 %v5928
        %7554 = vmatprep.subr.bf16.mxu0 %v5920
        %7555 = vmatpush2.bf16.msra.mxu0 %v5919
        %7556 = vmatprep.subr.bf16.mxu0 %v5911
        %7557 = vmatpush2.bf16.msra.mxu0 %v5910
        %7558 = vmatprep.subr.bf16.mxu0 %v5902
        %7559 = vmatpush2.bf16.msra.mxu0 %v5901
        %7560 = vmatprep.subr.bf16.mxu0 %v5893
        %7561 = vmatpush2.bf16.msra.mxu0 %v5892
        %7562 = vmatprep.subr.bf16.mxu0 %v5884
        %7563 = vmatpush2.bf16.msra.mxu0 %v5883
        %7564 = vmatprep.mubr.bf16.mxu0 %v3700
        %7565 = vmatmul.mubr.bf16.gmra.mxu0 %v3699
        %v7566 = vpop.f32.mrf.mxu0
        %v7567 = vadd.f32 %v7424, %v7566
        %v7568 = vpop.f32.mrf.mxu0
        %v7569 = vadd.f32 %v7426, %v7568
        %v7570 = vpop.f32.mrf.mxu0
        %v7571 = vadd.f32 %v7428, %v7570
        %v7572 = vpop.f32.mrf.mxu0
        %v7573 = vadd.f32 %v7430, %v7572
        %7574 = vmatprep.mubr.bf16.mxu0 %v3708
        %7575 = vmatmul.mubr.bf16.gmra.mxu0 %v3707
        %v7576 = vpop.f32.mrf.mxu0
        %v7577 = vadd.f32 %v7434, %v7576
        %v7578 = vpop.f32.mrf.mxu0
        %v7579 = vadd.f32 %v7436, %v7578
        %v7580 = vpop.f32.mrf.mxu0
        %v7581 = vadd.f32 %v7438, %v7580
        %v7582 = vpop.f32.mrf.mxu0
        %v7583 = vadd.f32 %v7440, %v7582
        %7584 = vmatprep.mubr.bf16.mxu0 %v3716
        %7585 = vmatmul.mubr.bf16.gmra.mxu0 %v3715
        %v7586 = vpop.f32.mrf.mxu0
        %v7587 = vadd.f32 %v7444, %v7586
        %v7588 = vpop.f32.mrf.mxu0
        %v7589 = vadd.f32 %v7446, %v7588
        %v7590 = vpop.f32.mrf.mxu0
        %v7591 = vadd.f32 %v7448, %v7590
        %v7592 = vpop.f32.mrf.mxu0
        %v7593 = vadd.f32 %v7450, %v7592
        %7594 = vmatprep.mubr.bf16.mxu0 %v3724
        %7595 = vmatmul.mubr.bf16.gmra.mxu0 %v3723
        %v7596 = vpop.f32.mrf.mxu0
        %v7597 = vadd.f32 %v7454, %v7596
        %v7598 = vpop.f32.mrf.mxu0
        %v7599 = vadd.f32 %v7456, %v7598
        %v7600 = vpop.f32.mrf.mxu0
        %v7601 = vadd.f32 %v7458, %v7600
        %v7602 = vpop.f32.mrf.mxu0
        %v7603 = vadd.f32 %v7460, %v7602
        %7604 = vmatprep.mubr.bf16.mxu0 %v3732
        %7605 = vmatmul.mubr.bf16.gmra.mxu0 %v3731
        %v7606 = vpop.f32.mrf.mxu0
        %v7607 = vadd.f32 %v7464, %v7606
        %v7608 = vpop.f32.mrf.mxu0
        %v7609 = vadd.f32 %v7466, %v7608
        %v7610 = vpop.f32.mrf.mxu0
        %v7611 = vadd.f32 %v7468, %v7610
        %v7612 = vpop.f32.mrf.mxu0
        %v7613 = vadd.f32 %v7470, %v7612
        %7614 = vmatprep.mubr.bf16.mxu0 %v3740
        %7615 = vmatmul.mubr.bf16.gmra.mxu0 %v3739
        %v7616 = vpop.f32.mrf.mxu0
        %v7617 = vadd.f32 %v7474, %v7616
        %v7618 = vpop.f32.mrf.mxu0
        %v7619 = vadd.f32 %v7476, %v7618
        %v7620 = vpop.f32.mrf.mxu0
        %v7621 = vadd.f32 %v7478, %v7620
        %v7622 = vpop.f32.mrf.mxu0
        %v7623 = vadd.f32 %v7480, %v7622
        %7624 = vmatprep.mubr.bf16.mxu0 %v3748
        %7625 = vmatmul.mubr.bf16.gmra.mxu0 %v3747
        %v7626 = vpop.f32.mrf.mxu0
        %v7627 = vadd.f32 %v7484, %v7626
        %v7628 = vpop.f32.mrf.mxu0
        %v7629 = vadd.f32 %v7486, %v7628
        %v7630 = vpop.f32.mrf.mxu0
        %v7631 = vadd.f32 %v7488, %v7630
        %v7632 = vpop.f32.mrf.mxu0
        %v7633 = vadd.f32 %v7490, %v7632
        %7634 = vmatprep.mubr.bf16.mxu0 %v3756
        %7635 = vmatmul.mubr.bf16.gmra.mxu0 %v3755
        %v7636 = vpop.f32.mrf.mxu0
        %v7637 = vadd.f32 %v7494, %v7636
        %v7638 = vpop.f32.mrf.mxu0
        %v7639 = vadd.f32 %v7496, %v7638
        %v7640 = vpop.f32.mrf.mxu0
        %v7641 = vadd.f32 %v7498, %v7640
        %v7642 = vpop.f32.mrf.mxu0
        %v7643 = vadd.f32 %v7500, %v7642
        %7644 = vmatprep.mubr.bf16.mxu0 %v3764
        %7645 = vmatmul.mubr.bf16.gmra.mxu0 %v3763
        %v7646 = vpop.f32.mrf.mxu0
        %v7647 = vadd.f32 %v7504, %v7646
        %v7648 = vpop.f32.mrf.mxu0
        %v7649 = vadd.f32 %v7506, %v7648
        %v7650 = vpop.f32.mrf.mxu0
        %v7651 = vadd.f32 %v7508, %v7650
        %v7652 = vpop.f32.mrf.mxu0
        %v7653 = vadd.f32 %v7510, %v7652
        %7654 = vmatprep.mubr.bf16.mxu0 %v3772
        %7655 = vmatmul.mubr.bf16.gmra.mxu0 %v3771
        %v7656 = vpop.f32.mrf.mxu0
        %v7657 = vadd.f32 %v7514, %v7656
        %v7658 = vpop.f32.mrf.mxu0
        %v7659 = vadd.f32 %v7516, %v7658
        %v7660 = vpop.f32.mrf.mxu0
        %v7661 = vadd.f32 %v7518, %v7660
        %v7662 = vpop.f32.mrf.mxu0
        %v7663 = vadd.f32 %v7520, %v7662
        %7664 = vmatprep.mubr.bf16.mxu0 %v3780
        %7665 = vmatmul.mubr.bf16.gmra.mxu0 %v3779
        %v7666 = vpop.f32.mrf.mxu0
        %v7667 = vadd.f32 %v7524, %v7666
        %v7668 = vpop.f32.mrf.mxu0
        %v7669 = vadd.f32 %v7526, %v7668
        %v7670 = vpop.f32.mrf.mxu0
        %v7671 = vadd.f32 %v7528, %v7670
        %v7672 = vpop.f32.mrf.mxu0
        %v7673 = vadd.f32 %v7530, %v7672
        %7674 = vdwg.mxu0
        %7675 = vmatprep.subr.bf16.mxu0 %v6019
        %7676 = vmatpush1.bf16.msra.mxu0 %v6018
        %7677 = vmatprep.subr.bf16.mxu0 %v6010
        %7678 = vmatpush1.bf16.msra.mxu0 %v6009
        %7679 = vmatprep.subr.bf16.mxu0 %v6001
        %7680 = vmatpush1.bf16.msra.mxu0 %v6000
        %7681 = vmatprep.subr.bf16.mxu0 %v5992
        %7682 = vmatpush1.bf16.msra.mxu0 %v5991
        %7683 = vmatprep.subr.bf16.mxu0 %v5983
        %7684 = vmatpush1.bf16.msra.mxu0 %v5982
        %7685 = vmatprep.subr.bf16.mxu0 %v5974
        %7686 = vmatpush1.bf16.msra.mxu0 %v5973
        %7687 = vmatprep.subr.bf16.mxu0 %v5965
        %7688 = vmatpush1.bf16.msra.mxu0 %v5964
        %7689 = vmatprep.subr.bf16.mxu0 %v5956
        %7690 = vmatpush1.bf16.msra.mxu0 %v5955
        %7691 = vmatprep.subr.bf16.mxu0 %v6091
        %7692 = vmatpush2.bf16.msra.mxu0 %v6090
        %7693 = vmatprep.subr.bf16.mxu0 %v6082
        %7694 = vmatpush2.bf16.msra.mxu0 %v6081
        %7695 = vmatprep.subr.bf16.mxu0 %v6073
        %7696 = vmatpush2.bf16.msra.mxu0 %v6072
        %7697 = vmatprep.subr.bf16.mxu0 %v6064
        %7698 = vmatpush2.bf16.msra.mxu0 %v6063
        %7699 = vmatprep.subr.bf16.mxu0 %v6055
        %7700 = vmatpush2.bf16.msra.mxu0 %v6054
        %7701 = vmatprep.subr.bf16.mxu0 %v6046
        %7702 = vmatpush2.bf16.msra.mxu0 %v6045
        %7703 = vmatprep.subr.bf16.mxu0 %v6037
        %7704 = vmatpush2.bf16.msra.mxu0 %v6036
        %7705 = vmatprep.subr.bf16.mxu0 %v6028
        %7706 = vmatpush2.bf16.msra.mxu0 %v6027
        %7707 = vmatprep.mubr.bf16.mxu0 %v3702
        %7708 = vmatmul.mubr.bf16.gmra.mxu0 %v3701
        %v7709 = vpop.f32.mrf.mxu0
        %v7710 = vadd.f32 %v7567, %v7709
        %v7711 = vpop.f32.mrf.mxu0
        %v7712 = vadd.f32 %v7569, %v7711
        %v7713 = vpop.f32.mrf.mxu0
        %v7714 = vadd.f32 %v7571, %v7713
        %v7715 = vpop.f32.mrf.mxu0
        %v7716 = vadd.f32 %v7573, %v7715
        %7717 = vmatprep.mubr.bf16.mxu0 %v3710
        %7718 = vmatmul.mubr.bf16.gmra.mxu0 %v3709
        %v7719 = vpop.f32.mrf.mxu0
        %v7720 = vadd.f32 %v7577, %v7719
        %v7721 = vpop.f32.mrf.mxu0
        %v7722 = vadd.f32 %v7579, %v7721
        %v7723 = vpop.f32.mrf.mxu0
        %v7724 = vadd.f32 %v7581, %v7723
        %v7725 = vpop.f32.mrf.mxu0
        %v7726 = vadd.f32 %v7583, %v7725
        %7727 = vmatprep.mubr.bf16.mxu0 %v3718
        %7728 = vmatmul.mubr.bf16.gmra.mxu0 %v3717
        %v7729 = vpop.f32.mrf.mxu0
        %v7730 = vadd.f32 %v7587, %v7729
        %v7731 = vpop.f32.mrf.mxu0
        %v7732 = vadd.f32 %v7589, %v7731
        %v7733 = vpop.f32.mrf.mxu0
        %v7734 = vadd.f32 %v7591, %v7733
        %v7735 = vpop.f32.mrf.mxu0
        %v7736 = vadd.f32 %v7593, %v7735
        %7737 = vmatprep.mubr.bf16.mxu0 %v3726
        %7738 = vmatmul.mubr.bf16.gmra.mxu0 %v3725
        %v7739 = vpop.f32.mrf.mxu0
        %v7740 = vadd.f32 %v7597, %v7739
        %v7741 = vpop.f32.mrf.mxu0
        %v7742 = vadd.f32 %v7599, %v7741
        %v7743 = vpop.f32.mrf.mxu0
        %v7744 = vadd.f32 %v7601, %v7743
        %v7745 = vpop.f32.mrf.mxu0
        %v7746 = vadd.f32 %v7603, %v7745
        %7747 = vmatprep.mubr.bf16.mxu0 %v3734
        %7748 = vmatmul.mubr.bf16.gmra.mxu0 %v3733
        %v7749 = vpop.f32.mrf.mxu0
        %v7750 = vadd.f32 %v7607, %v7749
        %v7751 = vpop.f32.mrf.mxu0
        %v7752 = vadd.f32 %v7609, %v7751
        %v7753 = vpop.f32.mrf.mxu0
        %v7754 = vadd.f32 %v7611, %v7753
        %v7755 = vpop.f32.mrf.mxu0
        %v7756 = vadd.f32 %v7613, %v7755
        %7757 = vmatprep.mubr.bf16.mxu0 %v3742
        %7758 = vmatmul.mubr.bf16.gmra.mxu0 %v3741
        %v7759 = vpop.f32.mrf.mxu0
        %v7760 = vadd.f32 %v7617, %v7759
        %v7761 = vpop.f32.mrf.mxu0
        %v7762 = vadd.f32 %v7619, %v7761
        %v7763 = vpop.f32.mrf.mxu0
        %v7764 = vadd.f32 %v7621, %v7763
        %v7765 = vpop.f32.mrf.mxu0
        %v7766 = vadd.f32 %v7623, %v7765
        %7767 = vmatprep.mubr.bf16.mxu0 %v3750
        %7768 = vmatmul.mubr.bf16.gmra.mxu0 %v3749
        %v7769 = vpop.f32.mrf.mxu0
        %v7770 = vadd.f32 %v7627, %v7769
        %v7771 = vpop.f32.mrf.mxu0
        %v7772 = vadd.f32 %v7629, %v7771
        %v7773 = vpop.f32.mrf.mxu0
        %v7774 = vadd.f32 %v7631, %v7773
        %v7775 = vpop.f32.mrf.mxu0
        %v7776 = vadd.f32 %v7633, %v7775
        %7777 = vmatprep.mubr.bf16.mxu0 %v3758
        %7778 = vmatmul.mubr.bf16.gmra.mxu0 %v3757
        %v7779 = vpop.f32.mrf.mxu0
        %v7780 = vadd.f32 %v7637, %v7779
        %v7781 = vpop.f32.mrf.mxu0
        %v7782 = vadd.f32 %v7639, %v7781
        %v7783 = vpop.f32.mrf.mxu0
        %v7784 = vadd.f32 %v7641, %v7783
        %v7785 = vpop.f32.mrf.mxu0
        %v7786 = vadd.f32 %v7643, %v7785
        %7787 = vmatprep.mubr.bf16.mxu0 %v3766
        %7788 = vmatmul.mubr.bf16.gmra.mxu0 %v3765
        %v7789 = vpop.f32.mrf.mxu0
        %v7790 = vadd.f32 %v7647, %v7789
        %v7791 = vpop.f32.mrf.mxu0
        %v7792 = vadd.f32 %v7649, %v7791
        %v7793 = vpop.f32.mrf.mxu0
        %v7794 = vadd.f32 %v7651, %v7793
        %v7795 = vpop.f32.mrf.mxu0
        %v7796 = vadd.f32 %v7653, %v7795
        %7797 = vmatprep.mubr.bf16.mxu0 %v3774
        %7798 = vmatmul.mubr.bf16.gmra.mxu0 %v3773
        %v7799 = vpop.f32.mrf.mxu0
        %v7800 = vadd.f32 %v7657, %v7799
        %v7801 = vpop.f32.mrf.mxu0
        %v7802 = vadd.f32 %v7659, %v7801
        %v7803 = vpop.f32.mrf.mxu0
        %v7804 = vadd.f32 %v7661, %v7803
        %v7805 = vpop.f32.mrf.mxu0
        %v7806 = vadd.f32 %v7663, %v7805
        %7807 = vmatprep.mubr.bf16.mxu0 %v3782
        %7808 = vmatmul.mubr.bf16.gmra.mxu0 %v3781
        %v7809 = vpop.f32.mrf.mxu0
        %v7810 = vadd.f32 %v7667, %v7809
        %v7811 = vpop.f32.mrf.mxu0
        %v7812 = vadd.f32 %v7669, %v7811
        %v7813 = vpop.f32.mrf.mxu0
        %v7814 = vadd.f32 %v7671, %v7813
        %v7815 = vpop.f32.mrf.mxu0
        %v7816 = vadd.f32 %v7673, %v7815
        %7817 = vdwg.mxu0
        %7818 = vmatprep.subr.bf16.mxu0 %v6163
        %7819 = vmatpush1.bf16.msra.mxu0 %v6162
        %7820 = vmatprep.subr.bf16.mxu0 %v6154
        %7821 = vmatpush1.bf16.msra.mxu0 %v6153
        %7822 = vmatprep.subr.bf16.mxu0 %v6145
        %7823 = vmatpush1.bf16.msra.mxu0 %v6144
        %7824 = vmatprep.subr.bf16.mxu0 %v6136
        %7825 = vmatpush1.bf16.msra.mxu0 %v6135
        %7826 = vmatprep.subr.bf16.mxu0 %v6127
        %7827 = vmatpush1.bf16.msra.mxu0 %v6126
        %7828 = vmatprep.subr.bf16.mxu0 %v6118
        %7829 = vmatpush1.bf16.msra.mxu0 %v6117
        %7830 = vmatprep.subr.bf16.mxu0 %v6109
        %7831 = vmatpush1.bf16.msra.mxu0 %v6108
        %7832 = vmatprep.subr.bf16.mxu0 %v6100
        %7833 = vmatpush1.bf16.msra.mxu0 %v6099
        %7834 = vmatprep.subr.bf16.mxu0 %v6235
        %7835 = vmatpush2.bf16.msra.mxu0 %v6234
        %7836 = vmatprep.subr.bf16.mxu0 %v6226
        %7837 = vmatpush2.bf16.msra.mxu0 %v6225
        %7838 = vmatprep.subr.bf16.mxu0 %v6217
        %7839 = vmatpush2.bf16.msra.mxu0 %v6216
        %7840 = vmatprep.subr.bf16.mxu0 %v6208
        %7841 = vmatpush2.bf16.msra.mxu0 %v6207
        %7842 = vmatprep.subr.bf16.mxu0 %v6199
        %7843 = vmatpush2.bf16.msra.mxu0 %v6198
        %7844 = vmatprep.subr.bf16.mxu0 %v6190
        %7845 = vmatpush2.bf16.msra.mxu0 %v6189
        %7846 = vmatprep.subr.bf16.mxu0 %v6181
        %7847 = vmatpush2.bf16.msra.mxu0 %v6180
        %7848 = vmatprep.subr.bf16.mxu0 %v6172
        %7849 = vmatpush2.bf16.msra.mxu0 %v6171
        %7850 = vmatprep.mubr.bf16.mxu0 %v3704
        %7851 = vmatmul.mubr.bf16.gmra.mxu0 %v3703
        %v7852 = vpop.f32.mrf.mxu0
        %v7853 = vadd.f32 %v7710, %v7852
        %v7854 = vpop.f32.mrf.mxu0
        %v7855 = vadd.f32 %v7712, %v7854
        %v7856 = vpop.f32.mrf.mxu0
        %v7857 = vadd.f32 %v7714, %v7856
        %v7858 = vpop.f32.mrf.mxu0
        %v7859 = vadd.f32 %v7716, %v7858
        %7860 = vmatprep.mubr.bf16.mxu0 %v3712
        %7861 = vmatmul.mubr.bf16.gmra.mxu0 %v3711
        %v7862 = vpop.f32.mrf.mxu0
        %v7863 = vadd.f32 %v7720, %v7862
        %v7864 = vpop.f32.mrf.mxu0
        %v7865 = vadd.f32 %v7722, %v7864
        %v7866 = vpop.f32.mrf.mxu0
        %v7867 = vadd.f32 %v7724, %v7866
        %v7868 = vpop.f32.mrf.mxu0
        %v7869 = vadd.f32 %v7726, %v7868
        %7870 = vmatprep.mubr.bf16.mxu0 %v3720
        %7871 = vmatmul.mubr.bf16.gmra.mxu0 %v3719
        %v7872 = vpop.f32.mrf.mxu0
        %v7873 = vadd.f32 %v7730, %v7872
        %v7874 = vpop.f32.mrf.mxu0
        %v7875 = vadd.f32 %v7732, %v7874
        %v7876 = vpop.f32.mrf.mxu0
        %v7877 = vadd.f32 %v7734, %v7876
        %v7878 = vpop.f32.mrf.mxu0
        %v7879 = vadd.f32 %v7736, %v7878
        %7880 = vmatprep.mubr.bf16.mxu0 %v3728
        %7881 = vmatmul.mubr.bf16.gmra.mxu0 %v3727
        %v7882 = vpop.f32.mrf.mxu0
        %v7883 = vadd.f32 %v7740, %v7882
        %v7884 = vpop.f32.mrf.mxu0
        %v7885 = vadd.f32 %v7742, %v7884
        %v7886 = vpop.f32.mrf.mxu0
        %v7887 = vadd.f32 %v7744, %v7886
        %v7888 = vpop.f32.mrf.mxu0
        %v7889 = vadd.f32 %v7746, %v7888
        %7890 = vmatprep.mubr.bf16.mxu0 %v3736
        %7891 = vmatmul.mubr.bf16.gmra.mxu0 %v3735
        %v7892 = vpop.f32.mrf.mxu0
        %v7893 = vadd.f32 %v7750, %v7892
        %v7894 = vpop.f32.mrf.mxu0
        %v7895 = vadd.f32 %v7752, %v7894
        %v7896 = vpop.f32.mrf.mxu0
        %v7897 = vadd.f32 %v7754, %v7896
        %v7898 = vpop.f32.mrf.mxu0
        %v7899 = vadd.f32 %v7756, %v7898
        %7900 = vmatprep.mubr.bf16.mxu0 %v3744
        %7901 = vmatmul.mubr.bf16.gmra.mxu0 %v3743
        %v7902 = vpop.f32.mrf.mxu0
        %v7903 = vadd.f32 %v7760, %v7902
        %v7904 = vpop.f32.mrf.mxu0
        %v7905 = vadd.f32 %v7762, %v7904
        %v7906 = vpop.f32.mrf.mxu0
        %v7907 = vadd.f32 %v7764, %v7906
        %v7908 = vpop.f32.mrf.mxu0
        %v7909 = vadd.f32 %v7766, %v7908
        %7910 = vmatprep.mubr.bf16.mxu0 %v3752
        %7911 = vmatmul.mubr.bf16.gmra.mxu0 %v3751
        %v7912 = vpop.f32.mrf.mxu0
        %v7913 = vadd.f32 %v7770, %v7912
        %v7914 = vpop.f32.mrf.mxu0
        %v7915 = vadd.f32 %v7772, %v7914
        %v7916 = vpop.f32.mrf.mxu0
        %v7917 = vadd.f32 %v7774, %v7916
        %v7918 = vpop.f32.mrf.mxu0
        %v7919 = vadd.f32 %v7776, %v7918
        %7920 = vmatprep.mubr.bf16.mxu0 %v3760
        %7921 = vmatmul.mubr.bf16.gmra.mxu0 %v3759
        %v7922 = vpop.f32.mrf.mxu0
        %v7923 = vadd.f32 %v7780, %v7922
        %v7924 = vpop.f32.mrf.mxu0
        %v7925 = vadd.f32 %v7782, %v7924
        %v7926 = vpop.f32.mrf.mxu0
        %v7927 = vadd.f32 %v7784, %v7926
        %v7928 = vpop.f32.mrf.mxu0
        %v7929 = vadd.f32 %v7786, %v7928
        %7930 = vmatprep.mubr.bf16.mxu0 %v3768
        %7931 = vmatmul.mubr.bf16.gmra.mxu0 %v3767
        %v7932 = vpop.f32.mrf.mxu0
        %v7933 = vadd.f32 %v7790, %v7932
        %v7934 = vpop.f32.mrf.mxu0
        %v7935 = vadd.f32 %v7792, %v7934
        %v7936 = vpop.f32.mrf.mxu0
        %v7937 = vadd.f32 %v7794, %v7936
        %v7938 = vpop.f32.mrf.mxu0
        %v7939 = vadd.f32 %v7796, %v7938
        %7940 = vmatprep.mubr.bf16.mxu0 %v3776
        %7941 = vmatmul.mubr.bf16.gmra.mxu0 %v3775
        %v7942 = vpop.f32.mrf.mxu0
        %v7943 = vadd.f32 %v7800, %v7942
        %v7944 = vpop.f32.mrf.mxu0
        %v7945 = vadd.f32 %v7802, %v7944
        %v7946 = vpop.f32.mrf.mxu0
        %v7947 = vadd.f32 %v7804, %v7946
        %v7948 = vpop.f32.mrf.mxu0
        %v7949 = vadd.f32 %v7806, %v7948
        %7950 = vmatprep.mubr.bf16.mxu0 %v3784
        %7951 = vmatmul.mubr.bf16.gmra.mxu0 %v3783
        %v7952 = vpop.f32.mrf.mxu0
        %v7953 = vadd.f32 %v7810, %v7952
        %v7954 = vpop.f32.mrf.mxu0
        %v7955 = vadd.f32 %v7812, %v7954
        %v7956 = vpop.f32.mrf.mxu0
        %v7957 = vadd.f32 %v7814, %v7956
        %v7958 = vpop.f32.mrf.mxu0
        %v7959 = vadd.f32 %v7816, %v7958
        %7960 = vdwg.mxu0
        %7961 = vmatprep.subr.bf16.mxu0 %v5733
        %7962 = vmatpush1.bf16.msra.mxu0 %v5732
        %7963 = vmatprep.subr.bf16.mxu0 %v5724
        %7964 = vmatpush1.bf16.msra.mxu0 %v5723
        %7965 = vmatprep.subr.bf16.mxu0 %v5715
        %7966 = vmatpush1.bf16.msra.mxu0 %v5714
        %7967 = vmatprep.subr.bf16.mxu0 %v5706
        %7968 = vmatpush1.bf16.msra.mxu0 %v5705
        %7969 = vmatprep.subr.bf16.mxu0 %v5697
        %7970 = vmatpush1.bf16.msra.mxu0 %v5696
        %7971 = vmatprep.subr.bf16.mxu0 %v5688
        %7972 = vmatpush1.bf16.msra.mxu0 %v5687
        %7973 = vmatprep.subr.bf16.mxu0 %v5679
        %7974 = vmatpush1.bf16.msra.mxu0 %v5678
        %7975 = vmatprep.subr.bf16.mxu0 %v5670
        %7976 = vmatpush1.bf16.msra.mxu0 %v5669
        %7977 = vmatprep.subr.bf16.mxu0 %v5805
        %7978 = vmatpush2.bf16.msra.mxu0 %v5804
        %7979 = vmatprep.subr.bf16.mxu0 %v5796
        %7980 = vmatpush2.bf16.msra.mxu0 %v5795
        %7981 = vmatprep.subr.bf16.mxu0 %v5787
        %7982 = vmatpush2.bf16.msra.mxu0 %v5786
        %7983 = vmatprep.subr.bf16.mxu0 %v5778
        %7984 = vmatpush2.bf16.msra.mxu0 %v5777
        %7985 = vmatprep.subr.bf16.mxu0 %v5769
        %7986 = vmatpush2.bf16.msra.mxu0 %v5768
        %7987 = vmatprep.subr.bf16.mxu0 %v5760
        %7988 = vmatpush2.bf16.msra.mxu0 %v5759
        %7989 = vmatprep.subr.bf16.mxu0 %v5751
        %7990 = vmatpush2.bf16.msra.mxu0 %v5750
        %7991 = vmatprep.subr.bf16.mxu0 %v5742
        %7992 = vmatpush2.bf16.msra.mxu0 %v5741
        %7993 = vmatprep.mubr.bf16.mxu0 %v3698
        %7994 = vmatmul.mubr.bf16.gmra.mxu0 %v3697
        %v7995 = vpop.f32.mrf.mxu0
        %v7996 = vadd.f32 0.0, %v7995
        %v7997 = vpop.f32.mrf.mxu0
        %v7998 = vadd.f32 0.0, %v7997
        %v7999 = vpop.f32.mrf.mxu0
        %v8000 = vadd.f32 0.0, %v7999
        %v8001 = vpop.f32.mrf.mxu0
        %v8002 = vadd.f32 0.0, %v8001
        %8003 = vmatprep.mubr.bf16.mxu0 %v3706
        %8004 = vmatmul.mubr.bf16.gmra.mxu0 %v3705
        %v8005 = vpop.f32.mrf.mxu0
        %v8006 = vadd.f32 0.0, %v8005
        %v8007 = vpop.f32.mrf.mxu0
        %v8008 = vadd.f32 0.0, %v8007
        %v8009 = vpop.f32.mrf.mxu0
        %v8010 = vadd.f32 0.0, %v8009
        %v8011 = vpop.f32.mrf.mxu0
        %v8012 = vadd.f32 0.0, %v8011
        %8013 = vmatprep.mubr.bf16.mxu0 %v3714
        %8014 = vmatmul.mubr.bf16.gmra.mxu0 %v3713
        %v8015 = vpop.f32.mrf.mxu0
        %v8016 = vadd.f32 0.0, %v8015
        %v8017 = vpop.f32.mrf.mxu0
        %v8018 = vadd.f32 0.0, %v8017
        %v8019 = vpop.f32.mrf.mxu0
        %v8020 = vadd.f32 0.0, %v8019
        %v8021 = vpop.f32.mrf.mxu0
        %v8022 = vadd.f32 0.0, %v8021
        %8023 = vmatprep.mubr.bf16.mxu0 %v3722
        %8024 = vmatmul.mubr.bf16.gmra.mxu0 %v3721
        %v8025 = vpop.f32.mrf.mxu0
        %v8026 = vadd.f32 0.0, %v8025
        %v8027 = vpop.f32.mrf.mxu0
        %v8028 = vadd.f32 0.0, %v8027
        %v8029 = vpop.f32.mrf.mxu0
        %v8030 = vadd.f32 0.0, %v8029
        %v8031 = vpop.f32.mrf.mxu0
        %v8032 = vadd.f32 0.0, %v8031
        %8033 = vmatprep.mubr.bf16.mxu0 %v3730
        %8034 = vmatmul.mubr.bf16.gmra.mxu0 %v3729
        %v8035 = vpop.f32.mrf.mxu0
        %v8036 = vadd.f32 0.0, %v8035
        %v8037 = vpop.f32.mrf.mxu0
        %v8038 = vadd.f32 0.0, %v8037
        %v8039 = vpop.f32.mrf.mxu0
        %v8040 = vadd.f32 0.0, %v8039
        %v8041 = vpop.f32.mrf.mxu0
        %v8042 = vadd.f32 0.0, %v8041
        %8043 = vmatprep.mubr.bf16.mxu0 %v3738
        %8044 = vmatmul.mubr.bf16.gmra.mxu0 %v3737
        %v8045 = vpop.f32.mrf.mxu0
        %v8046 = vadd.f32 0.0, %v8045
        %v8047 = vpop.f32.mrf.mxu0
        %v8048 = vadd.f32 0.0, %v8047
        %v8049 = vpop.f32.mrf.mxu0
        %v8050 = vadd.f32 0.0, %v8049
        %v8051 = vpop.f32.mrf.mxu0
        %v8052 = vadd.f32 0.0, %v8051
        %8053 = vmatprep.mubr.bf16.mxu0 %v3746
        %8054 = vmatmul.mubr.bf16.gmra.mxu0 %v3745
        %v8055 = vpop.f32.mrf.mxu0
        %v8056 = vadd.f32 0.0, %v8055
        %v8057 = vpop.f32.mrf.mxu0
        %v8058 = vadd.f32 0.0, %v8057
        %v8059 = vpop.f32.mrf.mxu0
        %v8060 = vadd.f32 0.0, %v8059
        %v8061 = vpop.f32.mrf.mxu0
        %v8062 = vadd.f32 0.0, %v8061
        %8063 = vmatprep.mubr.bf16.mxu0 %v3754
        %8064 = vmatmul.mubr.bf16.gmra.mxu0 %v3753
        %v8065 = vpop.f32.mrf.mxu0
        %v8066 = vadd.f32 0.0, %v8065
        %v8067 = vpop.f32.mrf.mxu0
        %v8068 = vadd.f32 0.0, %v8067
        %v8069 = vpop.f32.mrf.mxu0
        %v8070 = vadd.f32 0.0, %v8069
        %v8071 = vpop.f32.mrf.mxu0
        %v8072 = vadd.f32 0.0, %v8071
        %8073 = vmatprep.mubr.bf16.mxu0 %v3762
        %8074 = vmatmul.mubr.bf16.gmra.mxu0 %v3761
        %v8075 = vpop.f32.mrf.mxu0
        %v8076 = vadd.f32 0.0, %v8075
        %v8077 = vpop.f32.mrf.mxu0
        %v8078 = vadd.f32 0.0, %v8077
        %v8079 = vpop.f32.mrf.mxu0
        %v8080 = vadd.f32 0.0, %v8079
        %v8081 = vpop.f32.mrf.mxu0
        %v8082 = vadd.f32 0.0, %v8081
        %8083 = vmatprep.mubr.bf16.mxu0 %v3770
        %8084 = vmatmul.mubr.bf16.gmra.mxu0 %v3769
        %v8085 = vpop.f32.mrf.mxu0
        %v8086 = vadd.f32 0.0, %v8085
        %v8087 = vpop.f32.mrf.mxu0
        %v8088 = vadd.f32 0.0, %v8087
        %v8089 = vpop.f32.mrf.mxu0
        %v8090 = vadd.f32 0.0, %v8089
        %v8091 = vpop.f32.mrf.mxu0
        %v8092 = vadd.f32 0.0, %v8091
        %8093 = vmatprep.mubr.bf16.mxu0 %v3778
        %8094 = vmatmul.mubr.bf16.gmra.mxu0 %v3777
        %v8095 = vpop.f32.mrf.mxu0
        %v8096 = vadd.f32 0.0, %v8095
        %v8097 = vpop.f32.mrf.mxu0
        %v8098 = vadd.f32 0.0, %v8097
        %v8099 = vpop.f32.mrf.mxu0
        %v8100 = vadd.f32 0.0, %v8099
        %v8101 = vpop.f32.mrf.mxu0
        %v8102 = vadd.f32 0.0, %v8101
        %8103 = vdwg.mxu0
        %8104 = vmatprep.subr.bf16.mxu0 %v5877
        %8105 = vmatpush1.bf16.msra.mxu0 %v5876
        %8106 = vmatprep.subr.bf16.mxu0 %v5868
        %8107 = vmatpush1.bf16.msra.mxu0 %v5867
        %8108 = vmatprep.subr.bf16.mxu0 %v5859
        %8109 = vmatpush1.bf16.msra.mxu0 %v5858
        %8110 = vmatprep.subr.bf16.mxu0 %v5850
        %8111 = vmatpush1.bf16.msra.mxu0 %v5849
        %8112 = vmatprep.subr.bf16.mxu0 %v5841
        %8113 = vmatpush1.bf16.msra.mxu0 %v5840
        %8114 = vmatprep.subr.bf16.mxu0 %v5832
        %8115 = vmatpush1.bf16.msra.mxu0 %v5831
        %8116 = vmatprep.subr.bf16.mxu0 %v5823
        %8117 = vmatpush1.bf16.msra.mxu0 %v5822
        %8118 = vmatprep.subr.bf16.mxu0 %v5814
        %8119 = vmatpush1.bf16.msra.mxu0 %v5813
        %8120 = vmatprep.subr.bf16.mxu0 %v5949
        %8121 = vmatpush2.bf16.msra.mxu0 %v5948
        %8122 = vmatprep.subr.bf16.mxu0 %v5940
        %8123 = vmatpush2.bf16.msra.mxu0 %v5939
        %8124 = vmatprep.subr.bf16.mxu0 %v5931
        %8125 = vmatpush2.bf16.msra.mxu0 %v5930
        %8126 = vmatprep.subr.bf16.mxu0 %v5922
        %8127 = vmatpush2.bf16.msra.mxu0 %v5921
        %8128 = vmatprep.subr.bf16.mxu0 %v5913
        %8129 = vmatpush2.bf16.msra.mxu0 %v5912
        %8130 = vmatprep.subr.bf16.mxu0 %v5904
        %8131 = vmatpush2.bf16.msra.mxu0 %v5903
        %8132 = vmatprep.subr.bf16.mxu0 %v5895
        %8133 = vmatpush2.bf16.msra.mxu0 %v5894
        %8134 = vmatprep.subr.bf16.mxu0 %v5886
        %8135 = vmatpush2.bf16.msra.mxu0 %v5885
        %8136 = vmatprep.mubr.bf16.mxu0 %v3700
        %8137 = vmatmul.mubr.bf16.gmra.mxu0 %v3699
        %v8138 = vpop.f32.mrf.mxu0
        %v8139 = vadd.f32 %v7996, %v8138
        %v8140 = vpop.f32.mrf.mxu0
        %v8141 = vadd.f32 %v7998, %v8140
        %v8142 = vpop.f32.mrf.mxu0
        %v8143 = vadd.f32 %v8000, %v8142
        %v8144 = vpop.f32.mrf.mxu0
        %v8145 = vadd.f32 %v8002, %v8144
        %8146 = vmatprep.mubr.bf16.mxu0 %v3708
        %8147 = vmatmul.mubr.bf16.gmra.mxu0 %v3707
        %v8148 = vpop.f32.mrf.mxu0
        %v8149 = vadd.f32 %v8006, %v8148
        %v8150 = vpop.f32.mrf.mxu0
        %v8151 = vadd.f32 %v8008, %v8150
        %v8152 = vpop.f32.mrf.mxu0
        %v8153 = vadd.f32 %v8010, %v8152
        %v8154 = vpop.f32.mrf.mxu0
        %v8155 = vadd.f32 %v8012, %v8154
        %8156 = vmatprep.mubr.bf16.mxu0 %v3716
        %8157 = vmatmul.mubr.bf16.gmra.mxu0 %v3715
        %v8158 = vpop.f32.mrf.mxu0
        %v8159 = vadd.f32 %v8016, %v8158
        %v8160 = vpop.f32.mrf.mxu0
        %v8161 = vadd.f32 %v8018, %v8160
        %v8162 = vpop.f32.mrf.mxu0
        %v8163 = vadd.f32 %v8020, %v8162
        %v8164 = vpop.f32.mrf.mxu0
        %v8165 = vadd.f32 %v8022, %v8164
        %8166 = vmatprep.mubr.bf16.mxu0 %v3724
        %8167 = vmatmul.mubr.bf16.gmra.mxu0 %v3723
        %v8168 = vpop.f32.mrf.mxu0
        %v8169 = vadd.f32 %v8026, %v8168
        %v8170 = vpop.f32.mrf.mxu0
        %v8171 = vadd.f32 %v8028, %v8170
        %v8172 = vpop.f32.mrf.mxu0
        %v8173 = vadd.f32 %v8030, %v8172
        %v8174 = vpop.f32.mrf.mxu0
        %v8175 = vadd.f32 %v8032, %v8174
        %8176 = vmatprep.mubr.bf16.mxu0 %v3732
        %8177 = vmatmul.mubr.bf16.gmra.mxu0 %v3731
        %v8178 = vpop.f32.mrf.mxu0
        %v8179 = vadd.f32 %v8036, %v8178
        %v8180 = vpop.f32.mrf.mxu0
        %v8181 = vadd.f32 %v8038, %v8180
        %v8182 = vpop.f32.mrf.mxu0
        %v8183 = vadd.f32 %v8040, %v8182
        %v8184 = vpop.f32.mrf.mxu0
        %v8185 = vadd.f32 %v8042, %v8184
        %8186 = vmatprep.mubr.bf16.mxu0 %v3740
        %8187 = vmatmul.mubr.bf16.gmra.mxu0 %v3739
        %v8188 = vpop.f32.mrf.mxu0
        %v8189 = vadd.f32 %v8046, %v8188
        %v8190 = vpop.f32.mrf.mxu0
        %v8191 = vadd.f32 %v8048, %v8190
        %v8192 = vpop.f32.mrf.mxu0
        %v8193 = vadd.f32 %v8050, %v8192
        %v8194 = vpop.f32.mrf.mxu0
        %v8195 = vadd.f32 %v8052, %v8194
        %8196 = vmatprep.mubr.bf16.mxu0 %v3748
        %8197 = vmatmul.mubr.bf16.gmra.mxu0 %v3747
        %v8198 = vpop.f32.mrf.mxu0
        %v8199 = vadd.f32 %v8056, %v8198
        %v8200 = vpop.f32.mrf.mxu0
        %v8201 = vadd.f32 %v8058, %v8200
        %v8202 = vpop.f32.mrf.mxu0
        %v8203 = vadd.f32 %v8060, %v8202
        %v8204 = vpop.f32.mrf.mxu0
        %v8205 = vadd.f32 %v8062, %v8204
        %8206 = vmatprep.mubr.bf16.mxu0 %v3756
        %8207 = vmatmul.mubr.bf16.gmra.mxu0 %v3755
        %v8208 = vpop.f32.mrf.mxu0
        %v8209 = vadd.f32 %v8066, %v8208
        %v8210 = vpop.f32.mrf.mxu0
        %v8211 = vadd.f32 %v8068, %v8210
        %v8212 = vpop.f32.mrf.mxu0
        %v8213 = vadd.f32 %v8070, %v8212
        %v8214 = vpop.f32.mrf.mxu0
        %v8215 = vadd.f32 %v8072, %v8214
        %8216 = vmatprep.mubr.bf16.mxu0 %v3764
        %8217 = vmatmul.mubr.bf16.gmra.mxu0 %v3763
        %v8218 = vpop.f32.mrf.mxu0
        %v8219 = vadd.f32 %v8076, %v8218
        %v8220 = vpop.f32.mrf.mxu0
        %v8221 = vadd.f32 %v8078, %v8220
        %v8222 = vpop.f32.mrf.mxu0
        %v8223 = vadd.f32 %v8080, %v8222
        %v8224 = vpop.f32.mrf.mxu0
        %v8225 = vadd.f32 %v8082, %v8224
        %8226 = vmatprep.mubr.bf16.mxu0 %v3772
        %8227 = vmatmul.mubr.bf16.gmra.mxu0 %v3771
        %v8228 = vpop.f32.mrf.mxu0
        %v8229 = vadd.f32 %v8086, %v8228
        %v8230 = vpop.f32.mrf.mxu0
        %v8231 = vadd.f32 %v8088, %v8230
        %v8232 = vpop.f32.mrf.mxu0
        %v8233 = vadd.f32 %v8090, %v8232
        %v8234 = vpop.f32.mrf.mxu0
        %v8235 = vadd.f32 %v8092, %v8234
        %8236 = vmatprep.mubr.bf16.mxu0 %v3780
        %8237 = vmatmul.mubr.bf16.gmra.mxu0 %v3779
        %v8238 = vpop.f32.mrf.mxu0
        %v8239 = vadd.f32 %v8096, %v8238
        %v8240 = vpop.f32.mrf.mxu0
        %v8241 = vadd.f32 %v8098, %v8240
        %v8242 = vpop.f32.mrf.mxu0
        %v8243 = vadd.f32 %v8100, %v8242
        %v8244 = vpop.f32.mrf.mxu0
        %v8245 = vadd.f32 %v8102, %v8244
        %8246 = vdwg.mxu0
        %8247 = vmatprep.subr.bf16.mxu0 %v6021
        %8248 = vmatpush1.bf16.msra.mxu0 %v6020
        %8249 = vmatprep.subr.bf16.mxu0 %v6012
        %8250 = vmatpush1.bf16.msra.mxu0 %v6011
        %8251 = vmatprep.subr.bf16.mxu0 %v6003
        %8252 = vmatpush1.bf16.msra.mxu0 %v6002
        %8253 = vmatprep.subr.bf16.mxu0 %v5994
        %8254 = vmatpush1.bf16.msra.mxu0 %v5993
        %8255 = vmatprep.subr.bf16.mxu0 %v5985
        %8256 = vmatpush1.bf16.msra.mxu0 %v5984
        %8257 = vmatprep.subr.bf16.mxu0 %v5976
        %8258 = vmatpush1.bf16.msra.mxu0 %v5975
        %8259 = vmatprep.subr.bf16.mxu0 %v5967
        %8260 = vmatpush1.bf16.msra.mxu0 %v5966
        %8261 = vmatprep.subr.bf16.mxu0 %v5958
        %8262 = vmatpush1.bf16.msra.mxu0 %v5957
        %8263 = vmatprep.subr.bf16.mxu0 %v6093
        %8264 = vmatpush2.bf16.msra.mxu0 %v6092
        %8265 = vmatprep.subr.bf16.mxu0 %v6084
        %8266 = vmatpush2.bf16.msra.mxu0 %v6083
        %8267 = vmatprep.subr.bf16.mxu0 %v6075
        %8268 = vmatpush2.bf16.msra.mxu0 %v6074
        %8269 = vmatprep.subr.bf16.mxu0 %v6066
        %8270 = vmatpush2.bf16.msra.mxu0 %v6065
        %8271 = vmatprep.subr.bf16.mxu0 %v6057
        %8272 = vmatpush2.bf16.msra.mxu0 %v6056
        %8273 = vmatprep.subr.bf16.mxu0 %v6048
        %8274 = vmatpush2.bf16.msra.mxu0 %v6047
        %8275 = vmatprep.subr.bf16.mxu0 %v6039
        %8276 = vmatpush2.bf16.msra.mxu0 %v6038
        %8277 = vmatprep.subr.bf16.mxu0 %v6030
        %8278 = vmatpush2.bf16.msra.mxu0 %v6029
        %8279 = vmatprep.mubr.bf16.mxu0 %v3702
        %8280 = vmatmul.mubr.bf16.gmra.mxu0 %v3701
        %v8281 = vpop.f32.mrf.mxu0
        %v8282 = vadd.f32 %v8139, %v8281
        %v8283 = vpop.f32.mrf.mxu0
        %v8284 = vadd.f32 %v8141, %v8283
        %v8285 = vpop.f32.mrf.mxu0
        %v8286 = vadd.f32 %v8143, %v8285
        %v8287 = vpop.f32.mrf.mxu0
        %v8288 = vadd.f32 %v8145, %v8287
        %8289 = vmatprep.mubr.bf16.mxu0 %v3710
        %8290 = vmatmul.mubr.bf16.gmra.mxu0 %v3709
        %v8291 = vpop.f32.mrf.mxu0
        %v8292 = vadd.f32 %v8149, %v8291
        %v8293 = vpop.f32.mrf.mxu0
        %v8294 = vadd.f32 %v8151, %v8293
        %v8295 = vpop.f32.mrf.mxu0
        %v8296 = vadd.f32 %v8153, %v8295
        %v8297 = vpop.f32.mrf.mxu0
        %v8298 = vadd.f32 %v8155, %v8297
        %8299 = vmatprep.mubr.bf16.mxu0 %v3718
        %8300 = vmatmul.mubr.bf16.gmra.mxu0 %v3717
        %v8301 = vpop.f32.mrf.mxu0
        %v8302 = vadd.f32 %v8159, %v8301
        %v8303 = vpop.f32.mrf.mxu0
        %v8304 = vadd.f32 %v8161, %v8303
        %v8305 = vpop.f32.mrf.mxu0
        %v8306 = vadd.f32 %v8163, %v8305
        %v8307 = vpop.f32.mrf.mxu0
        %v8308 = vadd.f32 %v8165, %v8307
        %8309 = vmatprep.mubr.bf16.mxu0 %v3726
        %8310 = vmatmul.mubr.bf16.gmra.mxu0 %v3725
        %v8311 = vpop.f32.mrf.mxu0
        %v8312 = vadd.f32 %v8169, %v8311
        %v8313 = vpop.f32.mrf.mxu0
        %v8314 = vadd.f32 %v8171, %v8313
        %v8315 = vpop.f32.mrf.mxu0
        %v8316 = vadd.f32 %v8173, %v8315
        %v8317 = vpop.f32.mrf.mxu0
        %v8318 = vadd.f32 %v8175, %v8317
        %8319 = vmatprep.mubr.bf16.mxu0 %v3734
        %8320 = vmatmul.mubr.bf16.gmra.mxu0 %v3733
        %v8321 = vpop.f32.mrf.mxu0
        %v8322 = vadd.f32 %v8179, %v8321
        %v8323 = vpop.f32.mrf.mxu0
        %v8324 = vadd.f32 %v8181, %v8323
        %v8325 = vpop.f32.mrf.mxu0
        %v8326 = vadd.f32 %v8183, %v8325
        %v8327 = vpop.f32.mrf.mxu0
        %v8328 = vadd.f32 %v8185, %v8327
        %8329 = vmatprep.mubr.bf16.mxu0 %v3742
        %8330 = vmatmul.mubr.bf16.gmra.mxu0 %v3741
        %v8331 = vpop.f32.mrf.mxu0
        %v8332 = vadd.f32 %v8189, %v8331
        %v8333 = vpop.f32.mrf.mxu0
        %v8334 = vadd.f32 %v8191, %v8333
        %v8335 = vpop.f32.mrf.mxu0
        %v8336 = vadd.f32 %v8193, %v8335
        %v8337 = vpop.f32.mrf.mxu0
        %v8338 = vadd.f32 %v8195, %v8337
        %8339 = vmatprep.mubr.bf16.mxu0 %v3750
        %8340 = vmatmul.mubr.bf16.gmra.mxu0 %v3749
        %v8341 = vpop.f32.mrf.mxu0
        %v8342 = vadd.f32 %v8199, %v8341
        %v8343 = vpop.f32.mrf.mxu0
        %v8344 = vadd.f32 %v8201, %v8343
        %v8345 = vpop.f32.mrf.mxu0
        %v8346 = vadd.f32 %v8203, %v8345
        %v8347 = vpop.f32.mrf.mxu0
        %v8348 = vadd.f32 %v8205, %v8347
        %8349 = vmatprep.mubr.bf16.mxu0 %v3758
        %8350 = vmatmul.mubr.bf16.gmra.mxu0 %v3757
        %v8351 = vpop.f32.mrf.mxu0
        %v8352 = vadd.f32 %v8209, %v8351
        %v8353 = vpop.f32.mrf.mxu0
        %v8354 = vadd.f32 %v8211, %v8353
        %v8355 = vpop.f32.mrf.mxu0
        %v8356 = vadd.f32 %v8213, %v8355
        %v8357 = vpop.f32.mrf.mxu0
        %v8358 = vadd.f32 %v8215, %v8357
        %8359 = vmatprep.mubr.bf16.mxu0 %v3766
        %8360 = vmatmul.mubr.bf16.gmra.mxu0 %v3765
        %v8361 = vpop.f32.mrf.mxu0
        %v8362 = vadd.f32 %v8219, %v8361
        %v8363 = vpop.f32.mrf.mxu0
        %v8364 = vadd.f32 %v8221, %v8363
        %v8365 = vpop.f32.mrf.mxu0
        %v8366 = vadd.f32 %v8223, %v8365
        %v8367 = vpop.f32.mrf.mxu0
        %v8368 = vadd.f32 %v8225, %v8367
        %8369 = vmatprep.mubr.bf16.mxu0 %v3774
        %8370 = vmatmul.mubr.bf16.gmra.mxu0 %v3773
        %v8371 = vpop.f32.mrf.mxu0
        %v8372 = vadd.f32 %v8229, %v8371
        %v8373 = vpop.f32.mrf.mxu0
        %v8374 = vadd.f32 %v8231, %v8373
        %v8375 = vpop.f32.mrf.mxu0
        %v8376 = vadd.f32 %v8233, %v8375
        %v8377 = vpop.f32.mrf.mxu0
        %v8378 = vadd.f32 %v8235, %v8377
        %8379 = vmatprep.mubr.bf16.mxu0 %v3782
        %8380 = vmatmul.mubr.bf16.gmra.mxu0 %v3781
        %v8381 = vpop.f32.mrf.mxu0
        %v8382 = vadd.f32 %v8239, %v8381
        %v8383 = vpop.f32.mrf.mxu0
        %v8384 = vadd.f32 %v8241, %v8383
        %v8385 = vpop.f32.mrf.mxu0
        %v8386 = vadd.f32 %v8243, %v8385
        %v8387 = vpop.f32.mrf.mxu0
        %v8388 = vadd.f32 %v8245, %v8387
        %8389 = vdwg.mxu0
        %8390 = vmatprep.subr.bf16.mxu0 %v6165
        %8391 = vmatpush1.bf16.msra.mxu0 %v6164
        %8392 = vmatprep.subr.bf16.mxu0 %v6156
        %8393 = vmatpush1.bf16.msra.mxu0 %v6155
        %8394 = vmatprep.subr.bf16.mxu0 %v6147
        %8395 = vmatpush1.bf16.msra.mxu0 %v6146
        %8396 = vmatprep.subr.bf16.mxu0 %v6138
        %8397 = vmatpush1.bf16.msra.mxu0 %v6137
        %8398 = vmatprep.subr.bf16.mxu0 %v6129
        %8399 = vmatpush1.bf16.msra.mxu0 %v6128
        %8400 = vmatprep.subr.bf16.mxu0 %v6120
        %8401 = vmatpush1.bf16.msra.mxu0 %v6119
        %8402 = vmatprep.subr.bf16.mxu0 %v6111
        %8403 = vmatpush1.bf16.msra.mxu0 %v6110
        %8404 = vmatprep.subr.bf16.mxu0 %v6102
        %8405 = vmatpush1.bf16.msra.mxu0 %v6101
        %8406 = vmatprep.subr.bf16.mxu0 %v6237
        %8407 = vmatpush2.bf16.msra.mxu0 %v6236
        %8408 = vmatprep.subr.bf16.mxu0 %v6228
        %8409 = vmatpush2.bf16.msra.mxu0 %v6227
        %8410 = vmatprep.subr.bf16.mxu0 %v6219
        %8411 = vmatpush2.bf16.msra.mxu0 %v6218
        %8412 = vmatprep.subr.bf16.mxu0 %v6210
        %8413 = vmatpush2.bf16.msra.mxu0 %v6209
        %8414 = vmatprep.subr.bf16.mxu0 %v6201
        %8415 = vmatpush2.bf16.msra.mxu0 %v6200
        %8416 = vmatprep.subr.bf16.mxu0 %v6192
        %8417 = vmatpush2.bf16.msra.mxu0 %v6191
        %8418 = vmatprep.subr.bf16.mxu0 %v6183
        %8419 = vmatpush2.bf16.msra.mxu0 %v6182
        %8420 = vmatprep.subr.bf16.mxu0 %v6174
        %8421 = vmatpush2.bf16.msra.mxu0 %v6173
        %8422 = vmatprep.mubr.bf16.mxu0 %v3704
        %8423 = vmatmul.mubr.bf16.gmra.mxu0 %v3703
        %v8424 = vpop.f32.mrf.mxu0
        %v8425 = vadd.f32 %v8282, %v8424
        %v8426 = vpop.f32.mrf.mxu0
        %v8427 = vadd.f32 %v8284, %v8426
        %v8428 = vpop.f32.mrf.mxu0
        %v8429 = vadd.f32 %v8286, %v8428
        %v8430 = vpop.f32.mrf.mxu0
        %v8431 = vadd.f32 %v8288, %v8430
        %8432 = vmatprep.mubr.bf16.mxu0 %v3712
        %8433 = vmatmul.mubr.bf16.gmra.mxu0 %v3711
        %v8434 = vpop.f32.mrf.mxu0
        %v8435 = vadd.f32 %v8292, %v8434
        %v8436 = vpop.f32.mrf.mxu0
        %v8437 = vadd.f32 %v8294, %v8436
        %v8438 = vpop.f32.mrf.mxu0
        %v8439 = vadd.f32 %v8296, %v8438
        %v8440 = vpop.f32.mrf.mxu0
        %v8441 = vadd.f32 %v8298, %v8440
        %8442 = vmatprep.mubr.bf16.mxu0 %v3720
        %8443 = vmatmul.mubr.bf16.gmra.mxu0 %v3719
        %v8444 = vpop.f32.mrf.mxu0
        %v8445 = vadd.f32 %v8302, %v8444
        %v8446 = vpop.f32.mrf.mxu0
        %v8447 = vadd.f32 %v8304, %v8446
        %v8448 = vpop.f32.mrf.mxu0
        %v8449 = vadd.f32 %v8306, %v8448
        %v8450 = vpop.f32.mrf.mxu0
        %v8451 = vadd.f32 %v8308, %v8450
        %8452 = vmatprep.mubr.bf16.mxu0 %v3728
        %8453 = vmatmul.mubr.bf16.gmra.mxu0 %v3727
        %v8454 = vpop.f32.mrf.mxu0
        %v8455 = vadd.f32 %v8312, %v8454
        %v8456 = vpop.f32.mrf.mxu0
        %v8457 = vadd.f32 %v8314, %v8456
        %v8458 = vpop.f32.mrf.mxu0
        %v8459 = vadd.f32 %v8316, %v8458
        %v8460 = vpop.f32.mrf.mxu0
        %v8461 = vadd.f32 %v8318, %v8460
        %8462 = vmatprep.mubr.bf16.mxu0 %v3736
        %8463 = vmatmul.mubr.bf16.gmra.mxu0 %v3735
        %v8464 = vpop.f32.mrf.mxu0
        %v8465 = vadd.f32 %v8322, %v8464
        %v8466 = vpop.f32.mrf.mxu0
        %v8467 = vadd.f32 %v8324, %v8466
        %v8468 = vpop.f32.mrf.mxu0
        %v8469 = vadd.f32 %v8326, %v8468
        %v8470 = vpop.f32.mrf.mxu0
        %v8471 = vadd.f32 %v8328, %v8470
        %8472 = vmatprep.mubr.bf16.mxu0 %v3744
        %8473 = vmatmul.mubr.bf16.gmra.mxu0 %v3743
        %v8474 = vpop.f32.mrf.mxu0
        %v8475 = vadd.f32 %v8332, %v8474
        %v8476 = vpop.f32.mrf.mxu0
        %v8477 = vadd.f32 %v8334, %v8476
        %v8478 = vpop.f32.mrf.mxu0
        %v8479 = vadd.f32 %v8336, %v8478
        %v8480 = vpop.f32.mrf.mxu0
        %v8481 = vadd.f32 %v8338, %v8480
        %8482 = vmatprep.mubr.bf16.mxu0 %v3752
        %8483 = vmatmul.mubr.bf16.gmra.mxu0 %v3751
        %v8484 = vpop.f32.mrf.mxu0
        %v8485 = vadd.f32 %v8342, %v8484
        %v8486 = vpop.f32.mrf.mxu0
        %v8487 = vadd.f32 %v8344, %v8486
        %v8488 = vpop.f32.mrf.mxu0
        %v8489 = vadd.f32 %v8346, %v8488
        %v8490 = vpop.f32.mrf.mxu0
        %v8491 = vadd.f32 %v8348, %v8490
        %8492 = vmatprep.mubr.bf16.mxu0 %v3760
        %8493 = vmatmul.mubr.bf16.gmra.mxu0 %v3759
        %v8494 = vpop.f32.mrf.mxu0
        %v8495 = vadd.f32 %v8352, %v8494
        %v8496 = vpop.f32.mrf.mxu0
        %v8497 = vadd.f32 %v8354, %v8496
        %v8498 = vpop.f32.mrf.mxu0
        %v8499 = vadd.f32 %v8356, %v8498
        %v8500 = vpop.f32.mrf.mxu0
        %v8501 = vadd.f32 %v8358, %v8500
        %8502 = vmatprep.mubr.bf16.mxu0 %v3768
        %8503 = vmatmul.mubr.bf16.gmra.mxu0 %v3767
        %v8504 = vpop.f32.mrf.mxu0
        %v8505 = vadd.f32 %v8362, %v8504
        %v8506 = vpop.f32.mrf.mxu0
        %v8507 = vadd.f32 %v8364, %v8506
        %v8508 = vpop.f32.mrf.mxu0
        %v8509 = vadd.f32 %v8366, %v8508
        %v8510 = vpop.f32.mrf.mxu0
        %v8511 = vadd.f32 %v8368, %v8510
        %8512 = vmatprep.mubr.bf16.mxu0 %v3776
        %8513 = vmatmul.mubr.bf16.gmra.mxu0 %v3775
        %v8514 = vpop.f32.mrf.mxu0
        %v8515 = vadd.f32 %v8372, %v8514
        %v8516 = vpop.f32.mrf.mxu0
        %v8517 = vadd.f32 %v8374, %v8516
        %v8518 = vpop.f32.mrf.mxu0
        %v8519 = vadd.f32 %v8376, %v8518
        %v8520 = vpop.f32.mrf.mxu0
        %v8521 = vadd.f32 %v8378, %v8520
        %8522 = vmatprep.mubr.bf16.mxu0 %v3784
        %8523 = vmatmul.mubr.bf16.gmra.mxu0 %v3783
        %v8524 = vpop.f32.mrf.mxu0
        %v8525 = vadd.f32 %v8382, %v8524
        %v8526 = vpop.f32.mrf.mxu0
        %v8527 = vadd.f32 %v8384, %v8526
        %v8528 = vpop.f32.mrf.mxu0
        %v8529 = vadd.f32 %v8386, %v8528
        %v8530 = vpop.f32.mrf.mxu0
        %v8531 = vadd.f32 %v8388, %v8530
        %8532 = vdwg.mxu0
        %8533 = vmatprep.subr.bf16.mxu0 %v5735
        %8534 = vmatpush1.bf16.msra.mxu0 %v5734
        %8535 = vmatprep.subr.bf16.mxu0 %v5726
        %8536 = vmatpush1.bf16.msra.mxu0 %v5725
        %8537 = vmatprep.subr.bf16.mxu0 %v5717
        %8538 = vmatpush1.bf16.msra.mxu0 %v5716
        %8539 = vmatprep.subr.bf16.mxu0 %v5708
        %8540 = vmatpush1.bf16.msra.mxu0 %v5707
        %8541 = vmatprep.subr.bf16.mxu0 %v5699
        %8542 = vmatpush1.bf16.msra.mxu0 %v5698
        %8543 = vmatprep.subr.bf16.mxu0 %v5690
        %8544 = vmatpush1.bf16.msra.mxu0 %v5689
        %8545 = vmatprep.subr.bf16.mxu0 %v5681
        %8546 = vmatpush1.bf16.msra.mxu0 %v5680
        %8547 = vmatprep.subr.bf16.mxu0 %v5672
        %8548 = vmatpush1.bf16.msra.mxu0 %v5671
        %8549 = vmatprep.subr.bf16.mxu0 %v5807
        %8550 = vmatpush2.bf16.msra.mxu0 %v5806
        %8551 = vmatprep.subr.bf16.mxu0 %v5798
        %8552 = vmatpush2.bf16.msra.mxu0 %v5797
        %8553 = vmatprep.subr.bf16.mxu0 %v5789
        %8554 = vmatpush2.bf16.msra.mxu0 %v5788
        %8555 = vmatprep.subr.bf16.mxu0 %v5780
        %8556 = vmatpush2.bf16.msra.mxu0 %v5779
        %8557 = vmatprep.subr.bf16.mxu0 %v5771
        %8558 = vmatpush2.bf16.msra.mxu0 %v5770
        %8559 = vmatprep.subr.bf16.mxu0 %v5762
        %8560 = vmatpush2.bf16.msra.mxu0 %v5761
        %8561 = vmatprep.subr.bf16.mxu0 %v5753
        %8562 = vmatpush2.bf16.msra.mxu0 %v5752
        %8563 = vmatprep.subr.bf16.mxu0 %v5744
        %8564 = vmatpush2.bf16.msra.mxu0 %v5743
        %8565 = vmatprep.mubr.bf16.mxu0 %v3698
        %8566 = vmatmul.mubr.bf16.gmra.mxu0 %v3697
        %v8567 = vpop.f32.mrf.mxu0
        %v8568 = vadd.f32 0.0, %v8567
        %v8569 = vpop.f32.mrf.mxu0
        %v8570 = vadd.f32 0.0, %v8569
        %v8571 = vpop.f32.mrf.mxu0
        %v8572 = vadd.f32 0.0, %v8571
        %v8573 = vpop.f32.mrf.mxu0
        %v8574 = vadd.f32 0.0, %v8573
        %8575 = vmatprep.mubr.bf16.mxu0 %v3706
        %8576 = vmatmul.mubr.bf16.gmra.mxu0 %v3705
        %v8577 = vpop.f32.mrf.mxu0
        %v8578 = vadd.f32 0.0, %v8577
        %v8579 = vpop.f32.mrf.mxu0
        %v8580 = vadd.f32 0.0, %v8579
        %v8581 = vpop.f32.mrf.mxu0
        %v8582 = vadd.f32 0.0, %v8581
        %v8583 = vpop.f32.mrf.mxu0
        %v8584 = vadd.f32 0.0, %v8583
        %8585 = vmatprep.mubr.bf16.mxu0 %v3714
        %8586 = vmatmul.mubr.bf16.gmra.mxu0 %v3713
        %v8587 = vpop.f32.mrf.mxu0
        %v8588 = vadd.f32 0.0, %v8587
        %v8589 = vpop.f32.mrf.mxu0
        %v8590 = vadd.f32 0.0, %v8589
        %v8591 = vpop.f32.mrf.mxu0
        %v8592 = vadd.f32 0.0, %v8591
        %v8593 = vpop.f32.mrf.mxu0
        %v8594 = vadd.f32 0.0, %v8593
        %8595 = vmatprep.mubr.bf16.mxu0 %v3722
        %8596 = vmatmul.mubr.bf16.gmra.mxu0 %v3721
        %v8597 = vpop.f32.mrf.mxu0
        %v8598 = vadd.f32 0.0, %v8597
        %v8599 = vpop.f32.mrf.mxu0
        %v8600 = vadd.f32 0.0, %v8599
        %v8601 = vpop.f32.mrf.mxu0
        %v8602 = vadd.f32 0.0, %v8601
        %v8603 = vpop.f32.mrf.mxu0
        %v8604 = vadd.f32 0.0, %v8603
        %8605 = vmatprep.mubr.bf16.mxu0 %v3730
        %8606 = vmatmul.mubr.bf16.gmra.mxu0 %v3729
        %v8607 = vpop.f32.mrf.mxu0
        %v8608 = vadd.f32 0.0, %v8607
        %v8609 = vpop.f32.mrf.mxu0
        %v8610 = vadd.f32 0.0, %v8609
        %v8611 = vpop.f32.mrf.mxu0
        %v8612 = vadd.f32 0.0, %v8611
        %v8613 = vpop.f32.mrf.mxu0
        %v8614 = vadd.f32 0.0, %v8613
        %8615 = vmatprep.mubr.bf16.mxu0 %v3738
        %8616 = vmatmul.mubr.bf16.gmra.mxu0 %v3737
        %v8617 = vpop.f32.mrf.mxu0
        %v8618 = vadd.f32 0.0, %v8617
        %v8619 = vpop.f32.mrf.mxu0
        %v8620 = vadd.f32 0.0, %v8619
        %v8621 = vpop.f32.mrf.mxu0
        %v8622 = vadd.f32 0.0, %v8621
        %v8623 = vpop.f32.mrf.mxu0
        %v8624 = vadd.f32 0.0, %v8623
        %8625 = vmatprep.mubr.bf16.mxu0 %v3746
        %8626 = vmatmul.mubr.bf16.gmra.mxu0 %v3745
        %v8627 = vpop.f32.mrf.mxu0
        %v8628 = vadd.f32 0.0, %v8627
        %v8629 = vpop.f32.mrf.mxu0
        %v8630 = vadd.f32 0.0, %v8629
        %v8631 = vpop.f32.mrf.mxu0
        %v8632 = vadd.f32 0.0, %v8631
        %v8633 = vpop.f32.mrf.mxu0
        %v8634 = vadd.f32 0.0, %v8633
        %8635 = vmatprep.mubr.bf16.mxu0 %v3754
        %8636 = vmatmul.mubr.bf16.gmra.mxu0 %v3753
        %v8637 = vpop.f32.mrf.mxu0
        %v8638 = vadd.f32 0.0, %v8637
        %v8639 = vpop.f32.mrf.mxu0
        %v8640 = vadd.f32 0.0, %v8639
        %v8641 = vpop.f32.mrf.mxu0
        %v8642 = vadd.f32 0.0, %v8641
        %v8643 = vpop.f32.mrf.mxu0
        %v8644 = vadd.f32 0.0, %v8643
        %8645 = vmatprep.mubr.bf16.mxu0 %v3762
        %8646 = vmatmul.mubr.bf16.gmra.mxu0 %v3761
        %v8647 = vpop.f32.mrf.mxu0
        %v8648 = vadd.f32 0.0, %v8647
        %v8649 = vpop.f32.mrf.mxu0
        %v8650 = vadd.f32 0.0, %v8649
        %v8651 = vpop.f32.mrf.mxu0
        %v8652 = vadd.f32 0.0, %v8651
        %v8653 = vpop.f32.mrf.mxu0
        %v8654 = vadd.f32 0.0, %v8653
        %8655 = vmatprep.mubr.bf16.mxu0 %v3770
        %8656 = vmatmul.mubr.bf16.gmra.mxu0 %v3769
        %v8657 = vpop.f32.mrf.mxu0
        %v8658 = vadd.f32 0.0, %v8657
        %v8659 = vpop.f32.mrf.mxu0
        %v8660 = vadd.f32 0.0, %v8659
        %v8661 = vpop.f32.mrf.mxu0
        %v8662 = vadd.f32 0.0, %v8661
        %v8663 = vpop.f32.mrf.mxu0
        %v8664 = vadd.f32 0.0, %v8663
        %8665 = vmatprep.mubr.bf16.mxu0 %v3778
        %8666 = vmatmul.mubr.bf16.gmra.mxu0 %v3777
        %v8667 = vpop.f32.mrf.mxu0
        %v8668 = vadd.f32 0.0, %v8667
        %v8669 = vpop.f32.mrf.mxu0
        %v8670 = vadd.f32 0.0, %v8669
        %v8671 = vpop.f32.mrf.mxu0
        %v8672 = vadd.f32 0.0, %v8671
        %v8673 = vpop.f32.mrf.mxu0
        %v8674 = vadd.f32 0.0, %v8673
        %8675 = vdwg.mxu0
        %8676 = vmatprep.subr.bf16.mxu0 %v5879
        %8677 = vmatpush1.bf16.msra.mxu0 %v5878
        %8678 = vmatprep.subr.bf16.mxu0 %v5870
        %8679 = vmatpush1.bf16.msra.mxu0 %v5869
        %8680 = vmatprep.subr.bf16.mxu0 %v5861
        %8681 = vmatpush1.bf16.msra.mxu0 %v5860
        %8682 = vmatprep.subr.bf16.mxu0 %v5852
        %8683 = vmatpush1.bf16.msra.mxu0 %v5851
        %8684 = vmatprep.subr.bf16.mxu0 %v5843
        %8685 = vmatpush1.bf16.msra.mxu0 %v5842
        %8686 = vmatprep.subr.bf16.mxu0 %v5834
        %8687 = vmatpush1.bf16.msra.mxu0 %v5833
        %8688 = vmatprep.subr.bf16.mxu0 %v5825
        %8689 = vmatpush1.bf16.msra.mxu0 %v5824
        %8690 = vmatprep.subr.bf16.mxu0 %v5816
        %8691 = vmatpush1.bf16.msra.mxu0 %v5815
        %8692 = vmatprep.subr.bf16.mxu0 %v5951
        %8693 = vmatpush2.bf16.msra.mxu0 %v5950
        %8694 = vmatprep.subr.bf16.mxu0 %v5942
        %8695 = vmatpush2.bf16.msra.mxu0 %v5941
        %8696 = vmatprep.subr.bf16.mxu0 %v5933
        %8697 = vmatpush2.bf16.msra.mxu0 %v5932
        %8698 = vmatprep.subr.bf16.mxu0 %v5924
        %8699 = vmatpush2.bf16.msra.mxu0 %v5923
        %8700 = vmatprep.subr.bf16.mxu0 %v5915
        %8701 = vmatpush2.bf16.msra.mxu0 %v5914
        %8702 = vmatprep.subr.bf16.mxu0 %v5906
        %8703 = vmatpush2.bf16.msra.mxu0 %v5905
        %8704 = vmatprep.subr.bf16.mxu0 %v5897
        %8705 = vmatpush2.bf16.msra.mxu0 %v5896
        %8706 = vmatprep.subr.bf16.mxu0 %v5888
        %8707 = vmatpush2.bf16.msra.mxu0 %v5887
        %8708 = vmatprep.mubr.bf16.mxu0 %v3700
        %8709 = vmatmul.mubr.bf16.gmra.mxu0 %v3699
        %v8710 = vpop.f32.mrf.mxu0
        %v8711 = vadd.f32 %v8568, %v8710
        %v8712 = vpop.f32.mrf.mxu0
        %v8713 = vadd.f32 %v8570, %v8712
        %v8714 = vpop.f32.mrf.mxu0
        %v8715 = vadd.f32 %v8572, %v8714
        %v8716 = vpop.f32.mrf.mxu0
        %v8717 = vadd.f32 %v8574, %v8716
        %8718 = vmatprep.mubr.bf16.mxu0 %v3708
        %8719 = vmatmul.mubr.bf16.gmra.mxu0 %v3707
        %v8720 = vpop.f32.mrf.mxu0
        %v8721 = vadd.f32 %v8578, %v8720
        %v8722 = vpop.f32.mrf.mxu0
        %v8723 = vadd.f32 %v8580, %v8722
        %v8724 = vpop.f32.mrf.mxu0
        %v8725 = vadd.f32 %v8582, %v8724
        %v8726 = vpop.f32.mrf.mxu0
        %v8727 = vadd.f32 %v8584, %v8726
        %8728 = vmatprep.mubr.bf16.mxu0 %v3716
        %8729 = vmatmul.mubr.bf16.gmra.mxu0 %v3715
        %v8730 = vpop.f32.mrf.mxu0
        %v8731 = vadd.f32 %v8588, %v8730
        %v8732 = vpop.f32.mrf.mxu0
        %v8733 = vadd.f32 %v8590, %v8732
        %v8734 = vpop.f32.mrf.mxu0
        %v8735 = vadd.f32 %v8592, %v8734
        %v8736 = vpop.f32.mrf.mxu0
        %v8737 = vadd.f32 %v8594, %v8736
        %8738 = vmatprep.mubr.bf16.mxu0 %v3724
        %8739 = vmatmul.mubr.bf16.gmra.mxu0 %v3723
        %v8740 = vpop.f32.mrf.mxu0
        %v8741 = vadd.f32 %v8598, %v8740
        %v8742 = vpop.f32.mrf.mxu0
        %v8743 = vadd.f32 %v8600, %v8742
        %v8744 = vpop.f32.mrf.mxu0
        %v8745 = vadd.f32 %v8602, %v8744
        %v8746 = vpop.f32.mrf.mxu0
        %v8747 = vadd.f32 %v8604, %v8746
        %8748 = vmatprep.mubr.bf16.mxu0 %v3732
        %8749 = vmatmul.mubr.bf16.gmra.mxu0 %v3731
        %v8750 = vpop.f32.mrf.mxu0
        %v8751 = vadd.f32 %v8608, %v8750
        %v8752 = vpop.f32.mrf.mxu0
        %v8753 = vadd.f32 %v8610, %v8752
        %v8754 = vpop.f32.mrf.mxu0
        %v8755 = vadd.f32 %v8612, %v8754
        %v8756 = vpop.f32.mrf.mxu0
        %v8757 = vadd.f32 %v8614, %v8756
        %8758 = vmatprep.mubr.bf16.mxu0 %v3740
        %8759 = vmatmul.mubr.bf16.gmra.mxu0 %v3739
        %v8760 = vpop.f32.mrf.mxu0
        %v8761 = vadd.f32 %v8618, %v8760
        %v8762 = vpop.f32.mrf.mxu0
        %v8763 = vadd.f32 %v8620, %v8762
        %v8764 = vpop.f32.mrf.mxu0
        %v8765 = vadd.f32 %v8622, %v8764
        %v8766 = vpop.f32.mrf.mxu0
        %v8767 = vadd.f32 %v8624, %v8766
        %8768 = vmatprep.mubr.bf16.mxu0 %v3748
        %8769 = vmatmul.mubr.bf16.gmra.mxu0 %v3747
        %v8770 = vpop.f32.mrf.mxu0
        %v8771 = vadd.f32 %v8628, %v8770
        %v8772 = vpop.f32.mrf.mxu0
        %v8773 = vadd.f32 %v8630, %v8772
        %v8774 = vpop.f32.mrf.mxu0
        %v8775 = vadd.f32 %v8632, %v8774
        %v8776 = vpop.f32.mrf.mxu0
        %v8777 = vadd.f32 %v8634, %v8776
        %8778 = vmatprep.mubr.bf16.mxu0 %v3756
        %8779 = vmatmul.mubr.bf16.gmra.mxu0 %v3755
        %v8780 = vpop.f32.mrf.mxu0
        %v8781 = vadd.f32 %v8638, %v8780
        %v8782 = vpop.f32.mrf.mxu0
        %v8783 = vadd.f32 %v8640, %v8782
        %v8784 = vpop.f32.mrf.mxu0
        %v8785 = vadd.f32 %v8642, %v8784
        %v8786 = vpop.f32.mrf.mxu0
        %v8787 = vadd.f32 %v8644, %v8786
        %8788 = vmatprep.mubr.bf16.mxu0 %v3764
        %8789 = vmatmul.mubr.bf16.gmra.mxu0 %v3763
        %v8790 = vpop.f32.mrf.mxu0
        %v8791 = vadd.f32 %v8648, %v8790
        %v8792 = vpop.f32.mrf.mxu0
        %v8793 = vadd.f32 %v8650, %v8792
        %v8794 = vpop.f32.mrf.mxu0
        %v8795 = vadd.f32 %v8652, %v8794
        %v8796 = vpop.f32.mrf.mxu0
        %v8797 = vadd.f32 %v8654, %v8796
        %8798 = vmatprep.mubr.bf16.mxu0 %v3772
        %8799 = vmatmul.mubr.bf16.gmra.mxu0 %v3771
        %v8800 = vpop.f32.mrf.mxu0
        %v8801 = vadd.f32 %v8658, %v8800
        %v8802 = vpop.f32.mrf.mxu0
        %v8803 = vadd.f32 %v8660, %v8802
        %v8804 = vpop.f32.mrf.mxu0
        %v8805 = vadd.f32 %v8662, %v8804
        %v8806 = vpop.f32.mrf.mxu0
        %v8807 = vadd.f32 %v8664, %v8806
        %8808 = vmatprep.mubr.bf16.mxu0 %v3780
        %8809 = vmatmul.mubr.bf16.gmra.mxu0 %v3779
        %v8810 = vpop.f32.mrf.mxu0
        %v8811 = vadd.f32 %v8668, %v8810
        %v8812 = vpop.f32.mrf.mxu0
        %v8813 = vadd.f32 %v8670, %v8812
        %v8814 = vpop.f32.mrf.mxu0
        %v8815 = vadd.f32 %v8672, %v8814
        %v8816 = vpop.f32.mrf.mxu0
        %v8817 = vadd.f32 %v8674, %v8816
        %8818 = vdwg.mxu0
        %8819 = vmatprep.subr.bf16.mxu0 %v6023
        %8820 = vmatpush1.bf16.msra.mxu0 %v6022
        %8821 = vmatprep.subr.bf16.mxu0 %v6014
        %8822 = vmatpush1.bf16.msra.mxu0 %v6013
        %8823 = vmatprep.subr.bf16.mxu0 %v6005
        %8824 = vmatpush1.bf16.msra.mxu0 %v6004
        %8825 = vmatprep.subr.bf16.mxu0 %v5996
        %8826 = vmatpush1.bf16.msra.mxu0 %v5995
        %8827 = vmatprep.subr.bf16.mxu0 %v5987
        %8828 = vmatpush1.bf16.msra.mxu0 %v5986
        %8829 = vmatprep.subr.bf16.mxu0 %v5978
        %8830 = vmatpush1.bf16.msra.mxu0 %v5977
        %8831 = vmatprep.subr.bf16.mxu0 %v5969
        %8832 = vmatpush1.bf16.msra.mxu0 %v5968
        %8833 = vmatprep.subr.bf16.mxu0 %v5960
        %8834 = vmatpush1.bf16.msra.mxu0 %v5959
        %8835 = vmatprep.subr.bf16.mxu0 %v6095
        %8836 = vmatpush2.bf16.msra.mxu0 %v6094
        %8837 = vmatprep.subr.bf16.mxu0 %v6086
        %8838 = vmatpush2.bf16.msra.mxu0 %v6085
        %8839 = vmatprep.subr.bf16.mxu0 %v6077
        %8840 = vmatpush2.bf16.msra.mxu0 %v6076
        %8841 = vmatprep.subr.bf16.mxu0 %v6068
        %8842 = vmatpush2.bf16.msra.mxu0 %v6067
        %8843 = vmatprep.subr.bf16.mxu0 %v6059
        %8844 = vmatpush2.bf16.msra.mxu0 %v6058
        %8845 = vmatprep.subr.bf16.mxu0 %v6050
        %8846 = vmatpush2.bf16.msra.mxu0 %v6049
        %8847 = vmatprep.subr.bf16.mxu0 %v6041
        %8848 = vmatpush2.bf16.msra.mxu0 %v6040
        %8849 = vmatprep.subr.bf16.mxu0 %v6032
        %8850 = vmatpush2.bf16.msra.mxu0 %v6031
        %8851 = vmatprep.mubr.bf16.mxu0 %v3702
        %8852 = vmatmul.mubr.bf16.gmra.mxu0 %v3701
        %v8853 = vpop.f32.mrf.mxu0
        %v8854 = vadd.f32 %v8711, %v8853
        %v8855 = vpop.f32.mrf.mxu0
        %v8856 = vadd.f32 %v8713, %v8855
        %v8857 = vpop.f32.mrf.mxu0
        %v8858 = vadd.f32 %v8715, %v8857
        %v8859 = vpop.f32.mrf.mxu0
        %v8860 = vadd.f32 %v8717, %v8859
        %8861 = vmatprep.mubr.bf16.mxu0 %v3710
        %8862 = vmatmul.mubr.bf16.gmra.mxu0 %v3709
        %v8863 = vpop.f32.mrf.mxu0
        %v8864 = vadd.f32 %v8721, %v8863
        %v8865 = vpop.f32.mrf.mxu0
        %v8866 = vadd.f32 %v8723, %v8865
        %v8867 = vpop.f32.mrf.mxu0
        %v8868 = vadd.f32 %v8725, %v8867
        %v8869 = vpop.f32.mrf.mxu0
        %v8870 = vadd.f32 %v8727, %v8869
        %8871 = vmatprep.mubr.bf16.mxu0 %v3718
        %8872 = vmatmul.mubr.bf16.gmra.mxu0 %v3717
        %v8873 = vpop.f32.mrf.mxu0
        %v8874 = vadd.f32 %v8731, %v8873
        %v8875 = vpop.f32.mrf.mxu0
        %v8876 = vadd.f32 %v8733, %v8875
        %v8877 = vpop.f32.mrf.mxu0
        %v8878 = vadd.f32 %v8735, %v8877
        %v8879 = vpop.f32.mrf.mxu0
        %v8880 = vadd.f32 %v8737, %v8879
        %8881 = vmatprep.mubr.bf16.mxu0 %v3726
        %8882 = vmatmul.mubr.bf16.gmra.mxu0 %v3725
        %v8883 = vpop.f32.mrf.mxu0
        %v8884 = vadd.f32 %v8741, %v8883
        %v8885 = vpop.f32.mrf.mxu0
        %v8886 = vadd.f32 %v8743, %v8885
        %v8887 = vpop.f32.mrf.mxu0
        %v8888 = vadd.f32 %v8745, %v8887
        %v8889 = vpop.f32.mrf.mxu0
        %v8890 = vadd.f32 %v8747, %v8889
        %8891 = vmatprep.mubr.bf16.mxu0 %v3734
        %8892 = vmatmul.mubr.bf16.gmra.mxu0 %v3733
        %v8893 = vpop.f32.mrf.mxu0
        %v8894 = vadd.f32 %v8751, %v8893
        %v8895 = vpop.f32.mrf.mxu0
        %v8896 = vadd.f32 %v8753, %v8895
        %v8897 = vpop.f32.mrf.mxu0
        %v8898 = vadd.f32 %v8755, %v8897
        %v8899 = vpop.f32.mrf.mxu0
        %v8900 = vadd.f32 %v8757, %v8899
        %8901 = vmatprep.mubr.bf16.mxu0 %v3742
        %8902 = vmatmul.mubr.bf16.gmra.mxu0 %v3741
        %v8903 = vpop.f32.mrf.mxu0
        %v8904 = vadd.f32 %v8761, %v8903
        %v8905 = vpop.f32.mrf.mxu0
        %v8906 = vadd.f32 %v8763, %v8905
        %v8907 = vpop.f32.mrf.mxu0
        %v8908 = vadd.f32 %v8765, %v8907
        %v8909 = vpop.f32.mrf.mxu0
        %v8910 = vadd.f32 %v8767, %v8909
        %8911 = vmatprep.mubr.bf16.mxu0 %v3750
        %8912 = vmatmul.mubr.bf16.gmra.mxu0 %v3749
        %v8913 = vpop.f32.mrf.mxu0
        %v8914 = vadd.f32 %v8771, %v8913
        %v8915 = vpop.f32.mrf.mxu0
        %v8916 = vadd.f32 %v8773, %v8915
        %v8917 = vpop.f32.mrf.mxu0
        %v8918 = vadd.f32 %v8775, %v8917
        %v8919 = vpop.f32.mrf.mxu0
        %v8920 = vadd.f32 %v8777, %v8919
        %8921 = vmatprep.mubr.bf16.mxu0 %v3758
        %8922 = vmatmul.mubr.bf16.gmra.mxu0 %v3757
        %v8923 = vpop.f32.mrf.mxu0
        %v8924 = vadd.f32 %v8781, %v8923
        %v8925 = vpop.f32.mrf.mxu0
        %v8926 = vadd.f32 %v8783, %v8925
        %v8927 = vpop.f32.mrf.mxu0
        %v8928 = vadd.f32 %v8785, %v8927
        %v8929 = vpop.f32.mrf.mxu0
        %v8930 = vadd.f32 %v8787, %v8929
        %8931 = vmatprep.mubr.bf16.mxu0 %v3766
        %8932 = vmatmul.mubr.bf16.gmra.mxu0 %v3765
        %v8933 = vpop.f32.mrf.mxu0
        %v8934 = vadd.f32 %v8791, %v8933
        %v8935 = vpop.f32.mrf.mxu0
        %v8936 = vadd.f32 %v8793, %v8935
        %v8937 = vpop.f32.mrf.mxu0
        %v8938 = vadd.f32 %v8795, %v8937
        %v8939 = vpop.f32.mrf.mxu0
        %v8940 = vadd.f32 %v8797, %v8939
        %8941 = vmatprep.mubr.bf16.mxu0 %v3774
        %8942 = vmatmul.mubr.bf16.gmra.mxu0 %v3773
        %v8943 = vpop.f32.mrf.mxu0
        %v8944 = vadd.f32 %v8801, %v8943
        %v8945 = vpop.f32.mrf.mxu0
        %v8946 = vadd.f32 %v8803, %v8945
        %v8947 = vpop.f32.mrf.mxu0
        %v8948 = vadd.f32 %v8805, %v8947
        %v8949 = vpop.f32.mrf.mxu0
        %v8950 = vadd.f32 %v8807, %v8949
        %8951 = vmatprep.mubr.bf16.mxu0 %v3782
        %8952 = vmatmul.mubr.bf16.gmra.mxu0 %v3781
        %v8953 = vpop.f32.mrf.mxu0
        %v8954 = vadd.f32 %v8811, %v8953
        %v8955 = vpop.f32.mrf.mxu0
        %v8956 = vadd.f32 %v8813, %v8955
        %v8957 = vpop.f32.mrf.mxu0
        %v8958 = vadd.f32 %v8815, %v8957
        %v8959 = vpop.f32.mrf.mxu0
        %v8960 = vadd.f32 %v8817, %v8959
        %8961 = vdwg.mxu0
        %8962 = vmatprep.subr.bf16.mxu0 %v6167
        %8963 = vmatpush1.bf16.msra.mxu0 %v6166
        %8964 = vmatprep.subr.bf16.mxu0 %v6158
        %8965 = vmatpush1.bf16.msra.mxu0 %v6157
        %8966 = vmatprep.subr.bf16.mxu0 %v6149
        %8967 = vmatpush1.bf16.msra.mxu0 %v6148
        %8968 = vmatprep.subr.bf16.mxu0 %v6140
        %8969 = vmatpush1.bf16.msra.mxu0 %v6139
        %8970 = vmatprep.subr.bf16.mxu0 %v6131
        %8971 = vmatpush1.bf16.msra.mxu0 %v6130
        %8972 = vmatprep.subr.bf16.mxu0 %v6122
        %8973 = vmatpush1.bf16.msra.mxu0 %v6121
        %8974 = vmatprep.subr.bf16.mxu0 %v6113
        %8975 = vmatpush1.bf16.msra.mxu0 %v6112
        %8976 = vmatprep.subr.bf16.mxu0 %v6104
        %8977 = vmatpush1.bf16.msra.mxu0 %v6103
        %8978 = vmatprep.subr.bf16.mxu0 %v6239
        %8979 = vmatpush2.bf16.msra.mxu0 %v6238
        %8980 = vmatprep.subr.bf16.mxu0 %v6230
        %8981 = vmatpush2.bf16.msra.mxu0 %v6229
        %8982 = vmatprep.subr.bf16.mxu0 %v6221
        %8983 = vmatpush2.bf16.msra.mxu0 %v6220
        %8984 = vmatprep.subr.bf16.mxu0 %v6212
        %8985 = vmatpush2.bf16.msra.mxu0 %v6211
        %8986 = vmatprep.subr.bf16.mxu0 %v6203
        %8987 = vmatpush2.bf16.msra.mxu0 %v6202
        %8988 = vmatprep.subr.bf16.mxu0 %v6194
        %8989 = vmatpush2.bf16.msra.mxu0 %v6193
        %8990 = vmatprep.subr.bf16.mxu0 %v6185
        %8991 = vmatpush2.bf16.msra.mxu0 %v6184
        %8992 = vmatprep.subr.bf16.mxu0 %v6176
        %8993 = vmatpush2.bf16.msra.mxu0 %v6175
        %8994 = vmatprep.mubr.bf16.mxu0 %v3704
        %8995 = vmatmul.mubr.bf16.gmra.mxu0 %v3703
        %v8996 = vpop.f32.mrf.mxu0
        %v8997 = vadd.f32 %v8854, %v8996
        %v8998 = vpop.f32.mrf.mxu0
        %v8999 = vadd.f32 %v8856, %v8998
        %v9000 = vpop.f32.mrf.mxu0
        %v9001 = vadd.f32 %v8858, %v9000
        %v9002 = vpop.f32.mrf.mxu0
        %v9003 = vadd.f32 %v8860, %v9002
        %9004 = vmatprep.mubr.bf16.mxu0 %v3712
        %9005 = vmatmul.mubr.bf16.gmra.mxu0 %v3711
        %v9006 = vpop.f32.mrf.mxu0
        %v9007 = vadd.f32 %v8864, %v9006
        %v9008 = vpop.f32.mrf.mxu0
        %v9009 = vadd.f32 %v8866, %v9008
        %v9010 = vpop.f32.mrf.mxu0
        %v9011 = vadd.f32 %v8868, %v9010
        %v9012 = vpop.f32.mrf.mxu0
        %v9013 = vadd.f32 %v8870, %v9012
        %9014 = vmatprep.mubr.bf16.mxu0 %v3720
        %9015 = vmatmul.mubr.bf16.gmra.mxu0 %v3719
        %v9016 = vpop.f32.mrf.mxu0
        %v9017 = vadd.f32 %v8874, %v9016
        %v9018 = vpop.f32.mrf.mxu0
        %v9019 = vadd.f32 %v8876, %v9018
        %v9020 = vpop.f32.mrf.mxu0
        %v9021 = vadd.f32 %v8878, %v9020
        %v9022 = vpop.f32.mrf.mxu0
        %v9023 = vadd.f32 %v8880, %v9022
        %9024 = vmatprep.mubr.bf16.mxu0 %v3728
        %9025 = vmatmul.mubr.bf16.gmra.mxu0 %v3727
        %v9026 = vpop.f32.mrf.mxu0
        %v9027 = vadd.f32 %v8884, %v9026
        %v9028 = vpop.f32.mrf.mxu0
        %v9029 = vadd.f32 %v8886, %v9028
        %v9030 = vpop.f32.mrf.mxu0
        %v9031 = vadd.f32 %v8888, %v9030
        %v9032 = vpop.f32.mrf.mxu0
        %v9033 = vadd.f32 %v8890, %v9032
        %9034 = vmatprep.mubr.bf16.mxu0 %v3736
        %9035 = vmatmul.mubr.bf16.gmra.mxu0 %v3735
        %v9036 = vpop.f32.mrf.mxu0
        %v9037 = vadd.f32 %v8894, %v9036
        %v9038 = vpop.f32.mrf.mxu0
        %v9039 = vadd.f32 %v8896, %v9038
        %v9040 = vpop.f32.mrf.mxu0
        %v9041 = vadd.f32 %v8898, %v9040
        %v9042 = vpop.f32.mrf.mxu0
        %v9043 = vadd.f32 %v8900, %v9042
        %9044 = vmatprep.mubr.bf16.mxu0 %v3744
        %9045 = vmatmul.mubr.bf16.gmra.mxu0 %v3743
        %v9046 = vpop.f32.mrf.mxu0
        %v9047 = vadd.f32 %v8904, %v9046
        %v9048 = vpop.f32.mrf.mxu0
        %v9049 = vadd.f32 %v8906, %v9048
        %v9050 = vpop.f32.mrf.mxu0
        %v9051 = vadd.f32 %v8908, %v9050
        %v9052 = vpop.f32.mrf.mxu0
        %v9053 = vadd.f32 %v8910, %v9052
        %9054 = vmatprep.mubr.bf16.mxu0 %v3752
        %9055 = vmatmul.mubr.bf16.gmra.mxu0 %v3751
        %v9056 = vpop.f32.mrf.mxu0
        %v9057 = vadd.f32 %v8914, %v9056
        %v9058 = vpop.f32.mrf.mxu0
        %v9059 = vadd.f32 %v8916, %v9058
        %v9060 = vpop.f32.mrf.mxu0
        %v9061 = vadd.f32 %v8918, %v9060
        %v9062 = vpop.f32.mrf.mxu0
        %v9063 = vadd.f32 %v8920, %v9062
        %9064 = vmatprep.mubr.bf16.mxu0 %v3760
        %9065 = vmatmul.mubr.bf16.gmra.mxu0 %v3759
        %v9066 = vpop.f32.mrf.mxu0
        %v9067 = vadd.f32 %v8924, %v9066
        %v9068 = vpop.f32.mrf.mxu0
        %v9069 = vadd.f32 %v8926, %v9068
        %v9070 = vpop.f32.mrf.mxu0
        %v9071 = vadd.f32 %v8928, %v9070
        %v9072 = vpop.f32.mrf.mxu0
        %v9073 = vadd.f32 %v8930, %v9072
        %9074 = vmatprep.mubr.bf16.mxu0 %v3768
        %9075 = vmatmul.mubr.bf16.gmra.mxu0 %v3767
        %v9076 = vpop.f32.mrf.mxu0
        %v9077 = vadd.f32 %v8934, %v9076
        %v9078 = vpop.f32.mrf.mxu0
        %v9079 = vadd.f32 %v8936, %v9078
        %v9080 = vpop.f32.mrf.mxu0
        %v9081 = vadd.f32 %v8938, %v9080
        %v9082 = vpop.f32.mrf.mxu0
        %v9083 = vadd.f32 %v8940, %v9082
        %9084 = vmatprep.mubr.bf16.mxu0 %v3776
        %9085 = vmatmul.mubr.bf16.gmra.mxu0 %v3775
        %v9086 = vpop.f32.mrf.mxu0
        %v9087 = vadd.f32 %v8944, %v9086
        %v9088 = vpop.f32.mrf.mxu0
        %v9089 = vadd.f32 %v8946, %v9088
        %v9090 = vpop.f32.mrf.mxu0
        %v9091 = vadd.f32 %v8948, %v9090
        %v9092 = vpop.f32.mrf.mxu0
        %v9093 = vadd.f32 %v8950, %v9092
        %9094 = vmatprep.mubr.bf16.mxu0 %v3784
        %9095 = vmatmul.mubr.bf16.gmra.mxu0 %v3783
        %v9096 = vpop.f32.mrf.mxu0
        %v9097 = vadd.f32 %v8954, %v9096
        %v9098 = vpop.f32.mrf.mxu0
        %v9099 = vadd.f32 %v8956, %v9098
        %v9100 = vpop.f32.mrf.mxu0
        %v9101 = vadd.f32 %v8958, %v9100
        %v9102 = vpop.f32.mrf.mxu0
        %v9103 = vadd.f32 %v8960, %v9102
        %9104 = vdwg.mxu0
        %9105 = vmatprep.subr.bf16.mxu0 0
        %9106 = vmatpush1.bf16.msra.mxu0 %v5736
        %9107 = vmatprep.subr.bf16.mxu0 0
        %9108 = vmatpush1.bf16.msra.mxu0 %v5727
        %9109 = vmatprep.subr.bf16.mxu0 0
        %9110 = vmatpush1.bf16.msra.mxu0 %v5718
        %9111 = vmatprep.subr.bf16.mxu0 0
        %9112 = vmatpush1.bf16.msra.mxu0 %v5709
        %9113 = vmatprep.subr.bf16.mxu0 0
        %9114 = vmatpush1.bf16.msra.mxu0 %v5700
        %9115 = vmatprep.subr.bf16.mxu0 0
        %9116 = vmatpush1.bf16.msra.mxu0 %v5691
        %9117 = vmatprep.subr.bf16.mxu0 0
        %9118 = vmatpush1.bf16.msra.mxu0 %v5682
        %9119 = vmatprep.subr.bf16.mxu0 0
        %9120 = vmatpush1.bf16.msra.mxu0 %v5673
        %9121 = vmatprep.subr.bf16.mxu0 0
        %9122 = vmatpush2.bf16.msra.mxu0 %v5808
        %9123 = vmatprep.subr.bf16.mxu0 0
        %9124 = vmatpush2.bf16.msra.mxu0 %v5799
        %9125 = vmatprep.subr.bf16.mxu0 0
        %9126 = vmatpush2.bf16.msra.mxu0 %v5790
        %9127 = vmatprep.subr.bf16.mxu0 0
        %9128 = vmatpush2.bf16.msra.mxu0 %v5781
        %9129 = vmatprep.subr.bf16.mxu0 0
        %9130 = vmatpush2.bf16.msra.mxu0 %v5772
        %9131 = vmatprep.subr.bf16.mxu0 0
        %9132 = vmatpush2.bf16.msra.mxu0 %v5763
        %9133 = vmatprep.subr.bf16.mxu0 0
        %9134 = vmatpush2.bf16.msra.mxu0 %v5754
        %9135 = vmatprep.subr.bf16.mxu0 0
        %9136 = vmatpush2.bf16.msra.mxu0 %v5745
        %9137 = vmatprep.mubr.bf16.mxu0 %v3698
        %9138 = vmatmul.mubr.bf16.gmra.mxu0 %v3697
        %v9139 = vpop.f32.mrf.mxu0
        %v9140 = vadd.f32 0.0, %v9139
        %v9141 = vpop.f32.mrf.mxu0
        %v9142 = vpop.f32.mrf.mxu0
        %v9143 = vadd.f32 0.0, %v9142
        %v9144 = vpop.f32.mrf.mxu0
        %9145 = vmatprep.mubr.bf16.mxu0 %v3706
        %9146 = vmatmul.mubr.bf16.gmra.mxu0 %v3705
        %v9147 = vpop.f32.mrf.mxu0
        %v9148 = vadd.f32 0.0, %v9147
        %v9149 = vpop.f32.mrf.mxu0
        %v9150 = vpop.f32.mrf.mxu0
        %v9151 = vadd.f32 0.0, %v9150
        %v9152 = vpop.f32.mrf.mxu0
        %9153 = vmatprep.mubr.bf16.mxu0 %v3714
        %9154 = vmatmul.mubr.bf16.gmra.mxu0 %v3713
        %v9155 = vpop.f32.mrf.mxu0
        %v9156 = vadd.f32 0.0, %v9155
        %v9157 = vpop.f32.mrf.mxu0
        %v9158 = vpop.f32.mrf.mxu0
        %v9159 = vadd.f32 0.0, %v9158
        %v9160 = vpop.f32.mrf.mxu0
        %9161 = vmatprep.mubr.bf16.mxu0 %v3722
        %9162 = vmatmul.mubr.bf16.gmra.mxu0 %v3721
        %v9163 = vpop.f32.mrf.mxu0
        %v9164 = vadd.f32 0.0, %v9163
        %v9165 = vpop.f32.mrf.mxu0
        %v9166 = vpop.f32.mrf.mxu0
        %v9167 = vadd.f32 0.0, %v9166
        %v9168 = vpop.f32.mrf.mxu0
        %9169 = vmatprep.mubr.bf16.mxu0 %v3730
        %9170 = vmatmul.mubr.bf16.gmra.mxu0 %v3729
        %v9171 = vpop.f32.mrf.mxu0
        %v9172 = vadd.f32 0.0, %v9171
        %v9173 = vpop.f32.mrf.mxu0
        %v9174 = vpop.f32.mrf.mxu0
        %v9175 = vadd.f32 0.0, %v9174
        %v9176 = vpop.f32.mrf.mxu0
        %9177 = vmatprep.mubr.bf16.mxu0 %v3738
        %9178 = vmatmul.mubr.bf16.gmra.mxu0 %v3737
        %v9179 = vpop.f32.mrf.mxu0
        %v9180 = vadd.f32 0.0, %v9179
        %v9181 = vpop.f32.mrf.mxu0
        %v9182 = vpop.f32.mrf.mxu0
        %v9183 = vadd.f32 0.0, %v9182
        %v9184 = vpop.f32.mrf.mxu0
        %9185 = vmatprep.mubr.bf16.mxu0 %v3746
        %9186 = vmatmul.mubr.bf16.gmra.mxu0 %v3745
        %v9187 = vpop.f32.mrf.mxu0
        %v9188 = vadd.f32 0.0, %v9187
        %v9189 = vpop.f32.mrf.mxu0
        %v9190 = vpop.f32.mrf.mxu0
        %v9191 = vadd.f32 0.0, %v9190
        %v9192 = vpop.f32.mrf.mxu0
        %9193 = vmatprep.mubr.bf16.mxu0 %v3754
        %9194 = vmatmul.mubr.bf16.gmra.mxu0 %v3753
        %v9195 = vpop.f32.mrf.mxu0
        %v9196 = vadd.f32 0.0, %v9195
        %v9197 = vpop.f32.mrf.mxu0
        %v9198 = vpop.f32.mrf.mxu0
        %v9199 = vadd.f32 0.0, %v9198
        %v9200 = vpop.f32.mrf.mxu0
        %9201 = vmatprep.mubr.bf16.mxu0 %v3762
        %9202 = vmatmul.mubr.bf16.gmra.mxu0 %v3761
        %v9203 = vpop.f32.mrf.mxu0
        %v9204 = vadd.f32 0.0, %v9203
        %v9205 = vpop.f32.mrf.mxu0
        %v9206 = vpop.f32.mrf.mxu0
        %v9207 = vadd.f32 0.0, %v9206
        %v9208 = vpop.f32.mrf.mxu0
        %9209 = vmatprep.mubr.bf16.mxu0 %v3770
        %9210 = vmatmul.mubr.bf16.gmra.mxu0 %v3769
        %v9211 = vpop.f32.mrf.mxu0
        %v9212 = vadd.f32 0.0, %v9211
        %v9213 = vpop.f32.mrf.mxu0
        %v9214 = vpop.f32.mrf.mxu0
        %v9215 = vadd.f32 0.0, %v9214
        %v9216 = vpop.f32.mrf.mxu0
        %9217 = vmatprep.mubr.bf16.mxu0 %v3778
        %9218 = vmatmul.mubr.bf16.gmra.mxu0 %v3777
        %v9219 = vpop.f32.mrf.mxu0
        %v9220 = vadd.f32 0.0, %v9219
        %v9221 = vpop.f32.mrf.mxu0
        %v9222 = vpop.f32.mrf.mxu0
        %v9223 = vadd.f32 0.0, %v9222
        %v9224 = vpop.f32.mrf.mxu0
        %9225 = vdwg.mxu0
        %9226 = vmatprep.subr.bf16.mxu0 0
        %9227 = vmatpush1.bf16.msra.mxu0 %v5880
        %9228 = vmatprep.subr.bf16.mxu0 0
        %9229 = vmatpush1.bf16.msra.mxu0 %v5871
        %9230 = vmatprep.subr.bf16.mxu0 0
        %9231 = vmatpush1.bf16.msra.mxu0 %v5862
        %9232 = vmatprep.subr.bf16.mxu0 0
        %9233 = vmatpush1.bf16.msra.mxu0 %v5853
        %9234 = vmatprep.subr.bf16.mxu0 0
        %9235 = vmatpush1.bf16.msra.mxu0 %v5844
        %9236 = vmatprep.subr.bf16.mxu0 0
        %9237 = vmatpush1.bf16.msra.mxu0 %v5835
        %9238 = vmatprep.subr.bf16.mxu0 0
        %9239 = vmatpush1.bf16.msra.mxu0 %v5826
        %9240 = vmatprep.subr.bf16.mxu0 0
        %9241 = vmatpush1.bf16.msra.mxu0 %v5817
        %9242 = vmatprep.subr.bf16.mxu0 0
        %9243 = vmatpush2.bf16.msra.mxu0 %v5952
        %9244 = vmatprep.subr.bf16.mxu0 0
        %9245 = vmatpush2.bf16.msra.mxu0 %v5943
        %9246 = vmatprep.subr.bf16.mxu0 0
        %9247 = vmatpush2.bf16.msra.mxu0 %v5934
        %9248 = vmatprep.subr.bf16.mxu0 0
        %9249 = vmatpush2.bf16.msra.mxu0 %v5925
        %9250 = vmatprep.subr.bf16.mxu0 0
        %9251 = vmatpush2.bf16.msra.mxu0 %v5916
        %9252 = vmatprep.subr.bf16.mxu0 0
        %9253 = vmatpush2.bf16.msra.mxu0 %v5907
        %9254 = vmatprep.subr.bf16.mxu0 0
        %9255 = vmatpush2.bf16.msra.mxu0 %v5898
        %9256 = vmatprep.subr.bf16.mxu0 0
        %9257 = vmatpush2.bf16.msra.mxu0 %v5889
        %9258 = vmatprep.mubr.bf16.mxu0 %v3700
        %9259 = vmatmul.mubr.bf16.gmra.mxu0 %v3699
        %v9260 = vpop.f32.mrf.mxu0
        %v9261 = vadd.f32 %v9140, %v9260
        %v9262 = vpop.f32.mrf.mxu0
        %v9263 = vpop.f32.mrf.mxu0
        %v9264 = vadd.f32 %v9143, %v9263
        %v9265 = vpop.f32.mrf.mxu0
        %9266 = vmatprep.mubr.bf16.mxu0 %v3708
        %9267 = vmatmul.mubr.bf16.gmra.mxu0 %v3707
        %v9268 = vpop.f32.mrf.mxu0
        %v9269 = vadd.f32 %v9148, %v9268
        %v9270 = vpop.f32.mrf.mxu0
        %v9271 = vpop.f32.mrf.mxu0
        %v9272 = vadd.f32 %v9151, %v9271
        %v9273 = vpop.f32.mrf.mxu0
        %9274 = vmatprep.mubr.bf16.mxu0 %v3716
        %9275 = vmatmul.mubr.bf16.gmra.mxu0 %v3715
        %v9276 = vpop.f32.mrf.mxu0
        %v9277 = vadd.f32 %v9156, %v9276
        %v9278 = vpop.f32.mrf.mxu0
        %v9279 = vpop.f32.mrf.mxu0
        %v9280 = vadd.f32 %v9159, %v9279
        %v9281 = vpop.f32.mrf.mxu0
        %9282 = vmatprep.mubr.bf16.mxu0 %v3724
        %9283 = vmatmul.mubr.bf16.gmra.mxu0 %v3723
        %v9284 = vpop.f32.mrf.mxu0
        %v9285 = vadd.f32 %v9164, %v9284
        %v9286 = vpop.f32.mrf.mxu0
        %v9287 = vpop.f32.mrf.mxu0
        %v9288 = vadd.f32 %v9167, %v9287
        %v9289 = vpop.f32.mrf.mxu0
        %9290 = vmatprep.mubr.bf16.mxu0 %v3732
        %9291 = vmatmul.mubr.bf16.gmra.mxu0 %v3731
        %v9292 = vpop.f32.mrf.mxu0
        %v9293 = vadd.f32 %v9172, %v9292
        %v9294 = vpop.f32.mrf.mxu0
        %v9295 = vpop.f32.mrf.mxu0
        %v9296 = vadd.f32 %v9175, %v9295
        %v9297 = vpop.f32.mrf.mxu0
        %9298 = vmatprep.mubr.bf16.mxu0 %v3740
        %9299 = vmatmul.mubr.bf16.gmra.mxu0 %v3739
        %v9300 = vpop.f32.mrf.mxu0
        %v9301 = vadd.f32 %v9180, %v9300
        %v9302 = vpop.f32.mrf.mxu0
        %v9303 = vpop.f32.mrf.mxu0
        %v9304 = vadd.f32 %v9183, %v9303
        %v9305 = vpop.f32.mrf.mxu0
        %9306 = vmatprep.mubr.bf16.mxu0 %v3748
        %9307 = vmatmul.mubr.bf16.gmra.mxu0 %v3747
        %v9308 = vpop.f32.mrf.mxu0
        %v9309 = vadd.f32 %v9188, %v9308
        %v9310 = vpop.f32.mrf.mxu0
        %v9311 = vpop.f32.mrf.mxu0
        %v9312 = vadd.f32 %v9191, %v9311
        %v9313 = vpop.f32.mrf.mxu0
        %9314 = vmatprep.mubr.bf16.mxu0 %v3756
        %9315 = vmatmul.mubr.bf16.gmra.mxu0 %v3755
        %v9316 = vpop.f32.mrf.mxu0
        %v9317 = vadd.f32 %v9196, %v9316
        %v9318 = vpop.f32.mrf.mxu0
        %v9319 = vpop.f32.mrf.mxu0
        %v9320 = vadd.f32 %v9199, %v9319
        %v9321 = vpop.f32.mrf.mxu0
        %9322 = vmatprep.mubr.bf16.mxu0 %v3764
        %9323 = vmatmul.mubr.bf16.gmra.mxu0 %v3763
        %v9324 = vpop.f32.mrf.mxu0
        %v9325 = vadd.f32 %v9204, %v9324
        %v9326 = vpop.f32.mrf.mxu0
        %v9327 = vpop.f32.mrf.mxu0
        %v9328 = vadd.f32 %v9207, %v9327
        %v9329 = vpop.f32.mrf.mxu0
        %9330 = vmatprep.mubr.bf16.mxu0 %v3772
        %9331 = vmatmul.mubr.bf16.gmra.mxu0 %v3771
        %v9332 = vpop.f32.mrf.mxu0
        %v9333 = vadd.f32 %v9212, %v9332
        %v9334 = vpop.f32.mrf.mxu0
        %v9335 = vpop.f32.mrf.mxu0
        %v9336 = vadd.f32 %v9215, %v9335
        %v9337 = vpop.f32.mrf.mxu0
        %9338 = vmatprep.mubr.bf16.mxu0 %v3780
        %9339 = vmatmul.mubr.bf16.gmra.mxu0 %v3779
        %v9340 = vpop.f32.mrf.mxu0
        %v9341 = vadd.f32 %v9220, %v9340
        %v9342 = vpop.f32.mrf.mxu0
        %v9343 = vpop.f32.mrf.mxu0
        %v9344 = vadd.f32 %v9223, %v9343
        %v9345 = vpop.f32.mrf.mxu0
        %9346 = vdwg.mxu0
        %9347 = vmatprep.subr.bf16.mxu0 0
        %9348 = vmatpush1.bf16.msra.mxu0 %v6024
        %9349 = vmatprep.subr.bf16.mxu0 0
        %9350 = vmatpush1.bf16.msra.mxu0 %v6015
        %9351 = vmatprep.subr.bf16.mxu0 0
        %9352 = vmatpush1.bf16.msra.mxu0 %v6006
        %9353 = vmatprep.subr.bf16.mxu0 0
        %9354 = vmatpush1.bf16.msra.mxu0 %v5997
        %9355 = vmatprep.subr.bf16.mxu0 0
        %9356 = vmatpush1.bf16.msra.mxu0 %v5988
        %9357 = vmatprep.subr.bf16.mxu0 0
        %9358 = vmatpush1.bf16.msra.mxu0 %v5979
        %9359 = vmatprep.subr.bf16.mxu0 0
        %9360 = vmatpush1.bf16.msra.mxu0 %v5970
        %9361 = vmatprep.subr.bf16.mxu0 0
        %9362 = vmatpush1.bf16.msra.mxu0 %v5961
        %9363 = vmatprep.subr.bf16.mxu0 0
        %9364 = vmatpush2.bf16.msra.mxu0 %v6096
        %9365 = vmatprep.subr.bf16.mxu0 0
        %9366 = vmatpush2.bf16.msra.mxu0 %v6087
        %9367 = vmatprep.subr.bf16.mxu0 0
        %9368 = vmatpush2.bf16.msra.mxu0 %v6078
        %9369 = vmatprep.subr.bf16.mxu0 0
        %9370 = vmatpush2.bf16.msra.mxu0 %v6069
        %9371 = vmatprep.subr.bf16.mxu0 0
        %9372 = vmatpush2.bf16.msra.mxu0 %v6060
        %9373 = vmatprep.subr.bf16.mxu0 0
        %9374 = vmatpush2.bf16.msra.mxu0 %v6051
        %9375 = vmatprep.subr.bf16.mxu0 0
        %9376 = vmatpush2.bf16.msra.mxu0 %v6042
        %9377 = vmatprep.subr.bf16.mxu0 0
        %9378 = vmatpush2.bf16.msra.mxu0 %v6033
        %9379 = vmatprep.mubr.bf16.mxu0 %v3702
        %9380 = vmatmul.mubr.bf16.gmra.mxu0 %v3701
        %v9381 = vpop.f32.mrf.mxu0
        %v9382 = vadd.f32 %v9261, %v9381
        %v9383 = vpop.f32.mrf.mxu0
        %v9384 = vpop.f32.mrf.mxu0
        %v9385 = vadd.f32 %v9264, %v9384
        %v9386 = vpop.f32.mrf.mxu0
        %9387 = vmatprep.mubr.bf16.mxu0 %v3710
        %9388 = vmatmul.mubr.bf16.gmra.mxu0 %v3709
        %v9389 = vpop.f32.mrf.mxu0
        %v9390 = vadd.f32 %v9269, %v9389
        %v9391 = vpop.f32.mrf.mxu0
        %v9392 = vpop.f32.mrf.mxu0
        %v9393 = vadd.f32 %v9272, %v9392
        %v9394 = vpop.f32.mrf.mxu0
        %9395 = vmatprep.mubr.bf16.mxu0 %v3718
        %9396 = vmatmul.mubr.bf16.gmra.mxu0 %v3717
        %v9397 = vpop.f32.mrf.mxu0
        %v9398 = vadd.f32 %v9277, %v9397
        %v9399 = vpop.f32.mrf.mxu0
        %v9400 = vpop.f32.mrf.mxu0
        %v9401 = vadd.f32 %v9280, %v9400
        %v9402 = vpop.f32.mrf.mxu0
        %9403 = vmatprep.mubr.bf16.mxu0 %v3726
        %9404 = vmatmul.mubr.bf16.gmra.mxu0 %v3725
        %v9405 = vpop.f32.mrf.mxu0
        %v9406 = vadd.f32 %v9285, %v9405
        %v9407 = vpop.f32.mrf.mxu0
        %v9408 = vpop.f32.mrf.mxu0
        %v9409 = vadd.f32 %v9288, %v9408
        %v9410 = vpop.f32.mrf.mxu0
        %9411 = vmatprep.mubr.bf16.mxu0 %v3734
        %9412 = vmatmul.mubr.bf16.gmra.mxu0 %v3733
        %v9413 = vpop.f32.mrf.mxu0
        %v9414 = vadd.f32 %v9293, %v9413
        %v9415 = vpop.f32.mrf.mxu0
        %v9416 = vpop.f32.mrf.mxu0
        %v9417 = vadd.f32 %v9296, %v9416
        %v9418 = vpop.f32.mrf.mxu0
        %9419 = vmatprep.mubr.bf16.mxu0 %v3742
        %9420 = vmatmul.mubr.bf16.gmra.mxu0 %v3741
        %v9421 = vpop.f32.mrf.mxu0
        %v9422 = vadd.f32 %v9301, %v9421
        %v9423 = vpop.f32.mrf.mxu0
        %v9424 = vpop.f32.mrf.mxu0
        %v9425 = vadd.f32 %v9304, %v9424
        %v9426 = vpop.f32.mrf.mxu0
        %9427 = vmatprep.mubr.bf16.mxu0 %v3750
        %9428 = vmatmul.mubr.bf16.gmra.mxu0 %v3749
        %v9429 = vpop.f32.mrf.mxu0
        %v9430 = vadd.f32 %v9309, %v9429
        %v9431 = vpop.f32.mrf.mxu0
        %v9432 = vpop.f32.mrf.mxu0
        %v9433 = vadd.f32 %v9312, %v9432
        %v9434 = vpop.f32.mrf.mxu0
        %9435 = vmatprep.mubr.bf16.mxu0 %v3758
        %9436 = vmatmul.mubr.bf16.gmra.mxu0 %v3757
        %v9437 = vpop.f32.mrf.mxu0
        %v9438 = vadd.f32 %v9317, %v9437
        %v9439 = vpop.f32.mrf.mxu0
        %v9440 = vpop.f32.mrf.mxu0
        %v9441 = vadd.f32 %v9320, %v9440
        %v9442 = vpop.f32.mrf.mxu0
        %9443 = vmatprep.mubr.bf16.mxu0 %v3766
        %9444 = vmatmul.mubr.bf16.gmra.mxu0 %v3765
        %v9445 = vpop.f32.mrf.mxu0
        %v9446 = vadd.f32 %v9325, %v9445
        %v9447 = vpop.f32.mrf.mxu0
        %v9448 = vpop.f32.mrf.mxu0
        %v9449 = vadd.f32 %v9328, %v9448
        %v9450 = vpop.f32.mrf.mxu0
        %9451 = vmatprep.mubr.bf16.mxu0 %v3774
        %9452 = vmatmul.mubr.bf16.gmra.mxu0 %v3773
        %v9453 = vpop.f32.mrf.mxu0
        %v9454 = vadd.f32 %v9333, %v9453
        %v9455 = vpop.f32.mrf.mxu0
        %v9456 = vpop.f32.mrf.mxu0
        %v9457 = vadd.f32 %v9336, %v9456
        %v9458 = vpop.f32.mrf.mxu0
        %9459 = vmatprep.mubr.bf16.mxu0 %v3782
        %9460 = vmatmul.mubr.bf16.gmra.mxu0 %v3781
        %v9461 = vpop.f32.mrf.mxu0
        %v9462 = vadd.f32 %v9341, %v9461
        %v9463 = vpop.f32.mrf.mxu0
        %v9464 = vpop.f32.mrf.mxu0
        %v9465 = vadd.f32 %v9344, %v9464
        %v9466 = vpop.f32.mrf.mxu0
        %9467 = vdwg.mxu0
        %9468 = vmatprep.subr.bf16.mxu0 0
        %9469 = vmatpush1.bf16.msra.mxu0 %v6168
        %9470 = vmatprep.subr.bf16.mxu0 0
        %9471 = vmatpush1.bf16.msra.mxu0 %v6159
        %9472 = vmatprep.subr.bf16.mxu0 0
        %9473 = vmatpush1.bf16.msra.mxu0 %v6150
        %9474 = vmatprep.subr.bf16.mxu0 0
        %9475 = vmatpush1.bf16.msra.mxu0 %v6141
        %9476 = vmatprep.subr.bf16.mxu0 0
        %9477 = vmatpush1.bf16.msra.mxu0 %v6132
        %9478 = vmatprep.subr.bf16.mxu0 0
        %9479 = vmatpush1.bf16.msra.mxu0 %v6123
        %9480 = vmatprep.subr.bf16.mxu0 0
        %9481 = vmatpush1.bf16.msra.mxu0 %v6114
        %9482 = vmatprep.subr.bf16.mxu0 0
        %9483 = vmatpush1.bf16.msra.mxu0 %v6105
        %9484 = vmatprep.subr.bf16.mxu0 0
        %9485 = vmatpush2.bf16.msra.mxu0 %v6240
        %9486 = vmatprep.subr.bf16.mxu0 0
        %9487 = vmatpush2.bf16.msra.mxu0 %v6231
        %9488 = vmatprep.subr.bf16.mxu0 0
        %9489 = vmatpush2.bf16.msra.mxu0 %v6222
        %9490 = vmatprep.subr.bf16.mxu0 0
        %9491 = vmatpush2.bf16.msra.mxu0 %v6213
        %9492 = vmatprep.subr.bf16.mxu0 0
        %9493 = vmatpush2.bf16.msra.mxu0 %v6204
        %9494 = vmatprep.subr.bf16.mxu0 0
        %9495 = vmatpush2.bf16.msra.mxu0 %v6195
        %9496 = vmatprep.subr.bf16.mxu0 0
        %9497 = vmatpush2.bf16.msra.mxu0 %v6186
        %9498 = vmatprep.subr.bf16.mxu0 0
        %9499 = vmatpush2.bf16.msra.mxu0 %v6177
        %9500 = vmatprep.mubr.bf16.mxu0 %v3704
        %9501 = vmatmul.mubr.bf16.gmra.mxu0 %v3703
        %v9502 = vpop.f32.mrf.mxu0
        %v9503 = vadd.f32 %v9382, %v9502
        %v9504 = vpop.f32.mrf.mxu0
        %v9505 = vpop.f32.mrf.mxu0
        %v9506 = vadd.f32 %v9385, %v9505
        %v9507 = vpop.f32.mrf.mxu0
        %9508 = vmatprep.mubr.bf16.mxu0 %v3712
        %9509 = vmatmul.mubr.bf16.gmra.mxu0 %v3711
        %v9510 = vpop.f32.mrf.mxu0
        %v9511 = vadd.f32 %v9390, %v9510
        %v9512 = vpop.f32.mrf.mxu0
        %v9513 = vpop.f32.mrf.mxu0
        %v9514 = vadd.f32 %v9393, %v9513
        %v9515 = vpop.f32.mrf.mxu0
        %9516 = vmatprep.mubr.bf16.mxu0 %v3720
        %9517 = vmatmul.mubr.bf16.gmra.mxu0 %v3719
        %v9518 = vpop.f32.mrf.mxu0
        %v9519 = vadd.f32 %v9398, %v9518
        %v9520 = vpop.f32.mrf.mxu0
        %v9521 = vpop.f32.mrf.mxu0
        %v9522 = vadd.f32 %v9401, %v9521
        %v9523 = vpop.f32.mrf.mxu0
        %9524 = vmatprep.mubr.bf16.mxu0 %v3728
        %9525 = vmatmul.mubr.bf16.gmra.mxu0 %v3727
        %v9526 = vpop.f32.mrf.mxu0
        %v9527 = vadd.f32 %v9406, %v9526
        %v9528 = vpop.f32.mrf.mxu0
        %v9529 = vpop.f32.mrf.mxu0
        %v9530 = vadd.f32 %v9409, %v9529
        %v9531 = vpop.f32.mrf.mxu0
        %9532 = vmatprep.mubr.bf16.mxu0 %v3736
        %9533 = vmatmul.mubr.bf16.gmra.mxu0 %v3735
        %v9534 = vpop.f32.mrf.mxu0
        %v9535 = vadd.f32 %v9414, %v9534
        %v9536 = vpop.f32.mrf.mxu0
        %v9537 = vpop.f32.mrf.mxu0
        %v9538 = vadd.f32 %v9417, %v9537
        %v9539 = vpop.f32.mrf.mxu0
        %9540 = vmatprep.mubr.bf16.mxu0 %v3744
        %9541 = vmatmul.mubr.bf16.gmra.mxu0 %v3743
        %v9542 = vpop.f32.mrf.mxu0
        %v9543 = vadd.f32 %v9422, %v9542
        %v9544 = vpop.f32.mrf.mxu0
        %v9545 = vpop.f32.mrf.mxu0
        %v9546 = vadd.f32 %v9425, %v9545
        %v9547 = vpop.f32.mrf.mxu0
        %9548 = vmatprep.mubr.bf16.mxu0 %v3752
        %9549 = vmatmul.mubr.bf16.gmra.mxu0 %v3751
        %v9550 = vpop.f32.mrf.mxu0
        %v9551 = vadd.f32 %v9430, %v9550
        %v9552 = vpop.f32.mrf.mxu0
        %v9553 = vpop.f32.mrf.mxu0
        %v9554 = vadd.f32 %v9433, %v9553
        %v9555 = vpop.f32.mrf.mxu0
        %9556 = vmatprep.mubr.bf16.mxu0 %v3760
        %9557 = vmatmul.mubr.bf16.gmra.mxu0 %v3759
        %v9558 = vpop.f32.mrf.mxu0
        %v9559 = vadd.f32 %v9438, %v9558
        %v9560 = vpop.f32.mrf.mxu0
        %v9561 = vpop.f32.mrf.mxu0
        %v9562 = vadd.f32 %v9441, %v9561
        %v9563 = vpop.f32.mrf.mxu0
        %9564 = vmatprep.mubr.bf16.mxu0 %v3768
        %9565 = vmatmul.mubr.bf16.gmra.mxu0 %v3767
        %v9566 = vpop.f32.mrf.mxu0
        %v9567 = vadd.f32 %v9446, %v9566
        %v9568 = vpop.f32.mrf.mxu0
        %v9569 = vpop.f32.mrf.mxu0
        %v9570 = vadd.f32 %v9449, %v9569
        %v9571 = vpop.f32.mrf.mxu0
        %9572 = vmatprep.mubr.bf16.mxu0 %v3776
        %9573 = vmatmul.mubr.bf16.gmra.mxu0 %v3775
        %v9574 = vpop.f32.mrf.mxu0
        %v9575 = vadd.f32 %v9454, %v9574
        %v9576 = vpop.f32.mrf.mxu0
        %v9577 = vpop.f32.mrf.mxu0
        %v9578 = vadd.f32 %v9457, %v9577
        %v9579 = vpop.f32.mrf.mxu0
        %9580 = vmatprep.mubr.bf16.mxu0 %v3784
        %9581 = vmatmul.mubr.bf16.gmra.mxu0 %v3783
        %v9582 = vpop.f32.mrf.mxu0
        %v9583 = vadd.f32 %v9462, %v9582
        %v9584 = vpop.f32.mrf.mxu0
        %v9585 = vpop.f32.mrf.mxu0
        %v9586 = vadd.f32 %v9465, %v9585
        %v9587 = vpop.f32.mrf.mxu0
        %9588 = vdwg.mxu0
        %9589 = vst [vmem:[#allocation3] sm:$0xff] %v7281
        %9590 = vst [vmem:[#allocation3 + $0x8] sm:$0xff] %v7283
        %9591 = vst [vmem:[#allocation3 + $0x10] sm:$0xff] %v7853
        %9592 = vst [vmem:[#allocation3 + $0x18] sm:$0xff] %v7855
        %9593 = vst [vmem:[#allocation3 + $0x20] sm:$0xff] %v8425
        %9594 = vst [vmem:[#allocation3 + $0x28] sm:$0xff] %v8427
        %9595 = vst [vmem:[#allocation3 + $0x30] sm:$0xff] %v8997
        %9596 = vst [vmem:[#allocation3 + $0x38] sm:$0xff] %v8999
        %9597 = vst [vmem:[#allocation3 + $0x40] sm:$0xff] %v9503
        %9598 = vst [vmem:[#allocation3 + $0x48] sm:$0xff] %v7285
        %9599 = vst [vmem:[#allocation3 + $0x50] sm:$0xff] %v7287
        %9600 = vst [vmem:[#allocation3 + $0x58] sm:$0xff] %v7857
        %9601 = vst [vmem:[#allocation3 + $0x60] sm:$0xff] %v7859
        %9602 = vst [vmem:[#allocation3 + $0x68] sm:$0xff] %v8429
        %9603 = vst [vmem:[#allocation3 + $0x70] sm:$0xff] %v8431
        %9604 = vst [vmem:[#allocation3 + $0x78] sm:$0xff] %v9001
        %9605 = vst [vmem:[#allocation3 + $0x80] sm:$0xff] %v9003
        %9606 = vst [vmem:[#allocation3 + $0x88] sm:$0xff] %v9506
        %9607 = vst [vmem:[#allocation3 + $0x90] sm:$0xff] %v7291
        %9608 = vst [vmem:[#allocation3 + $0x98] sm:$0xff] %v7293
        %9609 = vst [vmem:[#allocation3 + $0xa0] sm:$0xff] %v7863
        %9610 = vst [vmem:[#allocation3 + $0xa8] sm:$0xff] %v7865
        %9611 = vst [vmem:[#allocation3 + $0xb0] sm:$0xff] %v8435
        %9612 = vst [vmem:[#allocation3 + $0xb8] sm:$0xff] %v8437
        %9613 = vst [vmem:[#allocation3 + $0xc0] sm:$0xff] %v9007
        %9614 = vst [vmem:[#allocation3 + $0xc8] sm:$0xff] %v9009
        %9615 = vst [vmem:[#allocation3 + $0xd0] sm:$0xff] %v9511
        %9616 = vst [vmem:[#allocation3 + $0xd8] sm:$0xff] %v7295
        %9617 = vst [vmem:[#allocation3 + $0xe0] sm:$0xff] %v7297
        %9618 = vst [vmem:[#allocation3 + $0xe8] sm:$0xff] %v7867
        %9619 = vst [vmem:[#allocation3 + $0xf0] sm:$0xff] %v7869
        %9620 = vst [vmem:[#allocation3 + $0xf8] sm:$0xff] %v8439
        %9621 = vst [vmem:[#allocation3 + $0x100] sm:$0xff] %v8441
        %9622 = vst [vmem:[#allocation3 + $0x108] sm:$0xff] %v9011
        %9623 = vst [vmem:[#allocation3 + $0x110] sm:$0xff] %v9013
        %9624 = vst [vmem:[#allocation3 + $0x118] sm:$0xff] %v9514
        %9625 = vst [vmem:[#allocation3 + $0x120] sm:$0xff] %v7301
        %9626 = vst [vmem:[#allocation3 + $0x128] sm:$0xff] %v7303
        %9627 = vst [vmem:[#allocation3 + $0x130] sm:$0xff] %v7873
        %9628 = vst [vmem:[#allocation3 + $0x138] sm:$0xff] %v7875
        %9629 = vst [vmem:[#allocation3 + $0x140] sm:$0xff] %v8445
        %9630 = vst [vmem:[#allocation3 + $0x148] sm:$0xff] %v8447
        %9631 = vst [vmem:[#allocation3 + $0x150] sm:$0xff] %v9017
        %9632 = vst [vmem:[#allocation3 + $0x158] sm:$0xff] %v9019
        %9633 = vst [vmem:[#allocation3 + $0x160] sm:$0xff] %v9519
        %9634 = vst [vmem:[#allocation3 + $0x168] sm:$0xff] %v7305
        %9635 = vst [vmem:[#allocation3 + $0x170] sm:$0xff] %v7307
        %9636 = vst [vmem:[#allocation3 + $0x178] sm:$0xff] %v7877
        %9637 = vst [vmem:[#allocation3 + $0x180] sm:$0xff] %v7879
        %9638 = vst [vmem:[#allocation3 + $0x188] sm:$0xff] %v8449
        %9639 = vst [vmem:[#allocation3 + $0x190] sm:$0xff] %v8451
        %9640 = vst [vmem:[#allocation3 + $0x198] sm:$0xff] %v9021
        %9641 = vst [vmem:[#allocation3 + $0x1a0] sm:$0xff] %v9023
        %9642 = vst [vmem:[#allocation3 + $0x1a8] sm:$0xff] %v9522
        %9643 = vst [vmem:[#allocation3 + $0x1b0] sm:$0xff] %v7311
        %9644 = vst [vmem:[#allocation3 + $0x1b8] sm:$0xff] %v7313
        %9645 = vst [vmem:[#allocation3 + $0x1c0] sm:$0xff] %v7883
        %9646 = vst [vmem:[#allocation3 + $0x1c8] sm:$0xff] %v7885
        %9647 = vst [vmem:[#allocation3 + $0x1d0] sm:$0xff] %v8455
        %9648 = vst [vmem:[#allocation3 + $0x1d8] sm:$0xff] %v8457
        %9649 = vst [vmem:[#allocation3 + $0x1e0] sm:$0xff] %v9027
        %9650 = vst [vmem:[#allocation3 + $0x1e8] sm:$0xff] %v9029
        %9651 = vst [vmem:[#allocation3 + $0x1f0] sm:$0xff] %v9527
        %9652 = vst [vmem:[#allocation3 + $0x1f8] sm:$0xff] %v7315
        %9653 = vst [vmem:[#allocation3 + $0x200] sm:$0xff] %v7317
        %9654 = vst [vmem:[#allocation3 + $0x208] sm:$0xff] %v7887
        %9655 = vst [vmem:[#allocation3 + $0x210] sm:$0xff] %v7889
        %9656 = vst [vmem:[#allocation3 + $0x218] sm:$0xff] %v8459
        %9657 = vst [vmem:[#allocation3 + $0x220] sm:$0xff] %v8461
        %9658 = vst [vmem:[#allocation3 + $0x228] sm:$0xff] %v9031
        %9659 = vst [vmem:[#allocation3 + $0x230] sm:$0xff] %v9033
        %9660 = vst [vmem:[#allocation3 + $0x238] sm:$0xff] %v9530
        %9661 = vst [vmem:[#allocation3 + $0x240] sm:$0xff] %v7321
        %9662 = vst [vmem:[#allocation3 + $0x248] sm:$0xff] %v7323
        %9663 = vst [vmem:[#allocation3 + $0x250] sm:$0xff] %v7893
        %9664 = vst [vmem:[#allocation3 + $0x258] sm:$0xff] %v7895
        %9665 = vst [vmem:[#allocation3 + $0x260] sm:$0xff] %v8465
        %9666 = vst [vmem:[#allocation3 + $0x268] sm:$0xff] %v8467
        %9667 = vst [vmem:[#allocation3 + $0x270] sm:$0xff] %v9037
        %9668 = vst [vmem:[#allocation3 + $0x278] sm:$0xff] %v9039
        %9669 = vst [vmem:[#allocation3 + $0x280] sm:$0xff] %v9535
        %9670 = vst [vmem:[#allocation3 + $0x288] sm:$0xff] %v7325
        %9671 = vst [vmem:[#allocation3 + $0x290] sm:$0xff] %v7327
        %9672 = vst [vmem:[#allocation3 + $0x298] sm:$0xff] %v7897
        %9673 = vst [vmem:[#allocation3 + $0x2a0] sm:$0xff] %v7899
        %9674 = vst [vmem:[#allocation3 + $0x2a8] sm:$0xff] %v8469
        %9675 = vst [vmem:[#allocation3 + $0x2b0] sm:$0xff] %v8471
        %9676 = vst [vmem:[#allocation3 + $0x2b8] sm:$0xff] %v9041
        %9677 = vst [vmem:[#allocation3 + $0x2c0] sm:$0xff] %v9043
        %9678 = vst [vmem:[#allocation3 + $0x2c8] sm:$0xff] %v9538
        %9679 = vst [vmem:[#allocation3 + $0x2d0] sm:$0xff] %v7331
        %9680 = vst [vmem:[#allocation3 + $0x2d8] sm:$0xff] %v7333
        %9681 = vst [vmem:[#allocation3 + $0x2e0] sm:$0xff] %v7903
        %9682 = vst [vmem:[#allocation3 + $0x2e8] sm:$0xff] %v7905
        %9683 = vst [vmem:[#allocation3 + $0x2f0] sm:$0xff] %v8475
        %9684 = vst [vmem:[#allocation3 + $0x2f8] sm:$0xff] %v8477
        %9685 = vst [vmem:[#allocation3 + $0x300] sm:$0xff] %v9047
        %9686 = vst [vmem:[#allocation3 + $0x308] sm:$0xff] %v9049
        %9687 = vst [vmem:[#allocation3 + $0x310] sm:$0xff] %v9543
        %9688 = vst [vmem:[#allocation3 + $0x318] sm:$0xff] %v7335
        %9689 = vst [vmem:[#allocation3 + $0x320] sm:$0xff] %v7337
        %9690 = vst [vmem:[#allocation3 + $0x328] sm:$0xff] %v7907
        %9691 = vst [vmem:[#allocation3 + $0x330] sm:$0xff] %v7909
        %9692 = vst [vmem:[#allocation3 + $0x338] sm:$0xff] %v8479
        %9693 = vst [vmem:[#allocation3 + $0x340] sm:$0xff] %v8481
        %9694 = vst [vmem:[#allocation3 + $0x348] sm:$0xff] %v9051
        %9695 = vst [vmem:[#allocation3 + $0x350] sm:$0xff] %v9053
        %9696 = vst [vmem:[#allocation3 + $0x358] sm:$0xff] %v9546
        %9697 = vst [vmem:[#allocation3 + $0x360] sm:$0xff] %v7341
        %9698 = vst [vmem:[#allocation3 + $0x368] sm:$0xff] %v7343
        %9699 = vst [vmem:[#allocation3 + $0x370] sm:$0xff] %v7913
        %9700 = vst [vmem:[#allocation3 + $0x378] sm:$0xff] %v7915
        %9701 = vst [vmem:[#allocation3 + $0x380] sm:$0xff] %v8485
        %9702 = vst [vmem:[#allocation3 + $0x388] sm:$0xff] %v8487
        %9703 = vst [vmem:[#allocation3 + $0x390] sm:$0xff] %v9057
        %9704 = vst [vmem:[#allocation3 + $0x398] sm:$0xff] %v9059
        %9705 = vst [vmem:[#allocation3 + $0x3a0] sm:$0xff] %v9551
        %9706 = vst [vmem:[#allocation3 + $0x3a8] sm:$0xff] %v7345
        %9707 = vst [vmem:[#allocation3 + $0x3b0] sm:$0xff] %v7347
        %9708 = vst [vmem:[#allocation3 + $0x3b8] sm:$0xff] %v7917
        %9709 = vst [vmem:[#allocation3 + $0x3c0] sm:$0xff] %v7919
        %9710 = vst [vmem:[#allocation3 + $0x3c8] sm:$0xff] %v8489
        %9711 = vst [vmem:[#allocation3 + $0x3d0] sm:$0xff] %v8491
        %9712 = vst [vmem:[#allocation3 + $0x3d8] sm:$0xff] %v9061
        %9713 = vst [vmem:[#allocation3 + $0x3e0] sm:$0xff] %v9063
        %9714 = vst [vmem:[#allocation3 + $0x3e8] sm:$0xff] %v9554
        %9715 = vst [vmem:[#allocation3 + $0x3f0] sm:$0xff] %v7351
        %9716 = vst [vmem:[#allocation3 + $0x3f8] sm:$0xff] %v7353
        %9717 = vst [vmem:[#allocation3 + $0x400] sm:$0xff] %v7923
        %9718 = vst [vmem:[#allocation3 + $0x408] sm:$0xff] %v7925
        %9719 = vst [vmem:[#allocation3 + $0x410] sm:$0xff] %v8495
        %9720 = vst [vmem:[#allocation3 + $0x418] sm:$0xff] %v8497
        %9721 = vst [vmem:[#allocation3 + $0x420] sm:$0xff] %v9067
        %9722 = vst [vmem:[#allocation3 + $0x428] sm:$0xff] %v9069
        %9723 = vst [vmem:[#allocation3 + $0x430] sm:$0xff] %v9559
        %9724 = vst [vmem:[#allocation3 + $0x438] sm:$0xff] %v7355
        %9725 = vst [vmem:[#allocation3 + $0x440] sm:$0xff] %v7357
        %9726 = vst [vmem:[#allocation3 + $0x448] sm:$0xff] %v7927
        %9727 = vst [vmem:[#allocation3 + $0x450] sm:$0xff] %v7929
        %9728 = vst [vmem:[#allocation3 + $0x458] sm:$0xff] %v8499
        %9729 = vst [vmem:[#allocation3 + $0x460] sm:$0xff] %v8501
        %9730 = vst [vmem:[#allocation3 + $0x468] sm:$0xff] %v9071
        %9731 = vst [vmem:[#allocation3 + $0x470] sm:$0xff] %v9073
        %9732 = vst [vmem:[#allocation3 + $0x478] sm:$0xff] %v9562
        %9733 = vst [vmem:[#allocation3 + $0x480] sm:$0xff] %v7361
        %9734 = vst [vmem:[#allocation3 + $0x488] sm:$0xff] %v7363
        %9735 = vst [vmem:[#allocation3 + $0x490] sm:$0xff] %v7933
        %9736 = vst [vmem:[#allocation3 + $0x498] sm:$0xff] %v7935
        %9737 = vst [vmem:[#allocation3 + $0x4a0] sm:$0xff] %v8505
        %9738 = vst [vmem:[#allocation3 + $0x4a8] sm:$0xff] %v8507
        %9739 = vst [vmem:[#allocation3 + $0x4b0] sm:$0xff] %v9077
        %9740 = vst [vmem:[#allocation3 + $0x4b8] sm:$0xff] %v9079
        %9741 = vst [vmem:[#allocation3 + $0x4c0] sm:$0xff] %v9567
        %9742 = vst [vmem:[#allocation3 + $0x4c8] sm:$0xff] %v7365
        %9743 = vst [vmem:[#allocation3 + $0x4d0] sm:$0xff] %v7367
        %9744 = vst [vmem:[#allocation3 + $0x4d8] sm:$0xff] %v7937
        %9745 = vst [vmem:[#allocation3 + $0x4e0] sm:$0xff] %v7939
        %9746 = vst [vmem:[#allocation3 + $0x4e8] sm:$0xff] %v8509
        %9747 = vst [vmem:[#allocation3 + $0x4f0] sm:$0xff] %v8511
        %9748 = vst [vmem:[#allocation3 + $0x4f8] sm:$0xff] %v9081
        %9749 = vst [vmem:[#allocation3 + $0x500] sm:$0xff] %v9083
        %9750 = vst [vmem:[#allocation3 + $0x508] sm:$0xff] %v9570
        %9751 = vst [vmem:[#allocation3 + $0x510] sm:$0xff] %v7371
        %9752 = vst [vmem:[#allocation3 + $0x518] sm:$0xff] %v7373
        %9753 = vst [vmem:[#allocation3 + $0x520] sm:$0xff] %v7943
        %9754 = vst [vmem:[#allocation3 + $0x528] sm:$0xff] %v7945
        %9755 = vst [vmem:[#allocation3 + $0x530] sm:$0xff] %v8515
        %9756 = vst [vmem:[#allocation3 + $0x538] sm:$0xff] %v8517
        %9757 = vst [vmem:[#allocation3 + $0x540] sm:$0xff] %v9087
        %9758 = vst [vmem:[#allocation3 + $0x548] sm:$0xff] %v9089
        %9759 = vst [vmem:[#allocation3 + $0x550] sm:$0xff] %v9575
        %9760 = vst [vmem:[#allocation3 + $0x558] sm:$0xff] %v7375
        %9761 = vst [vmem:[#allocation3 + $0x560] sm:$0xff] %v7377
        %9762 = vst [vmem:[#allocation3 + $0x568] sm:$0xff] %v7947
        %9763 = vst [vmem:[#allocation3 + $0x570] sm:$0xff] %v7949
        %9764 = vst [vmem:[#allocation3 + $0x578] sm:$0xff] %v8519
        %9765 = vst [vmem:[#allocation3 + $0x580] sm:$0xff] %v8521
        %9766 = vst [vmem:[#allocation3 + $0x588] sm:$0xff] %v9091
        %9767 = vst [vmem:[#allocation3 + $0x590] sm:$0xff] %v9093
        %9768 = vst [vmem:[#allocation3 + $0x598] sm:$0xff] %v9578
        %9769 = vst [vmem:[#allocation3 + $0x5a0] sm:$0xff] %v7381
        %9770 = vst [vmem:[#allocation3 + $0x5a8] sm:$0xff] %v7383
        %9771 = vst [vmem:[#allocation3 + $0x5b0] sm:$0xff] %v7953
        %9772 = vst [vmem:[#allocation3 + $0x5b8] sm:$0xff] %v7955
        %9773 = vst [vmem:[#allocation3 + $0x5c0] sm:$0xff] %v8525
        %9774 = vst [vmem:[#allocation3 + $0x5c8] sm:$0xff] %v8527
        %9775 = vst [vmem:[#allocation3 + $0x5d0] sm:$0xff] %v9097
        %9776 = vst [vmem:[#allocation3 + $0x5d8] sm:$0xff] %v9099
        %9777 = vst [vmem:[#allocation3 + $0x5e0] sm:$0xff] %v9583
        %9778 = vst [vmem:[#allocation3 + $0x5e8] sm:$0xff] %v7385
        %9779 = vst [vmem:[#allocation3 + $0x5f0] sm:$0xff] %v7387
        %9780 = vst [vmem:[#allocation3 + $0x5f8] sm:$0xff] %v7957
        %9781 = vst [vmem:[#allocation3 + $0x600] sm:$0xff] %v7959
        %9782 = vst [vmem:[#allocation3 + $0x608] sm:$0xff] %v8529
        %9783 = vst [vmem:[#allocation3 + $0x610] sm:$0xff] %v8531
        %9784 = vst [vmem:[#allocation3 + $0x618] sm:$0xff] %v9101
        %9785 = vst [vmem:[#allocation3 + $0x620] sm:$0xff] %v9103
        %9786 = vst [vmem:[#allocation3 + $0x628] sm:$0xff] %v9586
        %v9787 = vld [vmem:[%s8] sm:$0xff]
        %v9788 = vld [vmem:[%s8 + $0x8] sm:$0xff]
        %v9789 = vld [vmem:[%s8 + $0x10] sm:$0xff]
        %v9790 = vld [vmem:[%s8 + $0x18] sm:$0xff]
        %v9791 = vld [vmem:[%s8 + $0x20] sm:$0xff]
        %v9792 = vld [vmem:[%s8 + $0x28] sm:$0xff]
        %v9793 = vld [vmem:[%s8 + $0x30] sm:$0xff]
        %v9794 = vld [vmem:[%s8 + $0x38] sm:$0xff]
        %v9795 = vld [vmem:[%s8 + $0x40] sm:$0xff]
        %v9796 = vld [vmem:[%s8 + $0x48] sm:$0xff]
        %v9797 = vld [vmem:[%s8 + $0x50] sm:$0xff]
        %v9798 = vld [vmem:[%s8 + $0x58] sm:$0xff]
        %v9799 = vld [vmem:[%s8 + $0x60] sm:$0xff]
        %v9800 = vld [vmem:[%s8 + $0x68] sm:$0xff]
        %v9801 = vld [vmem:[%s8 + $0x70] sm:$0xff]
        %v9802 = vld [vmem:[%s8 + $0x78] sm:$0xff]
        %v9803 = vld [vmem:[%s8 + $0x80] sm:$0xff]
        %v9804 = vld [vmem:[%s8 + $0x88] sm:$0xff]
        %v9805 = vld [vmem:[#allocation3] sm:$0xf8]
        %v9806 = vld [vmem:[#allocation3 + $0x48] sm:$0xff]
        %v9807 = vld [vmem:[#allocation3 + $0x90] sm:$0xff]
        %v9808 = vld [vmem:[#allocation3 + $0xd8] sm:$0xff]
        %v9809 = vld [vmem:[#allocation3 + $0x120] sm:$0xff]
        %v9810 = vld [vmem:[#allocation3 + $0x168] sm:$0xff]
        %v9811 = vld [vmem:[#allocation3 + $0x1b0] sm:$0xff]
        %v9812 = vld [vmem:[#allocation3 + $0x1f8] sm:$0xff]
        %v9813 = vld [vmem:[#allocation3 + $0x240] sm:$0xff]
        %v9814 = vld [vmem:[#allocation3 + $0x288] sm:$0xff]
        %v9815 = vld [vmem:[#allocation3 + $0x2d0] sm:$0xff]
        %v9816 = vld [vmem:[#allocation3 + $0x318] sm:$0xff]
        %v9817 = vld [vmem:[#allocation3 + $0x360] sm:$0xff]
        %v9818 = vld [vmem:[#allocation3 + $0x3a8] sm:$0xff]
        %v9819 = vld [vmem:[#allocation3 + $0x3f0] sm:$0xff]
        %v9820 = vld [vmem:[#allocation3 + $0x438] sm:$0xff]
        %v9821 = vld [vmem:[#allocation3 + $0x480] sm:$0xff]
        %v9822 = vld [vmem:[#allocation3 + $0x4c8] sm:$0xff]
        %v9823 = vld [vmem:[#allocation3 + $0x510] sm:$0x7]
        %9825 = vset.pattern.permute.xlu0 0
        %9826 = vperm.xlu0 %9825, %v9787
        %v9827 = vpop.permute.xlu0 %9826
        %9829 = vset.pattern.permute.xlu0 0
        %9830 = vperm.xlu0 %9829, %v9788
        %v9831 = vpop.permute.xlu0 %9830
        %9833 = vset.pattern.permute.xlu0 0
        %9834 = vperm.xlu0 %9833, %v9789
        %v9835 = vpop.permute.xlu0 %9834
        %9837 = vset.pattern.permute.xlu0 0
        %9838 = vperm.xlu0 %9837, %v9790
        %v9839 = vpop.permute.xlu0 %9838
        %9841 = vset.pattern.permute.xlu0 0
        %9842 = vperm.xlu0 %9841, %v9791
        %v9843 = vpop.permute.xlu0 %9842
        %9845 = vset.pattern.permute.xlu0 0
        %9846 = vperm.xlu0 %9845, %v9792
        %v9847 = vpop.permute.xlu0 %9846
        %9849 = vset.pattern.permute.xlu0 0
        %9850 = vperm.xlu0 %9849, %v9793
        %v9851 = vpop.permute.xlu0 %9850
        %9853 = vset.pattern.permute.xlu0 0
        %9854 = vperm.xlu0 %9853, %v9794
        %v9855 = vpop.permute.xlu0 %9854
        %9857 = vset.pattern.permute.xlu0 0
        %9858 = vperm.xlu0 %9857, %v9795
        %v9859 = vpop.permute.xlu0 %9858
        %9861 = vset.pattern.permute.xlu0 0
        %9862 = vperm.xlu0 %9861, %v9796
        %v9863 = vpop.permute.xlu0 %9862
        %9865 = vset.pattern.permute.xlu0 0
        %9866 = vperm.xlu0 %9865, %v9797
        %v9867 = vpop.permute.xlu0 %9866
        %9869 = vset.pattern.permute.xlu0 0
        %9870 = vperm.xlu0 %9869, %v9798
        %v9871 = vpop.permute.xlu0 %9870
        %9873 = vset.pattern.permute.xlu0 0
        %9874 = vperm.xlu0 %9873, %v9799
        %v9875 = vpop.permute.xlu0 %9874
        %9877 = vset.pattern.permute.xlu0 0
        %9878 = vperm.xlu0 %9877, %v9800
        %v9879 = vpop.permute.xlu0 %9878
        %9881 = vset.pattern.permute.xlu0 0
        %9882 = vperm.xlu0 %9881, %v9801
        %v9883 = vpop.permute.xlu0 %9882
        %9885 = vset.pattern.permute.xlu0 0
        %9886 = vperm.xlu0 %9885, %v9802
        %v9887 = vpop.permute.xlu0 %9886
        %9889 = vset.pattern.permute.xlu0 0
        %9890 = vperm.xlu0 %9889, %v9803
        %v9891 = vpop.permute.xlu0 %9890
        %9893 = vset.pattern.permute.xlu0 0
        %9894 = vperm.xlu0 %9893, %v9804
        %v9895 = vpop.permute.xlu0 %9894
        %vm9896 = vcmask 1042432
        %v9897 = vrot.slane %v9827, 5
        %v9898 = vrot.slane %v9831, 5
        %v9899 = vsel %vm9896, %v9897, %v9898
        %v9900 = vrot.slane %v9835, 5
        %v9901 = vsel %vm9896, %v9898, %v9900
        %v9902 = vrot.slane %v9839, 5
        %v9903 = vsel %vm9896, %v9900, %v9902
        %v9904 = vrot.slane %v9843, 5
        %v9905 = vsel %vm9896, %v9902, %v9904
        %v9906 = vrot.slane %v9847, 5
        %v9907 = vsel %vm9896, %v9904, %v9906
        %v9908 = vrot.slane %v9851, 5
        %v9909 = vsel %vm9896, %v9906, %v9908
        %v9910 = vrot.slane %v9855, 5
        %v9911 = vsel %vm9896, %v9908, %v9910
        %v9912 = vrot.slane %v9859, 5
        %v9913 = vsel %vm9896, %v9910, %v9912
        %v9914 = vrot.slane %v9863, 5
        %v9915 = vsel %vm9896, %v9912, %v9914
        %v9916 = vrot.slane %v9867, 5
        %v9917 = vsel %vm9896, %v9914, %v9916
        %v9918 = vrot.slane %v9871, 5
        %v9919 = vsel %vm9896, %v9916, %v9918
        %v9920 = vrot.slane %v9875, 5
        %v9921 = vsel %vm9896, %v9918, %v9920
        %v9922 = vrot.slane %v9879, 5
        %v9923 = vsel %vm9896, %v9920, %v9922
        %v9924 = vrot.slane %v9883, 5
        %v9925 = vsel %vm9896, %v9922, %v9924
        %v9926 = vrot.slane %v9887, 5
        %v9927 = vsel %vm9896, %v9924, %v9926
        %v9928 = vrot.slane %v9891, 5
        %v9929 = vsel %vm9896, %v9926, %v9928
        %v9930 = vrot.slane %v9895, 5
        %v9931 = vsel %vm9896, %v9928, %v9930
        %v9951 = vmul.f32 %v9805, %v9897
        %v9952 = vmul.f32 %v9806, %v9899
        %v9953 = vmul.f32 %v9807, %v9901
        %v9954 = vmul.f32 %v9808, %v9903
        %v9955 = vmul.f32 %v9809, %v9905
        %v9956 = vmul.f32 %v9810, %v9907
        %v9957 = vmul.f32 %v9811, %v9909
        %v9958 = vmul.f32 %v9812, %v9911
        %v9959 = vmul.f32 %v9813, %v9913
        %v9960 = vmul.f32 %v9814, %v9915
        %v9961 = vmul.f32 %v9815, %v9917
        %v9962 = vmul.f32 %v9816, %v9919
        %v9963 = vmul.f32 %v9817, %v9921
        %v9964 = vmul.f32 %v9818, %v9923
        %v9965 = vmul.f32 %v9819, %v9925
        %v9966 = vmul.f32 %v9820, %v9927
        %v9967 = vmul.f32 %v9821, %v9929
        %v9968 = vmul.f32 %v9822, %v9931
        %v9969 = vmul.f32 %v9823, %v9930
        %v9970 = vadd.f32 %v9951, 0.0
        %v9971 = vadd.f32 %v9952, 0.0
        %v9972 = vadd.f32 %v9953, 0.0
        %v9973 = vadd.f32 %v9954, 0.0
        %v9974 = vadd.f32 %v9955, 0.0
        %v9975 = vadd.f32 %v9956, 0.0
        %v9976 = vadd.f32 %v9957, 0.0
        %v9977 = vadd.f32 %v9958, 0.0
        %v9978 = vadd.f32 %v9959, 0.0
        %v9979 = vadd.f32 %v9960, 0.0
        %v9980 = vadd.f32 %v9961, 0.0
        %v9981 = vadd.f32 %v9962, 0.0
        %v9982 = vadd.f32 %v9963, 0.0
        %v9983 = vadd.f32 %v9964, 0.0
        %v9984 = vadd.f32 %v9965, 0.0
        %v9985 = vadd.f32 %v9966, 0.0
        %v9986 = vadd.f32 %v9967, 0.0
        %v9987 = vadd.f32 %v9968, 0.0
        %v9988 = vadd.f32 %v9969, 0.0
        %v9989 = vld [vmem:[#allocation3 + $0x8] sm:$0xf0]
        %v9990 = vld [vmem:[#allocation3 + $0x50] sm:$0xff]
        %v9991 = vld [vmem:[#allocation3 + $0x98] sm:$0xff]
        %v9992 = vld [vmem:[#allocation3 + $0xe0] sm:$0xff]
        %v9993 = vld [vmem:[#allocation3 + $0x128] sm:$0xff]
        %v9994 = vld [vmem:[#allocation3 + $0x170] sm:$0xff]
        %v9995 = vld [vmem:[#allocation3 + $0x1b8] sm:$0xff]
        %v9996 = vld [vmem:[#allocation3 + $0x200] sm:$0xff]
        %v9997 = vld [vmem:[#allocation3 + $0x248] sm:$0xff]
        %v9998 = vld [vmem:[#allocation3 + $0x290] sm:$0xff]
        %v9999 = vld [vmem:[#allocation3 + $0x2d8] sm:$0xff]
        %v10000 = vld [vmem:[#allocation3 + $0x320] sm:$0xff]
        %v10001 = vld [vmem:[#allocation3 + $0x368] sm:$0xff]
        %v10002 = vld [vmem:[#allocation3 + $0x3b0] sm:$0xff]
        %v10003 = vld [vmem:[#allocation3 + $0x3f8] sm:$0xff]
        %v10004 = vld [vmem:[#allocation3 + $0x440] sm:$0xff]
        %v10005 = vld [vmem:[#allocation3 + $0x488] sm:$0xff]
        %v10006 = vld [vmem:[#allocation3 + $0x4d0] sm:$0xff]
        %v10007 = vld [vmem:[#allocation3 + $0x518] sm:$0xf]
        %vm10027 = vcmask 1046528
        %v10028 = vrot.slane %v9989, 1
        %v10029 = vrot.slane %v9990, 1
        %v10030 = vsel %vm10027, %v10028, %v10029
        %v10031 = vrot.slane %v9991, 1
        %v10032 = vsel %vm10027, %v10029, %v10031
        %v10033 = vrot.slane %v9992, 1
        %v10034 = vsel %vm10027, %v10031, %v10033
        %v10035 = vrot.slane %v9993, 1
        %v10036 = vsel %vm10027, %v10033, %v10035
        %v10037 = vrot.slane %v9994, 1
        %v10038 = vsel %vm10027, %v10035, %v10037
        %v10039 = vrot.slane %v9995, 1
        %v10040 = vsel %vm10027, %v10037, %v10039
        %v10041 = vrot.slane %v9996, 1
        %v10042 = vsel %vm10027, %v10039, %v10041
        %v10043 = vrot.slane %v9997, 1
        %v10044 = vsel %vm10027, %v10041, %v10043
        %v10045 = vrot.slane %v9998, 1
        %v10046 = vsel %vm10027, %v10043, %v10045
        %v10047 = vrot.slane %v9999, 1
        %v10048 = vsel %vm10027, %v10045, %v10047
        %v10049 = vrot.slane %v10000, 1
        %v10050 = vsel %vm10027, %v10047, %v10049
        %v10051 = vrot.slane %v10001, 1
        %v10052 = vsel %vm10027, %v10049, %v10051
        %v10053 = vrot.slane %v10002, 1
        %v10054 = vsel %vm10027, %v10051, %v10053
        %v10055 = vrot.slane %v10003, 1
        %v10056 = vsel %vm10027, %v10053, %v10055
        %v10057 = vrot.slane %v10004, 1
        %v10058 = vsel %vm10027, %v10055, %v10057
        %v10059 = vrot.slane %v10005, 1
        %v10060 = vsel %vm10027, %v10057, %v10059
        %v10061 = vrot.slane %v10006, 1
        %v10062 = vsel %vm10027, %v10059, %v10061
        %v10063 = vrot.slane %v10007, 1
        %v10064 = vsel %vm10027, %v10061, %v10063
        %v10084 = vadd.f32 %v9970, %v10030
        %v10085 = vadd.f32 %v9971, %v10032
        %v10086 = vadd.f32 %v9972, %v10034
        %v10087 = vadd.f32 %v9973, %v10036
        %v10088 = vadd.f32 %v9974, %v10038
        %v10089 = vadd.f32 %v9975, %v10040
        %v10090 = vadd.f32 %v9976, %v10042
        %v10091 = vadd.f32 %v9977, %v10044
        %v10092 = vadd.f32 %v9978, %v10046
        %v10093 = vadd.f32 %v9979, %v10048
        %v10094 = vadd.f32 %v9980, %v10050
        %v10095 = vadd.f32 %v9981, %v10052
        %v10096 = vadd.f32 %v9982, %v10054
        %v10097 = vadd.f32 %v9983, %v10056
        %v10098 = vadd.f32 %v9984, %v10058
        %v10099 = vadd.f32 %v9985, %v10060
        %v10100 = vadd.f32 %v9986, %v10062
        %v10101 = vadd.f32 %v9987, %v10064
        %v10102 = vadd.f32 %v9988, %v10063
        %v10103 = vld [vmem:[#allocation3 + $0x10] sm:$0xe0]
        %v10104 = vld [vmem:[#allocation3 + $0x58] sm:$0xff]
        %v10105 = vld [vmem:[#allocation3 + $0xa0] sm:$0xff]
        %v10106 = vld [vmem:[#allocation3 + $0xe8] sm:$0xff]
        %v10107 = vld [vmem:[#allocation3 + $0x130] sm:$0xff]
        %v10108 = vld [vmem:[#allocation3 + $0x178] sm:$0xff]
        %v10109 = vld [vmem:[#allocation3 + $0x1c0] sm:$0xff]
        %v10110 = vld [vmem:[#allocation3 + $0x208] sm:$0xff]
        %v10111 = vld [vmem:[#allocation3 + $0x250] sm:$0xff]
        %v10112 = vld [vmem:[#allocation3 + $0x298] sm:$0xff]
        %v10113 = vld [vmem:[#allocation3 + $0x2e0] sm:$0xff]
        %v10114 = vld [vmem:[#allocation3 + $0x328] sm:$0xff]
        %v10115 = vld [vmem:[#allocation3 + $0x370] sm:$0xff]
        %v10116 = vld [vmem:[#allocation3 + $0x3b8] sm:$0xff]
        %v10117 = vld [vmem:[#allocation3 + $0x400] sm:$0xff]
        %v10118 = vld [vmem:[#allocation3 + $0x448] sm:$0xff]
        %v10119 = vld [vmem:[#allocation3 + $0x490] sm:$0xff]
        %v10120 = vld [vmem:[#allocation3 + $0x4d8] sm:$0xff]
        %v10121 = vld [vmem:[#allocation3 + $0x520] sm:$0x1f]
        %10122 = vset.pattern.permute.xlu0 1
        %10123 = vperm.xlu0 %10122, %v9787
        %v10124 = vpop.permute.xlu0 %10123
        %10125 = vset.pattern.permute.xlu0 1
        %10126 = vperm.xlu0 %10125, %v9788
        %v10127 = vpop.permute.xlu0 %10126
        %10128 = vset.pattern.permute.xlu0 1
        %10129 = vperm.xlu0 %10128, %v9789
        %v10130 = vpop.permute.xlu0 %10129
        %10131 = vset.pattern.permute.xlu0 1
        %10132 = vperm.xlu0 %10131, %v9790
        %v10133 = vpop.permute.xlu0 %10132
        %10134 = vset.pattern.permute.xlu0 1
        %10135 = vperm.xlu0 %10134, %v9791
        %v10136 = vpop.permute.xlu0 %10135
        %10137 = vset.pattern.permute.xlu0 1
        %10138 = vperm.xlu0 %10137, %v9792
        %v10139 = vpop.permute.xlu0 %10138
        %10140 = vset.pattern.permute.xlu0 1
        %10141 = vperm.xlu0 %10140, %v9793
        %v10142 = vpop.permute.xlu0 %10141
        %10143 = vset.pattern.permute.xlu0 1
        %10144 = vperm.xlu0 %10143, %v9794
        %v10145 = vpop.permute.xlu0 %10144
        %10146 = vset.pattern.permute.xlu0 1
        %10147 = vperm.xlu0 %10146, %v9795
        %v10148 = vpop.permute.xlu0 %10147
        %10149 = vset.pattern.permute.xlu0 1
        %10150 = vperm.xlu0 %10149, %v9796
        %v10151 = vpop.permute.xlu0 %10150
        %10152 = vset.pattern.permute.xlu0 1
        %10153 = vperm.xlu0 %10152, %v9797
        %v10154 = vpop.permute.xlu0 %10153
        %10155 = vset.pattern.permute.xlu0 1
        %10156 = vperm.xlu0 %10155, %v9798
        %v10157 = vpop.permute.xlu0 %10156
        %10158 = vset.pattern.permute.xlu0 1
        %10159 = vperm.xlu0 %10158, %v9799
        %v10160 = vpop.permute.xlu0 %10159
        %10161 = vset.pattern.permute.xlu0 1
        %10162 = vperm.xlu0 %10161, %v9800
        %v10163 = vpop.permute.xlu0 %10162
        %10164 = vset.pattern.permute.xlu0 1
        %10165 = vperm.xlu0 %10164, %v9801
        %v10166 = vpop.permute.xlu0 %10165
        %10167 = vset.pattern.permute.xlu0 1
        %10168 = vperm.xlu0 %10167, %v9802
        %v10169 = vpop.permute.xlu0 %10168
        %10170 = vset.pattern.permute.xlu0 1
        %10171 = vperm.xlu0 %10170, %v9803
        %v10172 = vpop.permute.xlu0 %10171
        %10173 = vset.pattern.permute.xlu0 1
        %10174 = vperm.xlu0 %10173, %v9804
        %v10175 = vpop.permute.xlu0 %10174
        %vm10176 = vcmask 1044480
        %v10177 = vrot.slane %v10124, 3
        %v10178 = vrot.slane %v10127, 3
        %v10179 = vsel %vm10176, %v10177, %v10178
        %v10180 = vrot.slane %v10130, 3
        %v10181 = vsel %vm10176, %v10178, %v10180
        %v10182 = vrot.slane %v10133, 3
        %v10183 = vsel %vm10176, %v10180, %v10182
        %v10184 = vrot.slane %v10136, 3
        %v10185 = vsel %vm10176, %v10182, %v10184
        %v10186 = vrot.slane %v10139, 3
        %v10187 = vsel %vm10176, %v10184, %v10186
        %v10188 = vrot.slane %v10142, 3
        %v10189 = vsel %vm10176, %v10186, %v10188
        %v10190 = vrot.slane %v10145, 3
        %v10191 = vsel %vm10176, %v10188, %v10190
        %v10192 = vrot.slane %v10148, 3
        %v10193 = vsel %vm10176, %v10190, %v10192
        %v10194 = vrot.slane %v10151, 3
        %v10195 = vsel %vm10176, %v10192, %v10194
        %v10196 = vrot.slane %v10154, 3
        %v10197 = vsel %vm10176, %v10194, %v10196
        %v10198 = vrot.slane %v10157, 3
        %v10199 = vsel %vm10176, %v10196, %v10198
        %v10200 = vrot.slane %v10160, 3
        %v10201 = vsel %vm10176, %v10198, %v10200
        %v10202 = vrot.slane %v10163, 3
        %v10203 = vsel %vm10176, %v10200, %v10202
        %v10204 = vrot.slane %v10166, 3
        %v10205 = vsel %vm10176, %v10202, %v10204
        %v10206 = vrot.slane %v10169, 3
        %v10207 = vsel %vm10176, %v10204, %v10206
        %v10208 = vrot.slane %v10172, 3
        %v10209 = vsel %vm10176, %v10206, %v10208
        %v10210 = vrot.slane %v10175, 3
        %v10211 = vsel %vm10176, %v10208, %v10210
        %v10231 = vmul.f32 %v10103, %v10177
        %v10232 = vmul.f32 %v10104, %v10179
        %v10233 = vmul.f32 %v10105, %v10181
        %v10234 = vmul.f32 %v10106, %v10183
        %v10235 = vmul.f32 %v10107, %v10185
        %v10236 = vmul.f32 %v10108, %v10187
        %v10237 = vmul.f32 %v10109, %v10189
        %v10238 = vmul.f32 %v10110, %v10191
        %v10239 = vmul.f32 %v10111, %v10193
        %v10240 = vmul.f32 %v10112, %v10195
        %v10241 = vmul.f32 %v10113, %v10197
        %v10242 = vmul.f32 %v10114, %v10199
        %v10243 = vmul.f32 %v10115, %v10201
        %v10244 = vmul.f32 %v10116, %v10203
        %v10245 = vmul.f32 %v10117, %v10205
        %v10246 = vmul.f32 %v10118, %v10207
        %v10247 = vmul.f32 %v10119, %v10209
        %v10248 = vmul.f32 %v10120, %v10211
        %v10249 = vmul.f32 %v10121, %v10210
        %vm10269 = vcmask 1045504
        %v10270 = vrot.slane %v10231, 2
        %v10271 = vrot.slane %v10232, 2
        %v10272 = vsel %vm10269, %v10270, %v10271
        %v10273 = vrot.slane %v10233, 2
        %v10274 = vsel %vm10269, %v10271, %v10273
        %v10275 = vrot.slane %v10234, 2
        %v10276 = vsel %vm10269, %v10273, %v10275
        %v10277 = vrot.slane %v10235, 2
        %v10278 = vsel %vm10269, %v10275, %v10277
        %v10279 = vrot.slane %v10236, 2
        %v10280 = vsel %vm10269, %v10277, %v10279
        %v10281 = vrot.slane %v10237, 2
        %v10282 = vsel %vm10269, %v10279, %v10281
        %v10283 = vrot.slane %v10238, 2
        %v10284 = vsel %vm10269, %v10281, %v10283
        %v10285 = vrot.slane %v10239, 2
        %v10286 = vsel %vm10269, %v10283, %v10285
        %v10287 = vrot.slane %v10240, 2
        %v10288 = vsel %vm10269, %v10285, %v10287
        %v10289 = vrot.slane %v10241, 2
        %v10290 = vsel %vm10269, %v10287, %v10289
        %v10291 = vrot.slane %v10242, 2
        %v10292 = vsel %vm10269, %v10289, %v10291
        %v10293 = vrot.slane %v10243, 2
        %v10294 = vsel %vm10269, %v10291, %v10293
        %v10295 = vrot.slane %v10244, 2
        %v10296 = vsel %vm10269, %v10293, %v10295
        %v10297 = vrot.slane %v10245, 2
        %v10298 = vsel %vm10269, %v10295, %v10297
        %v10299 = vrot.slane %v10246, 2
        %v10300 = vsel %vm10269, %v10297, %v10299
        %v10301 = vrot.slane %v10247, 2
        %v10302 = vsel %vm10269, %v10299, %v10301
        %v10303 = vrot.slane %v10248, 2
        %v10304 = vsel %vm10269, %v10301, %v10303
        %v10305 = vrot.slane %v10249, 2
        %v10306 = vsel %vm10269, %v10303, %v10305
        %v10326 = vadd.f32 %v10084, %v10272
        %v10327 = vadd.f32 %v10085, %v10274
        %v10328 = vadd.f32 %v10086, %v10276
        %v10329 = vadd.f32 %v10087, %v10278
        %v10330 = vadd.f32 %v10088, %v10280
        %v10331 = vadd.f32 %v10089, %v10282
        %v10332 = vadd.f32 %v10090, %v10284
        %v10333 = vadd.f32 %v10091, %v10286
        %v10334 = vadd.f32 %v10092, %v10288
        %v10335 = vadd.f32 %v10093, %v10290
        %v10336 = vadd.f32 %v10094, %v10292
        %v10337 = vadd.f32 %v10095, %v10294
        %v10338 = vadd.f32 %v10096, %v10296
        %v10339 = vadd.f32 %v10097, %v10298
        %v10340 = vadd.f32 %v10098, %v10300
        %v10341 = vadd.f32 %v10099, %v10302
        %v10342 = vadd.f32 %v10100, %v10304
        %v10343 = vadd.f32 %v10101, %v10306
        %v10344 = vadd.f32 %v10102, %v10305
        %v10345 = vld [vmem:[#allocation3 + $0x60] sm:$0x80]
        %v10346 = vld [vmem:[#allocation3 + $0xa8] sm:$0xff]
        %v10347 = vld [vmem:[#allocation3 + $0xf0] sm:$0xff]
        %v10348 = vld [vmem:[#allocation3 + $0x138] sm:$0xff]
        %v10349 = vld [vmem:[#allocation3 + $0x180] sm:$0xff]
        %v10350 = vld [vmem:[#allocation3 + $0x1c8] sm:$0xff]
        %v10351 = vld [vmem:[#allocation3 + $0x210] sm:$0xff]
        %v10352 = vld [vmem:[#allocation3 + $0x258] sm:$0xff]
        %v10353 = vld [vmem:[#allocation3 + $0x2a0] sm:$0xff]
        %v10354 = vld [vmem:[#allocation3 + $0x2e8] sm:$0xff]
        %v10355 = vld [vmem:[#allocation3 + $0x330] sm:$0xff]
        %v10356 = vld [vmem:[#allocation3 + $0x378] sm:$0xff]
        %v10357 = vld [vmem:[#allocation3 + $0x3c0] sm:$0xff]
        %v10358 = vld [vmem:[#allocation3 + $0x408] sm:$0xff]
        %v10359 = vld [vmem:[#allocation3 + $0x450] sm:$0xff]
        %v10360 = vld [vmem:[#allocation3 + $0x498] sm:$0xff]
        %v10361 = vld [vmem:[#allocation3 + $0x4e0] sm:$0xff]
        %v10362 = vld [vmem:[#allocation3 + $0x528] sm:$0xff]
        %v10363 = vld [vmem:[#allocation3 + $0x570] sm:$0x7f]
        %v10364 = vrot.slane %v9827, 1
        %v10365 = vrot.slane %v9831, 1
        %v10366 = vsel %vm10027, %v10364, %v10365
        %v10367 = vrot.slane %v9835, 1
        %v10368 = vsel %vm10027, %v10365, %v10367
        %v10369 = vrot.slane %v9839, 1
        %v10370 = vsel %vm10027, %v10367, %v10369
        %v10371 = vrot.slane %v9843, 1
        %v10372 = vsel %vm10027, %v10369, %v10371
        %v10373 = vrot.slane %v9847, 1
        %v10374 = vsel %vm10027, %v10371, %v10373
        %v10375 = vrot.slane %v9851, 1
        %v10376 = vsel %vm10027, %v10373, %v10375
        %v10377 = vrot.slane %v9855, 1
        %v10378 = vsel %vm10027, %v10375, %v10377
        %v10379 = vrot.slane %v9859, 1
        %v10380 = vsel %vm10027, %v10377, %v10379
        %v10381 = vrot.slane %v9863, 1
        %v10382 = vsel %vm10027, %v10379, %v10381
        %v10383 = vrot.slane %v9867, 1
        %v10384 = vsel %vm10027, %v10381, %v10383
        %v10385 = vrot.slane %v9871, 1
        %v10386 = vsel %vm10027, %v10383, %v10385
        %v10387 = vrot.slane %v9875, 1
        %v10388 = vsel %vm10027, %v10385, %v10387
        %v10389 = vrot.slane %v9879, 1
        %v10390 = vsel %vm10027, %v10387, %v10389
        %v10391 = vrot.slane %v9883, 1
        %v10392 = vsel %vm10027, %v10389, %v10391
        %v10393 = vrot.slane %v9887, 1
        %v10394 = vsel %vm10027, %v10391, %v10393
        %v10395 = vrot.slane %v9891, 1
        %v10396 = vsel %vm10027, %v10393, %v10395
        %v10397 = vrot.slane %v9895, 1
        %v10398 = vsel %vm10027, %v10395, %v10397
        %v10418 = vmul.f32 %v10345, %v10364
        %v10419 = vmul.f32 %v10346, %v10366
        %v10420 = vmul.f32 %v10347, %v10368
        %v10421 = vmul.f32 %v10348, %v10370
        %v10422 = vmul.f32 %v10349, %v10372
        %v10423 = vmul.f32 %v10350, %v10374
        %v10424 = vmul.f32 %v10351, %v10376
        %v10425 = vmul.f32 %v10352, %v10378
        %v10426 = vmul.f32 %v10353, %v10380
        %v10427 = vmul.f32 %v10354, %v10382
        %v10428 = vmul.f32 %v10355, %v10384
        %v10429 = vmul.f32 %v10356, %v10386
        %v10430 = vmul.f32 %v10357, %v10388
        %v10431 = vmul.f32 %v10358, %v10390
        %v10432 = vmul.f32 %v10359, %v10392
        %v10433 = vmul.f32 %v10360, %v10394
        %v10434 = vmul.f32 %v10361, %v10396
        %v10435 = vmul.f32 %v10362, %v10398
        %v10436 = vmul.f32 %v10363, %v10397
        %vm10456 = vcmask 1043456
        %v10457 = vrot.slane %v10418, 4
        %v10458 = vrot.slane %v10419, 4
        %v10459 = vsel %vm10456, %v10457, %v10458
        %v10460 = vrot.slane %v10420, 4
        %v10461 = vsel %vm10456, %v10458, %v10460
        %v10462 = vrot.slane %v10421, 4
        %v10463 = vsel %vm10456, %v10460, %v10462
        %v10464 = vrot.slane %v10422, 4
        %v10465 = vsel %vm10456, %v10462, %v10464
        %v10466 = vrot.slane %v10423, 4
        %v10467 = vsel %vm10456, %v10464, %v10466
        %v10468 = vrot.slane %v10424, 4
        %v10469 = vsel %vm10456, %v10466, %v10468
        %v10470 = vrot.slane %v10425, 4
        %v10471 = vsel %vm10456, %v10468, %v10470
        %v10472 = vrot.slane %v10426, 4
        %v10473 = vsel %vm10456, %v10470, %v10472
        %v10474 = vrot.slane %v10427, 4
        %v10475 = vsel %vm10456, %v10472, %v10474
        %v10476 = vrot.slane %v10428, 4
        %v10477 = vsel %vm10456, %v10474, %v10476
        %v10478 = vrot.slane %v10429, 4
        %v10479 = vsel %vm10456, %v10476, %v10478
        %v10480 = vrot.slane %v10430, 4
        %v10481 = vsel %vm10456, %v10478, %v10480
        %v10482 = vrot.slane %v10431, 4
        %v10483 = vsel %vm10456, %v10480, %v10482
        %v10484 = vrot.slane %v10432, 4
        %v10485 = vsel %vm10456, %v10482, %v10484
        %v10486 = vrot.slane %v10433, 4
        %v10487 = vsel %vm10456, %v10484, %v10486
        %v10488 = vrot.slane %v10434, 4
        %v10489 = vsel %vm10456, %v10486, %v10488
        %v10490 = vrot.slane %v10435, 4
        %v10491 = vsel %vm10456, %v10488, %v10490
        %v10492 = vrot.slane %v10436, 4
        %v10493 = vsel %vm10456, %v10490, %v10492
        %v10513 = vadd.f32 %v10326, %v10459
        %v10514 = vadd.f32 %v10327, %v10461
        %v10515 = vadd.f32 %v10328, %v10463
        %v10516 = vadd.f32 %v10329, %v10465
        %v10517 = vadd.f32 %v10330, %v10467
        %v10518 = vadd.f32 %v10331, %v10469
        %v10519 = vadd.f32 %v10332, %v10471
        %v10520 = vadd.f32 %v10333, %v10473
        %v10521 = vadd.f32 %v10334, %v10475
        %v10522 = vadd.f32 %v10335, %v10477
        %v10523 = vadd.f32 %v10336, %v10479
        %v10524 = vadd.f32 %v10337, %v10481
        %v10525 = vadd.f32 %v10338, %v10483
        %v10526 = vadd.f32 %v10339, %v10485
        %v10527 = vadd.f32 %v10340, %v10487
        %v10528 = vadd.f32 %v10341, %v10489
        %v10529 = vadd.f32 %v10342, %v10491
        %v10530 = vadd.f32 %v10343, %v10493
        %v10531 = vadd.f32 %v10344, %v10492
        %v10532 = vld [vmem:[#allocation3 + $0xb0] sm:$0xff]
        %v10533 = vld [vmem:[#allocation3 + $0xf8] sm:$0xff]
        %v10534 = vld [vmem:[#allocation3 + $0x140] sm:$0xff]
        %v10535 = vld [vmem:[#allocation3 + $0x188] sm:$0xff]
        %v10536 = vld [vmem:[#allocation3 + $0x1d0] sm:$0xff]
        %v10537 = vld [vmem:[#allocation3 + $0x218] sm:$0xff]
        %v10538 = vld [vmem:[#allocation3 + $0x260] sm:$0xff]
        %v10539 = vld [vmem:[#allocation3 + $0x2a8] sm:$0xff]
        %v10540 = vld [vmem:[#allocation3 + $0x2f0] sm:$0xff]
        %v10541 = vld [vmem:[#allocation3 + $0x338] sm:$0xff]
        %v10542 = vld [vmem:[#allocation3 + $0x380] sm:$0xff]
        %v10543 = vld [vmem:[#allocation3 + $0x3c8] sm:$0xff]
        %v10544 = vld [vmem:[#allocation3 + $0x410] sm:$0xff]
        %v10545 = vld [vmem:[#allocation3 + $0x458] sm:$0xff]
        %v10546 = vld [vmem:[#allocation3 + $0x4a0] sm:$0xff]
        %v10547 = vld [vmem:[#allocation3 + $0x4e8] sm:$0xff]
        %v10548 = vld [vmem:[#allocation3 + $0x530] sm:$0xff]
        %v10549 = vld [vmem:[#allocation3 + $0x578] sm:$0xff]
        %v10568 = vrot.slane %v10532, 5
        %v10569 = vrot.slane %v10533, 5
        %v10570 = vsel %vm9896, %v10568, %v10569
        %v10571 = vrot.slane %v10534, 5
        %v10572 = vsel %vm9896, %v10569, %v10571
        %v10573 = vrot.slane %v10535, 5
        %v10574 = vsel %vm9896, %v10571, %v10573
        %v10575 = vrot.slane %v10536, 5
        %v10576 = vsel %vm9896, %v10573, %v10575
        %v10577 = vrot.slane %v10537, 5
        %v10578 = vsel %vm9896, %v10575, %v10577
        %v10579 = vrot.slane %v10538, 5
        %v10580 = vsel %vm9896, %v10577, %v10579
        %v10581 = vrot.slane %v10539, 5
        %v10582 = vsel %vm9896, %v10579, %v10581
        %v10583 = vrot.slane %v10540, 5
        %v10584 = vsel %vm9896, %v10581, %v10583
        %v10585 = vrot.slane %v10541, 5
        %v10586 = vsel %vm9896, %v10583, %v10585
        %v10587 = vrot.slane %v10542, 5
        %v10588 = vsel %vm9896, %v10585, %v10587
        %v10589 = vrot.slane %v10543, 5
        %v10590 = vsel %vm9896, %v10587, %v10589
        %v10591 = vrot.slane %v10544, 5
        %v10592 = vsel %vm9896, %v10589, %v10591
        %v10593 = vrot.slane %v10545, 5
        %v10594 = vsel %vm9896, %v10591, %v10593
        %v10595 = vrot.slane %v10546, 5
        %v10596 = vsel %vm9896, %v10593, %v10595
        %v10597 = vrot.slane %v10547, 5
        %v10598 = vsel %vm9896, %v10595, %v10597
        %v10599 = vrot.slane %v10548, 5
        %v10600 = vsel %vm9896, %v10597, %v10599
        %v10601 = vrot.slane %v10549, 5
        %v10602 = vsel %vm9896, %v10599, %v10601
        %v10622 = vadd.f32 %v10513, %v10568
        %v10623 = vadd.f32 %v10514, %v10570
        %v10624 = vadd.f32 %v10515, %v10572
        %v10625 = vadd.f32 %v10516, %v10574
        %v10626 = vadd.f32 %v10517, %v10576
        %v10627 = vadd.f32 %v10518, %v10578
        %v10628 = vadd.f32 %v10519, %v10580
        %v10629 = vadd.f32 %v10520, %v10582
        %v10630 = vadd.f32 %v10521, %v10584
        %v10631 = vadd.f32 %v10522, %v10586
        %v10632 = vadd.f32 %v10523, %v10588
        %v10633 = vadd.f32 %v10524, %v10590
        %v10634 = vadd.f32 %v10525, %v10592
        %v10635 = vadd.f32 %v10526, %v10594
        %v10636 = vadd.f32 %v10527, %v10596
        %v10637 = vadd.f32 %v10528, %v10598
        %v10638 = vadd.f32 %v10529, %v10600
        %v10639 = vadd.f32 %v10530, %v10602
        %v10640 = vadd.f32 %v10531, %v10601
        %v10641 = vld [vmem:[#allocation3 + $0xb8] sm:$0xfe]
        %v10642 = vld [vmem:[#allocation3 + $0x100] sm:$0xff]
        %v10643 = vld [vmem:[#allocation3 + $0x148] sm:$0xff]
        %v10644 = vld [vmem:[#allocation3 + $0x190] sm:$0xff]
        %v10645 = vld [vmem:[#allocation3 + $0x1d8] sm:$0xff]
        %v10646 = vld [vmem:[#allocation3 + $0x220] sm:$0xff]
        %v10647 = vld [vmem:[#allocation3 + $0x268] sm:$0xff]
        %v10648 = vld [vmem:[#allocation3 + $0x2b0] sm:$0xff]
        %v10649 = vld [vmem:[#allocation3 + $0x2f8] sm:$0xff]
        %v10650 = vld [vmem:[#allocation3 + $0x340] sm:$0xff]
        %v10651 = vld [vmem:[#allocation3 + $0x388] sm:$0xff]
        %v10652 = vld [vmem:[#allocation3 + $0x3d0] sm:$0xff]
        %v10653 = vld [vmem:[#allocation3 + $0x418] sm:$0xff]
        %v10654 = vld [vmem:[#allocation3 + $0x460] sm:$0xff]
        %v10655 = vld [vmem:[#allocation3 + $0x4a8] sm:$0xff]
        %v10656 = vld [vmem:[#allocation3 + $0x4f0] sm:$0xff]
        %v10657 = vld [vmem:[#allocation3 + $0x538] sm:$0xff]
        %v10658 = vld [vmem:[#allocation3 + $0x580] sm:$0xff]
        %v10659 = vld [vmem:[#allocation3 + $0x5c8] sm:$0x1]
        %vm10660 = vcmask 1040384
        %v10661 = vrot.slane %v10124, 7
        %v10662 = vrot.slane %v10127, 7
        %v10663 = vsel %vm10660, %v10661, %v10662
        %v10664 = vrot.slane %v10130, 7
        %v10665 = vsel %vm10660, %v10662, %v10664
        %v10666 = vrot.slane %v10133, 7
        %v10667 = vsel %vm10660, %v10664, %v10666
        %v10668 = vrot.slane %v10136, 7
        %v10669 = vsel %vm10660, %v10666, %v10668
        %v10670 = vrot.slane %v10139, 7
        %v10671 = vsel %vm10660, %v10668, %v10670
        %v10672 = vrot.slane %v10142, 7
        %v10673 = vsel %vm10660, %v10670, %v10672
        %v10674 = vrot.slane %v10145, 7
        %v10675 = vsel %vm10660, %v10672, %v10674
        %v10676 = vrot.slane %v10148, 7
        %v10677 = vsel %vm10660, %v10674, %v10676
        %v10678 = vrot.slane %v10151, 7
        %v10679 = vsel %vm10660, %v10676, %v10678
        %v10680 = vrot.slane %v10154, 7
        %v10681 = vsel %vm10660, %v10678, %v10680
        %v10682 = vrot.slane %v10157, 7
        %v10683 = vsel %vm10660, %v10680, %v10682
        %v10684 = vrot.slane %v10160, 7
        %v10685 = vsel %vm10660, %v10682, %v10684
        %v10686 = vrot.slane %v10163, 7
        %v10687 = vsel %vm10660, %v10684, %v10686
        %v10688 = vrot.slane %v10166, 7
        %v10689 = vsel %vm10660, %v10686, %v10688
        %v10690 = vrot.slane %v10169, 7
        %v10691 = vsel %vm10660, %v10688, %v10690
        %v10692 = vrot.slane %v10172, 7
        %v10693 = vsel %vm10660, %v10690, %v10692
        %v10694 = vrot.slane %v10175, 7
        %v10695 = vsel %vm10660, %v10692, %v10694
        %v10715 = vmul.f32 %v10641, %v10661
        %v10716 = vmul.f32 %v10642, %v10663
        %v10717 = vmul.f32 %v10643, %v10665
        %v10718 = vmul.f32 %v10644, %v10667
        %v10719 = vmul.f32 %v10645, %v10669
        %v10720 = vmul.f32 %v10646, %v10671
        %v10721 = vmul.f32 %v10647, %v10673
        %v10722 = vmul.f32 %v10648, %v10675
        %v10723 = vmul.f32 %v10649, %v10677
        %v10724 = vmul.f32 %v10650, %v10679
        %v10725 = vmul.f32 %v10651, %v10681
        %v10726 = vmul.f32 %v10652, %v10683
        %v10727 = vmul.f32 %v10653, %v10685
        %v10728 = vmul.f32 %v10654, %v10687
        %v10729 = vmul.f32 %v10655, %v10689
        %v10730 = vmul.f32 %v10656, %v10691
        %v10731 = vmul.f32 %v10657, %v10693
        %v10732 = vmul.f32 %v10658, %v10695
        %v10733 = vmul.f32 %v10659, %v10694
        %vm10753 = vcmask 1041408
        %v10754 = vrot.slane %v10715, 6
        %v10755 = vrot.slane %v10716, 6
        %v10756 = vsel %vm10753, %v10754, %v10755
        %v10757 = vrot.slane %v10717, 6
        %v10758 = vsel %vm10753, %v10755, %v10757
        %v10759 = vrot.slane %v10718, 6
        %v10760 = vsel %vm10753, %v10757, %v10759
        %v10761 = vrot.slane %v10719, 6
        %v10762 = vsel %vm10753, %v10759, %v10761
        %v10763 = vrot.slane %v10720, 6
        %v10764 = vsel %vm10753, %v10761, %v10763
        %v10765 = vrot.slane %v10721, 6
        %v10766 = vsel %vm10753, %v10763, %v10765
        %v10767 = vrot.slane %v10722, 6
        %v10768 = vsel %vm10753, %v10765, %v10767
        %v10769 = vrot.slane %v10723, 6
        %v10770 = vsel %vm10753, %v10767, %v10769
        %v10771 = vrot.slane %v10724, 6
        %v10772 = vsel %vm10753, %v10769, %v10771
        %v10773 = vrot.slane %v10725, 6
        %v10774 = vsel %vm10753, %v10771, %v10773
        %v10775 = vrot.slane %v10726, 6
        %v10776 = vsel %vm10753, %v10773, %v10775
        %v10777 = vrot.slane %v10727, 6
        %v10778 = vsel %vm10753, %v10775, %v10777
        %v10779 = vrot.slane %v10728, 6
        %v10780 = vsel %vm10753, %v10777, %v10779
        %v10781 = vrot.slane %v10729, 6
        %v10782 = vsel %vm10753, %v10779, %v10781
        %v10783 = vrot.slane %v10730, 6
        %v10784 = vsel %vm10753, %v10781, %v10783
        %v10785 = vrot.slane %v10731, 6
        %v10786 = vsel %vm10753, %v10783, %v10785
        %v10787 = vrot.slane %v10732, 6
        %v10788 = vsel %vm10753, %v10785, %v10787
        %v10789 = vrot.slane %v10733, 6
        %v10790 = vsel %vm10753, %v10787, %v10789
        %v10810 = vadd.f32 %v10622, %v10754
        %v10811 = vadd.f32 %v10623, %v10756
        %v10812 = vadd.f32 %v10624, %v10758
        %v10813 = vadd.f32 %v10625, %v10760
        %v10814 = vadd.f32 %v10626, %v10762
        %v10815 = vadd.f32 %v10627, %v10764
        %v10816 = vadd.f32 %v10628, %v10766
        %v10817 = vadd.f32 %v10629, %v10768
        %v10818 = vadd.f32 %v10630, %v10770
        %v10819 = vadd.f32 %v10631, %v10772
        %v10820 = vadd.f32 %v10632, %v10774
        %v10821 = vadd.f32 %v10633, %v10776
        %v10822 = vadd.f32 %v10634, %v10778
        %v10823 = vadd.f32 %v10635, %v10780
        %v10824 = vadd.f32 %v10636, %v10782
        %v10825 = vadd.f32 %v10637, %v10784
        %v10826 = vadd.f32 %v10638, %v10786
        %v10827 = vadd.f32 %v10639, %v10788
        %v10828 = vadd.f32 %v10640, %v10790
        %v10829 = vld [vmem:[#allocation3 + $0x108] sm:$0xf8]
        %v10830 = vld [vmem:[#allocation3 + $0x150] sm:$0xff]
        %v10831 = vld [vmem:[#allocation3 + $0x198] sm:$0xff]
        %v10832 = vld [vmem:[#allocation3 + $0x1e0] sm:$0xff]
        %v10833 = vld [vmem:[#allocation3 + $0x228] sm:$0xff]
        %v10834 = vld [vmem:[#allocation3 + $0x270] sm:$0xff]
        %v10835 = vld [vmem:[#allocation3 + $0x2b8] sm:$0xff]
        %v10836 = vld [vmem:[#allocation3 + $0x300] sm:$0xff]
        %v10837 = vld [vmem:[#allocation3 + $0x348] sm:$0xff]
        %v10838 = vld [vmem:[#allocation3 + $0x390] sm:$0xff]
        %v10839 = vld [vmem:[#allocation3 + $0x3d8] sm:$0xff]
        %v10840 = vld [vmem:[#allocation3 + $0x420] sm:$0xff]
        %v10841 = vld [vmem:[#allocation3 + $0x468] sm:$0xff]
        %v10842 = vld [vmem:[#allocation3 + $0x4b0] sm:$0xff]
        %v10843 = vld [vmem:[#allocation3 + $0x4f8] sm:$0xff]
        %v10844 = vld [vmem:[#allocation3 + $0x540] sm:$0xff]
        %v10845 = vld [vmem:[#allocation3 + $0x588] sm:$0xff]
        %v10846 = vld [vmem:[#allocation3 + $0x5d0] sm:$0xff]
        %v10847 = vld [vmem:[#allocation3 + $0x618] sm:$0x7]
        %v10848 = vmul.f32 %v10829, %v9897
        %v10849 = vmul.f32 %v10830, %v9899
        %v10850 = vmul.f32 %v10831, %v9901
        %v10851 = vmul.f32 %v10832, %v9903
        %v10852 = vmul.f32 %v10833, %v9905
        %v10853 = vmul.f32 %v10834, %v9907
        %v10854 = vmul.f32 %v10835, %v9909
        %v10855 = vmul.f32 %v10836, %v9911
        %v10856 = vmul.f32 %v10837, %v9913
        %v10857 = vmul.f32 %v10838, %v9915
        %v10858 = vmul.f32 %v10839, %v9917
        %v10859 = vmul.f32 %v10840, %v9919
        %v10860 = vmul.f32 %v10841, %v9921
        %v10861 = vmul.f32 %v10842, %v9923
        %v10862 = vmul.f32 %v10843, %v9925
        %v10863 = vmul.f32 %v10844, %v9927
        %v10864 = vmul.f32 %v10845, %v9929
        %v10865 = vmul.f32 %v10846, %v9931
        %v10866 = vmul.f32 %v10847, %v9930
        %v10867 = vadd.f32 %v10810, %v10848
        %v10868 = vadd.f32 %v10811, %v10849
        %v10869 = vadd.f32 %v10812, %v10850
        %v10870 = vadd.f32 %v10813, %v10851
        %v10871 = vadd.f32 %v10814, %v10852
        %v10872 = vadd.f32 %v10815, %v10853
        %v10873 = vadd.f32 %v10816, %v10854
        %v10874 = vadd.f32 %v10817, %v10855
        %v10875 = vadd.f32 %v10818, %v10856
        %v10876 = vadd.f32 %v10819, %v10857
        %v10877 = vadd.f32 %v10820, %v10858
        %v10878 = vadd.f32 %v10821, %v10859
        %v10879 = vadd.f32 %v10822, %v10860
        %v10880 = vadd.f32 %v10823, %v10861
        %v10881 = vadd.f32 %v10824, %v10862
        %v10882 = vadd.f32 %v10825, %v10863
        %v10883 = vadd.f32 %v10826, %v10864
        %v10884 = vadd.f32 %v10827, %v10865
        %v10885 = vadd.f32 %v10828, %v10866
        %v10886 = vld [vmem:[#allocation3 + $0x110] sm:$0xf0]
        %v10887 = vld [vmem:[#allocation3 + $0x158] sm:$0xff]
        %v10888 = vld [vmem:[#allocation3 + $0x1a0] sm:$0xff]
        %v10889 = vld [vmem:[#allocation3 + $0x1e8] sm:$0xff]
        %v10890 = vld [vmem:[#allocation3 + $0x230] sm:$0xff]
        %v10891 = vld [vmem:[#allocation3 + $0x278] sm:$0xff]
        %v10892 = vld [vmem:[#allocation3 + $0x2c0] sm:$0xff]
        %v10893 = vld [vmem:[#allocation3 + $0x308] sm:$0xff]
        %v10894 = vld [vmem:[#allocation3 + $0x350] sm:$0xff]
        %v10895 = vld [vmem:[#allocation3 + $0x398] sm:$0xff]
        %v10896 = vld [vmem:[#allocation3 + $0x3e0] sm:$0xff]
        %v10897 = vld [vmem:[#allocation3 + $0x428] sm:$0xff]
        %v10898 = vld [vmem:[#allocation3 + $0x470] sm:$0xff]
        %v10899 = vld [vmem:[#allocation3 + $0x4b8] sm:$0xff]
        %v10900 = vld [vmem:[#allocation3 + $0x500] sm:$0xff]
        %v10901 = vld [vmem:[#allocation3 + $0x548] sm:$0xff]
        %v10902 = vld [vmem:[#allocation3 + $0x590] sm:$0xff]
        %v10903 = vld [vmem:[#allocation3 + $0x5d8] sm:$0xff]
        %v10904 = vld [vmem:[#allocation3 + $0x620] sm:$0xf]
        %v10924 = vrot.slane %v10886, 1
        %v10925 = vrot.slane %v10887, 1
        %v10926 = vsel %vm10027, %v10924, %v10925
        %v10927 = vrot.slane %v10888, 1
        %v10928 = vsel %vm10027, %v10925, %v10927
        %v10929 = vrot.slane %v10889, 1
        %v10930 = vsel %vm10027, %v10927, %v10929
        %v10931 = vrot.slane %v10890, 1
        %v10932 = vsel %vm10027, %v10929, %v10931
        %v10933 = vrot.slane %v10891, 1
        %v10934 = vsel %vm10027, %v10931, %v10933
        %v10935 = vrot.slane %v10892, 1
        %v10936 = vsel %vm10027, %v10933, %v10935
        %v10937 = vrot.slane %v10893, 1
        %v10938 = vsel %vm10027, %v10935, %v10937
        %v10939 = vrot.slane %v10894, 1
        %v10940 = vsel %vm10027, %v10937, %v10939
        %v10941 = vrot.slane %v10895, 1
        %v10942 = vsel %vm10027, %v10939, %v10941
        %v10943 = vrot.slane %v10896, 1
        %v10944 = vsel %vm10027, %v10941, %v10943
        %v10945 = vrot.slane %v10897, 1
        %v10946 = vsel %vm10027, %v10943, %v10945
        %v10947 = vrot.slane %v10898, 1
        %v10948 = vsel %vm10027, %v10945, %v10947
        %v10949 = vrot.slane %v10899, 1
        %v10950 = vsel %vm10027, %v10947, %v10949
        %v10951 = vrot.slane %v10900, 1
        %v10952 = vsel %vm10027, %v10949, %v10951
        %v10953 = vrot.slane %v10901, 1
        %v10954 = vsel %vm10027, %v10951, %v10953
        %v10955 = vrot.slane %v10902, 1
        %v10956 = vsel %vm10027, %v10953, %v10955
        %v10957 = vrot.slane %v10903, 1
        %v10958 = vsel %vm10027, %v10955, %v10957
        %v10959 = vrot.slane %v10904, 1
        %v10960 = vsel %vm10027, %v10957, %v10959
        %v10980 = vadd.f32 %v10867, %v10926
        %v10981 = vadd.f32 %v10868, %v10928
        %v10982 = vadd.f32 %v10869, %v10930
        %v10983 = vadd.f32 %v10870, %v10932
        %v10984 = vadd.f32 %v10871, %v10934
        %v10985 = vadd.f32 %v10872, %v10936
        %v10986 = vadd.f32 %v10873, %v10938
        %v10987 = vadd.f32 %v10874, %v10940
        %v10988 = vadd.f32 %v10875, %v10942
        %v10989 = vadd.f32 %v10876, %v10944
        %v10990 = vadd.f32 %v10877, %v10946
        %v10991 = vadd.f32 %v10878, %v10948
        %v10992 = vadd.f32 %v10879, %v10950
        %v10993 = vadd.f32 %v10880, %v10952
        %v10994 = vadd.f32 %v10881, %v10954
        %v10995 = vadd.f32 %v10882, %v10956
        %v10996 = vadd.f32 %v10883, %v10958
        %v10997 = vadd.f32 %v10884, %v10960
        %v10998 = vadd.f32 %v10885, %v10959
        %v10999 = vld [vmem:[#allocation3 + $0x118] sm:$0xe0]
        %v11000 = vld [vmem:[#allocation3 + $0x160] sm:$0xff]
        %v11001 = vld [vmem:[#allocation3 + $0x1a8] sm:$0xff]
        %v11002 = vld [vmem:[#allocation3 + $0x1f0] sm:$0xff]
        %v11003 = vld [vmem:[#allocation3 + $0x238] sm:$0xff]
        %v11004 = vld [vmem:[#allocation3 + $0x280] sm:$0xff]
        %v11005 = vld [vmem:[#allocation3 + $0x2c8] sm:$0xff]
        %v11006 = vld [vmem:[#allocation3 + $0x310] sm:$0xff]
        %v11007 = vld [vmem:[#allocation3 + $0x358] sm:$0xff]
        %v11008 = vld [vmem:[#allocation3 + $0x3a0] sm:$0xff]
        %v11009 = vld [vmem:[#allocation3 + $0x3e8] sm:$0xff]
        %v11010 = vld [vmem:[#allocation3 + $0x430] sm:$0xff]
        %v11011 = vld [vmem:[#allocation3 + $0x478] sm:$0xff]
        %v11012 = vld [vmem:[#allocation3 + $0x4c0] sm:$0xff]
        %v11013 = vld [vmem:[#allocation3 + $0x508] sm:$0xff]
        %v11014 = vld [vmem:[#allocation3 + $0x550] sm:$0xff]
        %v11015 = vld [vmem:[#allocation3 + $0x598] sm:$0xff]
        %v11016 = vld [vmem:[#allocation3 + $0x5e0] sm:$0xff]
        %v11017 = vld [vmem:[#allocation3 + $0x628] sm:$0x1f]
        %v11018 = vmul.f32 %v10999, %v10177
        %v11019 = vmul.f32 %v11000, %v10179
        %v11020 = vmul.f32 %v11001, %v10181
        %v11021 = vmul.f32 %v11002, %v10183
        %v11022 = vmul.f32 %v11003, %v10185
        %v11023 = vmul.f32 %v11004, %v10187
        %v11024 = vmul.f32 %v11005, %v10189
        %v11025 = vmul.f32 %v11006, %v10191
        %v11026 = vmul.f32 %v11007, %v10193
        %v11027 = vmul.f32 %v11008, %v10195
        %v11028 = vmul.f32 %v11009, %v10197
        %v11029 = vmul.f32 %v11010, %v10199
        %v11030 = vmul.f32 %v11011, %v10201
        %v11031 = vmul.f32 %v11012, %v10203
        %v11032 = vmul.f32 %v11013, %v10205
        %v11033 = vmul.f32 %v11014, %v10207
        %v11034 = vmul.f32 %v11015, %v10209
        %v11035 = vmul.f32 %v11016, %v10211
        %v11036 = vmul.f32 %v11017, %v10210
        %v11056 = vrot.slane %v11018, 2
        %v11057 = vrot.slane %v11019, 2
        %v11058 = vsel %vm10269, %v11056, %v11057
        %v11059 = vrot.slane %v11020, 2
        %v11060 = vsel %vm10269, %v11057, %v11059
        %v11061 = vrot.slane %v11021, 2
        %v11062 = vsel %vm10269, %v11059, %v11061
        %v11063 = vrot.slane %v11022, 2
        %v11064 = vsel %vm10269, %v11061, %v11063
        %v11065 = vrot.slane %v11023, 2
        %v11066 = vsel %vm10269, %v11063, %v11065
        %v11067 = vrot.slane %v11024, 2
        %v11068 = vsel %vm10269, %v11065, %v11067
        %v11069 = vrot.slane %v11025, 2
        %v11070 = vsel %vm10269, %v11067, %v11069
        %v11071 = vrot.slane %v11026, 2
        %v11072 = vsel %vm10269, %v11069, %v11071
        %v11073 = vrot.slane %v11027, 2
        %v11074 = vsel %vm10269, %v11071, %v11073
        %v11075 = vrot.slane %v11028, 2
        %v11076 = vsel %vm10269, %v11073, %v11075
        %v11077 = vrot.slane %v11029, 2
        %v11078 = vsel %vm10269, %v11075, %v11077
        %v11079 = vrot.slane %v11030, 2
        %v11080 = vsel %vm10269, %v11077, %v11079
        %v11081 = vrot.slane %v11031, 2
        %v11082 = vsel %vm10269, %v11079, %v11081
        %v11083 = vrot.slane %v11032, 2
        %v11084 = vsel %vm10269, %v11081, %v11083
        %v11085 = vrot.slane %v11033, 2
        %v11086 = vsel %vm10269, %v11083, %v11085
        %v11087 = vrot.slane %v11034, 2
        %v11088 = vsel %vm10269, %v11085, %v11087
        %v11089 = vrot.slane %v11035, 2
        %v11090 = vsel %vm10269, %v11087, %v11089
        %v11091 = vrot.slane %v11036, 2
        %v11092 = vsel %vm10269, %v11089, %v11091
        %v11112 = vadd.f32 %v10980, %v11058
        %v11113 = vadd.f32 %v10981, %v11060
        %v11114 = vadd.f32 %v10982, %v11062
        %v11115 = vadd.f32 %v10983, %v11064
        %v11116 = vadd.f32 %v10984, %v11066
        %v11117 = vadd.f32 %v10985, %v11068
        %v11118 = vadd.f32 %v10986, %v11070
        %v11119 = vadd.f32 %v10987, %v11072
        %v11120 = vadd.f32 %v10988, %v11074
        %v11121 = vadd.f32 %v10989, %v11076
        %v11122 = vadd.f32 %v10990, %v11078
        %v11123 = vadd.f32 %v10991, %v11080
        %v11124 = vadd.f32 %v10992, %v11082
        %v11125 = vadd.f32 %v10993, %v11084
        %v11126 = vadd.f32 %v10994, %v11086
        %v11127 = vadd.f32 %v10995, %v11088
        %v11128 = vadd.f32 %v10996, %v11090
        %v11129 = vadd.f32 %v10997, %v11092
        %v11130 = vadd.f32 %v10998, %v11091
        %v11131 = vld [vmem:[#allocation15] sm:$0x1]
        %v11133 = vlaneseq
        %v11134 = vshrl.u32 %v11133, 7
        %v11135 = vsub.s32 0, %v11134
        %v11136 = vrot.slane %v11131, %v11135
        %v11138 = vadd.f32 %v11112, %v11136
        %v11139 = vadd.f32 %v11113, %v11136
        %v11140 = vadd.f32 %v11114, %v11136
        %v11141 = vadd.f32 %v11115, %v11136
        %v11142 = vadd.f32 %v11116, %v11136
        %v11143 = vadd.f32 %v11117, %v11136
        %v11144 = vadd.f32 %v11118, %v11136
        %v11145 = vadd.f32 %v11119, %v11136
        %v11146 = vadd.f32 %v11120, %v11136
        %v11147 = vadd.f32 %v11121, %v11136
        %v11148 = vadd.f32 %v11122, %v11136
        %v11149 = vadd.f32 %v11123, %v11136
        %v11150 = vadd.f32 %v11124, %v11136
        %v11151 = vadd.f32 %v11125, %v11136
        %v11152 = vadd.f32 %v11126, %v11136
        %v11153 = vadd.f32 %v11127, %v11136
        %v11154 = vadd.f32 %v11128, %v11136
        %v11155 = vadd.f32 %v11129, %v11136
        %v11156 = vadd.f32 %v11130, %v11136
        %v11157 = vmax.f32 %v11138, 0.0
        %v11158 = vmax.f32 %v11139, 0.0
        %v11159 = vmax.f32 %v11140, 0.0
        %v11160 = vmax.f32 %v11141, 0.0
        %v11161 = vmax.f32 %v11142, 0.0
        %v11162 = vmax.f32 %v11143, 0.0
        %v11163 = vmax.f32 %v11144, 0.0
        %v11164 = vmax.f32 %v11145, 0.0
        %v11165 = vmax.f32 %v11146, 0.0
        %v11166 = vmax.f32 %v11147, 0.0
        %v11167 = vmax.f32 %v11148, 0.0
        %v11168 = vmax.f32 %v11149, 0.0
        %v11169 = vmax.f32 %v11150, 0.0
        %v11170 = vmax.f32 %v11151, 0.0
        %v11171 = vmax.f32 %v11152, 0.0
        %v11172 = vmax.f32 %v11153, 0.0
        %v11173 = vmax.f32 %v11154, 0.0
        %v11174 = vmax.f32 %v11155, 0.0
        %v11175 = vmax.f32 %v11156, 0.0
        %v11176 = vpack.c.bf16 %v11158, %v11157
        %v11177 = vpack.c.bf16 %v11160, %v11159
        %v11178 = vpack.c.bf16 %v11162, %v11161
        %v11179 = vpack.c.bf16 %v11164, %v11163
        %v11180 = vpack.c.bf16 %v11166, %v11165
        %v11181 = vpack.c.bf16 %v11168, %v11167
        %v11182 = vpack.c.bf16 %v11170, %v11169
        %v11183 = vpack.c.bf16 %v11172, %v11171
        %v11184 = vpack.c.bf16 %v11174, %v11173
        %v11185 = vpack.c.bf16 %v11175, %v11175
        %v11196 = vunpack.c.l.b16 %v11176
        %v11197 = vunpack.c.h.b16 %v11176
        %v11198 = vunpack.c.l.b16 %v11177
        %v11199 = vunpack.c.h.b16 %v11177
        %v11200 = vunpack.c.l.b16 %v11178
        %v11201 = vunpack.c.h.b16 %v11178
        %v11202 = vunpack.c.l.b16 %v11179
        %v11203 = vunpack.c.h.b16 %v11179
        %v11204 = vunpack.c.l.b16 %v11180
        %v11205 = vunpack.c.h.b16 %v11180
        %v11206 = vunpack.c.l.b16 %v11181
        %v11207 = vunpack.c.h.b16 %v11181
        %v11208 = vunpack.c.l.b16 %v11182
        %v11209 = vunpack.c.h.b16 %v11182
        %v11210 = vunpack.c.l.b16 %v11183
        %v11211 = vunpack.c.h.b16 %v11183
        %v11212 = vunpack.c.l.b16 %v11184
        %v11213 = vunpack.c.h.b16 %v11184
        %v11214 = vunpack.c.l.b16 %v11185
        %v11215 = vpack.c.b16 %v11196, %v11196
        %v11216 = vpack.c.b16 %v11197, %v11197
        %v11217 = vpack.c.b16 %v11198, %v11198
        %v11218 = vpack.c.b16 %v11199, %v11199
        %v11219 = vpack.c.b16 %v11200, %v11200
        %v11220 = vpack.c.b16 %v11201, %v11201
        %v11221 = vpack.c.b16 %v11202, %v11202
        %v11222 = vpack.c.b16 %v11203, %v11203
        %v11223 = vpack.c.b16 %v11204, %v11204
        %v11224 = vpack.c.b16 %v11205, %v11205
        %v11225 = vpack.c.b16 %v11206, %v11206
        %v11226 = vpack.c.b16 %v11207, %v11207
        %v11227 = vpack.c.b16 %v11208, %v11208
        %v11228 = vpack.c.b16 %v11209, %v11209
        %v11229 = vpack.c.b16 %v11210, %v11210
        %v11230 = vpack.c.b16 %v11211, %v11211
        %v11231 = vpack.c.b16 %v11212, %v11212
        %v11232 = vpack.c.b16 %v11213, %v11213
        %v11233 = vpack.c.b16 %v11214, %v11214
        %vm11234 = vsmask.f32 2304
        %vm11235 = vsmask.f32 6416
        %vm11236 = vmor %vm11234, %vm11235
        %v11238 = vshrl.u32 %v11215, 16
        %v11240 = vrot.slane %v11238, 5
        %v11241 = vshll.u32 %v11215, 16
        %v11243 = vrot.slane %v11241, 6
        %v11244 = vor.u32 %v11240, %v11243
        %v11245 = vrot.slane %v11244, 4
        %v11247 = vshrl.u32 %v11216, 16
        %v11249 = vrot.slane %v11247, 5
        %v11250 = vshll.u32 %v11216, 16
        %v11252 = vrot.slane %v11250, 6
        %v11253 = vor.u32 %v11249, %v11252
        %v11254 = vsel %vm11236, %v11245, %v11253
        %v11255 = vrot.slane %v11253, 4
        %v11257 = vshrl.u32 %v11217, 16
        %v11259 = vrot.slane %v11257, 5
        %v11260 = vshll.u32 %v11217, 16
        %v11262 = vrot.slane %v11260, 6
        %v11263 = vor.u32 %v11259, %v11262
        %v11264 = vsel %vm11236, %v11255, %v11263
        %v11265 = vrot.slane %v11263, 4
        %v11267 = vshrl.u32 %v11218, 16
        %v11269 = vrot.slane %v11267, 5
        %v11270 = vshll.u32 %v11218, 16
        %v11272 = vrot.slane %v11270, 6
        %v11273 = vor.u32 %v11269, %v11272
        %v11274 = vsel %vm11236, %v11265, %v11273
        %v11275 = vrot.slane %v11273, 4
        %v11277 = vshrl.u32 %v11219, 16
        %v11279 = vrot.slane %v11277, 5
        %v11280 = vshll.u32 %v11219, 16
        %v11282 = vrot.slane %v11280, 6
        %v11283 = vor.u32 %v11279, %v11282
        %v11284 = vsel %vm11236, %v11275, %v11283
        %v11285 = vrot.slane %v11283, 4
        %v11287 = vshrl.u32 %v11220, 16
        %v11289 = vrot.slane %v11287, 5
        %v11290 = vshll.u32 %v11220, 16
        %v11292 = vrot.slane %v11290, 6
        %v11293 = vor.u32 %v11289, %v11292
        %v11294 = vsel %vm11236, %v11285, %v11293
        %v11295 = vrot.slane %v11293, 4
        %v11297 = vshrl.u32 %v11221, 16
        %v11299 = vrot.slane %v11297, 5
        %v11300 = vshll.u32 %v11221, 16
        %v11302 = vrot.slane %v11300, 6
        %v11303 = vor.u32 %v11299, %v11302
        %v11304 = vsel %vm11236, %v11295, %v11303
        %v11305 = vrot.slane %v11303, 4
        %v11307 = vshrl.u32 %v11222, 16
        %v11309 = vrot.slane %v11307, 5
        %v11310 = vshll.u32 %v11222, 16
        %v11312 = vrot.slane %v11310, 6
        %v11313 = vor.u32 %v11309, %v11312
        %v11314 = vsel %vm11236, %v11305, %v11313
        %v11315 = vrot.slane %v11313, 4
        %v11317 = vshrl.u32 %v11223, 16
        %v11319 = vrot.slane %v11317, 5
        %v11320 = vshll.u32 %v11223, 16
        %v11322 = vrot.slane %v11320, 6
        %v11323 = vor.u32 %v11319, %v11322
        %v11324 = vsel %vm11236, %v11315, %v11323
        %v11325 = vrot.slane %v11323, 4
        %v11327 = vshrl.u32 %v11224, 16
        %v11329 = vrot.slane %v11327, 5
        %v11330 = vshll.u32 %v11224, 16
        %v11332 = vrot.slane %v11330, 6
        %v11333 = vor.u32 %v11329, %v11332
        %v11334 = vsel %vm11236, %v11325, %v11333
        %v11335 = vrot.slane %v11333, 4
        %v11337 = vshrl.u32 %v11225, 16
        %v11339 = vrot.slane %v11337, 5
        %v11340 = vshll.u32 %v11225, 16
        %v11342 = vrot.slane %v11340, 6
        %v11343 = vor.u32 %v11339, %v11342
        %v11344 = vsel %vm11236, %v11335, %v11343
        %v11345 = vrot.slane %v11343, 4
        %v11347 = vshrl.u32 %v11226, 16
        %v11349 = vrot.slane %v11347, 5
        %v11350 = vshll.u32 %v11226, 16
        %v11352 = vrot.slane %v11350, 6
        %v11353 = vor.u32 %v11349, %v11352
        %v11354 = vsel %vm11236, %v11345, %v11353
        %v11355 = vrot.slane %v11353, 4
        %v11357 = vshrl.u32 %v11227, 16
        %v11359 = vrot.slane %v11357, 5
        %v11360 = vshll.u32 %v11227, 16
        %v11362 = vrot.slane %v11360, 6
        %v11363 = vor.u32 %v11359, %v11362
        %v11364 = vsel %vm11236, %v11355, %v11363
        %v11365 = vrot.slane %v11363, 4
        %v11367 = vshrl.u32 %v11228, 16
        %v11369 = vrot.slane %v11367, 5
        %v11370 = vshll.u32 %v11228, 16
        %v11372 = vrot.slane %v11370, 6
        %v11373 = vor.u32 %v11369, %v11372
        %v11374 = vsel %vm11236, %v11365, %v11373
        %v11375 = vrot.slane %v11373, 4
        %v11377 = vshrl.u32 %v11229, 16
        %v11379 = vrot.slane %v11377, 5
        %v11380 = vshll.u32 %v11229, 16
        %v11382 = vrot.slane %v11380, 6
        %v11383 = vor.u32 %v11379, %v11382
        %v11384 = vsel %vm11236, %v11375, %v11383
        %v11385 = vrot.slane %v11383, 4
        %v11387 = vshrl.u32 %v11230, 16
        %v11389 = vrot.slane %v11387, 5
        %v11390 = vshll.u32 %v11230, 16
        %v11392 = vrot.slane %v11390, 6
        %v11393 = vor.u32 %v11389, %v11392
        %v11394 = vsel %vm11236, %v11385, %v11393
        %v11395 = vrot.slane %v11393, 4
        %v11397 = vshrl.u32 %v11231, 16
        %v11399 = vrot.slane %v11397, 5
        %v11400 = vshll.u32 %v11231, 16
        %v11402 = vrot.slane %v11400, 6
        %v11403 = vor.u32 %v11399, %v11402
        %v11404 = vsel %vm11236, %v11395, %v11403
        %v11405 = vrot.slane %v11403, 4
        %v11407 = vshrl.u32 %v11232, 16
        %v11409 = vrot.slane %v11407, 5
        %v11410 = vshll.u32 %v11232, 16
        %v11412 = vrot.slane %v11410, 6
        %v11413 = vor.u32 %v11409, %v11412
        %v11414 = vsel %vm11236, %v11405, %v11413
        %v11415 = vrot.slane %v11413, 4
        %v11417 = vshrl.u32 %v11233, 16
        %v11419 = vrot.slane %v11417, 5
        %v11420 = vshll.u32 %v11233, 16
        %v11422 = vrot.slane %v11420, 6
        %v11423 = vor.u32 %v11419, %v11422
        %v11424 = vsel %vm11236, %v11415, %v11423
        %11443 = vst [vmem:[%s433] sm:$0xf] %v11254
        %11444 = vst [vmem:[%s433 + $0x4] sm:$0xf] %v11264
        %11445 = vst [vmem:[%s433 + $0x8] sm:$0xf] %v11274
        %11446 = vst [vmem:[%s433 + $0xc] sm:$0xf] %v11284
        %11447 = vst [vmem:[%s433 + $0x10] sm:$0xf] %v11294
        %11448 = vst [vmem:[%s433 + $0x14] sm:$0xf] %v11304
        %11449 = vst [vmem:[%s433 + $0x18] sm:$0xf] %v11314
        %11450 = vst [vmem:[%s433 + $0x1c] sm:$0xf] %v11324
        %11451 = vst [vmem:[%s433 + $0x20] sm:$0xf] %v11334
        %11452 = vst [vmem:[%s433 + $0x24] sm:$0xf] %v11344
        %11453 = vst [vmem:[%s433 + $0x28] sm:$0xf] %v11354
        %11454 = vst [vmem:[%s433 + $0x2c] sm:$0xf] %v11364
        %11455 = vst [vmem:[%s433 + $0x30] sm:$0xf] %v11374
        %11456 = vst [vmem:[%s433 + $0x34] sm:$0xf] %v11384
        %11457 = vst [vmem:[%s433 + $0x38] sm:$0xf] %v11394
        %11458 = vst [vmem:[%s433 + $0x3c] sm:$0xf] %v11404
        %11459 = vst [vmem:[%s433 + $0x40] sm:$0xf] %v11414
        %11460 = vst [vmem:[%s433 + $0x44] sm:$0xf] %v11424
        %s11461 = sand.u32 %s231, 1
        %s11462 = scalar_lea.sflag [#allocation6], %s11461
        %s11463 = sand.u32 %s231, 1
        %s11464 = smul.addr %s11463, 72
        %s11465 = scalar_lea.vmem [#allocation16], %s11464
        // Predicated region
        $region85: #{tpu_custom_call.1} parent=55 // pred_check
          %p11466 = pneg %p241
        $region86: #{tpu_custom_call.1} parent=55 // pred_check_branch
          %11468 = sbr.rel (%p11466) target = $region88
        $region87: #{tpu_custom_call.1} parent=55 // pred_region
          %s11470 = ssub.s32 1152, 1152
          %11471 = vsyncadd %s11462, %s11470
          %s11472 = smul.addr %s29, 18
          %s11473 = smul.addr %s11472, 64
          %s11474 = scalar_lea.hbm %s9, %s11473
          %s11475 = sshll.u32 %s11465, 4
          %s11476 = int_to_ptr.vmem [resolvable:$true] %s11475
          %11481 = dma.vmem_to_hbm [thread:$0]  %s11476, 1152, %s11474, %s11462, 64, 64, 4
        $region88: #{tpu_custom_call.1} parent=55 // pred_fallthru
          _
      $region56: #{tpu_custom_call.1} parent=5 // pred_fallthru
        _
      %p11482 = scmp.le.s32.totalorder 2, %s24
      // Predicated region
      $region89: #{tpu_custom_call.1} parent=5 // pred_check
        %p11483 = pneg %p11482
      $region90: #{tpu_custom_call.1} parent=5 // pred_check_branch
        %11485 = sbr.rel (%p11483) target = $region92
      $region91: #{tpu_custom_call.1} parent=5 // pred_region
        %s11486 = ssub.s32 %s24, 2
        // Predicated region
        $region93: #{tpu_custom_call.1} parent=91 // pred_check
          %p11487 = pneg %p247
        $region94: #{tpu_custom_call.1} parent=91 // pred_check_branch
          %11489 = sbr.rel (%p11487) target = $region96
        $region95: #{tpu_custom_call.1} parent=91 // pred_region
          %s11490 = sand.u32 %s232, 1
          %s11491 = scalar_lea.sflag [#allocation6], %s11490
          %s11492 = sand.u32 %s232, 1
          %s11493 = smul.addr %s11492, 72
          %s11494 = scalar_lea.vmem [#allocation16], %s11493
          %11495 = dma.done %s11491, 1152
        $region96: #{tpu_custom_call.1} parent=91 // pred_fallthru
          _
      $region92: #{tpu_custom_call.1} parent=5 // pred_fallthru
        _
    $region6: #{tpu_custom_call.1} parent=1 // loop_footer
      %s28 = sadd.s32 1, %s24
    $region7: #{tpu_custom_call.1} parent=1 // loop_footer_branch
      %23 = sbr.rel target = $region3
    $region8: #{tpu_custom_call.1} parent=1 // loop_exit
      _
    %11496 = vsyncpa [#allocation5], 1
    %s11497 = scalar_lea.sflag [#allocation5], 1
    %11498 = vsyncpa %s11497, 1
    %11499 = vsyncpa [#allocation8], 1
    %11500 = vsyncpa [#allocation11], 1
    %11501 = vsyncpa [#allocation14], 1
    %11502 = vsyncpa [#allocation6], 1
    %s11503 = scalar_lea.sflag [#allocation6], 1
    %11504 = vsyncpa %s11503, 1

</llo_original>
